<compile_context>
chip_gen: v6e
topology: v6e:2x2x1
jax: 0.10.0
libtpu: 0.0.40
codegen_flags: <defaults>
</compile_context>

<pallas_src>
import jax
import jax.numpy as jnp
from jax import lax
from jax.experimental import pallas as pl
from jax.experimental.pallas import tpu as pltpu

# ---- module hyperparameters (from the PyTorch source) ----
N_EMBD = 192
N_HEAD = 3
HEAD_SIZE = N_EMBD // N_HEAD      # 64
HIDDEN = 4 * N_EMBD               # 768
BLOCK_SIZE = 128                  # max sequence length (causal-mask buffer)
LN_EPS = 1e-5


def _layernorm(v, g, b):
    mu = jnp.mean(v, axis=-1, keepdims=True)
    var = jnp.mean((v - mu) ** 2, axis=-1, keepdims=True)
    return (v - mu) * lax.rsqrt(var + LN_EPS) * g + b


def make_block_kernel(b_blk, seq_len):
    T = seq_len
    M = b_blk * T  # rows fed to the big matmuls per grid step

    def kernel(x_ref,
               ln1g_ref, ln1b_ref,
               wqkv_ref,
               wp_ref, bp_ref,
               ln2g_ref, ln2b_ref,
               w1_ref, b1_ref, w2_ref, b2_ref,
               o_ref,
               qkv_scr, sa_scr):
        # ---- ln1 + fused QKV projection (single wide MXU matmul) ----
        xn = _layernorm(x_ref[...].reshape(M, N_EMBD),
                        ln1g_ref[...], ln1b_ref[...])
        qkv_scr[...] = jnp.dot(
            xn.astype(jnp.bfloat16), wqkv_ref[...],
            preferred_element_type=jnp.float32).astype(jnp.bfloat16)

        # NOTE: module scales by C**-0.5 with C = n_embd (not head_size), per spec.
        scale = jnp.float32(N_EMBD ** -0.5)
        row = lax.broadcasted_iota(jnp.int32, (T, T), 0)
        col = lax.broadcasted_iota(jnp.int32, (T, T), 1)
        causal_bias = jnp.where(row >= col,
                                jnp.float32(0.0), jnp.float32(-1e30))
        wp = wp_ref[...]                                      # (C, C) bf16, hoisted
        dn = (((1,), (1,)), ((), ()))                         # q @ k^T, no transpose

        def attend(b):
            r0 = b * T
            if not isinstance(r0, int):
                r0 = pl.multiple_of(r0, T)
            acc = None
            for h in range(N_HEAD):                           # static unroll (3)
                c0 = h * HEAD_SIZE
                qh = qkv_scr[pl.ds(r0, T), pl.ds(c0, HEAD_SIZE)]
                kh = qkv_scr[pl.ds(r0, T), pl.ds(N_EMBD + c0, HEAD_SIZE)]
                vh = qkv_scr[pl.ds(r0, T), pl.ds(2 * N_EMBD + c0, HEAD_SIZE)]

                s = lax.dot_general(qh, kh, dn,
                                    preferred_element_type=jnp.float32)
                s = s * scale + causal_bias
                s = s - jnp.max(s, axis=-1, keepdims=True)
                p = jnp.exp(s)
                p = p * pl.reciprocal(jnp.sum(p, axis=-1, keepdims=True),
                                      approx=True)

                ho = jnp.dot(p.astype(jnp.bfloat16), vh,
                             preferred_element_type=jnp.float32)    # (T, hs)
                # concat(head_outs) @ Wp == sum_h head_h @ Wp[h*hs:(h+1)*hs, :]
                contrib = jnp.dot(ho.astype(jnp.bfloat16),
                                  wp[c0:c0 + HEAD_SIZE, :],
                                  preferred_element_type=jnp.float32)
                acc = contrib if acc is None else acc + contrib
            sa_scr[pl.ds(r0, T), :] = acc

        if b_blk == 1:
            attend(0)
        else:
            def body(b, carry):
                attend(b)
                return carry
            lax.fori_loop(0, b_blk, body, 0,
                          unroll=2 if b_blk % 2 == 0 else 1)

        # ---- residual 1 + ln2 + feed-forward + residual 2 ----
        x1 = x_ref[...].reshape(M, N_EMBD) + sa_scr[...] + bp_ref[...]
        x1n = _layernorm(x1, ln2g_ref[...], ln2b_ref[...]).astype(jnp.bfloat16)
        h1 = jnp.maximum(
            jnp.dot(x1n, w1_ref[...], preferred_element_type=jnp.float32)
            + b1_ref[...], 0.0).astype(jnp.bfloat16)                 # bias+ReLU+cast fused
        ff = jnp.dot(h1, w2_ref[...],
                     preferred_element_type=jnp.float32) + b2_ref[...]

        o_ref[...] = (x1 + ff).reshape(b_blk, T, N_EMBD)

    return kernel


def _fuse_heads(w):
    """(N_HEAD, C, HS) -> (C, N_HEAD*HS) with column order matching torch.cat(heads)."""
    return jnp.transpose(w, (1, 0, 2)).reshape(N_EMBD, N_HEAD * HEAD_SIZE)


def _pick_batch_block(B, T, max_rows=512):
    """Largest batch block with M = bb*T <= max_rows, preferring grid length >= 2
    (both v7x TensorCores get work); falls back to the fattest block otherwise."""
    best_any, best_multi = 1, 0
    for d in range(1, B + 1):
        if B % d or d * T > max_rows:
            continue
        best_any = d
        if B // d >= 2:
            best_multi = d
    return best_multi if best_multi else best_any


def transformer_block(x, params, batch_block=None):
    """x: (B, T, C) float32.  Returns (B, T, C) float32."""
    B, T, C = x.shape
    assert C == N_EMBD and T <= BLOCK_SIZE and T % 8 == 0

    if batch_block is None:
        batch_block = _pick_batch_block(B, T)
    assert B % batch_block == 0
    grid = (B // batch_block,)
    M = batch_block * T

    (ln1_g, ln1_b, wq, wk, wv, wp, bp, ln2_g, ln2_b, w1, b1, w2, b2) = params

    # Fuse per-head weights into one (C, 3C) Q|K|V slab; cast matmul weights to bf16.
    wqkv = jnp.concatenate(
        [_fuse_heads(wq), _fuse_heads(wk), _fuse_heads(wv)],
        axis=1).astype(jnp.bfloat16)
    wp_b = wp.astype(jnp.bfloat16)
    w1_b = w1.astype(jnp.bfloat16)
    w2_b = w2.astype(jnp.bfloat16)

    full = lambda shape: pl.BlockSpec(shape, lambda b: (0,) * len(shape))

    in_specs = [
        pl.BlockSpec((batch_block, T, C), lambda b: (b, 0, 0)),  # x
        full((1, C)), full((1, C)),                              # ln1 gamma/beta
        full((C, 3 * C)),                                        # fused Wqkv
        full((C, C)), full((1, C)),                              # proj W, b
        full((1, C)), full((1, C)),                              # ln2 gamma/beta
        full((C, HIDDEN)), full((1, HIDDEN)),                    # fc1 W, b
        full((HIDDEN, C)), full((1, C)),                         # fc2 W, b
    ]

    return pl.pallas_call(
        make_block_kernel(batch_block, T),
        out_shape=jax.ShapeDtypeStruct((B, T, C), jnp.float32),
        grid_spec=pltpu.PrefetchScalarGridSpec(
            num_scalar_prefetch=0,
            grid=grid,
            in_specs=in_specs,
            out_specs=pl.BlockSpec((batch_block, T, C), lambda b: (b, 0, 0)),
            scratch_shapes=[
                pltpu.VMEM((M, 3 * C), jnp.bfloat16),   # fused Q|K|V slab
                pltpu.VMEM((M, C), jnp.float32),        # attention-output accumulator
            ],
        ),
        compiler_params=pltpu.CompilerParams(
            dimension_semantics=("parallel",),
            vmem_limit_bytes=32 << 20,
        ),
    )(x, ln1_g, ln1_b, wqkv, wp_b, bp, ln2_g, ln2_b, w1_b, b1, w2_b, b2)


def make_params(key):
    ks = jax.random.split(key, 8)
    s = 0.02
    ln1_g = jnp.ones((1, N_EMBD), jnp.float32)
    ln1_b = jnp.zeros((1, N_EMBD), jnp.float32)
    wq = s * jax.random.normal(ks[0], (N_HEAD, N_EMBD, HEAD_SIZE), jnp.float32)
    wk = s * jax.random.normal(ks[1], (N_HEAD, N_EMBD, HEAD_SIZE), jnp.float32)
    wv = s * jax.random.normal(ks[2], (N_HEAD, N_EMBD, HEAD_SIZE), jnp.float32)
    wp = s * jax.random.normal(ks[3], (N_EMBD, N_EMBD), jnp.float32)
    bp = s * jax.random.normal(ks[4], (1, N_EMBD), jnp.float32)
    ln2_g = jnp.ones((1, N_EMBD), jnp.float32)
    ln2_b = jnp.zeros((1, N_EMBD), jnp.float32)
    w1 = s * jax.random.normal(ks[5], (N_EMBD, HIDDEN), jnp.float32)
    b1 = s * jax.random.normal(ks[6], (1, HIDDEN), jnp.float32)
    w2 = s * jax.random.normal(ks[7], (HIDDEN, N_EMBD), jnp.float32)
    b2 = jnp.zeros((1, N_EMBD), jnp.float32)
    return (ln1_g, ln1_b, wq, wk, wv, wp, bp, ln2_g, ln2_b, w1, b1, w2, b2)


def reference_block(x, params):
    (ln1_g, ln1_b, wq, wk, wv, wp, bp, ln2_g, ln2_b, w1, b1, w2, b2) = params
    B, T, C = x.shape
    xn = _layernorm(x, ln1_g, ln1_b)
    scale = C ** (-0.5)
    mask = jnp.tril(jnp.ones((T, T), bool))
    outs = []
    for h in range(N_HEAD):
        q = xn @ wq[h]
        k = xn @ wk[h]
        v = xn @ wv[h]
        wei = jnp.einsum("btd,bsd->bts", q, k) * scale
        wei = jnp.where(mask, wei, -jnp.inf)
        wei = jax.nn.softmax(wei, axis=-1)
        outs.append(jnp.einsum("bts,bsd->btd", wei, v))
    sa = jnp.concatenate(outs, axis=-1) @ wp + bp
    x1 = x + sa
    x1n = _layernorm(x1, ln2_g, ln2_b)
    ff = jnp.maximum(x1n @ w1 + b1, 0.0) @ w2 + b2
    return x1 + ff


if __name__ == "__main__":
    key = jax.random.PRNGKey(0)
    kx, kp = jax.random.split(key)
    B, T = 2, 128                       # T <= block_size (128)
    x = jax.random.normal(kx, (B, T, N_EMBD), jnp.float32)
    params = make_params(kp)

    out = transformer_block(x, params)
    out = jax.block_until_ready(out)

    ref = reference_block(x, params)
    assert out.shape == (B, T, N_EMBD)
    # bf16 MXU operands (f32 accumulation) -> tolerance relaxed vs. pure-f32 ref.
    assert jnp.allclose(out, ref, atol=2e-2, rtol=2e-2), float(
        jnp.max(jnp.abs(out - ref)))
    print("KERNEL_OK")
</pallas_src>

<mosaic_0001>
module attributes {stable_mosaic.version = 11 : i64} {
  func.func @kernel(%arg0: i32, %arg1: memref<1x128x192xf32, #tpu.memory_space<vmem>>, %arg2: memref<1x192xf32, #tpu.memory_space<vmem>>, %arg3: memref<1x192xf32, #tpu.memory_space<vmem>>, %arg4: memref<192x576xbf16, #tpu.memory_space<vmem>>, %arg5: memref<192x192xbf16, #tpu.memory_space<vmem>>, %arg6: memref<1x192xf32, #tpu.memory_space<vmem>>, %arg7: memref<1x192xf32, #tpu.memory_space<vmem>>, %arg8: memref<1x192xf32, #tpu.memory_space<vmem>>, %arg9: memref<192x768xbf16, #tpu.memory_space<vmem>>, %arg10: memref<1x768xf32, #tpu.memory_space<vmem>>, %arg11: memref<768x192xbf16, #tpu.memory_space<vmem>>, %arg12: memref<1x192xf32, #tpu.memory_space<vmem>>, %arg13: memref<1x128x192xf32, #tpu.memory_space<vmem>>, %arg14: memref<128x576xbf16, #tpu.memory_space<vmem>>, %arg15: memref<128x192xf32, #tpu.memory_space<vmem>>) attributes {dimension_semantics = [#tpu.dimension_semantics<parallel>], iteration_bounds = array<i64: 2>, scalar_prefetch = 0 : i64, scratch_operands = 2 : i64, tpu.core_type = #tpu.core_type<tc>, window_params = [{transform_indices = @transform_0, window_bounds = array<i64: 1, 128, 192>}, {pipeline_mode = #tpu.pipeline_mode<synchronous>, transform_indices = @transform_1, window_bounds = array<i64: 1, 192>}, {pipeline_mode = #tpu.pipeline_mode<synchronous>, transform_indices = @transform_2, window_bounds = array<i64: 1, 192>}, {pipeline_mode = #tpu.pipeline_mode<synchronous>, transform_indices = @transform_3, window_bounds = array<i64: 192, 576>}, {pipeline_mode = #tpu.pipeline_mode<synchronous>, transform_indices = @transform_4, window_bounds = array<i64: 192, 192>}, {pipeline_mode = #tpu.pipeline_mode<synchronous>, transform_indices = @transform_5, window_bounds = array<i64: 1, 192>}, {pipeline_mode = #tpu.pipeline_mode<synchronous>, transform_indices = @transform_6, window_bounds = array<i64: 1, 192>}, {pipeline_mode = #tpu.pipeline_mode<synchronous>, transform_indices = @transform_7, window_bounds = array<i64: 1, 192>}, {pipeline_mode = #tpu.pipeline_mode<synchronous>, transform_indices = @transform_8, window_bounds = array<i64: 192, 768>}, {pipeline_mode = #tpu.pipeline_mode<synchronous>, transform_indices = @transform_9, window_bounds = array<i64: 1, 768>}, {pipeline_mode = #tpu.pipeline_mode<synchronous>, transform_indices = @transform_10, window_bounds = array<i64: 768, 192>}, {pipeline_mode = #tpu.pipeline_mode<synchronous>, transform_indices = @transform_11, window_bounds = array<i64: 1, 192>}, {transform_indices = @transform_12, window_bounds = array<i64: 1, 128, 192>}]} {
    %c0 = arith.constant 0 : index
    %c0_0 = arith.constant 0 : index
    %c0_1 = arith.constant 0 : index
    %0 = vector.load %arg1[%c0, %c0_0, %c0_1] : memref<1x128x192xf32, #tpu.memory_space<vmem>>, vector<1x128x192xf32>
    %1 = vector.shape_cast %0 : vector<1x128x192xf32> to vector<128x192xf32>
    %c0_2 = arith.constant 0 : index
    %c0_3 = arith.constant 0 : index
    %2 = vector.load %arg2[%c0_2, %c0_3] : memref<1x192xf32, #tpu.memory_space<vmem>>, vector<1x192xf32>
    %c0_4 = arith.constant 0 : index
    %c0_5 = arith.constant 0 : index
    %3 = vector.load %arg3[%c0_4, %c0_5] : memref<1x192xf32, #tpu.memory_space<vmem>>, vector<1x192xf32>
    %cst = arith.constant dense<0.000000e+00> : vector<128xf32>
    %4 = vector.multi_reduction <add>, %1, %cst [1] : vector<128x192xf32> to vector<128xf32>
    %5 = vector.shape_cast %4 : vector<128xf32> to vector<128x1xf32>
    %cst_6 = arith.constant 1.920000e+02 : f32
    %6 = vector.broadcast %cst_6 : f32 to vector<128x1xf32>
    %7 = arith.divf %5, %6 : vector<128x1xf32>
    %8 = vector.broadcast %7 : vector<128x1xf32> to vector<128x192xf32>
    %9 = arith.subf %1, %8 : vector<128x192xf32>
    %10 = arith.mulf %9, %9 : vector<128x192xf32>
    %cst_7 = arith.constant dense<0.000000e+00> : vector<128xf32>
    %11 = vector.multi_reduction <add>, %10, %cst_7 [1] : vector<128x192xf32> to vector<128xf32>
    %12 = vector.shape_cast %11 : vector<128xf32> to vector<128x1xf32>
    %cst_8 = arith.constant 1.920000e+02 : f32
    %13 = vector.broadcast %cst_8 : f32 to vector<128x1xf32>
    %14 = arith.divf %12, %13 : vector<128x1xf32>
    %15 = vector.broadcast %7 : vector<128x1xf32> to vector<128x192xf32>
    %16 = arith.subf %1, %15 : vector<128x192xf32>
    %cst_9 = arith.constant 9.99999974E-6 : f32
    %17 = vector.broadcast %cst_9 : f32 to vector<128x1xf32>
    %18 = arith.addf %14, %17 : vector<128x1xf32>
    %19 = math.rsqrt %18 : vector<128x1xf32>
    %20 = vector.broadcast %19 : vector<128x1xf32> to vector<128x192xf32>
    %21 = arith.mulf %16, %20 : vector<128x192xf32>
    %22 = vector.broadcast %2 : vector<1x192xf32> to vector<128x192xf32>
    %23 = arith.mulf %21, %22 : vector<128x192xf32>
    %24 = vector.broadcast %3 : vector<1x192xf32> to vector<128x192xf32>
    %25 = arith.addf %23, %24 : vector<128x192xf32>
    %26 = arith.truncf %25 : vector<128x192xf32> to vector<128x192xbf16>
    %c0_10 = arith.constant 0 : index
    %c0_11 = arith.constant 0 : index
    %27 = vector.load %arg4[%c0_10, %c0_11] : memref<192x576xbf16, #tpu.memory_space<vmem>>, vector<192x576xbf16>
    %cst_12 = arith.constant dense<0.000000e+00> : vector<128x576xf32>
    %28 = tpu.matmul %26, %27, %cst_12 {dimension_numbers = #tpu.dot_dimension_numbers<[1], [0], [0], [1], [0, 0, 1, 1], [], []>} : vector<128x192xbf16>, vector<192x576xbf16>, vector<128x576xf32> -> vector<128x576xf32>
    %29 = arith.truncf %28 : vector<128x576xf32> to vector<128x576xbf16>
    %c0_13 = arith.constant 0 : index
    %c0_14 = arith.constant 0 : index
    %30 = vector.load %arg14[%c0_13, %c0_14] : memref<128x576xbf16, #tpu.memory_space<vmem>>, vector<128x576xbf16>
    tpu.vector_store %arg14[%c0_13, %c0_14], %29 {strides = array<i32>} : memref<128x576xbf16, #tpu.memory_space<vmem>>, vector<128x576xbf16>,
    %31 = tpu.iota {dimensions = array<i32: 0>} : vector<128x128xi32>
    %32 = tpu.iota {dimensions = array<i32: 1>} : vector<128x128xi32>
    %33 = arith.cmpi sge, %31, %32 : vector<128x128xi32>
    %cst_15 = arith.constant 0.000000e+00 : f32
    %cst_16 = arith.constant -1.000000e+30 : f32
    %34 = vector.broadcast %cst_15 : f32 to vector<128x128xf32>
    %35 = vector.broadcast %cst_16 : f32 to vector<128x128xf32>
    %36 = arith.select %33, %34, %35 : vector<128x128xi1>, vector<128x128xf32>
    %c0_17 = arith.constant 0 : index
    %c0_18 = arith.constant 0 : index
    %37 = vector.load %arg5[%c0_17, %c0_18] : memref<192x192xbf16, #tpu.memory_space<vmem>>, vector<192x192xbf16>
    %c0_19 = arith.constant 0 : index
    %c0_20 = arith.constant 0 : index
    %38 = vector.load %arg14[%c0_19, %c0_20] : memref<128x576xbf16, #tpu.memory_space<vmem>>, vector<128x64xbf16>
    %c0_21 = arith.constant 0 : index
    %c192 = arith.constant 192 : index
    %39 = vector.load %arg14[%c0_21, %c192] : memref<128x576xbf16, #tpu.memory_space<vmem>>, vector<128x64xbf16>
    %c0_22 = arith.constant 0 : index
    %c384 = arith.constant 384 : index
    %40 = vector.load %arg14[%c0_22, %c384] : memref<128x576xbf16, #tpu.memory_space<vmem>>, vector<128x64xbf16>
    %cst_23 = arith.constant dense<0.000000e+00> : vector<128x128xf32>
    %41 = tpu.matmul %38, %39, %cst_23 {dimension_numbers = #tpu.dot_dimension_numbers<[1], [1], [0], [0], [0, 0, 1, 0], [], []>} : vector<128x64xbf16>, vector<128x64xbf16>, vector<128x128xf32> -> vector<128x128xf32>
    %cst_24 = arith.constant 0.0721687824 : f32
    %42 = vector.broadcast %cst_24 : f32 to vector<128x128xf32>
    %43 = arith.mulf %41, %42 : vector<128x128xf32>
    %44 = arith.addf %43, %36 : vector<128x128xf32>
    %cst_25 = arith.constant dense<0xFF800000> : vector<128xf32>
    %45 = vector.multi_reduction <maximumf>, %44, %cst_25 [1] : vector<128x128xf32> to vector<128xf32>
    %46 = vector.shape_cast %45 : vector<128xf32> to vector<128x1xf32>
    %47 = vector.broadcast %46 : vector<128x1xf32> to vector<128x128xf32>
    %48 = arith.subf %44, %47 : vector<128x128xf32>
    %49 = math.exp %48 : vector<128x128xf32>
    %cst_26 = arith.constant dense<0.000000e+00> : vector<128xf32>
    %50 = vector.multi_reduction <add>, %49, %cst_26 [1] : vector<128x128xf32> to vector<128xf32>
    %51 = vector.shape_cast %50 : vector<128xf32> to vector<128x1xf32>
    %52 = tpu.reciprocal %51 {approx = true} : vector<128x1xf32> -> vector<128x1xf32>
    %53 = vector.broadcast %52 : vector<128x1xf32> to vector<128x128xf32>
    %54 = arith.mulf %49, %53 : vector<128x128xf32>
    %55 = arith.truncf %54 : vector<128x128xf32> to vector<128x128xbf16>
    %cst_27 = arith.constant dense<0.000000e+00> : vector<128x64xf32>
    %56 = tpu.matmul %55, %40, %cst_27 {dimension_numbers = #tpu.dot_dimension_numbers<[1], [0], [0], [1], [0, 0, 1, 1], [], []>} : vector<128x128xbf16>, vector<128x64xbf16>, vector<128x64xf32> -> vector<128x64xf32>
    %57 = arith.truncf %56 : vector<128x64xf32> to vector<128x64xbf16>
    %58 = vector.extract_strided_slice %37 {offsets = [0, 0], sizes = [64, 192], strides = [1, 1]} : vector<192x192xbf16> to vector<64x192xbf16>
    %cst_28 = arith.constant dense<0.000000e+00> : vector<128x192xf32>
    %59 = tpu.matmul %57, %58, %cst_28 {dimension_numbers = #tpu.dot_dimension_numbers<[1], [0], [0], [1], [0, 0, 1, 1], [], []>} : vector<128x64xbf16>, vector<64x192xbf16>, vector<128x192xf32> -> vector<128x192xf32>
    %c0_29 = arith.constant 0 : index
    %c64 = arith.constant 64 : index
    %60 = vector.load %arg14[%c0_29, %c64] : memref<128x576xbf16, #tpu.memory_space<vmem>>, vector<128x64xbf16>
    %c0_30 = arith.constant 0 : index
    %c256 = arith.constant 256 : index
    %61 = vector.load %arg14[%c0_30, %c256] : memref<128x576xbf16, #tpu.memory_space<vmem>>, vector<128x64xbf16>
    %c0_31 = arith.constant 0 : index
    %c448 = arith.constant 448 : index
    %62 = vector.load %arg14[%c0_31, %c448] : memref<128x576xbf16, #tpu.memory_space<vmem>>, vector<128x64xbf16>
    %cst_32 = arith.constant dense<0.000000e+00> : vector<128x128xf32>
    %63 = tpu.matmul %60, %61, %cst_32 {dimension_numbers = #tpu.dot_dimension_numbers<[1], [1], [0], [0], [0, 0, 1, 0], [], []>} : vector<128x64xbf16>, vector<128x64xbf16>, vector<128x128xf32> -> vector<128x128xf32>
    %cst_33 = arith.constant 0.0721687824 : f32
    %64 = vector.broadcast %cst_33 : f32 to vector<128x128xf32>
    %65 = arith.mulf %63, %64 : vector<128x128xf32>
    %66 = arith.addf %65, %36 : vector<128x128xf32>
    %cst_34 = arith.constant dense<0xFF800000> : vector<128xf32>
    %67 = vector.multi_reduction <maximumf>, %66, %cst_34 [1] : vector<128x128xf32> to vector<128xf32>
    %68 = vector.shape_cast %67 : vector<128xf32> to vector<128x1xf32>
    %69 = vector.broadcast %68 : vector<128x1xf32> to vector<128x128xf32>
    %70 = arith.subf %66, %69 : vector<128x128xf32>
    %71 = math.exp %70 : vector<128x128xf32>
    %cst_35 = arith.constant dense<0.000000e+00> : vector<128xf32>
    %72 = vector.multi_reduction <add>, %71, %cst_35 [1] : vector<128x128xf32> to vector<128xf32>
    %73 = vector.shape_cast %72 : vector<128xf32> to vector<128x1xf32>
    %74 = tpu.reciprocal %73 {approx = true} : vector<128x1xf32> -> vector<128x1xf32>
    %75 = vector.broadcast %74 : vector<128x1xf32> to vector<128x128xf32>
    %76 = arith.mulf %71, %75 : vector<128x128xf32>
    %77 = arith.truncf %76 : vector<128x128xf32> to vector<128x128xbf16>
    %cst_36 = arith.constant dense<0.000000e+00> : vector<128x64xf32>
    %78 = tpu.matmul %77, %62, %cst_36 {dimension_numbers = #tpu.dot_dimension_numbers<[1], [0], [0], [1], [0, 0, 1, 1], [], []>} : vector<128x128xbf16>, vector<128x64xbf16>, vector<128x64xf32> -> vector<128x64xf32>
    %79 = arith.truncf %78 : vector<128x64xf32> to vector<128x64xbf16>
    %80 = vector.extract_strided_slice %37 {offsets = [64, 0], sizes = [64, 192], strides = [1, 1]} : vector<192x192xbf16> to vector<64x192xbf16>
    %cst_37 = arith.constant dense<0.000000e+00> : vector<128x192xf32>
    %81 = tpu.matmul %79, %80, %cst_37 {dimension_numbers = #tpu.dot_dimension_numbers<[1], [0], [0], [1], [0, 0, 1, 1], [], []>} : vector<128x64xbf16>, vector<64x192xbf16>, vector<128x192xf32> -> vector<128x192xf32>
    %82 = arith.addf %59, %81 : vector<128x192xf32>
    %c0_38 = arith.constant 0 : index
    %c128 = arith.constant 128 : index
    %83 = vector.load %arg14[%c0_38, %c128] : memref<128x576xbf16, #tpu.memory_space<vmem>>, vector<128x64xbf16>
    %c0_39 = arith.constant 0 : index
    %c320 = arith.constant 320 : index
    %84 = vector.load %arg14[%c0_39, %c320] : memref<128x576xbf16, #tpu.memory_space<vmem>>, vector<128x64xbf16>
    %c0_40 = arith.constant 0 : index
    %c512 = arith.constant 512 : index
    %85 = vector.load %arg14[%c0_40, %c512] : memref<128x576xbf16, #tpu.memory_space<vmem>>, vector<128x64xbf16>
    %cst_41 = arith.constant dense<0.000000e+00> : vector<128x128xf32>
    %86 = tpu.matmul %83, %84, %cst_41 {dimension_numbers = #tpu.dot_dimension_numbers<[1], [1], [0], [0], [0, 0, 1, 0], [], []>} : vector<128x64xbf16>, vector<128x64xbf16>, vector<128x128xf32> -> vector<128x128xf32>
    %cst_42 = arith.constant 0.0721687824 : f32
    %87 = vector.broadcast %cst_42 : f32 to vector<128x128xf32>
    %88 = arith.mulf %86, %87 : vector<128x128xf32>
    %89 = arith.addf %88, %36 : vector<128x128xf32>
    %cst_43 = arith.constant dense<0xFF800000> : vector<128xf32>
    %90 = vector.multi_reduction <maximumf>, %89, %cst_43 [1] : vector<128x128xf32> to vector<128xf32>
    %91 = vector.shape_cast %90 : vector<128xf32> to vector<128x1xf32>
    %92 = vector.broadcast %91 : vector<128x1xf32> to vector<128x128xf32>
    %93 = arith.subf %89, %92 : vector<128x128xf32>
    %94 = math.exp %93 : vector<128x128xf32>
    %cst_44 = arith.constant dense<0.000000e+00> : vector<128xf32>
    %95 = vector.multi_reduction <add>, %94, %cst_44 [1] : vector<128x128xf32> to vector<128xf32>
    %96 = vector.shape_cast %95 : vector<128xf32> to vector<128x1xf32>
    %97 = tpu.reciprocal %96 {approx = true} : vector<128x1xf32> -> vector<128x1xf32>
    %98 = vector.broadcast %97 : vector<128x1xf32> to vector<128x128xf32>
    %99 = arith.mulf %94, %98 : vector<128x128xf32>
    %100 = arith.truncf %99 : vector<128x128xf32> to vector<128x128xbf16>
    %cst_45 = arith.constant dense<0.000000e+00> : vector<128x64xf32>
    %101 = tpu.matmul %100, %85, %cst_45 {dimension_numbers = #tpu.dot_dimension_numbers<[1], [0], [0], [1], [0, 0, 1, 1], [], []>} : vector<128x128xbf16>, vector<128x64xbf16>, vector<128x64xf32> -> vector<128x64xf32>
    %102 = arith.truncf %101 : vector<128x64xf32> to vector<128x64xbf16>
    %103 = vector.extract_strided_slice %37 {offsets = [128, 0], sizes = [64, 192], strides = [1, 1]} : vector<192x192xbf16> to vector<64x192xbf16>
    %cst_46 = arith.constant dense<0.000000e+00> : vector<128x192xf32>
    %104 = tpu.matmul %102, %103, %cst_46 {dimension_numbers = #tpu.dot_dimension_numbers<[1], [0], [0], [1], [0, 0, 1, 1], [], []>} : vector<128x64xbf16>, vector<64x192xbf16>, vector<128x192xf32> -> vector<128x192xf32>
    %105 = arith.addf %82, %104 : vector<128x192xf32>
    %c0_47 = arith.constant 0 : index
    %c0_48 = arith.constant 0 : index
    %106 = vector.load %arg15[%c0_47, %c0_48] : memref<128x192xf32, #tpu.memory_space<vmem>>, vector<128x192xf32>
    tpu.vector_store %arg15[%c0_47, %c0_48], %105 {strides = array<i32>} : memref<128x192xf32, #tpu.memory_space<vmem>>, vector<128x192xf32>,
    %c0_49 = arith.constant 0 : index
    %c0_50 = arith.constant 0 : index
    %c0_51 = arith.constant 0 : index
    %107 = vector.load %arg1[%c0_49, %c0_50, %c0_51] : memref<1x128x192xf32, #tpu.memory_space<vmem>>, vector<1x128x192xf32>
    %108 = vector.shape_cast %107 : vector<1x128x192xf32> to vector<128x192xf32>
    %c0_52 = arith.constant 0 : index
    %c0_53 = arith.constant 0 : index
    %109 = vector.load %arg15[%c0_52, %c0_53] : memref<128x192xf32, #tpu.memory_space<vmem>>, vector<128x192xf32>
    %110 = arith.addf %108, %109 : vector<128x192xf32>
    %c0_54 = arith.constant 0 : index
    %c0_55 = arith.constant 0 : index
    %111 = vector.load %arg6[%c0_54, %c0_55] : memref<1x192xf32, #tpu.memory_space<vmem>>, vector<1x192xf32>
    %112 = vector.broadcast %111 : vector<1x192xf32> to vector<128x192xf32>
    %113 = arith.addf %110, %112 : vector<128x192xf32>
    %c0_56 = arith.constant 0 : index
    %c0_57 = arith.constant 0 : index
    %114 = vector.load %arg7[%c0_56, %c0_57] : memref<1x192xf32, #tpu.memory_space<vmem>>, vector<1x192xf32>
    %c0_58 = arith.constant 0 : index
    %c0_59 = arith.constant 0 : index
    %115 = vector.load %arg8[%c0_58, %c0_59] : memref<1x192xf32, #tpu.memory_space<vmem>>, vector<1x192xf32>
    %cst_60 = arith.constant dense<0.000000e+00> : vector<128xf32>
    %116 = vector.multi_reduction <add>, %113, %cst_60 [1] : vector<128x192xf32> to vector<128xf32>
    %117 = vector.shape_cast %116 : vector<128xf32> to vector<128x1xf32>
    %cst_61 = arith.constant 1.920000e+02 : f32
    %118 = vector.broadcast %cst_61 : f32 to vector<128x1xf32>
    %119 = arith.divf %117, %118 : vector<128x1xf32>
    %120 = vector.broadcast %119 : vector<128x1xf32> to vector<128x192xf32>
    %121 = arith.subf %113, %120 : vector<128x192xf32>
    %122 = arith.mulf %121, %121 : vector<128x192xf32>
    %cst_62 = arith.constant dense<0.000000e+00> : vector<128xf32>
    %123 = vector.multi_reduction <add>, %122, %cst_62 [1] : vector<128x192xf32> to vector<128xf32>
    %124 = vector.shape_cast %123 : vector<128xf32> to vector<128x1xf32>
    %cst_63 = arith.constant 1.920000e+02 : f32
    %125 = vector.broadcast %cst_63 : f32 to vector<128x1xf32>
    %126 = arith.divf %124, %125 : vector<128x1xf32>
    %127 = vector.broadcast %119 : vector<128x1xf32> to vector<128x192xf32>
    %128 = arith.subf %113, %127 : vector<128x192xf32>
    %cst_64 = arith.constant 9.99999974E-6 : f32
    %129 = vector.broadcast %cst_64 : f32 to vector<128x1xf32>
    %130 = arith.addf %126, %129 : vector<128x1xf32>
    %131 = math.rsqrt %130 : vector<128x1xf32>
    %132 = vector.broadcast %131 : vector<128x1xf32> to vector<128x192xf32>
    %133 = arith.mulf %128, %132 : vector<128x192xf32>
    %134 = vector.broadcast %114 : vector<1x192xf32> to vector<128x192xf32>
    %135 = arith.mulf %133, %134 : vector<128x192xf32>
    %136 = vector.broadcast %115 : vector<1x192xf32> to vector<128x192xf32>
    %137 = arith.addf %135, %136 : vector<128x192xf32>
    %138 = arith.truncf %137 : vector<128x192xf32> to vector<128x192xbf16>
    %c0_65 = arith.constant 0 : index
    %c0_66 = arith.constant 0 : index
    %139 = vector.load %arg9[%c0_65, %c0_66] : memref<192x768xbf16, #tpu.memory_space<vmem>>, vector<192x768xbf16>
    %cst_67 = arith.constant dense<0.000000e+00> : vector<128x768xf32>
    %140 = tpu.matmul %138, %139, %cst_67 {dimension_numbers = #tpu.dot_dimension_numbers<[1], [0], [0], [1], [0, 0, 1, 1], [], []>} : vector<128x192xbf16>, vector<192x768xbf16>, vector<128x768xf32> -> vector<128x768xf32>
    %c0_68 = arith.constant 0 : index
    %c0_69 = arith.constant 0 : index
    %141 = vector.load %arg10[%c0_68, %c0_69] : memref<1x768xf32, #tpu.memory_space<vmem>>, vector<1x768xf32>
    %142 = vector.broadcast %141 : vector<1x768xf32> to vector<128x768xf32>
    %143 = arith.addf %140, %142 : vector<128x768xf32>
    %cst_70 = arith.constant 0.000000e+00 : f32
    %144 = vector.broadcast %cst_70 : f32 to vector<128x768xf32>
    %145 = arith.maximumf %143, %144 : vector<128x768xf32>
    %146 = arith.truncf %145 : vector<128x768xf32> to vector<128x768xbf16>
    %c0_71 = arith.constant 0 : index
    %c0_72 = arith.constant 0 : index
    %147 = vector.load %arg11[%c0_71, %c0_72] : memref<768x192xbf16, #tpu.memory_space<vmem>>, vector<768x192xbf16>
    %cst_73 = arith.constant dense<0.000000e+00> : vector<128x192xf32>
    %148 = tpu.matmul %146, %147, %cst_73 {dimension_numbers = #tpu.dot_dimension_numbers<[1], [0], [0], [1], [0, 0, 1, 1], [], []>} : vector<128x768xbf16>, vector<768x192xbf16>, vector<128x192xf32> -> vector<128x192xf32>
    %c0_74 = arith.constant 0 : index
    %c0_75 = arith.constant 0 : index
    %149 = vector.load %arg12[%c0_74, %c0_75] : memref<1x192xf32, #tpu.memory_space<vmem>>, vector<1x192xf32>
    %150 = vector.broadcast %149 : vector<1x192xf32> to vector<128x192xf32>
    %151 = arith.addf %148, %150 : vector<128x192xf32>
    %152 = arith.addf %113, %151 : vector<128x192xf32>
    %153 = vector.shape_cast %152 : vector<128x192xf32> to vector<1x128x192xf32>
    %c0_76 = arith.constant 0 : index
    %c0_77 = arith.constant 0 : index
    %c0_78 = arith.constant 0 : index
    %154 = vector.load %arg13[%c0_76, %c0_77, %c0_78] : memref<1x128x192xf32, #tpu.memory_space<vmem>>, vector<1x128x192xf32>
    tpu.vector_store %arg13[%c0_76, %c0_77, %c0_78], %153 {strides = array<i32>} : memref<1x128x192xf32, #tpu.memory_space<vmem>>, vector<1x128x192xf32>,
    return
  }
  func.func @transform_0(%arg0: i32) -> (i32, i32, i32) {
    %c0_i32 = arith.constant 0 : i32
    %c0_i32_0 = arith.constant 0 : i32
    %c0_i32_1 = arith.constant 0 : i32
    return %arg0, %c0_i32, %c0_i32_0 : i32, i32, i32
  }
  func.func @transform_1(%arg0: i32) -> (i32, i32) {
    %c0_i32 = arith.constant 0 : i32
    %c0_i32_0 = arith.constant 0 : i32
    %c0_i32_1 = arith.constant 0 : i32
    return %c0_i32, %c0_i32_0 : i32, i32
  }
  func.func @transform_2(%arg0: i32) -> (i32, i32) {
    %c0_i32 = arith.constant 0 : i32
    %c0_i32_0 = arith.constant 0 : i32
    %c0_i32_1 = arith.constant 0 : i32
    return %c0_i32, %c0_i32_0 : i32, i32
  }
  func.func @transform_3(%arg0: i32) -> (i32, i32) {
    %c0_i32 = arith.constant 0 : i32
    %c0_i32_0 = arith.constant 0 : i32
    %c0_i32_1 = arith.constant 0 : i32
    return %c0_i32, %c0_i32_0 : i32, i32
  }
  func.func @transform_4(%arg0: i32) -> (i32, i32) {
    %c0_i32 = arith.constant 0 : i32
    %c0_i32_0 = arith.constant 0 : i32
    %c0_i32_1 = arith.constant 0 : i32
    return %c0_i32, %c0_i32_0 : i32, i32
  }
  func.func @transform_5(%arg0: i32) -> (i32, i32) {
    %c0_i32 = arith.constant 0 : i32
    %c0_i32_0 = arith.constant 0 : i32
    %c0_i32_1 = arith.constant 0 : i32
    return %c0_i32, %c0_i32_0 : i32, i32
  }
  func.func @transform_6(%arg0: i32) -> (i32, i32) {
    %c0_i32 = arith.constant 0 : i32
    %c0_i32_0 = arith.constant 0 : i32
    %c0_i32_1 = arith.constant 0 : i32
    return %c0_i32, %c0_i32_0 : i32, i32
  }
  func.func @transform_7(%arg0: i32) -> (i32, i32) {
    %c0_i32 = arith.constant 0 : i32
    %c0_i32_0 = arith.constant 0 : i32
    %c0_i32_1 = arith.constant 0 : i32
    return %c0_i32, %c0_i32_0 : i32, i32
  }
  func.func @transform_8(%arg0: i32) -> (i32, i32) {
    %c0_i32 = arith.constant 0 : i32
    %c0_i32_0 = arith.constant 0 : i32
    %c0_i32_1 = arith.constant 0 : i32
    return %c0_i32, %c0_i32_0 : i32, i32
  }
  func.func @transform_9(%arg0: i32) -> (i32, i32) {
    %c0_i32 = arith.constant 0 : i32
    %c0_i32_0 = arith.constant 0 : i32
    %c0_i32_1 = arith.constant 0 : i32
    return %c0_i32, %c0_i32_0 : i32, i32
  }
  func.func @transform_10(%arg0: i32) -> (i32, i32) {
    %c0_i32 = arith.constant 0 : i32
    %c0_i32_0 = arith.constant 0 : i32
    %c0_i32_1 = arith.constant 0 : i32
    return %c0_i32, %c0_i32_0 : i32, i32
  }
  func.func @transform_11(%arg0: i32) -> (i32, i32) {
    %c0_i32 = arith.constant 0 : i32
    %c0_i32_0 = arith.constant 0 : i32
    %c0_i32_1 = arith.constant 0 : i32
    return %c0_i32, %c0_i32_0 : i32, i32
  }
  func.func @transform_12(%arg0: i32) -> (i32, i32, i32) {
    %c0_i32 = arith.constant 0 : i32
    %c0_i32_0 = arith.constant 0 : i32
    %c0_i32_1 = arith.constant 0 : i32
    return %arg0, %c0_i32, %c0_i32_0 : i32, i32, i32
  }
}

</mosaic_0001>

<llo_original>
// kernel: tpu_custom_call.1
$region0: #{tpu_custom_call.1}
  #allocation0 [shape = 'u32[]', space=smem, size = 0x4, offset = 0x4, fixed_abs, tag = 'smem constant byte address 0x4 - core index']
  #allocation1 [shape = 'u32[144,128]{1,0:T(1,128)}', space=vmem, size = 0x12000, scoped, tag = 'internal scratch']
  #allocation2 [shape = 'bf16[128,576]{1,0:T(8,128)(2,1)}', space=vmem, size = 0x28000, scoped, tag = 'scratch operand']
  #allocation3 [shape = 'f32[128,192]{1,0:T(8,128)}', space=vmem, size = 0x20000, scoped, tag = 'scratch operand']
  %s0 = inlined_call_operand.vmem [shape: f32[2,128,192], index: 0, kind: input, shape index: {}]
  %s1 = inlined_call_operand.vmem [shape: f32[1,192], index: 1, kind: input, shape index: {}]
  %s2 = inlined_call_operand.vmem [shape: f32[1,192], index: 2, kind: input, shape index: {}]
  %s3 = inlined_call_operand.vmem [shape: bf16[192,576], index: 3, kind: input, shape index: {}]
  %s4 = inlined_call_operand.vmem [shape: bf16[192,192], index: 4, kind: input, shape index: {}]
  %s5 = inlined_call_operand.vmem [shape: f32[1,192], index: 5, kind: input, shape index: {}]
  %s6 = inlined_call_operand.vmem [shape: f32[1,192], index: 6, kind: input, shape index: {}]
  %s7 = inlined_call_operand.vmem [shape: f32[1,192], index: 7, kind: input, shape index: {}]
  %s8 = inlined_call_operand.vmem [shape: bf16[192,768], index: 8, kind: input, shape index: {}]
  %s9 = inlined_call_operand.vmem [shape: f32[1,768], index: 9, kind: input, shape index: {}]
  %s10 = inlined_call_operand.vmem [shape: bf16[768,192], index: 10, kind: input, shape index: {}]
  %s11 = inlined_call_operand.vmem [shape: f32[1,192], index: 11, kind: input, shape index: {}]
  %s12 = inlined_call_operand.vmem [shape: f32[2,128,192], index: 12, kind: output, shape index: {}]
  %s13 = sld [smem:[#allocation0]]
  $region81: #{tpu_custom_call.1} parent=0
    _
  %s15 = ssub.s32 1, %s13
  %s16 = scalar_select 0, %s15, %s13
  loop: start=0, step=1, limit=4
  $region2: #{tpu_custom_call.1} parent=0 // loop_pre_header
    _
  $region3: #{tpu_custom_call.1} parent=0 // loop_header
    %s18 = sphi 0, %s22
    %p19 = scmp.ge.s32.totalorder %s18, 4
    %s28 = sphi 0, %s30
    %s31 = sphi 0, %s28
    %s32 = sphi 0, %s31
    %s48 = sphi 0, %s32
    %s52 = sphi 0, %s52
    %s54 = sphi 0, %s52
    %s55 = sphi 0, %s54
    %s69 = sphi 0, %s55
    %s73 = sphi 0, %s73
    %s75 = sphi 0, %s73
    %s76 = sphi 0, %s75
    %s90 = sphi 0, %s76
    %s94 = sphi 0, %s94
    %s96 = sphi 0, %s94
    %s97 = sphi 0, %s96
    %s111 = sphi 0, %s97
    %s115 = sphi 0, %s115
    %s117 = sphi 0, %s115
    %s118 = sphi 0, %s117
    %s132 = sphi 0, %s118
    %s136 = sphi 0, %s136
    %s138 = sphi 0, %s136
    %s139 = sphi 0, %s138
    %s153 = sphi 0, %s139
    %s157 = sphi 0, %s157
    %s159 = sphi 0, %s157
    %s160 = sphi 0, %s159
    %s174 = sphi 0, %s160
    %s178 = sphi 0, %s178
    %s180 = sphi 0, %s178
    %s181 = sphi 0, %s180
    %s195 = sphi 0, %s181
    %s199 = sphi 0, %s199
    %s201 = sphi 0, %s199
    %s202 = sphi 0, %s201
    %s216 = sphi 0, %s202
    %s220 = sphi 0, %s220
    %s222 = sphi 0, %s220
    %s223 = sphi 0, %s222
    %s237 = sphi 0, %s223
    %s241 = sphi 0, %s241
    %s243 = sphi 0, %s241
    %s244 = sphi 0, %s243
    %s258 = sphi 0, %s244
    %s262 = sphi 0, %s262
    %s264 = sphi 0, %s262
    %s265 = sphi 0, %s264
    %s279 = sphi 0, %s265
    %s285 = sphi 0, %s287
    %s288 = sphi 0, %s285
    %s289 = sphi 0, %s288
    %s305 = sphi 0, %s289
  $region4: #{tpu_custom_call.1} parent=0 // loop_header_branch
    %21 = sbr.rel (%p19) target = $region8
  $region5: #{tpu_custom_call.1} parent=0 // loop_body
    %s23 = ssub.s32 %s18, 1
    %s24 = ssub.s32 %s18, 2
    %s25 = sadd.s32 %s18, 1
    %s26 = ssub.s32 %s18, %s25
    %p27 = scmp.eq.s32.totalorder %s26, 0
    %s29 = sadd.s32 %s28, 1
    %s30 = scalar_select %p27, %s28, %s29
    %p33 = pneg %p27
    %p34 = scmp.eq.s32.totalorder %s18, 1
    %p35 = por %p33, %p34
    %p36 = scmp.ne.s32.totalorder %s28, %s31
    %p37 = scmp.eq.s32.totalorder %s18, 0
    %p38 = por %p36, %p37
    %p39 = scmp.ne.s32.totalorder %s28, %s31
    %p40 = scmp.eq.s32.totalorder %s23, 1
    %p41 = por %p39, %p40
    %p42 = scmp.ne.s32.totalorder %s31, %s32
    %p43 = scmp.eq.s32.totalorder %s23, 0
    %p44 = por %p42, %p43
    %p45 = scmp.ne.s32.totalorder %s31, %s32
    %p46 = scmp.eq.s32.totalorder %s24, 1
    %p47 = por %p45, %p46
    %p49 = scmp.ne.s32.totalorder %s32, %s48
    %p50 = scmp.eq.s32.totalorder %s24, 0
    %p51 = por %p49, %p50
    %s53 = sadd.s32 %s52, 1
    %p56 = scmp.eq.s32.totalorder %s18, 1
    %p57 = scmp.ne.s32.totalorder %s52, %s54
    %p58 = scmp.eq.s32.totalorder %s18, 0
    %p59 = por %p57, %p58
    %p60 = scmp.ne.s32.totalorder %s52, %s54
    %p61 = scmp.eq.s32.totalorder %s23, 1
    %p62 = por %p60, %p61
    %p63 = scmp.ne.s32.totalorder %s54, %s55
    %p64 = scmp.eq.s32.totalorder %s23, 0
    %p65 = por %p63, %p64
    %p66 = scmp.ne.s32.totalorder %s54, %s55
    %p67 = scmp.eq.s32.totalorder %s24, 1
    %p68 = por %p66, %p67
    %p70 = scmp.ne.s32.totalorder %s55, %s69
    %p71 = scmp.eq.s32.totalorder %s24, 0
    %p72 = por %p70, %p71
    %s74 = sadd.s32 %s73, 1
    %p77 = scmp.eq.s32.totalorder %s18, 1
    %p78 = scmp.ne.s32.totalorder %s73, %s75
    %p79 = scmp.eq.s32.totalorder %s18, 0
    %p80 = por %p78, %p79
    %p81 = scmp.ne.s32.totalorder %s73, %s75
    %p82 = scmp.eq.s32.totalorder %s23, 1
    %p83 = por %p81, %p82
    %p84 = scmp.ne.s32.totalorder %s75, %s76
    %p85 = scmp.eq.s32.totalorder %s23, 0
    %p86 = por %p84, %p85
    %p87 = scmp.ne.s32.totalorder %s75, %s76
    %p88 = scmp.eq.s32.totalorder %s24, 1
    %p89 = por %p87, %p88
    %p91 = scmp.ne.s32.totalorder %s76, %s90
    %p92 = scmp.eq.s32.totalorder %s24, 0
    %p93 = por %p91, %p92
    %s95 = sadd.s32 %s94, 1
    %p98 = scmp.eq.s32.totalorder %s18, 1
    %p99 = scmp.ne.s32.totalorder %s94, %s96
    %p100 = scmp.eq.s32.totalorder %s18, 0
    %p101 = por %p99, %p100
    %p102 = scmp.ne.s32.totalorder %s94, %s96
    %p103 = scmp.eq.s32.totalorder %s23, 1
    %p104 = por %p102, %p103
    %p105 = scmp.ne.s32.totalorder %s96, %s97
    %p106 = scmp.eq.s32.totalorder %s23, 0
    %p107 = por %p105, %p106
    %p108 = scmp.ne.s32.totalorder %s96, %s97
    %p109 = scmp.eq.s32.totalorder %s24, 1
    %p110 = por %p108, %p109
    %p112 = scmp.ne.s32.totalorder %s97, %s111
    %p113 = scmp.eq.s32.totalorder %s24, 0
    %p114 = por %p112, %p113
    %s116 = sadd.s32 %s115, 1
    %p119 = scmp.eq.s32.totalorder %s18, 1
    %p120 = scmp.ne.s32.totalorder %s115, %s117
    %p121 = scmp.eq.s32.totalorder %s18, 0
    %p122 = por %p120, %p121
    %p123 = scmp.ne.s32.totalorder %s115, %s117
    %p124 = scmp.eq.s32.totalorder %s23, 1
    %p125 = por %p123, %p124
    %p126 = scmp.ne.s32.totalorder %s117, %s118
    %p127 = scmp.eq.s32.totalorder %s23, 0
    %p128 = por %p126, %p127
    %p129 = scmp.ne.s32.totalorder %s117, %s118
    %p130 = scmp.eq.s32.totalorder %s24, 1
    %p131 = por %p129, %p130
    %p133 = scmp.ne.s32.totalorder %s118, %s132
    %p134 = scmp.eq.s32.totalorder %s24, 0
    %p135 = por %p133, %p134
    %s137 = sadd.s32 %s136, 1
    %p140 = scmp.eq.s32.totalorder %s18, 1
    %p141 = scmp.ne.s32.totalorder %s136, %s138
    %p142 = scmp.eq.s32.totalorder %s18, 0
    %p143 = por %p141, %p142
    %p144 = scmp.ne.s32.totalorder %s136, %s138
    %p145 = scmp.eq.s32.totalorder %s23, 1
    %p146 = por %p144, %p145
    %p147 = scmp.ne.s32.totalorder %s138, %s139
    %p148 = scmp.eq.s32.totalorder %s23, 0
    %p149 = por %p147, %p148
    %p150 = scmp.ne.s32.totalorder %s138, %s139
    %p151 = scmp.eq.s32.totalorder %s24, 1
    %p152 = por %p150, %p151
    %p154 = scmp.ne.s32.totalorder %s139, %s153
    %p155 = scmp.eq.s32.totalorder %s24, 0
    %p156 = por %p154, %p155
    %s158 = sadd.s32 %s157, 1
    %p161 = scmp.eq.s32.totalorder %s18, 1
    %p162 = scmp.ne.s32.totalorder %s157, %s159
    %p163 = scmp.eq.s32.totalorder %s18, 0
    %p164 = por %p162, %p163
    %p165 = scmp.ne.s32.totalorder %s157, %s159
    %p166 = scmp.eq.s32.totalorder %s23, 1
    %p167 = por %p165, %p166
    %p168 = scmp.ne.s32.totalorder %s159, %s160
    %p169 = scmp.eq.s32.totalorder %s23, 0
    %p170 = por %p168, %p169
    %p171 = scmp.ne.s32.totalorder %s159, %s160
    %p172 = scmp.eq.s32.totalorder %s24, 1
    %p173 = por %p171, %p172
    %p175 = scmp.ne.s32.totalorder %s160, %s174
    %p176 = scmp.eq.s32.totalorder %s24, 0
    %p177 = por %p175, %p176
    %s179 = sadd.s32 %s178, 1
    %p182 = scmp.eq.s32.totalorder %s18, 1
    %p183 = scmp.ne.s32.totalorder %s178, %s180
    %p184 = scmp.eq.s32.totalorder %s18, 0
    %p185 = por %p183, %p184
    %p186 = scmp.ne.s32.totalorder %s178, %s180
    %p187 = scmp.eq.s32.totalorder %s23, 1
    %p188 = por %p186, %p187
    %p189 = scmp.ne.s32.totalorder %s180, %s181
    %p190 = scmp.eq.s32.totalorder %s23, 0
    %p191 = por %p189, %p190
    %p192 = scmp.ne.s32.totalorder %s180, %s181
    %p193 = scmp.eq.s32.totalorder %s24, 1
    %p194 = por %p192, %p193
    %p196 = scmp.ne.s32.totalorder %s181, %s195
    %p197 = scmp.eq.s32.totalorder %s24, 0
    %p198 = por %p196, %p197
    %s200 = sadd.s32 %s199, 1
    %p203 = scmp.eq.s32.totalorder %s18, 1
    %p204 = scmp.ne.s32.totalorder %s199, %s201
    %p205 = scmp.eq.s32.totalorder %s18, 0
    %p206 = por %p204, %p205
    %p207 = scmp.ne.s32.totalorder %s199, %s201
    %p208 = scmp.eq.s32.totalorder %s23, 1
    %p209 = por %p207, %p208
    %p210 = scmp.ne.s32.totalorder %s201, %s202
    %p211 = scmp.eq.s32.totalorder %s23, 0
    %p212 = por %p210, %p211
    %p213 = scmp.ne.s32.totalorder %s201, %s202
    %p214 = scmp.eq.s32.totalorder %s24, 1
    %p215 = por %p213, %p214
    %p217 = scmp.ne.s32.totalorder %s202, %s216
    %p218 = scmp.eq.s32.totalorder %s24, 0
    %p219 = por %p217, %p218
    %s221 = sadd.s32 %s220, 1
    %p224 = scmp.eq.s32.totalorder %s18, 1
    %p225 = scmp.ne.s32.totalorder %s220, %s222
    %p226 = scmp.eq.s32.totalorder %s18, 0
    %p227 = por %p225, %p226
    %p228 = scmp.ne.s32.totalorder %s220, %s222
    %p229 = scmp.eq.s32.totalorder %s23, 1
    %p230 = por %p228, %p229
    %p231 = scmp.ne.s32.totalorder %s222, %s223
    %p232 = scmp.eq.s32.totalorder %s23, 0
    %p233 = por %p231, %p232
    %p234 = scmp.ne.s32.totalorder %s222, %s223
    %p235 = scmp.eq.s32.totalorder %s24, 1
    %p236 = por %p234, %p235
    %p238 = scmp.ne.s32.totalorder %s223, %s237
    %p239 = scmp.eq.s32.totalorder %s24, 0
    %p240 = por %p238, %p239
    %s242 = sadd.s32 %s241, 1
    %p245 = scmp.eq.s32.totalorder %s18, 1
    %p246 = scmp.ne.s32.totalorder %s241, %s243
    %p247 = scmp.eq.s32.totalorder %s18, 0
    %p248 = por %p246, %p247
    %p249 = scmp.ne.s32.totalorder %s241, %s243
    %p250 = scmp.eq.s32.totalorder %s23, 1
    %p251 = por %p249, %p250
    %p252 = scmp.ne.s32.totalorder %s243, %s244
    %p253 = scmp.eq.s32.totalorder %s23, 0
    %p254 = por %p252, %p253
    %p255 = scmp.ne.s32.totalorder %s243, %s244
    %p256 = scmp.eq.s32.totalorder %s24, 1
    %p257 = por %p255, %p256
    %p259 = scmp.ne.s32.totalorder %s244, %s258
    %p260 = scmp.eq.s32.totalorder %s24, 0
    %p261 = por %p259, %p260
    %s263 = sadd.s32 %s262, 1
    %p266 = scmp.eq.s32.totalorder %s18, 1
    %p267 = scmp.ne.s32.totalorder %s262, %s264
    %p268 = scmp.eq.s32.totalorder %s18, 0
    %p269 = por %p267, %p268
    %p270 = scmp.ne.s32.totalorder %s262, %s264
    %p271 = scmp.eq.s32.totalorder %s23, 1
    %p272 = por %p270, %p271
    %p273 = scmp.ne.s32.totalorder %s264, %s265
    %p274 = scmp.eq.s32.totalorder %s23, 0
    %p275 = por %p273, %p274
    %p276 = scmp.ne.s32.totalorder %s264, %s265
    %p277 = scmp.eq.s32.totalorder %s24, 1
    %p278 = por %p276, %p277
    %p280 = scmp.ne.s32.totalorder %s265, %s279
    %p281 = scmp.eq.s32.totalorder %s24, 0
    %p282 = por %p280, %p281
    %s283 = ssub.s32 %s18, %s25
    %p284 = scmp.eq.s32.totalorder %s283, 0
    %s286 = sadd.s32 %s285, 1
    %s287 = scalar_select %p284, %s285, %s286
    %p290 = pneg %p284
    %p291 = scmp.eq.s32.totalorder %s18, 1
    %p292 = por %p290, %p291
    %p293 = scmp.ne.s32.totalorder %s285, %s288
    %p294 = scmp.eq.s32.totalorder %s18, 0
    %p295 = por %p293, %p294
    %p296 = scmp.ne.s32.totalorder %s285, %s288
    %p297 = scmp.eq.s32.totalorder %s23, 1
    %p298 = por %p296, %p297
    %p299 = scmp.ne.s32.totalorder %s288, %s289
    %p300 = scmp.eq.s32.totalorder %s23, 0
    %p301 = por %p299, %p300
    %p302 = scmp.ne.s32.totalorder %s288, %s289
    %p303 = scmp.eq.s32.totalorder %s24, 1
    %p304 = por %p302, %p303
    %p306 = scmp.ne.s32.totalorder %s289, %s305
    %p307 = scmp.eq.s32.totalorder %s24, 0
    %p308 = por %p306, %p307
    %p309 = scmp.le.s32.totalorder 1, %s18
    %p310 = scmp.lt.s32.totalorder %s18, 3
    %p311 = pnand %p309, %p310
    %p312 = pneg %p311
    // Predicated region
    $region9: #{tpu_custom_call.1} parent=5 // pred_check
      _
    $region10: #{tpu_custom_call.1} parent=5 // pred_check_branch
      %314 = sbr.rel (%p311) target = $region12
    $region11: #{tpu_custom_call.1} parent=5 // pred_region
      %s315 = ssub.s32 %s18, 1
      // Predicated region
      $region13: #{tpu_custom_call.1} parent=11 // pred_check
        %p316 = pneg %p65
      $region14: #{tpu_custom_call.1} parent=11 // pred_check_branch
        %318 = sbr.rel (%p316) target = $region16
      $region15: #{tpu_custom_call.1} parent=11 // pred_region
        _
      $region16: #{tpu_custom_call.1} parent=11 // pred_fallthru
        _
      // Predicated region
      $region17: #{tpu_custom_call.1} parent=11 // pred_check
        %p319 = pneg %p86
      $region18: #{tpu_custom_call.1} parent=11 // pred_check_branch
        %321 = sbr.rel (%p319) target = $region20
      $region19: #{tpu_custom_call.1} parent=11 // pred_region
        _
      $region20: #{tpu_custom_call.1} parent=11 // pred_fallthru
        _
      // Predicated region
      $region21: #{tpu_custom_call.1} parent=11 // pred_check
        %p322 = pneg %p107
      $region22: #{tpu_custom_call.1} parent=11 // pred_check_branch
        %324 = sbr.rel (%p322) target = $region24
      $region23: #{tpu_custom_call.1} parent=11 // pred_region
        _
      $region24: #{tpu_custom_call.1} parent=11 // pred_fallthru
        _
      // Predicated region
      $region25: #{tpu_custom_call.1} parent=11 // pred_check
        %p325 = pneg %p128
      $region26: #{tpu_custom_call.1} parent=11 // pred_check_branch
        %327 = sbr.rel (%p325) target = $region28
      $region27: #{tpu_custom_call.1} parent=11 // pred_region
        _
      $region28: #{tpu_custom_call.1} parent=11 // pred_fallthru
        _
      // Predicated region
      $region29: #{tpu_custom_call.1} parent=11 // pred_check
        %p328 = pneg %p149
      $region30: #{tpu_custom_call.1} parent=11 // pred_check_branch
        %330 = sbr.rel (%p328) target = $region32
      $region31: #{tpu_custom_call.1} parent=11 // pred_region
        _
      $region32: #{tpu_custom_call.1} parent=11 // pred_fallthru
        _
      // Predicated region
      $region33: #{tpu_custom_call.1} parent=11 // pred_check
        %p331 = pneg %p170
      $region34: #{tpu_custom_call.1} parent=11 // pred_check_branch
        %333 = sbr.rel (%p331) target = $region36
      $region35: #{tpu_custom_call.1} parent=11 // pred_region
        _
      $region36: #{tpu_custom_call.1} parent=11 // pred_fallthru
        _
      // Predicated region
      $region37: #{tpu_custom_call.1} parent=11 // pred_check
        %p334 = pneg %p191
      $region38: #{tpu_custom_call.1} parent=11 // pred_check_branch
        %336 = sbr.rel (%p334) target = $region40
      $region39: #{tpu_custom_call.1} parent=11 // pred_region
        _
      $region40: #{tpu_custom_call.1} parent=11 // pred_fallthru
        _
      // Predicated region
      $region41: #{tpu_custom_call.1} parent=11 // pred_check
        %p337 = pneg %p212
      $region42: #{tpu_custom_call.1} parent=11 // pred_check_branch
        %339 = sbr.rel (%p337) target = $region44
      $region43: #{tpu_custom_call.1} parent=11 // pred_region
        _
      $region44: #{tpu_custom_call.1} parent=11 // pred_fallthru
        _
      // Predicated region
      $region45: #{tpu_custom_call.1} parent=11 // pred_check
        %p340 = pneg %p233
      $region46: #{tpu_custom_call.1} parent=11 // pred_check_branch
        %342 = sbr.rel (%p340) target = $region48
      $region47: #{tpu_custom_call.1} parent=11 // pred_region
        _
      $region48: #{tpu_custom_call.1} parent=11 // pred_fallthru
        _
      // Predicated region
      $region49: #{tpu_custom_call.1} parent=11 // pred_check
        %p343 = pneg %p254
      $region50: #{tpu_custom_call.1} parent=11 // pred_check_branch
        %345 = sbr.rel (%p343) target = $region52
      $region51: #{tpu_custom_call.1} parent=11 // pred_region
        _
      $region52: #{tpu_custom_call.1} parent=11 // pred_fallthru
        _
      // Predicated region
      $region53: #{tpu_custom_call.1} parent=11 // pred_check
        %p346 = pneg %p275
      $region54: #{tpu_custom_call.1} parent=11 // pred_check_branch
        %348 = sbr.rel (%p346) target = $region56
      $region55: #{tpu_custom_call.1} parent=11 // pred_region
        _
      $region56: #{tpu_custom_call.1} parent=11 // pred_fallthru
        _
    $region12: #{tpu_custom_call.1} parent=5 // pred_fallthru
      _
    %p349 = scmp.lt.s32.totalorder %s18, 2
    // Predicated region
    $region57: #{tpu_custom_call.1} parent=5 // pred_check
      %p350 = pneg %p349
    $region58: #{tpu_custom_call.1} parent=5 // pred_check_branch
      %352 = sbr.rel (%p350) target = $region60
    $region59: #{tpu_custom_call.1} parent=5 // pred_region
      // Predicated region
      $region61: #{tpu_custom_call.1} parent=59 // pred_check
        %p353 = pneg %p38
      $region62: #{tpu_custom_call.1} parent=59 // pred_check_branch
        %355 = sbr.rel (%p353) target = $region64
      $region63: #{tpu_custom_call.1} parent=59 // pred_region
        %p356 = scmp.lt.s32.totalorder %s18, 1
        %s357 = scalar_select %p356, %s18, 1
        %s358 = smul.addr %s357, 32
        %s359 = smul.addr %s358, 8
        %s360 = scalar_lea.vmem %s0, %s359
      $region64: #{tpu_custom_call.1} parent=59 // pred_fallthru
        _
    $region60: #{tpu_custom_call.1} parent=5 // pred_fallthru
      _
    %p361 = scmp.le.s32.totalorder 1, %s18
    %p362 = scmp.lt.s32.totalorder %s18, 3
    %p363 = pnand %p361, %p362
    %p364 = pneg %p363
    // Predicated region
    $region65: #{tpu_custom_call.1} parent=5 // pred_check
      _
    $region66: #{tpu_custom_call.1} parent=5 // pred_check_branch
      %366 = sbr.rel (%p363) target = $region68
    $region67: #{tpu_custom_call.1} parent=5 // pred_region
      %s367 = ssub.s32 %s18, 1
      %p368 = scmp.lt.s32.totalorder %s23, 1
      %s369 = scalar_select %p368, %s23, 1
      %s370 = smul.addr %s369, 32
      %s371 = smul.addr %s370, 8
      %s372 = scalar_lea.vmem %s0, %s371
      %p373 = pneg %p44
      %p374 = pneg %p41
      %p375 = pneg %p65
      %p376 = pneg %p62
      %p377 = pneg %p86
      %p378 = pneg %p83
      %p379 = pneg %p107
      %p380 = pneg %p104
      %p381 = pneg %p128
      %p382 = pneg %p125
      %p383 = pneg %p149
      %p384 = pneg %p146
      %p385 = pneg %p170
      %p386 = pneg %p167
      %p387 = pneg %p191
      %p388 = pneg %p188
      %p389 = pneg %p212
      %p390 = pneg %p209
      %p391 = pneg %p233
      %p392 = pneg %p230
      %p393 = pneg %p254
      %p394 = pneg %p251
      %p395 = pneg %p275
      %p396 = pneg %p272
      %p397 = pneg %p301
      %p398 = pneg %p298
      %p399 = scmp.lt.s32.totalorder %s23, 1
      %s400 = scalar_select %p399, %s23, 1
      %s401 = smul.addr %s400, 32
      %s402 = smul.addr %s401, 8
      %s403 = scalar_lea.vmem %s12, %s402
      %p404 = scmp.lt.s32.totalorder %s23, 1
      %s405 = scalar_select %p404, %s23, 1
      %s406 = smul.addr %s405, 32
      %s407 = smul.addr %s406, 8
      %s408 = scalar_lea.vmem %s0, %s407
      %p409 = scmp.lt.s32.totalorder %s23, 1
      %s410 = scalar_select %p409, %s23, 1
      %s411 = smul.addr %s410, 32
      %s412 = smul.addr %s411, 8
      %s413 = scalar_lea.vmem %s12, %s412
      %v415 = vld [vmem:[%s408] sm:$0xff]
      %v416 = vld [vmem:[%s408 + $0x8] sm:$0xff]
      %v417 = vld [vmem:[%s408 + $0x10] sm:$0xff]
      %v418 = vld [vmem:[%s408 + $0x18] sm:$0xff]
      %v419 = vld [vmem:[%s408 + $0x20] sm:$0xff]
      %v420 = vld [vmem:[%s408 + $0x28] sm:$0xff]
      %v421 = vld [vmem:[%s408 + $0x30] sm:$0xff]
      %v422 = vld [vmem:[%s408 + $0x38] sm:$0xff]
      %v423 = vld [vmem:[%s408 + $0x40] sm:$0xff]
      %v424 = vld [vmem:[%s408 + $0x48] sm:$0xff]
      %v425 = vld [vmem:[%s408 + $0x50] sm:$0xff]
      %v426 = vld [vmem:[%s408 + $0x58] sm:$0xff]
      %v427 = vld [vmem:[%s408 + $0x60] sm:$0xff]
      %v428 = vld [vmem:[%s408 + $0x68] sm:$0xff]
      %v429 = vld [vmem:[%s408 + $0x70] sm:$0xff]
      %v430 = vld [vmem:[%s408 + $0x78] sm:$0xff]
      %v431 = vld [vmem:[%s408 + $0x80] sm:$0xff]
      %v432 = vld [vmem:[%s408 + $0x88] sm:$0xff]
      %v433 = vld [vmem:[%s408 + $0x90] sm:$0xff]
      %v434 = vld [vmem:[%s408 + $0x98] sm:$0xff]
      %v435 = vld [vmem:[%s408 + $0xa0] sm:$0xff]
      %v436 = vld [vmem:[%s408 + $0xa8] sm:$0xff]
      %v437 = vld [vmem:[%s408 + $0xb0] sm:$0xff]
      %v438 = vld [vmem:[%s408 + $0xb8] sm:$0xff]
      %v439 = vld [vmem:[%s408 + $0xc0] sm:$0xff]
      %v440 = vld [vmem:[%s408 + $0xc8] sm:$0xff]
      %v441 = vld [vmem:[%s408 + $0xd0] sm:$0xff]
      %v442 = vld [vmem:[%s408 + $0xd8] sm:$0xff]
      %v443 = vld [vmem:[%s408 + $0xe0] sm:$0xff]
      %v444 = vld [vmem:[%s408 + $0xe8] sm:$0xff]
      %v445 = vld [vmem:[%s408 + $0xf0] sm:$0xff]
      %v446 = vld [vmem:[%s408 + $0xf8] sm:$0xff]
      %v447 = vld [vmem:[%s1] sm:$0x3]
      %v448 = vld [vmem:[%s2] sm:$0x3]
      %vm449 = vcmask 523264
      %v450 = vsel %vm449, %v416, 0.0
      %v451 = vadd.f32 %v415, %v450
      %452 = vadd.xlane.f32.xlu0 %v451
      %v453 = vpop.xlane.xlu0 %452
      %v454 = vsel %vm449, %v418, 0.0
      %v455 = vadd.f32 %v417, %v454
      %456 = vadd.xlane.f32.xlu0 %v455
      %v457 = vpop.xlane.xlu0 %456
      %v458 = vsel %vm449, %v420, 0.0
      %v459 = vadd.f32 %v419, %v458
      %460 = vadd.xlane.f32.xlu0 %v459
      %v461 = vpop.xlane.xlu0 %460
      %v462 = vsel %vm449, %v422, 0.0
      %v463 = vadd.f32 %v421, %v462
      %464 = vadd.xlane.f32.xlu0 %v463
      %v465 = vpop.xlane.xlu0 %464
      %v466 = vsel %vm449, %v424, 0.0
      %v467 = vadd.f32 %v423, %v466
      %468 = vadd.xlane.f32.xlu0 %v467
      %v469 = vpop.xlane.xlu0 %468
      %v470 = vsel %vm449, %v426, 0.0
      %v471 = vadd.f32 %v425, %v470
      %472 = vadd.xlane.f32.xlu0 %v471
      %v473 = vpop.xlane.xlu0 %472
      %v474 = vsel %vm449, %v428, 0.0
      %v475 = vadd.f32 %v427, %v474
      %476 = vadd.xlane.f32.xlu0 %v475
      %v477 = vpop.xlane.xlu0 %476
      %v478 = vsel %vm449, %v430, 0.0
      %v479 = vadd.f32 %v429, %v478
      %480 = vadd.xlane.f32.xlu0 %v479
      %v481 = vpop.xlane.xlu0 %480
      %v482 = vsel %vm449, %v432, 0.0
      %v483 = vadd.f32 %v431, %v482
      %484 = vadd.xlane.f32.xlu0 %v483
      %v485 = vpop.xlane.xlu0 %484
      %v486 = vsel %vm449, %v434, 0.0
      %v487 = vadd.f32 %v433, %v486
      %488 = vadd.xlane.f32.xlu0 %v487
      %v489 = vpop.xlane.xlu0 %488
      %v490 = vsel %vm449, %v436, 0.0
      %v491 = vadd.f32 %v435, %v490
      %492 = vadd.xlane.f32.xlu0 %v491
      %v493 = vpop.xlane.xlu0 %492
      %v494 = vsel %vm449, %v438, 0.0
      %v495 = vadd.f32 %v437, %v494
      %496 = vadd.xlane.f32.xlu0 %v495
      %v497 = vpop.xlane.xlu0 %496
      %v498 = vsel %vm449, %v440, 0.0
      %v499 = vadd.f32 %v439, %v498
      %500 = vadd.xlane.f32.xlu0 %v499
      %v501 = vpop.xlane.xlu0 %500
      %v502 = vsel %vm449, %v442, 0.0
      %v503 = vadd.f32 %v441, %v502
      %504 = vadd.xlane.f32.xlu0 %v503
      %v505 = vpop.xlane.xlu0 %504
      %v506 = vsel %vm449, %v444, 0.0
      %v507 = vadd.f32 %v443, %v506
      %508 = vadd.xlane.f32.xlu0 %v507
      %v509 = vpop.xlane.xlu0 %508
      %v510 = vsel %vm449, %v446, 0.0
      %v511 = vadd.f32 %v445, %v510
      %512 = vadd.xlane.f32.xlu0 %v511
      %v513 = vpop.xlane.xlu0 %512
      %v514 = vrcp.pop 192.0
      %v515 = vmul.f32 %v453, %v514
      %v516 = vmul.f32 %v457, %v514
      %v517 = vmul.f32 %v461, %v514
      %v518 = vmul.f32 %v465, %v514
      %v519 = vmul.f32 %v469, %v514
      %v520 = vmul.f32 %v473, %v514
      %v521 = vmul.f32 %v477, %v514
      %v522 = vmul.f32 %v481, %v514
      %v523 = vmul.f32 %v485, %v514
      %v524 = vmul.f32 %v489, %v514
      %v525 = vmul.f32 %v493, %v514
      %v526 = vmul.f32 %v497, %v514
      %v527 = vmul.f32 %v501, %v514
      %v528 = vmul.f32 %v505, %v514
      %v529 = vmul.f32 %v509, %v514
      %v530 = vmul.f32 %v513, %v514
      %v531 = vsub.f32 %v415, %v515
      %v532 = vsub.f32 %v416, %v515
      %v533 = vsub.f32 %v417, %v516
      %v534 = vsub.f32 %v418, %v516
      %v535 = vsub.f32 %v419, %v517
      %v536 = vsub.f32 %v420, %v517
      %v537 = vsub.f32 %v421, %v518
      %v538 = vsub.f32 %v422, %v518
      %v539 = vsub.f32 %v423, %v519
      %v540 = vsub.f32 %v424, %v519
      %v541 = vsub.f32 %v425, %v520
      %v542 = vsub.f32 %v426, %v520
      %v543 = vsub.f32 %v427, %v521
      %v544 = vsub.f32 %v428, %v521
      %v545 = vsub.f32 %v429, %v522
      %v546 = vsub.f32 %v430, %v522
      %v547 = vsub.f32 %v431, %v523
      %v548 = vsub.f32 %v432, %v523
      %v549 = vsub.f32 %v433, %v524
      %v550 = vsub.f32 %v434, %v524
      %v551 = vsub.f32 %v435, %v525
      %v552 = vsub.f32 %v436, %v525
      %v553 = vsub.f32 %v437, %v526
      %v554 = vsub.f32 %v438, %v526
      %v555 = vsub.f32 %v439, %v527
      %v556 = vsub.f32 %v440, %v527
      %v557 = vsub.f32 %v441, %v528
      %v558 = vsub.f32 %v442, %v528
      %v559 = vsub.f32 %v443, %v529
      %v560 = vsub.f32 %v444, %v529
      %v561 = vsub.f32 %v445, %v530
      %v562 = vsub.f32 %v446, %v530
      %v563 = vmul.f32 %v531, %v531
      %v564 = vmul.f32 %v532, %v532
      %v565 = vmul.f32 %v533, %v533
      %v566 = vmul.f32 %v534, %v534
      %v567 = vmul.f32 %v535, %v535
      %v568 = vmul.f32 %v536, %v536
      %v569 = vmul.f32 %v537, %v537
      %v570 = vmul.f32 %v538, %v538
      %v571 = vmul.f32 %v539, %v539
      %v572 = vmul.f32 %v540, %v540
      %v573 = vmul.f32 %v541, %v541
      %v574 = vmul.f32 %v542, %v542
      %v575 = vmul.f32 %v543, %v543
      %v576 = vmul.f32 %v544, %v544
      %v577 = vmul.f32 %v545, %v545
      %v578 = vmul.f32 %v546, %v546
      %v579 = vmul.f32 %v547, %v547
      %v580 = vmul.f32 %v548, %v548
      %v581 = vmul.f32 %v549, %v549
      %v582 = vmul.f32 %v550, %v550
      %v583 = vmul.f32 %v551, %v551
      %v584 = vmul.f32 %v552, %v552
      %v585 = vmul.f32 %v553, %v553
      %v586 = vmul.f32 %v554, %v554
      %v587 = vmul.f32 %v555, %v555
      %v588 = vmul.f32 %v556, %v556
      %v589 = vmul.f32 %v557, %v557
      %v590 = vmul.f32 %v558, %v558
      %v591 = vmul.f32 %v559, %v559
      %v592 = vmul.f32 %v560, %v560
      %v593 = vmul.f32 %v561, %v561
      %v594 = vmul.f32 %v562, %v562
      %v595 = vsel %vm449, %v564, 0.0
      %v596 = vadd.f32 %v563, %v595
      %597 = vadd.xlane.f32.xlu0 %v596
      %v598 = vpop.xlane.xlu0 %597
      %v599 = vsel %vm449, %v566, 0.0
      %v600 = vadd.f32 %v565, %v599
      %601 = vadd.xlane.f32.xlu0 %v600
      %v602 = vpop.xlane.xlu0 %601
      %v603 = vsel %vm449, %v568, 0.0
      %v604 = vadd.f32 %v567, %v603
      %605 = vadd.xlane.f32.xlu0 %v604
      %v606 = vpop.xlane.xlu0 %605
      %v607 = vsel %vm449, %v570, 0.0
      %v608 = vadd.f32 %v569, %v607
      %609 = vadd.xlane.f32.xlu0 %v608
      %v610 = vpop.xlane.xlu0 %609
      %v611 = vsel %vm449, %v572, 0.0
      %v612 = vadd.f32 %v571, %v611
      %613 = vadd.xlane.f32.xlu0 %v612
      %v614 = vpop.xlane.xlu0 %613
      %v615 = vsel %vm449, %v574, 0.0
      %v616 = vadd.f32 %v573, %v615
      %617 = vadd.xlane.f32.xlu0 %v616
      %v618 = vpop.xlane.xlu0 %617
      %v619 = vsel %vm449, %v576, 0.0
      %v620 = vadd.f32 %v575, %v619
      %621 = vadd.xlane.f32.xlu0 %v620
      %v622 = vpop.xlane.xlu0 %621
      %v623 = vsel %vm449, %v578, 0.0
      %v624 = vadd.f32 %v577, %v623
      %625 = vadd.xlane.f32.xlu0 %v624
      %v626 = vpop.xlane.xlu0 %625
      %v627 = vsel %vm449, %v580, 0.0
      %v628 = vadd.f32 %v579, %v627
      %629 = vadd.xlane.f32.xlu0 %v628
      %v630 = vpop.xlane.xlu0 %629
      %v631 = vsel %vm449, %v582, 0.0
      %v632 = vadd.f32 %v581, %v631
      %633 = vadd.xlane.f32.xlu0 %v632
      %v634 = vpop.xlane.xlu0 %633
      %v635 = vsel %vm449, %v584, 0.0
      %v636 = vadd.f32 %v583, %v635
      %637 = vadd.xlane.f32.xlu0 %v636
      %v638 = vpop.xlane.xlu0 %637
      %v639 = vsel %vm449, %v586, 0.0
      %v640 = vadd.f32 %v585, %v639
      %641 = vadd.xlane.f32.xlu0 %v640
      %v642 = vpop.xlane.xlu0 %641
      %v643 = vsel %vm449, %v588, 0.0
      %v644 = vadd.f32 %v587, %v643
      %645 = vadd.xlane.f32.xlu0 %v644
      %v646 = vpop.xlane.xlu0 %645
      %v647 = vsel %vm449, %v590, 0.0
      %v648 = vadd.f32 %v589, %v647
      %649 = vadd.xlane.f32.xlu0 %v648
      %v650 = vpop.xlane.xlu0 %649
      %v651 = vsel %vm449, %v592, 0.0
      %v652 = vadd.f32 %v591, %v651
      %653 = vadd.xlane.f32.xlu0 %v652
      %v654 = vpop.xlane.xlu0 %653
      %v655 = vsel %vm449, %v594, 0.0
      %v656 = vadd.f32 %v593, %v655
      %657 = vadd.xlane.f32.xlu0 %v656
      %v658 = vpop.xlane.xlu0 %657
      %v659 = vmul.f32 %v598, %v514
      %v660 = vmul.f32 %v602, %v514
      %v661 = vmul.f32 %v606, %v514
      %v662 = vmul.f32 %v610, %v514
      %v663 = vmul.f32 %v614, %v514
      %v664 = vmul.f32 %v618, %v514
      %v665 = vmul.f32 %v622, %v514
      %v666 = vmul.f32 %v626, %v514
      %v667 = vmul.f32 %v630, %v514
      %v668 = vmul.f32 %v634, %v514
      %v669 = vmul.f32 %v638, %v514
      %v670 = vmul.f32 %v642, %v514
      %v671 = vmul.f32 %v646, %v514
      %v672 = vmul.f32 %v650, %v514
      %v673 = vmul.f32 %v654, %v514
      %v674 = vmul.f32 %v658, %v514
      %v675 = vadd.f32 %v659, 1e-05
      %v676 = vadd.f32 %v660, 1e-05
      %v677 = vadd.f32 %v661, 1e-05
      %v678 = vadd.f32 %v662, 1e-05
      %v679 = vadd.f32 %v663, 1e-05
      %v680 = vadd.f32 %v664, 1e-05
      %v681 = vadd.f32 %v665, 1e-05
      %v682 = vadd.f32 %v666, 1e-05
      %v683 = vadd.f32 %v667, 1e-05
      %v684 = vadd.f32 %v668, 1e-05
      %v685 = vadd.f32 %v669, 1e-05
      %v686 = vadd.f32 %v670, 1e-05
      %v687 = vadd.f32 %v671, 1e-05
      %v688 = vadd.f32 %v672, 1e-05
      %v689 = vadd.f32 %v673, 1e-05
      %v690 = vadd.f32 %v674, 1e-05
      %v691 = vrsqrt.pop %v675
      %v692 = vrsqrt.pop %v676
      %v693 = vrsqrt.pop %v677
      %v694 = vrsqrt.pop %v678
      %v695 = vrsqrt.pop %v679
      %v696 = vrsqrt.pop %v680
      %v697 = vrsqrt.pop %v681
      %v698 = vrsqrt.pop %v682
      %v699 = vrsqrt.pop %v683
      %v700 = vrsqrt.pop %v684
      %v701 = vrsqrt.pop %v685
      %v702 = vrsqrt.pop %v686
      %v703 = vrsqrt.pop %v687
      %v704 = vrsqrt.pop %v688
      %v705 = vrsqrt.pop %v689
      %v706 = vrsqrt.pop %v690
      %v707 = vmul.f32 %v531, %v691
      %v708 = vmul.f32 %v532, %v691
      %v709 = vmul.f32 %v533, %v692
      %v710 = vmul.f32 %v534, %v692
      %v711 = vmul.f32 %v535, %v693
      %v712 = vmul.f32 %v536, %v693
      %v713 = vmul.f32 %v537, %v694
      %v714 = vmul.f32 %v538, %v694
      %v715 = vmul.f32 %v539, %v695
      %v716 = vmul.f32 %v540, %v695
      %v717 = vmul.f32 %v541, %v696
      %v718 = vmul.f32 %v542, %v696
      %v719 = vmul.f32 %v543, %v697
      %v720 = vmul.f32 %v544, %v697
      %v721 = vmul.f32 %v545, %v698
      %v722 = vmul.f32 %v546, %v698
      %v723 = vmul.f32 %v547, %v699
      %v724 = vmul.f32 %v548, %v699
      %v725 = vmul.f32 %v549, %v700
      %v726 = vmul.f32 %v550, %v700
      %v727 = vmul.f32 %v551, %v701
      %v728 = vmul.f32 %v552, %v701
      %v729 = vmul.f32 %v553, %v702
      %v730 = vmul.f32 %v554, %v702
      %v731 = vmul.f32 %v555, %v703
      %v732 = vmul.f32 %v556, %v703
      %v733 = vmul.f32 %v557, %v704
      %v734 = vmul.f32 %v558, %v704
      %v735 = vmul.f32 %v559, %v705
      %v736 = vmul.f32 %v560, %v705
      %v737 = vmul.f32 %v561, %v706
      %v738 = vmul.f32 %v562, %v706
      %v740 = vlaneseq
      %v741 = vshrl.u32 %v740, 7
      %v742 = vsub.s32 0, %v741
      %v743 = vrot.slane %v447, %v742
      %v744 = vlaneseq
      %v745 = vshrl.u32 %v744, 7
      %v746 = vsub.s32 1, %v745
      %v747 = vrot.slane %v447, %v746
      %v750 = vmul.f32 %v707, %v743
      %v751 = vmul.f32 %v708, %v747
      %v752 = vmul.f32 %v709, %v743
      %v753 = vmul.f32 %v710, %v747
      %v754 = vmul.f32 %v711, %v743
      %v755 = vmul.f32 %v712, %v747
      %v756 = vmul.f32 %v713, %v743
      %v757 = vmul.f32 %v714, %v747
      %v758 = vmul.f32 %v715, %v743
      %v759 = vmul.f32 %v716, %v747
      %v760 = vmul.f32 %v717, %v743
      %v761 = vmul.f32 %v718, %v747
      %v762 = vmul.f32 %v719, %v743
      %v763 = vmul.f32 %v720, %v747
      %v764 = vmul.f32 %v721, %v743
      %v765 = vmul.f32 %v722, %v747
      %v766 = vmul.f32 %v723, %v743
      %v767 = vmul.f32 %v724, %v747
      %v768 = vmul.f32 %v725, %v743
      %v769 = vmul.f32 %v726, %v747
      %v770 = vmul.f32 %v727, %v743
      %v771 = vmul.f32 %v728, %v747
      %v772 = vmul.f32 %v729, %v743
      %v773 = vmul.f32 %v730, %v747
      %v774 = vmul.f32 %v731, %v743
      %v775 = vmul.f32 %v732, %v747
      %v776 = vmul.f32 %v733, %v743
      %v777 = vmul.f32 %v734, %v747
      %v778 = vmul.f32 %v735, %v743
      %v779 = vmul.f32 %v736, %v747
      %v780 = vmul.f32 %v737, %v743
      %v781 = vmul.f32 %v738, %v747
      %v783 = vlaneseq
      %v784 = vshrl.u32 %v783, 7
      %v785 = vsub.s32 0, %v784
      %v786 = vrot.slane %v448, %v785
      %v787 = vlaneseq
      %v788 = vshrl.u32 %v787, 7
      %v789 = vsub.s32 1, %v788
      %v790 = vrot.slane %v448, %v789
      %v793 = vadd.f32 %v750, %v786
      %v794 = vadd.f32 %v751, %v790
      %v795 = vadd.f32 %v752, %v786
      %v796 = vadd.f32 %v753, %v790
      %v797 = vadd.f32 %v754, %v786
      %v798 = vadd.f32 %v755, %v790
      %v799 = vadd.f32 %v756, %v786
      %v800 = vadd.f32 %v757, %v790
      %v801 = vadd.f32 %v758, %v786
      %v802 = vadd.f32 %v759, %v790
      %v803 = vadd.f32 %v760, %v786
      %v804 = vadd.f32 %v761, %v790
      %v805 = vadd.f32 %v762, %v786
      %v806 = vadd.f32 %v763, %v790
      %v807 = vadd.f32 %v764, %v786
      %v808 = vadd.f32 %v765, %v790
      %v809 = vadd.f32 %v766, %v786
      %v810 = vadd.f32 %v767, %v790
      %v811 = vadd.f32 %v768, %v786
      %v812 = vadd.f32 %v769, %v790
      %v813 = vadd.f32 %v770, %v786
      %v814 = vadd.f32 %v771, %v790
      %v815 = vadd.f32 %v772, %v786
      %v816 = vadd.f32 %v773, %v790
      %v817 = vadd.f32 %v774, %v786
      %v818 = vadd.f32 %v775, %v790
      %v819 = vadd.f32 %v776, %v786
      %v820 = vadd.f32 %v777, %v790
      %v821 = vadd.f32 %v778, %v786
      %v822 = vadd.f32 %v779, %v790
      %v823 = vadd.f32 %v780, %v786
      %v824 = vadd.f32 %v781, %v790
      %v825 = vpack.c.bf16 %v795, %v793
      %v826 = vpack.c.bf16 %v796, %v794
      %v827 = vpack.c.bf16 %v799, %v797
      %v828 = vpack.c.bf16 %v800, %v798
      %v829 = vpack.c.bf16 %v803, %v801
      %v830 = vpack.c.bf16 %v804, %v802
      %v831 = vpack.c.bf16 %v807, %v805
      %v832 = vpack.c.bf16 %v808, %v806
      %v833 = vpack.c.bf16 %v811, %v809
      %v834 = vpack.c.bf16 %v812, %v810
      %v835 = vpack.c.bf16 %v815, %v813
      %v836 = vpack.c.bf16 %v816, %v814
      %v837 = vpack.c.bf16 %v819, %v817
      %v838 = vpack.c.bf16 %v820, %v818
      %v839 = vpack.c.bf16 %v823, %v821
      %v840 = vpack.c.bf16 %v824, %v822
      %v841 = vld [vmem:[%s3] sm:$0xff]
      %v842 = vld [vmem:[%s3 + $0x8] sm:$0xff]
      %v843 = vld [vmem:[%s3 + $0x10] sm:$0xf]
      %v844 = vld [vmem:[%s3 + $0x14] sm:$0xff]
      %v845 = vld [vmem:[%s3 + $0x1c] sm:$0xff]
      %v846 = vld [vmem:[%s3 + $0x24] sm:$0xf]
      %v847 = vld [vmem:[%s3 + $0x28] sm:$0xff]
      %v848 = vld [vmem:[%s3 + $0x30] sm:$0xff]
      %v849 = vld [vmem:[%s3 + $0x38] sm:$0xf]
      %v850 = vld [vmem:[%s3 + $0x3c] sm:$0xff]
      %v851 = vld [vmem:[%s3 + $0x44] sm:$0xff]
      %v852 = vld [vmem:[%s3 + $0x4c] sm:$0xf]
      %v853 = vld [vmem:[%s3 + $0x50] sm:$0xff]
      %v854 = vld [vmem:[%s3 + $0x58] sm:$0xff]
      %v855 = vld [vmem:[%s3 + $0x60] sm:$0xf]
      %v856 = vld [vmem:[%s3 + $0x64] sm:$0xff]
      %v857 = vld [vmem:[%s3 + $0x6c] sm:$0xff]
      %v858 = vld [vmem:[%s3 + $0x74] sm:$0xf]
      %v859 = vld [vmem:[%s3 + $0x78] sm:$0xff]
      %v860 = vld [vmem:[%s3 + $0x80] sm:$0xff]
      %v861 = vld [vmem:[%s3 + $0x88] sm:$0xf]
      %v862 = vld [vmem:[%s3 + $0x8c] sm:$0xff]
      %v863 = vld [vmem:[%s3 + $0x94] sm:$0xff]
      %v864 = vld [vmem:[%s3 + $0x9c] sm:$0xf]
      %v865 = vld [vmem:[%s3 + $0xa0] sm:$0xff]
      %v866 = vld [vmem:[%s3 + $0xa8] sm:$0xff]
      %v867 = vld [vmem:[%s3 + $0xb0] sm:$0xf]
      %v868 = vld [vmem:[%s3 + $0xb4] sm:$0xff]
      %v869 = vld [vmem:[%s3 + $0xbc] sm:$0xff]
      %v870 = vld [vmem:[%s3 + $0xc4] sm:$0xf]
      %v871 = vld [vmem:[%s3 + $0xc8] sm:$0xff]
      %v872 = vld [vmem:[%s3 + $0xd0] sm:$0xff]
      %v873 = vld [vmem:[%s3 + $0xd8] sm:$0xf]
      %v874 = vld [vmem:[%s3 + $0xdc] sm:$0xff]
      %v875 = vld [vmem:[%s3 + $0xe4] sm:$0xff]
      %v876 = vld [vmem:[%s3 + $0xec] sm:$0xf]
      %v877 = vld [vmem:[%s3 + $0xf0] sm:$0xff]
      %v878 = vld [vmem:[%s3 + $0xf8] sm:$0xff]
      %v879 = vld [vmem:[%s3 + $0x100] sm:$0xf]
      %v880 = vld [vmem:[%s3 + $0x104] sm:$0xff]
      %v881 = vld [vmem:[%s3 + $0x10c] sm:$0xff]
      %v882 = vld [vmem:[%s3 + $0x114] sm:$0xf]
      %v883 = vld [vmem:[%s3 + $0x118] sm:$0xff]
      %v884 = vld [vmem:[%s3 + $0x120] sm:$0xff]
      %v885 = vld [vmem:[%s3 + $0x128] sm:$0xf]
      %v886 = vld [vmem:[%s3 + $0x12c] sm:$0xff]
      %v887 = vld [vmem:[%s3 + $0x134] sm:$0xff]
      %v888 = vld [vmem:[%s3 + $0x13c] sm:$0xf]
      %v889 = vld [vmem:[%s3 + $0x140] sm:$0xff]
      %v890 = vld [vmem:[%s3 + $0x148] sm:$0xff]
      %v891 = vld [vmem:[%s3 + $0x150] sm:$0xf]
      %v892 = vld [vmem:[%s3 + $0x154] sm:$0xff]
      %v893 = vld [vmem:[%s3 + $0x15c] sm:$0xff]
      %v894 = vld [vmem:[%s3 + $0x164] sm:$0xf]
      %v895 = vld [vmem:[%s3 + $0x168] sm:$0xff]
      %v896 = vld [vmem:[%s3 + $0x170] sm:$0xff]
      %v897 = vld [vmem:[%s3 + $0x178] sm:$0xf]
      %v898 = vld [vmem:[%s3 + $0x17c] sm:$0xff]
      %v899 = vld [vmem:[%s3 + $0x184] sm:$0xff]
      %v900 = vld [vmem:[%s3 + $0x18c] sm:$0xf]
      %v901 = vld [vmem:[%s3 + $0x190] sm:$0xff]
      %v902 = vld [vmem:[%s3 + $0x198] sm:$0xff]
      %v903 = vld [vmem:[%s3 + $0x1a0] sm:$0xf]
      %v904 = vld [vmem:[%s3 + $0x1a4] sm:$0xff]
      %v905 = vld [vmem:[%s3 + $0x1ac] sm:$0xff]
      %v906 = vld [vmem:[%s3 + $0x1b4] sm:$0xf]
      %v907 = vld [vmem:[%s3 + $0x1b8] sm:$0xff]
      %v908 = vld [vmem:[%s3 + $0x1c0] sm:$0xff]
      %v909 = vld [vmem:[%s3 + $0x1c8] sm:$0xf]
      %v910 = vld [vmem:[%s3 + $0x1cc] sm:$0xff]
      %v911 = vld [vmem:[%s3 + $0x1d4] sm:$0xff]
      %v912 = vld [vmem:[%s3 + $0x1dc] sm:$0xf]
      %v985 = vunpack.c.l.b16 %v841
      %v986 = vunpack.c.h.b16 %v841
      %v987 = vunpack.c.l.b16 %v842
      %v988 = vunpack.c.h.b16 %v842
      %v989 = vunpack.c.l.b16 %v843
      %v990 = vunpack.c.l.b16 %v844
      %v991 = vunpack.c.h.b16 %v844
      %v992 = vunpack.c.l.b16 %v845
      %v993 = vunpack.c.h.b16 %v845
      %v994 = vunpack.c.l.b16 %v846
      %v995 = vunpack.c.l.b16 %v847
      %v996 = vunpack.c.h.b16 %v847
      %v997 = vunpack.c.l.b16 %v848
      %v998 = vunpack.c.h.b16 %v848
      %v999 = vunpack.c.l.b16 %v849
      %v1000 = vunpack.c.l.b16 %v850
      %v1001 = vunpack.c.h.b16 %v850
      %v1002 = vunpack.c.l.b16 %v851
      %v1003 = vunpack.c.h.b16 %v851
      %v1004 = vunpack.c.l.b16 %v852
      %v1005 = vunpack.c.l.b16 %v853
      %v1006 = vunpack.c.h.b16 %v853
      %v1007 = vunpack.c.l.b16 %v854
      %v1008 = vunpack.c.h.b16 %v854
      %v1009 = vunpack.c.l.b16 %v855
      %v1010 = vunpack.c.l.b16 %v856
      %v1011 = vunpack.c.h.b16 %v856
      %v1012 = vunpack.c.l.b16 %v857
      %v1013 = vunpack.c.h.b16 %v857
      %v1014 = vunpack.c.l.b16 %v858
      %v1015 = vunpack.c.l.b16 %v859
      %v1016 = vunpack.c.h.b16 %v859
      %v1017 = vunpack.c.l.b16 %v860
      %v1018 = vunpack.c.h.b16 %v860
      %v1019 = vunpack.c.l.b16 %v861
      %v1020 = vunpack.c.l.b16 %v862
      %v1021 = vunpack.c.h.b16 %v862
      %v1022 = vunpack.c.l.b16 %v863
      %v1023 = vunpack.c.h.b16 %v863
      %v1024 = vunpack.c.l.b16 %v864
      %v1025 = vunpack.c.l.b16 %v865
      %v1026 = vunpack.c.h.b16 %v865
      %v1027 = vunpack.c.l.b16 %v866
      %v1028 = vunpack.c.h.b16 %v866
      %v1029 = vunpack.c.l.b16 %v867
      %v1030 = vunpack.c.l.b16 %v868
      %v1031 = vunpack.c.h.b16 %v868
      %v1032 = vunpack.c.l.b16 %v869
      %v1033 = vunpack.c.h.b16 %v869
      %v1034 = vunpack.c.l.b16 %v870
      %v1035 = vunpack.c.l.b16 %v871
      %v1036 = vunpack.c.h.b16 %v871
      %v1037 = vunpack.c.l.b16 %v872
      %v1038 = vunpack.c.h.b16 %v872
      %v1039 = vunpack.c.l.b16 %v873
      %v1040 = vunpack.c.l.b16 %v874
      %v1041 = vunpack.c.h.b16 %v874
      %v1042 = vunpack.c.l.b16 %v875
      %v1043 = vunpack.c.h.b16 %v875
      %v1044 = vunpack.c.l.b16 %v876
      %v1045 = vunpack.c.l.b16 %v877
      %v1046 = vunpack.c.h.b16 %v877
      %v1047 = vunpack.c.l.b16 %v878
      %v1048 = vunpack.c.h.b16 %v878
      %v1049 = vunpack.c.l.b16 %v879
      %v1050 = vunpack.c.l.b16 %v880
      %v1051 = vunpack.c.h.b16 %v880
      %v1052 = vunpack.c.l.b16 %v881
      %v1053 = vunpack.c.h.b16 %v881
      %v1054 = vunpack.c.l.b16 %v882
      %v1055 = vunpack.c.l.b16 %v883
      %v1056 = vunpack.c.h.b16 %v883
      %v1057 = vunpack.c.l.b16 %v884
      %v1058 = vunpack.c.h.b16 %v884
      %v1059 = vunpack.c.l.b16 %v885
      %v1060 = vunpack.c.l.b16 %v886
      %v1061 = vunpack.c.h.b16 %v886
      %v1062 = vunpack.c.l.b16 %v887
      %v1063 = vunpack.c.h.b16 %v887
      %v1064 = vunpack.c.l.b16 %v888
      %v1065 = vunpack.c.l.b16 %v889
      %v1066 = vunpack.c.h.b16 %v889
      %v1067 = vunpack.c.l.b16 %v890
      %v1068 = vunpack.c.h.b16 %v890
      %v1069 = vunpack.c.l.b16 %v891
      %v1070 = vunpack.c.l.b16 %v892
      %v1071 = vunpack.c.h.b16 %v892
      %v1072 = vunpack.c.l.b16 %v893
      %v1073 = vunpack.c.h.b16 %v893
      %v1074 = vunpack.c.l.b16 %v894
      %v1075 = vunpack.c.l.b16 %v895
      %v1076 = vunpack.c.h.b16 %v895
      %v1077 = vunpack.c.l.b16 %v896
      %v1078 = vunpack.c.h.b16 %v896
      %v1079 = vunpack.c.l.b16 %v897
      %v1080 = vunpack.c.l.b16 %v898
      %v1081 = vunpack.c.h.b16 %v898
      %v1082 = vunpack.c.l.b16 %v899
      %v1083 = vunpack.c.h.b16 %v899
      %v1084 = vunpack.c.l.b16 %v900
      %v1085 = vunpack.c.l.b16 %v901
      %v1086 = vunpack.c.h.b16 %v901
      %v1087 = vunpack.c.l.b16 %v902
      %v1088 = vunpack.c.h.b16 %v902
      %v1089 = vunpack.c.l.b16 %v903
      %v1090 = vunpack.c.l.b16 %v904
      %v1091 = vunpack.c.h.b16 %v904
      %v1092 = vunpack.c.l.b16 %v905
      %v1093 = vunpack.c.h.b16 %v905
      %v1094 = vunpack.c.l.b16 %v906
      %v1095 = vunpack.c.l.b16 %v907
      %v1096 = vunpack.c.h.b16 %v907
      %v1097 = vunpack.c.l.b16 %v908
      %v1098 = vunpack.c.h.b16 %v908
      %v1099 = vunpack.c.l.b16 %v909
      %v1100 = vunpack.c.l.b16 %v910
      %v1101 = vunpack.c.h.b16 %v910
      %v1102 = vunpack.c.l.b16 %v911
      %v1103 = vunpack.c.h.b16 %v911
      %v1104 = vunpack.c.l.b16 %v912
      %v1105 = vpack.c.b16 %v990, %v985
      %v1106 = vpack.c.b16 %v991, %v986
      %v1107 = vpack.c.b16 %v992, %v987
      %v1108 = vpack.c.b16 %v993, %v988
      %v1109 = vpack.c.b16 %v994, %v989
      %v1110 = vpack.c.b16 %v1000, %v995
      %v1111 = vpack.c.b16 %v1001, %v996
      %v1112 = vpack.c.b16 %v1002, %v997
      %v1113 = vpack.c.b16 %v1003, %v998
      %v1114 = vpack.c.b16 %v1004, %v999
      %v1115 = vpack.c.b16 %v1010, %v1005
      %v1116 = vpack.c.b16 %v1011, %v1006
      %v1117 = vpack.c.b16 %v1012, %v1007
      %v1118 = vpack.c.b16 %v1013, %v1008
      %v1119 = vpack.c.b16 %v1014, %v1009
      %v1120 = vpack.c.b16 %v1020, %v1015
      %v1121 = vpack.c.b16 %v1021, %v1016
      %v1122 = vpack.c.b16 %v1022, %v1017
      %v1123 = vpack.c.b16 %v1023, %v1018
      %v1124 = vpack.c.b16 %v1024, %v1019
      %v1125 = vpack.c.b16 %v1030, %v1025
      %v1126 = vpack.c.b16 %v1031, %v1026
      %v1127 = vpack.c.b16 %v1032, %v1027
      %v1128 = vpack.c.b16 %v1033, %v1028
      %v1129 = vpack.c.b16 %v1034, %v1029
      %v1130 = vpack.c.b16 %v1040, %v1035
      %v1131 = vpack.c.b16 %v1041, %v1036
      %v1132 = vpack.c.b16 %v1042, %v1037
      %v1133 = vpack.c.b16 %v1043, %v1038
      %v1134 = vpack.c.b16 %v1044, %v1039
      %v1135 = vpack.c.b16 %v1050, %v1045
      %v1136 = vpack.c.b16 %v1051, %v1046
      %v1137 = vpack.c.b16 %v1052, %v1047
      %v1138 = vpack.c.b16 %v1053, %v1048
      %v1139 = vpack.c.b16 %v1054, %v1049
      %v1140 = vpack.c.b16 %v1060, %v1055
      %v1141 = vpack.c.b16 %v1061, %v1056
      %v1142 = vpack.c.b16 %v1062, %v1057
      %v1143 = vpack.c.b16 %v1063, %v1058
      %v1144 = vpack.c.b16 %v1064, %v1059
      %v1145 = vpack.c.b16 %v1070, %v1065
      %v1146 = vpack.c.b16 %v1071, %v1066
      %v1147 = vpack.c.b16 %v1072, %v1067
      %v1148 = vpack.c.b16 %v1073, %v1068
      %v1149 = vpack.c.b16 %v1074, %v1069
      %v1150 = vpack.c.b16 %v1080, %v1075
      %v1151 = vpack.c.b16 %v1081, %v1076
      %v1152 = vpack.c.b16 %v1082, %v1077
      %v1153 = vpack.c.b16 %v1083, %v1078
      %v1154 = vpack.c.b16 %v1084, %v1079
      %v1155 = vpack.c.b16 %v1090, %v1085
      %v1156 = vpack.c.b16 %v1091, %v1086
      %v1157 = vpack.c.b16 %v1092, %v1087
      %v1158 = vpack.c.b16 %v1093, %v1088
      %v1159 = vpack.c.b16 %v1094, %v1089
      %v1160 = vpack.c.b16 %v1100, %v1095
      %v1161 = vpack.c.b16 %v1101, %v1096
      %v1162 = vpack.c.b16 %v1102, %v1097
      %v1163 = vpack.c.b16 %v1103, %v1098
      %v1164 = vpack.c.b16 %v1104, %v1099
      %v1226 = vsel %vm449, %v826, 0
      %v1229 = vsel %vm449, %v828, 0
      %v1232 = vsel %vm449, %v830, 0
      %v1235 = vsel %vm449, %v832, 0
      %v1238 = vsel %vm449, %v834, 0
      %v1241 = vsel %vm449, %v836, 0
      %v1244 = vsel %vm449, %v838, 0
      %v1247 = vsel %vm449, %v840, 0
      %1249 = vmatprep.subr.bf16.mxu0 %v1141
      %1250 = vmatpush1.bf16.msra.mxu0 %v1140
      %1251 = vmatprep.subr.bf16.mxu0 %v1136
      %1252 = vmatpush1.bf16.msra.mxu0 %v1135
      %1253 = vmatprep.subr.bf16.mxu0 %v1131
      %1254 = vmatpush1.bf16.msra.mxu0 %v1130
      %1255 = vmatprep.subr.bf16.mxu0 %v1126
      %1256 = vmatpush1.bf16.msra.mxu0 %v1125
      %1257 = vmatprep.subr.bf16.mxu0 %v1121
      %1258 = vmatpush1.bf16.msra.mxu0 %v1120
      %1259 = vmatprep.subr.bf16.mxu0 %v1116
      %1260 = vmatpush1.bf16.msra.mxu0 %v1115
      %1261 = vmatprep.subr.bf16.mxu0 %v1111
      %1262 = vmatpush1.bf16.msra.mxu0 %v1110
      %1263 = vmatprep.subr.bf16.mxu0 %v1106
      %1264 = vmatpush1.bf16.msra.mxu0 %v1105
      %1265 = vmatprep.subr.bf16.mxu0 0
      %1266 = vmatpush2.bf16.msra.mxu0 0
      %1267 = vmatprep.subr.bf16.mxu0 0
      %1268 = vmatpush2.bf16.msra.mxu0 0
      %1269 = vmatprep.subr.bf16.mxu0 0
      %1270 = vmatpush2.bf16.msra.mxu0 0
      %1271 = vmatprep.subr.bf16.mxu0 0
      %1272 = vmatpush2.bf16.msra.mxu0 0
      %1273 = vmatprep.subr.bf16.mxu0 %v1161
      %1274 = vmatpush2.bf16.msra.mxu0 %v1160
      %1275 = vmatprep.subr.bf16.mxu0 %v1156
      %1276 = vmatpush2.bf16.msra.mxu0 %v1155
      %1277 = vmatprep.subr.bf16.mxu0 %v1151
      %1278 = vmatpush2.bf16.msra.mxu0 %v1150
      %1279 = vmatprep.subr.bf16.mxu0 %v1146
      %1280 = vmatpush2.bf16.msra.mxu0 %v1145
      %1281 = vmatprep.mubr.bf16.mxu0 %v1226
      %1282 = vmatmul.mubr.bf16.gmra.mxu0 %v825
      %v1283 = vpop.f32.mrf.mxu0
      %v1284 = vadd.f32 0.0, %v1283
      %v1285 = vpop.f32.mrf.mxu0
      %v1286 = vadd.f32 0.0, %v1285
      %v1287 = vpop.f32.mrf.mxu0
      %v1288 = vadd.f32 0.0, %v1287
      %v1289 = vpop.f32.mrf.mxu0
      %v1290 = vadd.f32 0.0, %v1289
      %1291 = vmatprep.mubr.bf16.mxu0 %v1229
      %1292 = vmatmul.mubr.bf16.gmra.mxu0 %v827
      %v1293 = vpop.f32.mrf.mxu0
      %v1294 = vadd.f32 0.0, %v1293
      %v1295 = vpop.f32.mrf.mxu0
      %v1296 = vadd.f32 0.0, %v1295
      %v1297 = vpop.f32.mrf.mxu0
      %v1298 = vadd.f32 0.0, %v1297
      %v1299 = vpop.f32.mrf.mxu0
      %v1300 = vadd.f32 0.0, %v1299
      %1301 = vmatprep.mubr.bf16.mxu0 %v1232
      %1302 = vmatmul.mubr.bf16.gmra.mxu0 %v829
      %v1303 = vpop.f32.mrf.mxu0
      %v1304 = vadd.f32 0.0, %v1303
      %v1305 = vpop.f32.mrf.mxu0
      %v1306 = vadd.f32 0.0, %v1305
      %v1307 = vpop.f32.mrf.mxu0
      %v1308 = vadd.f32 0.0, %v1307
      %v1309 = vpop.f32.mrf.mxu0
      %v1310 = vadd.f32 0.0, %v1309
      %1311 = vmatprep.mubr.bf16.mxu0 %v1235
      %1312 = vmatmul.mubr.bf16.gmra.mxu0 %v831
      %v1313 = vpop.f32.mrf.mxu0
      %v1314 = vadd.f32 0.0, %v1313
      %v1315 = vpop.f32.mrf.mxu0
      %v1316 = vadd.f32 0.0, %v1315
      %v1317 = vpop.f32.mrf.mxu0
      %v1318 = vadd.f32 0.0, %v1317
      %v1319 = vpop.f32.mrf.mxu0
      %v1320 = vadd.f32 0.0, %v1319
      %1321 = vmatprep.mubr.bf16.mxu0 %v1238
      %1322 = vmatmul.mubr.bf16.gmra.mxu0 %v833
      %v1323 = vpop.f32.mrf.mxu0
      %v1324 = vadd.f32 0.0, %v1323
      %v1325 = vpop.f32.mrf.mxu0
      %v1326 = vadd.f32 0.0, %v1325
      %v1327 = vpop.f32.mrf.mxu0
      %v1328 = vadd.f32 0.0, %v1327
      %v1329 = vpop.f32.mrf.mxu0
      %v1330 = vadd.f32 0.0, %v1329
      %1331 = vmatprep.mubr.bf16.mxu0 %v1241
      %1332 = vmatmul.mubr.bf16.gmra.mxu0 %v835
      %v1333 = vpop.f32.mrf.mxu0
      %v1334 = vadd.f32 0.0, %v1333
      %v1335 = vpop.f32.mrf.mxu0
      %v1336 = vadd.f32 0.0, %v1335
      %v1337 = vpop.f32.mrf.mxu0
      %v1338 = vadd.f32 0.0, %v1337
      %v1339 = vpop.f32.mrf.mxu0
      %v1340 = vadd.f32 0.0, %v1339
      %1341 = vmatprep.mubr.bf16.mxu0 %v1244
      %1342 = vmatmul.mubr.bf16.gmra.mxu0 %v837
      %v1343 = vpop.f32.mrf.mxu0
      %v1344 = vadd.f32 0.0, %v1343
      %v1345 = vpop.f32.mrf.mxu0
      %v1346 = vadd.f32 0.0, %v1345
      %v1347 = vpop.f32.mrf.mxu0
      %v1348 = vadd.f32 0.0, %v1347
      %v1349 = vpop.f32.mrf.mxu0
      %v1350 = vadd.f32 0.0, %v1349
      %1351 = vmatprep.mubr.bf16.mxu0 %v1247
      %1352 = vmatmul.mubr.bf16.gmra.mxu0 %v839
      %v1353 = vpop.f32.mrf.mxu0
      %v1354 = vadd.f32 0.0, %v1353
      %v1355 = vpop.f32.mrf.mxu0
      %v1356 = vadd.f32 0.0, %v1355
      %v1357 = vpop.f32.mrf.mxu0
      %v1358 = vadd.f32 0.0, %v1357
      %v1359 = vpop.f32.mrf.mxu0
      %v1360 = vadd.f32 0.0, %v1359
      %1361 = vdwg.mxu0
      %1362 = vmatprep.subr.bf16.mxu0 %v1143
      %1363 = vmatpush1.bf16.msra.mxu0 %v1142
      %1364 = vmatprep.subr.bf16.mxu0 %v1138
      %1365 = vmatpush1.bf16.msra.mxu0 %v1137
      %1366 = vmatprep.subr.bf16.mxu0 %v1133
      %1367 = vmatpush1.bf16.msra.mxu0 %v1132
      %1368 = vmatprep.subr.bf16.mxu0 %v1128
      %1369 = vmatpush1.bf16.msra.mxu0 %v1127
      %1370 = vmatprep.subr.bf16.mxu0 %v1123
      %1371 = vmatpush1.bf16.msra.mxu0 %v1122
      %1372 = vmatprep.subr.bf16.mxu0 %v1118
      %1373 = vmatpush1.bf16.msra.mxu0 %v1117
      %1374 = vmatprep.subr.bf16.mxu0 %v1113
      %1375 = vmatpush1.bf16.msra.mxu0 %v1112
      %1376 = vmatprep.subr.bf16.mxu0 %v1108
      %1377 = vmatpush1.bf16.msra.mxu0 %v1107
      %1378 = vmatprep.subr.bf16.mxu0 0
      %1379 = vmatpush2.bf16.msra.mxu0 0
      %1380 = vmatprep.subr.bf16.mxu0 0
      %1381 = vmatpush2.bf16.msra.mxu0 0
      %1382 = vmatprep.subr.bf16.mxu0 0
      %1383 = vmatpush2.bf16.msra.mxu0 0
      %1384 = vmatprep.subr.bf16.mxu0 0
      %1385 = vmatpush2.bf16.msra.mxu0 0
      %1386 = vmatprep.subr.bf16.mxu0 %v1163
      %1387 = vmatpush2.bf16.msra.mxu0 %v1162
      %1388 = vmatprep.subr.bf16.mxu0 %v1158
      %1389 = vmatpush2.bf16.msra.mxu0 %v1157
      %1390 = vmatprep.subr.bf16.mxu0 %v1153
      %1391 = vmatpush2.bf16.msra.mxu0 %v1152
      %1392 = vmatprep.subr.bf16.mxu0 %v1148
      %1393 = vmatpush2.bf16.msra.mxu0 %v1147
      %1394 = vmatprep.mubr.bf16.mxu0 %v1226
      %1395 = vmatmul.mubr.bf16.gmra.mxu0 %v825
      %v1396 = vpop.f32.mrf.mxu0
      %v1397 = vadd.f32 0.0, %v1396
      %v1398 = vpop.f32.mrf.mxu0
      %v1399 = vadd.f32 0.0, %v1398
      %v1400 = vpop.f32.mrf.mxu0
      %v1401 = vadd.f32 0.0, %v1400
      %v1402 = vpop.f32.mrf.mxu0
      %v1403 = vadd.f32 0.0, %v1402
      %1404 = vmatprep.mubr.bf16.mxu0 %v1229
      %1405 = vmatmul.mubr.bf16.gmra.mxu0 %v827
      %v1406 = vpop.f32.mrf.mxu0
      %v1407 = vadd.f32 0.0, %v1406
      %v1408 = vpop.f32.mrf.mxu0
      %v1409 = vadd.f32 0.0, %v1408
      %v1410 = vpop.f32.mrf.mxu0
      %v1411 = vadd.f32 0.0, %v1410
      %v1412 = vpop.f32.mrf.mxu0
      %v1413 = vadd.f32 0.0, %v1412
      %1414 = vmatprep.mubr.bf16.mxu0 %v1232
      %1415 = vmatmul.mubr.bf16.gmra.mxu0 %v829
      %v1416 = vpop.f32.mrf.mxu0
      %v1417 = vadd.f32 0.0, %v1416
      %v1418 = vpop.f32.mrf.mxu0
      %v1419 = vadd.f32 0.0, %v1418
      %v1420 = vpop.f32.mrf.mxu0
      %v1421 = vadd.f32 0.0, %v1420
      %v1422 = vpop.f32.mrf.mxu0
      %v1423 = vadd.f32 0.0, %v1422
      %1424 = vmatprep.mubr.bf16.mxu0 %v1235
      %1425 = vmatmul.mubr.bf16.gmra.mxu0 %v831
      %v1426 = vpop.f32.mrf.mxu0
      %v1427 = vadd.f32 0.0, %v1426
      %v1428 = vpop.f32.mrf.mxu0
      %v1429 = vadd.f32 0.0, %v1428
      %v1430 = vpop.f32.mrf.mxu0
      %v1431 = vadd.f32 0.0, %v1430
      %v1432 = vpop.f32.mrf.mxu0
      %v1433 = vadd.f32 0.0, %v1432
      %1434 = vmatprep.mubr.bf16.mxu0 %v1238
      %1435 = vmatmul.mubr.bf16.gmra.mxu0 %v833
      %v1436 = vpop.f32.mrf.mxu0
      %v1437 = vadd.f32 0.0, %v1436
      %v1438 = vpop.f32.mrf.mxu0
      %v1439 = vadd.f32 0.0, %v1438
      %v1440 = vpop.f32.mrf.mxu0
      %v1441 = vadd.f32 0.0, %v1440
      %v1442 = vpop.f32.mrf.mxu0
      %v1443 = vadd.f32 0.0, %v1442
      %1444 = vmatprep.mubr.bf16.mxu0 %v1241
      %1445 = vmatmul.mubr.bf16.gmra.mxu0 %v835
      %v1446 = vpop.f32.mrf.mxu0
      %v1447 = vadd.f32 0.0, %v1446
      %v1448 = vpop.f32.mrf.mxu0
      %v1449 = vadd.f32 0.0, %v1448
      %v1450 = vpop.f32.mrf.mxu0
      %v1451 = vadd.f32 0.0, %v1450
      %v1452 = vpop.f32.mrf.mxu0
      %v1453 = vadd.f32 0.0, %v1452
      %1454 = vmatprep.mubr.bf16.mxu0 %v1244
      %1455 = vmatmul.mubr.bf16.gmra.mxu0 %v837
      %v1456 = vpop.f32.mrf.mxu0
      %v1457 = vadd.f32 0.0, %v1456
      %v1458 = vpop.f32.mrf.mxu0
      %v1459 = vadd.f32 0.0, %v1458
      %v1460 = vpop.f32.mrf.mxu0
      %v1461 = vadd.f32 0.0, %v1460
      %v1462 = vpop.f32.mrf.mxu0
      %v1463 = vadd.f32 0.0, %v1462
      %1464 = vmatprep.mubr.bf16.mxu0 %v1247
      %1465 = vmatmul.mubr.bf16.gmra.mxu0 %v839
      %v1466 = vpop.f32.mrf.mxu0
      %v1467 = vadd.f32 0.0, %v1466
      %v1468 = vpop.f32.mrf.mxu0
      %v1469 = vadd.f32 0.0, %v1468
      %v1470 = vpop.f32.mrf.mxu0
      %v1471 = vadd.f32 0.0, %v1470
      %v1472 = vpop.f32.mrf.mxu0
      %v1473 = vadd.f32 0.0, %v1472
      %1474 = vdwg.mxu0
      %1475 = vmatprep.subr.bf16.mxu0 0
      %1476 = vmatpush1.bf16.msra.mxu0 %v1144
      %1477 = vmatprep.subr.bf16.mxu0 0
      %1478 = vmatpush1.bf16.msra.mxu0 %v1139
      %1479 = vmatprep.subr.bf16.mxu0 0
      %1480 = vmatpush1.bf16.msra.mxu0 %v1134
      %1481 = vmatprep.subr.bf16.mxu0 0
      %1482 = vmatpush1.bf16.msra.mxu0 %v1129
      %1483 = vmatprep.subr.bf16.mxu0 0
      %1484 = vmatpush1.bf16.msra.mxu0 %v1124
      %1485 = vmatprep.subr.bf16.mxu0 0
      %1486 = vmatpush1.bf16.msra.mxu0 %v1119
      %1487 = vmatprep.subr.bf16.mxu0 0
      %1488 = vmatpush1.bf16.msra.mxu0 %v1114
      %1489 = vmatprep.subr.bf16.mxu0 0
      %1490 = vmatpush1.bf16.msra.mxu0 %v1109
      %1491 = vmatprep.subr.bf16.mxu0 0
      %1492 = vmatpush2.bf16.msra.mxu0 0
      %1493 = vmatprep.subr.bf16.mxu0 0
      %1494 = vmatpush2.bf16.msra.mxu0 0
      %1495 = vmatprep.subr.bf16.mxu0 0
      %1496 = vmatpush2.bf16.msra.mxu0 0
      %1497 = vmatprep.subr.bf16.mxu0 0
      %1498 = vmatpush2.bf16.msra.mxu0 0
      %1499 = vmatprep.subr.bf16.mxu0 0
      %1500 = vmatpush2.bf16.msra.mxu0 %v1164
      %1501 = vmatprep.subr.bf16.mxu0 0
      %1502 = vmatpush2.bf16.msra.mxu0 %v1159
      %1503 = vmatprep.subr.bf16.mxu0 0
      %1504 = vmatpush2.bf16.msra.mxu0 %v1154
      %1505 = vmatprep.subr.bf16.mxu0 0
      %1506 = vmatpush2.bf16.msra.mxu0 %v1149
      %1507 = vmatprep.mubr.bf16.mxu0 %v1226
      %1508 = vmatmul.mubr.bf16.gmra.mxu0 %v825
      %v1509 = vpop.f32.mrf.mxu0
      %v1510 = vadd.f32 0.0, %v1509
      %v1511 = vpop.f32.mrf.mxu0
      %v1512 = vpop.f32.mrf.mxu0
      %v1513 = vadd.f32 0.0, %v1512
      %v1514 = vpop.f32.mrf.mxu0
      %1515 = vmatprep.mubr.bf16.mxu0 %v1229
      %1516 = vmatmul.mubr.bf16.gmra.mxu0 %v827
      %v1517 = vpop.f32.mrf.mxu0
      %v1518 = vadd.f32 0.0, %v1517
      %v1519 = vpop.f32.mrf.mxu0
      %v1520 = vpop.f32.mrf.mxu0
      %v1521 = vadd.f32 0.0, %v1520
      %v1522 = vpop.f32.mrf.mxu0
      %1523 = vmatprep.mubr.bf16.mxu0 %v1232
      %1524 = vmatmul.mubr.bf16.gmra.mxu0 %v829
      %v1525 = vpop.f32.mrf.mxu0
      %v1526 = vadd.f32 0.0, %v1525
      %v1527 = vpop.f32.mrf.mxu0
      %v1528 = vpop.f32.mrf.mxu0
      %v1529 = vadd.f32 0.0, %v1528
      %v1530 = vpop.f32.mrf.mxu0
      %1531 = vmatprep.mubr.bf16.mxu0 %v1235
      %1532 = vmatmul.mubr.bf16.gmra.mxu0 %v831
      %v1533 = vpop.f32.mrf.mxu0
      %v1534 = vadd.f32 0.0, %v1533
      %v1535 = vpop.f32.mrf.mxu0
      %v1536 = vpop.f32.mrf.mxu0
      %v1537 = vadd.f32 0.0, %v1536
      %v1538 = vpop.f32.mrf.mxu0
      %1539 = vmatprep.mubr.bf16.mxu0 %v1238
      %1540 = vmatmul.mubr.bf16.gmra.mxu0 %v833
      %v1541 = vpop.f32.mrf.mxu0
      %v1542 = vadd.f32 0.0, %v1541
      %v1543 = vpop.f32.mrf.mxu0
      %v1544 = vpop.f32.mrf.mxu0
      %v1545 = vadd.f32 0.0, %v1544
      %v1546 = vpop.f32.mrf.mxu0
      %1547 = vmatprep.mubr.bf16.mxu0 %v1241
      %1548 = vmatmul.mubr.bf16.gmra.mxu0 %v835
      %v1549 = vpop.f32.mrf.mxu0
      %v1550 = vadd.f32 0.0, %v1549
      %v1551 = vpop.f32.mrf.mxu0
      %v1552 = vpop.f32.mrf.mxu0
      %v1553 = vadd.f32 0.0, %v1552
      %v1554 = vpop.f32.mrf.mxu0
      %1555 = vmatprep.mubr.bf16.mxu0 %v1244
      %1556 = vmatmul.mubr.bf16.gmra.mxu0 %v837
      %v1557 = vpop.f32.mrf.mxu0
      %v1558 = vadd.f32 0.0, %v1557
      %v1559 = vpop.f32.mrf.mxu0
      %v1560 = vpop.f32.mrf.mxu0
      %v1561 = vadd.f32 0.0, %v1560
      %v1562 = vpop.f32.mrf.mxu0
      %1563 = vmatprep.mubr.bf16.mxu0 %v1247
      %1564 = vmatmul.mubr.bf16.gmra.mxu0 %v839
      %v1565 = vpop.f32.mrf.mxu0
      %v1566 = vadd.f32 0.0, %v1565
      %v1567 = vpop.f32.mrf.mxu0
      %v1568 = vpop.f32.mrf.mxu0
      %v1569 = vadd.f32 0.0, %v1568
      %v1570 = vpop.f32.mrf.mxu0
      %1571 = vdwg.mxu0
      %v1572 = vpack.c.bf16 %v1288, %v1284
      %v1573 = vpack.c.bf16 %v1290, %v1286
      %v1574 = vpack.c.bf16 %v1401, %v1397
      %v1575 = vpack.c.bf16 %v1403, %v1399
      %v1576 = vpack.c.bf16 %v1513, %v1510
      %v1577 = vpack.c.bf16 %v1298, %v1294
      %v1578 = vpack.c.bf16 %v1300, %v1296
      %v1579 = vpack.c.bf16 %v1411, %v1407
      %v1580 = vpack.c.bf16 %v1413, %v1409
      %v1581 = vpack.c.bf16 %v1521, %v1518
      %v1582 = vpack.c.bf16 %v1308, %v1304
      %v1583 = vpack.c.bf16 %v1310, %v1306
      %v1584 = vpack.c.bf16 %v1421, %v1417
      %v1585 = vpack.c.bf16 %v1423, %v1419
      %v1586 = vpack.c.bf16 %v1529, %v1526
      %v1587 = vpack.c.bf16 %v1318, %v1314
      %v1588 = vpack.c.bf16 %v1320, %v1316
      %v1589 = vpack.c.bf16 %v1431, %v1427
      %v1590 = vpack.c.bf16 %v1433, %v1429
      %v1591 = vpack.c.bf16 %v1537, %v1534
      %v1592 = vpack.c.bf16 %v1328, %v1324
      %v1593 = vpack.c.bf16 %v1330, %v1326
      %v1594 = vpack.c.bf16 %v1441, %v1437
      %v1595 = vpack.c.bf16 %v1443, %v1439
      %v1596 = vpack.c.bf16 %v1545, %v1542
      %v1597 = vpack.c.bf16 %v1338, %v1334
      %v1598 = vpack.c.bf16 %v1340, %v1336
      %v1599 = vpack.c.bf16 %v1451, %v1447
      %v1600 = vpack.c.bf16 %v1453, %v1449
      %v1601 = vpack.c.bf16 %v1553, %v1550
      %v1602 = vpack.c.bf16 %v1348, %v1344
      %v1603 = vpack.c.bf16 %v1350, %v1346
      %v1604 = vpack.c.bf16 %v1461, %v1457
      %v1605 = vpack.c.bf16 %v1463, %v1459
      %v1606 = vpack.c.bf16 %v1561, %v1558
      %v1607 = vpack.c.bf16 %v1358, %v1354
      %v1608 = vpack.c.bf16 %v1360, %v1356
      %v1609 = vpack.c.bf16 %v1471, %v1467
      %v1610 = vpack.c.bf16 %v1473, %v1469
      %v1611 = vpack.c.bf16 %v1569, %v1566
      %v1652 = vunpack.c.l.b16 %v1572
      %v1653 = vunpack.c.l.b16 %v1573
      %v1654 = vunpack.c.l.b16 %v1574
      %v1655 = vunpack.c.l.b16 %v1575
      %v1656 = vunpack.c.l.b16 %v1576
      %v1657 = vunpack.c.h.b16 %v1572
      %v1658 = vunpack.c.h.b16 %v1573
      %v1659 = vunpack.c.h.b16 %v1574
      %v1660 = vunpack.c.h.b16 %v1575
      %v1661 = vunpack.c.h.b16 %v1576
      %v1662 = vunpack.c.l.b16 %v1577
      %v1663 = vunpack.c.l.b16 %v1578
      %v1664 = vunpack.c.l.b16 %v1579
      %v1665 = vunpack.c.l.b16 %v1580
      %v1666 = vunpack.c.l.b16 %v1581
      %v1667 = vunpack.c.h.b16 %v1577
      %v1668 = vunpack.c.h.b16 %v1578
      %v1669 = vunpack.c.h.b16 %v1579
      %v1670 = vunpack.c.h.b16 %v1580
      %v1671 = vunpack.c.h.b16 %v1581
      %v1672 = vunpack.c.l.b16 %v1582
      %v1673 = vunpack.c.l.b16 %v1583
      %v1674 = vunpack.c.l.b16 %v1584
      %v1675 = vunpack.c.l.b16 %v1585
      %v1676 = vunpack.c.l.b16 %v1586
      %v1677 = vunpack.c.h.b16 %v1582
      %v1678 = vunpack.c.h.b16 %v1583
      %v1679 = vunpack.c.h.b16 %v1584
      %v1680 = vunpack.c.h.b16 %v1585
      %v1681 = vunpack.c.h.b16 %v1586
      %v1682 = vunpack.c.l.b16 %v1587
      %v1683 = vunpack.c.l.b16 %v1588
      %v1684 = vunpack.c.l.b16 %v1589
      %v1685 = vunpack.c.l.b16 %v1590
      %v1686 = vunpack.c.l.b16 %v1591
      %v1687 = vunpack.c.h.b16 %v1587
      %v1688 = vunpack.c.h.b16 %v1588
      %v1689 = vunpack.c.h.b16 %v1589
      %v1690 = vunpack.c.h.b16 %v1590
      %v1691 = vunpack.c.h.b16 %v1591
      %v1692 = vunpack.c.l.b16 %v1592
      %v1693 = vunpack.c.l.b16 %v1593
      %v1694 = vunpack.c.l.b16 %v1594
      %v1695 = vunpack.c.l.b16 %v1595
      %v1696 = vunpack.c.l.b16 %v1596
      %v1697 = vunpack.c.h.b16 %v1592
      %v1698 = vunpack.c.h.b16 %v1593
      %v1699 = vunpack.c.h.b16 %v1594
      %v1700 = vunpack.c.h.b16 %v1595
      %v1701 = vunpack.c.h.b16 %v1596
      %v1702 = vunpack.c.l.b16 %v1597
      %v1703 = vunpack.c.l.b16 %v1598
      %v1704 = vunpack.c.l.b16 %v1599
      %v1705 = vunpack.c.l.b16 %v1600
      %v1706 = vunpack.c.l.b16 %v1601
      %v1707 = vunpack.c.h.b16 %v1597
      %v1708 = vunpack.c.h.b16 %v1598
      %v1709 = vunpack.c.h.b16 %v1599
      %v1710 = vunpack.c.h.b16 %v1600
      %v1711 = vunpack.c.h.b16 %v1601
      %v1712 = vunpack.c.l.b16 %v1602
      %v1713 = vunpack.c.l.b16 %v1603
      %v1714 = vunpack.c.l.b16 %v1604
      %v1715 = vunpack.c.l.b16 %v1605
      %v1716 = vunpack.c.l.b16 %v1606
      %v1717 = vunpack.c.h.b16 %v1602
      %v1718 = vunpack.c.h.b16 %v1603
      %v1719 = vunpack.c.h.b16 %v1604
      %v1720 = vunpack.c.h.b16 %v1605
      %v1721 = vunpack.c.h.b16 %v1606
      %v1722 = vunpack.c.l.b16 %v1607
      %v1723 = vunpack.c.l.b16 %v1608
      %v1724 = vunpack.c.l.b16 %v1609
      %v1725 = vunpack.c.l.b16 %v1610
      %v1726 = vunpack.c.l.b16 %v1611
      %v1727 = vunpack.c.h.b16 %v1607
      %v1728 = vunpack.c.h.b16 %v1608
      %v1729 = vunpack.c.h.b16 %v1609
      %v1730 = vunpack.c.h.b16 %v1610
      %v1731 = vunpack.c.h.b16 %v1611
      %v1732 = vpack.c.b16 %v1653, %v1652
      %v1733 = vpack.c.b16 %v1655, %v1654
      %v1734 = vpack.c.b16 %v1656, %v1656
      %v1735 = vpack.c.b16 %v1658, %v1657
      %v1736 = vpack.c.b16 %v1660, %v1659
      %v1737 = vpack.c.b16 %v1661, %v1661
      %v1738 = vpack.c.b16 %v1663, %v1662
      %v1739 = vpack.c.b16 %v1665, %v1664
      %v1740 = vpack.c.b16 %v1666, %v1666
      %v1741 = vpack.c.b16 %v1668, %v1667
      %v1742 = vpack.c.b16 %v1670, %v1669
      %v1743 = vpack.c.b16 %v1671, %v1671
      %v1744 = vpack.c.b16 %v1673, %v1672
      %v1745 = vpack.c.b16 %v1675, %v1674
      %v1746 = vpack.c.b16 %v1676, %v1676
      %v1747 = vpack.c.b16 %v1678, %v1677
      %v1748 = vpack.c.b16 %v1680, %v1679
      %v1749 = vpack.c.b16 %v1681, %v1681
      %v1750 = vpack.c.b16 %v1683, %v1682
      %v1751 = vpack.c.b16 %v1685, %v1684
      %v1752 = vpack.c.b16 %v1686, %v1686
      %v1753 = vpack.c.b16 %v1688, %v1687
      %v1754 = vpack.c.b16 %v1690, %v1689
      %v1755 = vpack.c.b16 %v1691, %v1691
      %v1756 = vpack.c.b16 %v1693, %v1692
      %v1757 = vpack.c.b16 %v1695, %v1694
      %v1758 = vpack.c.b16 %v1696, %v1696
      %v1759 = vpack.c.b16 %v1698, %v1697
      %v1760 = vpack.c.b16 %v1700, %v1699
      %v1761 = vpack.c.b16 %v1701, %v1701
      %v1762 = vpack.c.b16 %v1703, %v1702
      %v1763 = vpack.c.b16 %v1705, %v1704
      %v1764 = vpack.c.b16 %v1706, %v1706
      %v1765 = vpack.c.b16 %v1708, %v1707
      %v1766 = vpack.c.b16 %v1710, %v1709
      %v1767 = vpack.c.b16 %v1711, %v1711
      %v1768 = vpack.c.b16 %v1713, %v1712
      %v1769 = vpack.c.b16 %v1715, %v1714
      %v1770 = vpack.c.b16 %v1716, %v1716
      %v1771 = vpack.c.b16 %v1718, %v1717
      %v1772 = vpack.c.b16 %v1720, %v1719
      %v1773 = vpack.c.b16 %v1721, %v1721
      %v1774 = vpack.c.b16 %v1723, %v1722
      %v1775 = vpack.c.b16 %v1725, %v1724
      %v1776 = vpack.c.b16 %v1726, %v1726
      %v1777 = vpack.c.b16 %v1728, %v1727
      %v1778 = vpack.c.b16 %v1730, %v1729
      %v1779 = vpack.c.b16 %v1731, %v1731
      %1828 = vst [vmem:[#allocation2] sm:$0xff] %v1732
      %1829 = vst [vmem:[#allocation2 + $0x8] sm:$0xff] %v1733
      %vm1830 = vcmask 519168
      %1831 = vst.msk [vmem:[#allocation2 + $0x10] sm:$0xf] %vm1830, %v1734
      %1832 = vst [vmem:[#allocation2 + $0x14] sm:$0xff] %v1735
      %1833 = vst [vmem:[#allocation2 + $0x1c] sm:$0xff] %v1736
      %1834 = vst.msk [vmem:[#allocation2 + $0x24] sm:$0xf] %vm1830, %v1737
      %1835 = vst [vmem:[#allocation2 + $0x28] sm:$0xff] %v1738
      %1836 = vst [vmem:[#allocation2 + $0x30] sm:$0xff] %v1739
      %1837 = vst.msk [vmem:[#allocation2 + $0x38] sm:$0xf] %vm1830, %v1740
      %1838 = vst [vmem:[#allocation2 + $0x3c] sm:$0xff] %v1741
      %1839 = vst [vmem:[#allocation2 + $0x44] sm:$0xff] %v1742
      %1840 = vst.msk [vmem:[#allocation2 + $0x4c] sm:$0xf] %vm1830, %v1743
      %1841 = vst [vmem:[#allocation2 + $0x50] sm:$0xff] %v1744
      %1842 = vst [vmem:[#allocation2 + $0x58] sm:$0xff] %v1745
      %1843 = vst.msk [vmem:[#allocation2 + $0x60] sm:$0xf] %vm1830, %v1746
      %1844 = vst [vmem:[#allocation2 + $0x64] sm:$0xff] %v1747
      %1845 = vst [vmem:[#allocation2 + $0x6c] sm:$0xff] %v1748
      %1846 = vst.msk [vmem:[#allocation2 + $0x74] sm:$0xf] %vm1830, %v1749
      %1847 = vst [vmem:[#allocation2 + $0x78] sm:$0xff] %v1750
      %1848 = vst [vmem:[#allocation2 + $0x80] sm:$0xff] %v1751
      %1849 = vst.msk [vmem:[#allocation2 + $0x88] sm:$0xf] %vm1830, %v1752
      %1850 = vst [vmem:[#allocation2 + $0x8c] sm:$0xff] %v1753
      %1851 = vst [vmem:[#allocation2 + $0x94] sm:$0xff] %v1754
      %1852 = vst.msk [vmem:[#allocation2 + $0x9c] sm:$0xf] %vm1830, %v1755
      %1853 = vst [vmem:[#allocation2 + $0xa0] sm:$0xff] %v1756
      %1854 = vst [vmem:[#allocation2 + $0xa8] sm:$0xff] %v1757
      %1855 = vst.msk [vmem:[#allocation2 + $0xb0] sm:$0xf] %vm1830, %v1758
      %1856 = vst [vmem:[#allocation2 + $0xb4] sm:$0xff] %v1759
      %1857 = vst [vmem:[#allocation2 + $0xbc] sm:$0xff] %v1760
      %1858 = vst.msk [vmem:[#allocation2 + $0xc4] sm:$0xf] %vm1830, %v1761
      %1859 = vst [vmem:[#allocation2 + $0xc8] sm:$0xff] %v1762
      %1860 = vst [vmem:[#allocation2 + $0xd0] sm:$0xff] %v1763
      %1861 = vst.msk [vmem:[#allocation2 + $0xd8] sm:$0xf] %vm1830, %v1764
      %1862 = vst [vmem:[#allocation2 + $0xdc] sm:$0xff] %v1765
      %1863 = vst [vmem:[#allocation2 + $0xe4] sm:$0xff] %v1766
      %1864 = vst.msk [vmem:[#allocation2 + $0xec] sm:$0xf] %vm1830, %v1767
      %1865 = vst [vmem:[#allocation2 + $0xf0] sm:$0xff] %v1768
      %1866 = vst [vmem:[#allocation2 + $0xf8] sm:$0xff] %v1769
      %1867 = vst.msk [vmem:[#allocation2 + $0x100] sm:$0xf] %vm1830, %v1770
      %1868 = vst [vmem:[#allocation2 + $0x104] sm:$0xff] %v1771
      %1869 = vst [vmem:[#allocation2 + $0x10c] sm:$0xff] %v1772
      %1870 = vst.msk [vmem:[#allocation2 + $0x114] sm:$0xf] %vm1830, %v1773
      %1871 = vst [vmem:[#allocation2 + $0x118] sm:$0xff] %v1774
      %1872 = vst [vmem:[#allocation2 + $0x120] sm:$0xff] %v1775
      %1873 = vst.msk [vmem:[#allocation2 + $0x128] sm:$0xf] %vm1830, %v1776
      %1874 = vst [vmem:[#allocation2 + $0x12c] sm:$0xff] %v1777
      %1875 = vst [vmem:[#allocation2 + $0x134] sm:$0xff] %v1778
      %1876 = vst.msk [vmem:[#allocation2 + $0x13c] sm:$0xf] %vm1830, %v1779
      %v1877 = vlaneseq
      %v1878 = vshrl.u32 %v1877, 7
      %v1879 = vadd.s32 %v1878, 8
      %v1880 = vadd.s32 %v1878, 16
      %v1881 = vadd.s32 %v1878, 24
      %v1882 = vadd.s32 %v1878, 32
      %v1883 = vadd.s32 %v1878, 40
      %v1884 = vadd.s32 %v1878, 48
      %v1885 = vadd.s32 %v1878, 56
      %v1886 = vadd.s32 %v1878, 64
      %v1887 = vadd.s32 %v1878, 72
      %v1888 = vadd.s32 %v1878, 80
      %v1889 = vadd.s32 %v1878, 88
      %v1890 = vadd.s32 %v1878, 96
      %v1891 = vadd.s32 %v1878, 104
      %v1892 = vadd.s32 %v1878, 112
      %v1893 = vadd.s32 %v1878, 120
      %v1894 = vlaneseq
      %v1895 = vand.u32 %v1894, 127
      %vm1896 = vcmp.ge.s32.totalorder %v1878, %v1895
      %vm1897 = vcmp.ge.s32.totalorder %v1879, %v1895
      %vm1898 = vcmp.ge.s32.totalorder %v1880, %v1895
      %vm1899 = vcmp.ge.s32.totalorder %v1881, %v1895
      %vm1900 = vcmp.ge.s32.totalorder %v1882, %v1895
      %vm1901 = vcmp.ge.s32.totalorder %v1883, %v1895
      %vm1902 = vcmp.ge.s32.totalorder %v1884, %v1895
      %vm1903 = vcmp.ge.s32.totalorder %v1885, %v1895
      %vm1904 = vcmp.ge.s32.totalorder %v1886, %v1895
      %vm1905 = vcmp.ge.s32.totalorder %v1887, %v1895
      %vm1906 = vcmp.ge.s32.totalorder %v1888, %v1895
      %vm1907 = vcmp.ge.s32.totalorder %v1889, %v1895
      %vm1908 = vcmp.ge.s32.totalorder %v1890, %v1895
      %vm1909 = vcmp.ge.s32.totalorder %v1891, %v1895
      %vm1910 = vcmp.ge.s32.totalorder %v1892, %v1895
      %vm1911 = vcmp.ge.s32.totalorder %v1893, %v1895
      %v1912 = vsel %vm1896, 0.0, -1e+30
      %v1913 = vsel %vm1897, 0.0, -1e+30
      %v1914 = vsel %vm1898, 0.0, -1e+30
      %v1915 = vsel %vm1899, 0.0, -1e+30
      %v1916 = vsel %vm1900, 0.0, -1e+30
      %v1917 = vsel %vm1901, 0.0, -1e+30
      %v1918 = vsel %vm1902, 0.0, -1e+30
      %v1919 = vsel %vm1903, 0.0, -1e+30
      %v1920 = vsel %vm1904, 0.0, -1e+30
      %v1921 = vsel %vm1905, 0.0, -1e+30
      %v1922 = vsel %vm1906, 0.0, -1e+30
      %v1923 = vsel %vm1907, 0.0, -1e+30
      %v1924 = vsel %vm1908, 0.0, -1e+30
      %v1925 = vsel %vm1909, 0.0, -1e+30
      %v1926 = vsel %vm1910, 0.0, -1e+30
      %v1927 = vsel %vm1911, 0.0, -1e+30
      %v1928 = vld [vmem:[%s4] sm:$0xff]
      %v1929 = vld [vmem:[%s4 + $0x8] sm:$0xff]
      %v1930 = vld [vmem:[%s4 + $0x10] sm:$0xff]
      %v1931 = vld [vmem:[%s4 + $0x18] sm:$0xff]
      %v1932 = vld [vmem:[%s4 + $0x20] sm:$0xff]
      %v1933 = vld [vmem:[%s4 + $0x28] sm:$0xff]
      %v1934 = vld [vmem:[%s4 + $0x30] sm:$0xff]
      %v1935 = vld [vmem:[%s4 + $0x38] sm:$0xff]
      %v1936 = vld [vmem:[%s4 + $0x40] sm:$0xff]
      %v1937 = vld [vmem:[%s4 + $0x48] sm:$0xff]
      %v1938 = vld [vmem:[%s4 + $0x50] sm:$0xff]
      %v1939 = vld [vmem:[%s4 + $0x58] sm:$0xff]
      %v1940 = vld [vmem:[%s4 + $0x60] sm:$0xff]
      %v1941 = vld [vmem:[%s4 + $0x68] sm:$0xff]
      %v1942 = vld [vmem:[%s4 + $0x70] sm:$0xff]
      %v1943 = vld [vmem:[%s4 + $0x78] sm:$0xff]
      %v1944 = vld [vmem:[%s4 + $0x80] sm:$0xff]
      %v1945 = vld [vmem:[%s4 + $0x88] sm:$0xff]
      %v1946 = vld [vmem:[%s4 + $0x90] sm:$0xff]
      %v1947 = vld [vmem:[%s4 + $0x98] sm:$0xff]
      %v1948 = vld [vmem:[%s4 + $0xa0] sm:$0xff]
      %v1949 = vld [vmem:[%s4 + $0xa8] sm:$0xff]
      %v1950 = vld [vmem:[%s4 + $0xb0] sm:$0xff]
      %v1951 = vld [vmem:[%s4 + $0xb8] sm:$0xff]
      %v1952 = vld [vmem:[#allocation2] sm:$0xf]
      %v1953 = vld [vmem:[#allocation2 + $0x14] sm:$0xf]
      %v1954 = vld [vmem:[#allocation2 + $0x28] sm:$0xf]
      %v1955 = vld [vmem:[#allocation2 + $0x3c] sm:$0xf]
      %v1956 = vld [vmem:[#allocation2 + $0x50] sm:$0xf]
      %v1957 = vld [vmem:[#allocation2 + $0x64] sm:$0xf]
      %v1958 = vld [vmem:[#allocation2 + $0x78] sm:$0xf]
      %v1959 = vld [vmem:[#allocation2 + $0x8c] sm:$0xf]
      %v1960 = vld [vmem:[#allocation2 + $0xa0] sm:$0xf]
      %v1961 = vld [vmem:[#allocation2 + $0xb4] sm:$0xf]
      %v1962 = vld [vmem:[#allocation2 + $0xc8] sm:$0xf]
      %v1963 = vld [vmem:[#allocation2 + $0xdc] sm:$0xf]
      %v1964 = vld [vmem:[#allocation2 + $0xf0] sm:$0xf]
      %v1965 = vld [vmem:[#allocation2 + $0x104] sm:$0xf]
      %v1966 = vld [vmem:[#allocation2 + $0x118] sm:$0xf]
      %v1967 = vld [vmem:[#allocation2 + $0x12c] sm:$0xf]
      %v1968 = vld [vmem:[#allocation2 + $0x4] sm:$0xf]
      %v1969 = vld [vmem:[#allocation2 + $0x18] sm:$0xf]
      %v1970 = vld [vmem:[#allocation2 + $0x2c] sm:$0xf]
      %v1971 = vld [vmem:[#allocation2 + $0x40] sm:$0xf]
      %v1972 = vld [vmem:[#allocation2 + $0x54] sm:$0xf]
      %v1973 = vld [vmem:[#allocation2 + $0x68] sm:$0xf]
      %v1974 = vld [vmem:[#allocation2 + $0x7c] sm:$0xf]
      %v1975 = vld [vmem:[#allocation2 + $0x90] sm:$0xf]
      %v1976 = vld [vmem:[#allocation2 + $0xa4] sm:$0xf]
      %v1977 = vld [vmem:[#allocation2 + $0xb8] sm:$0xf]
      %v1978 = vld [vmem:[#allocation2 + $0xcc] sm:$0xf]
      %v1979 = vld [vmem:[#allocation2 + $0xe0] sm:$0xf]
      %v1980 = vld [vmem:[#allocation2 + $0xf4] sm:$0xf]
      %v1981 = vld [vmem:[#allocation2 + $0x108] sm:$0xf]
      %v1982 = vld [vmem:[#allocation2 + $0x11c] sm:$0xf]
      %v1983 = vld [vmem:[#allocation2 + $0x130] sm:$0xf]
      %v1984 = vld [vmem:[#allocation2 + $0xc] sm:$0xf]
      %v1985 = vld [vmem:[#allocation2 + $0x20] sm:$0xf]
      %v1986 = vld [vmem:[#allocation2 + $0x34] sm:$0xf]
      %v1987 = vld [vmem:[#allocation2 + $0x48] sm:$0xf]
      %v1988 = vld [vmem:[#allocation2 + $0x5c] sm:$0xf]
      %v1989 = vld [vmem:[#allocation2 + $0x70] sm:$0xf]
      %v1990 = vld [vmem:[#allocation2 + $0x84] sm:$0xf]
      %v1991 = vld [vmem:[#allocation2 + $0x98] sm:$0xf]
      %v1992 = vld [vmem:[#allocation2 + $0xac] sm:$0xf]
      %v1993 = vld [vmem:[#allocation2 + $0xc0] sm:$0xf]
      %v1994 = vld [vmem:[#allocation2 + $0xd4] sm:$0xf]
      %v1995 = vld [vmem:[#allocation2 + $0xe8] sm:$0xf]
      %v1996 = vld [vmem:[#allocation2 + $0xfc] sm:$0xf]
      %v1997 = vld [vmem:[#allocation2 + $0x110] sm:$0xf]
      %v1998 = vld [vmem:[#allocation2 + $0x124] sm:$0xf]
      %v1999 = vld [vmem:[#allocation2 + $0x138] sm:$0xf]
      %v2016 = vunpack.c.l.b16 %v1952
      %v2017 = vunpack.c.l.b16 %v1953
      %v2018 = vunpack.c.l.b16 %v1954
      %v2019 = vunpack.c.l.b16 %v1955
      %v2020 = vunpack.c.l.b16 %v1956
      %v2021 = vunpack.c.l.b16 %v1957
      %v2022 = vunpack.c.l.b16 %v1958
      %v2023 = vunpack.c.l.b16 %v1959
      %v2024 = vunpack.c.l.b16 %v1960
      %v2025 = vunpack.c.l.b16 %v1961
      %v2026 = vunpack.c.l.b16 %v1962
      %v2027 = vunpack.c.l.b16 %v1963
      %v2028 = vunpack.c.l.b16 %v1964
      %v2029 = vunpack.c.l.b16 %v1965
      %v2030 = vunpack.c.l.b16 %v1966
      %v2031 = vunpack.c.l.b16 %v1967
      %v2032 = vpack.c.b16 %v2017, %v2016
      %v2033 = vpack.c.b16 %v2019, %v2018
      %v2034 = vpack.c.b16 %v2021, %v2020
      %v2035 = vpack.c.b16 %v2023, %v2022
      %v2036 = vpack.c.b16 %v2025, %v2024
      %v2037 = vpack.c.b16 %v2027, %v2026
      %v2038 = vpack.c.b16 %v2029, %v2028
      %v2039 = vpack.c.b16 %v2031, %v2030
      %v2056 = vunpack.c.l.b16 %v1968
      %v2057 = vunpack.c.l.b16 %v1969
      %v2058 = vunpack.c.l.b16 %v1970
      %v2059 = vunpack.c.l.b16 %v1971
      %v2060 = vunpack.c.l.b16 %v1972
      %v2061 = vunpack.c.l.b16 %v1973
      %v2062 = vunpack.c.l.b16 %v1974
      %v2063 = vunpack.c.l.b16 %v1975
      %v2064 = vunpack.c.l.b16 %v1976
      %v2065 = vunpack.c.l.b16 %v1977
      %v2066 = vunpack.c.l.b16 %v1978
      %v2067 = vunpack.c.l.b16 %v1979
      %v2068 = vunpack.c.l.b16 %v1980
      %v2069 = vunpack.c.l.b16 %v1981
      %v2070 = vunpack.c.l.b16 %v1982
      %v2071 = vunpack.c.l.b16 %v1983
      %v2072 = vpack.c.b16 %v2057, %v2056
      %v2073 = vpack.c.b16 %v2059, %v2058
      %v2074 = vpack.c.b16 %v2061, %v2060
      %v2075 = vpack.c.b16 %v2063, %v2062
      %v2076 = vpack.c.b16 %v2065, %v2064
      %v2077 = vpack.c.b16 %v2067, %v2066
      %v2078 = vpack.c.b16 %v2069, %v2068
      %v2079 = vpack.c.b16 %v2071, %v2070
      %2080 = vrot.lane.b32.xlu0 %v2072, 64
      %v2081 = vpop.permute.xlu0 %2080
      %2082 = vrot.lane.b32.xlu0 %v2073, 64
      %v2083 = vpop.permute.xlu0 %2082
      %2084 = vrot.lane.b32.xlu0 %v2074, 64
      %v2085 = vpop.permute.xlu0 %2084
      %2086 = vrot.lane.b32.xlu0 %v2075, 64
      %v2087 = vpop.permute.xlu0 %2086
      %2088 = vrot.lane.b32.xlu0 %v2076, 64
      %v2089 = vpop.permute.xlu0 %2088
      %2090 = vrot.lane.b32.xlu0 %v2077, 64
      %v2091 = vpop.permute.xlu0 %2090
      %2092 = vrot.lane.b32.xlu0 %v2078, 64
      %v2093 = vpop.permute.xlu0 %2092
      %2094 = vrot.lane.b32.xlu0 %v2079, 64
      %v2095 = vpop.permute.xlu0 %2094
      %v2097 = vsel %vm449, %v2032, 0
      %v2100 = vsel %vm449, %v2033, 0
      %v2103 = vsel %vm449, %v2034, 0
      %v2106 = vsel %vm449, %v2035, 0
      %v2109 = vsel %vm449, %v2036, 0
      %v2112 = vsel %vm449, %v2037, 0
      %v2115 = vsel %vm449, %v2038, 0
      %v2118 = vsel %vm449, %v2039, 0
      %v2121 = vsel %vm449, %v2081, 0
      %v2124 = vsel %vm449, %v2083, 0
      %v2127 = vsel %vm449, %v2085, 0
      %v2130 = vsel %vm449, %v2087, 0
      %v2133 = vsel %vm449, %v2089, 0
      %v2136 = vsel %vm449, %v2091, 0
      %v2139 = vsel %vm449, %v2093, 0
      %v2142 = vsel %vm449, %v2095, 0
      %2144 = vmatprep.subr.bf16.mxu0 0
      %2145 = vmatpush1.bf16.xpose.msra.mxu0 %v2142
      %2146 = vmatprep.subr.bf16.mxu0 0
      %2147 = vmatpush1.bf16.xpose.msra.mxu0 %v2139
      %2148 = vmatprep.subr.bf16.mxu0 0
      %2149 = vmatpush1.bf16.xpose.msra.mxu0 %v2136
      %2150 = vmatprep.subr.bf16.mxu0 0
      %2151 = vmatpush1.bf16.xpose.msra.mxu0 %v2133
      %2152 = vmatprep.subr.bf16.mxu0 0
      %2153 = vmatpush1.bf16.xpose.msra.mxu0 %v2130
      %2154 = vmatprep.subr.bf16.mxu0 0
      %2155 = vmatpush1.bf16.xpose.msra.mxu0 %v2127
      %2156 = vmatprep.subr.bf16.mxu0 0
      %2157 = vmatpush1.bf16.xpose.msra.mxu0 %v2124
      %2158 = vmatprep.subr.bf16.mxu0 0
      %2159 = vmatpush1.bf16.xpose.msra.mxu0 %v2121
      %2160 = vmatprep.subr.bf16.mxu0 0
      %2161 = vmatpush2.bf16.xpose.msra.mxu0 0
      %2162 = vmatprep.subr.bf16.mxu0 0
      %2163 = vmatpush2.bf16.xpose.msra.mxu0 0
      %2164 = vmatprep.subr.bf16.mxu0 0
      %2165 = vmatpush2.bf16.xpose.msra.mxu0 0
      %2166 = vmatprep.subr.bf16.mxu0 0
      %2167 = vmatpush2.bf16.xpose.msra.mxu0 0
      %2168 = vmatprep.subr.bf16.mxu0 0
      %2169 = vmatpush2.bf16.xpose.msra.mxu0 0
      %2170 = vmatprep.subr.bf16.mxu0 0
      %2171 = vmatpush2.bf16.xpose.msra.mxu0 0
      %2172 = vmatprep.subr.bf16.mxu0 0
      %2173 = vmatpush2.bf16.xpose.msra.mxu0 0
      %2174 = vmatprep.subr.bf16.mxu0 0
      %2175 = vmatpush2.bf16.xpose.msra.mxu0 0
      %2176 = vmatprep.mubr.bf16.mxu0 0
      %2177 = vmatmul.mubr.bf16.gmra.mxu0 %v2097
      %v2178 = vpop.f32.mrf.mxu0
      %v2179 = vadd.f32 0.0, %v2178
      %v2180 = vpop.f32.mrf.mxu0
      %v2181 = vpop.f32.mrf.mxu0
      %v2182 = vadd.f32 0.0, %v2181
      %v2183 = vpop.f32.mrf.mxu0
      %2184 = vmatprep.mubr.bf16.mxu0 0
      %2185 = vmatmul.mubr.bf16.gmra.mxu0 %v2100
      %v2186 = vpop.f32.mrf.mxu0
      %v2187 = vadd.f32 0.0, %v2186
      %v2188 = vpop.f32.mrf.mxu0
      %v2189 = vpop.f32.mrf.mxu0
      %v2190 = vadd.f32 0.0, %v2189
      %v2191 = vpop.f32.mrf.mxu0
      %2192 = vmatprep.mubr.bf16.mxu0 0
      %2193 = vmatmul.mubr.bf16.gmra.mxu0 %v2103
      %v2194 = vpop.f32.mrf.mxu0
      %v2195 = vadd.f32 0.0, %v2194
      %v2196 = vpop.f32.mrf.mxu0
      %v2197 = vpop.f32.mrf.mxu0
      %v2198 = vadd.f32 0.0, %v2197
      %v2199 = vpop.f32.mrf.mxu0
      %2200 = vmatprep.mubr.bf16.mxu0 0
      %2201 = vmatmul.mubr.bf16.gmra.mxu0 %v2106
      %v2202 = vpop.f32.mrf.mxu0
      %v2203 = vadd.f32 0.0, %v2202
      %v2204 = vpop.f32.mrf.mxu0
      %v2205 = vpop.f32.mrf.mxu0
      %v2206 = vadd.f32 0.0, %v2205
      %v2207 = vpop.f32.mrf.mxu0
      %2208 = vmatprep.mubr.bf16.mxu0 0
      %2209 = vmatmul.mubr.bf16.gmra.mxu0 %v2109
      %v2210 = vpop.f32.mrf.mxu0
      %v2211 = vadd.f32 0.0, %v2210
      %v2212 = vpop.f32.mrf.mxu0
      %v2213 = vpop.f32.mrf.mxu0
      %v2214 = vadd.f32 0.0, %v2213
      %v2215 = vpop.f32.mrf.mxu0
      %2216 = vmatprep.mubr.bf16.mxu0 0
      %2217 = vmatmul.mubr.bf16.gmra.mxu0 %v2112
      %v2218 = vpop.f32.mrf.mxu0
      %v2219 = vadd.f32 0.0, %v2218
      %v2220 = vpop.f32.mrf.mxu0
      %v2221 = vpop.f32.mrf.mxu0
      %v2222 = vadd.f32 0.0, %v2221
      %v2223 = vpop.f32.mrf.mxu0
      %2224 = vmatprep.mubr.bf16.mxu0 0
      %2225 = vmatmul.mubr.bf16.gmra.mxu0 %v2115
      %v2226 = vpop.f32.mrf.mxu0
      %v2227 = vadd.f32 0.0, %v2226
      %v2228 = vpop.f32.mrf.mxu0
      %v2229 = vpop.f32.mrf.mxu0
      %v2230 = vadd.f32 0.0, %v2229
      %v2231 = vpop.f32.mrf.mxu0
      %2232 = vmatprep.mubr.bf16.mxu0 0
      %2233 = vmatmul.mubr.bf16.gmra.mxu0 %v2118
      %v2234 = vpop.f32.mrf.mxu0
      %v2235 = vadd.f32 0.0, %v2234
      %v2236 = vpop.f32.mrf.mxu0
      %v2237 = vpop.f32.mrf.mxu0
      %v2238 = vadd.f32 0.0, %v2237
      %v2239 = vpop.f32.mrf.mxu0
      %2240 = vdwg.mxu0
      %v2241 = vmul.f32 %v2179, 0.07216878
      %v2242 = vmul.f32 %v2182, 0.07216878
      %v2243 = vmul.f32 %v2187, 0.07216878
      %v2244 = vmul.f32 %v2190, 0.07216878
      %v2245 = vmul.f32 %v2195, 0.07216878
      %v2246 = vmul.f32 %v2198, 0.07216878
      %v2247 = vmul.f32 %v2203, 0.07216878
      %v2248 = vmul.f32 %v2206, 0.07216878
      %v2249 = vmul.f32 %v2211, 0.07216878
      %v2250 = vmul.f32 %v2214, 0.07216878
      %v2251 = vmul.f32 %v2219, 0.07216878
      %v2252 = vmul.f32 %v2222, 0.07216878
      %v2253 = vmul.f32 %v2227, 0.07216878
      %v2254 = vmul.f32 %v2230, 0.07216878
      %v2255 = vmul.f32 %v2235, 0.07216878
      %v2256 = vmul.f32 %v2238, 0.07216878
      %v2257 = vadd.f32 %v2241, %v1912
      %v2258 = vadd.f32 %v2242, %v1913
      %v2259 = vadd.f32 %v2243, %v1914
      %v2260 = vadd.f32 %v2244, %v1915
      %v2261 = vadd.f32 %v2245, %v1916
      %v2262 = vadd.f32 %v2246, %v1917
      %v2263 = vadd.f32 %v2247, %v1918
      %v2264 = vadd.f32 %v2248, %v1919
      %v2265 = vadd.f32 %v2249, %v1920
      %v2266 = vadd.f32 %v2250, %v1921
      %v2267 = vadd.f32 %v2251, %v1922
      %v2268 = vadd.f32 %v2252, %v1923
      %v2269 = vadd.f32 %v2253, %v1924
      %v2270 = vadd.f32 %v2254, %v1925
      %v2271 = vadd.f32 %v2255, %v1926
      %v2272 = vadd.f32 %v2256, %v1927
      %2273 = vmax.xlane.f32.xlu0 %v2257
      %v2274 = vpop.xlane.xlu0 %2273
      %2275 = vmax.xlane.f32.xlu0 %v2258
      %v2276 = vpop.xlane.xlu0 %2275
      %2277 = vmax.xlane.f32.xlu0 %v2259
      %v2278 = vpop.xlane.xlu0 %2277
      %2279 = vmax.xlane.f32.xlu0 %v2260
      %v2280 = vpop.xlane.xlu0 %2279
      %2281 = vmax.xlane.f32.xlu0 %v2261
      %v2282 = vpop.xlane.xlu0 %2281
      %2283 = vmax.xlane.f32.xlu0 %v2262
      %v2284 = vpop.xlane.xlu0 %2283
      %2285 = vmax.xlane.f32.xlu0 %v2263
      %v2286 = vpop.xlane.xlu0 %2285
      %2287 = vmax.xlane.f32.xlu0 %v2264
      %v2288 = vpop.xlane.xlu0 %2287
      %2289 = vmax.xlane.f32.xlu0 %v2265
      %v2290 = vpop.xlane.xlu0 %2289
      %2291 = vmax.xlane.f32.xlu0 %v2266
      %v2292 = vpop.xlane.xlu0 %2291
      %2293 = vmax.xlane.f32.xlu0 %v2267
      %v2294 = vpop.xlane.xlu0 %2293
      %2295 = vmax.xlane.f32.xlu0 %v2268
      %v2296 = vpop.xlane.xlu0 %2295
      %2297 = vmax.xlane.f32.xlu0 %v2269
      %v2298 = vpop.xlane.xlu0 %2297
      %2299 = vmax.xlane.f32.xlu0 %v2270
      %v2300 = vpop.xlane.xlu0 %2299
      %2301 = vmax.xlane.f32.xlu0 %v2271
      %v2302 = vpop.xlane.xlu0 %2301
      %2303 = vmax.xlane.f32.xlu0 %v2272
      %v2304 = vpop.xlane.xlu0 %2303
      %v2305 = vsub.f32 %v2257, %v2274
      %v2306 = vsub.f32 %v2258, %v2276
      %v2307 = vsub.f32 %v2259, %v2278
      %v2308 = vsub.f32 %v2260, %v2280
      %v2309 = vsub.f32 %v2261, %v2282
      %v2310 = vsub.f32 %v2262, %v2284
      %v2311 = vsub.f32 %v2263, %v2286
      %v2312 = vsub.f32 %v2264, %v2288
      %v2313 = vsub.f32 %v2265, %v2290
      %v2314 = vsub.f32 %v2266, %v2292
      %v2315 = vsub.f32 %v2267, %v2294
      %v2316 = vsub.f32 %v2268, %v2296
      %v2317 = vsub.f32 %v2269, %v2298
      %v2318 = vsub.f32 %v2270, %v2300
      %v2319 = vsub.f32 %v2271, %v2302
      %v2320 = vsub.f32 %v2272, %v2304
      %v2321 = vmul.f32 %v2305, 1.442695
      %v2322 = vpow.pop %v2321
      %v2323 = vmul.f32 %v2306, 1.442695
      %v2324 = vpow.pop %v2323
      %v2325 = vmul.f32 %v2307, 1.442695
      %v2326 = vpow.pop %v2325
      %v2327 = vmul.f32 %v2308, 1.442695
      %v2328 = vpow.pop %v2327
      %v2329 = vmul.f32 %v2309, 1.442695
      %v2330 = vpow.pop %v2329
      %v2331 = vmul.f32 %v2310, 1.442695
      %v2332 = vpow.pop %v2331
      %v2333 = vmul.f32 %v2311, 1.442695
      %v2334 = vpow.pop %v2333
      %v2335 = vmul.f32 %v2312, 1.442695
      %v2336 = vpow.pop %v2335
      %v2337 = vmul.f32 %v2313, 1.442695
      %v2338 = vpow.pop %v2337
      %v2339 = vmul.f32 %v2314, 1.442695
      %v2340 = vpow.pop %v2339
      %v2341 = vmul.f32 %v2315, 1.442695
      %v2342 = vpow.pop %v2341
      %v2343 = vmul.f32 %v2316, 1.442695
      %v2344 = vpow.pop %v2343
      %v2345 = vmul.f32 %v2317, 1.442695
      %v2346 = vpow.pop %v2345
      %v2347 = vmul.f32 %v2318, 1.442695
      %v2348 = vpow.pop %v2347
      %v2349 = vmul.f32 %v2319, 1.442695
      %v2350 = vpow.pop %v2349
      %v2351 = vmul.f32 %v2320, 1.442695
      %v2352 = vpow.pop %v2351
      %2353 = vadd.xlane.f32.xlu0 %v2322
      %v2354 = vpop.xlane.xlu0 %2353
      %2355 = vadd.xlane.f32.xlu0 %v2324
      %v2356 = vpop.xlane.xlu0 %2355
      %2357 = vadd.xlane.f32.xlu0 %v2326
      %v2358 = vpop.xlane.xlu0 %2357
      %2359 = vadd.xlane.f32.xlu0 %v2328
      %v2360 = vpop.xlane.xlu0 %2359
      %2361 = vadd.xlane.f32.xlu0 %v2330
      %v2362 = vpop.xlane.xlu0 %2361
      %2363 = vadd.xlane.f32.xlu0 %v2332
      %v2364 = vpop.xlane.xlu0 %2363
      %2365 = vadd.xlane.f32.xlu0 %v2334
      %v2366 = vpop.xlane.xlu0 %2365
      %2367 = vadd.xlane.f32.xlu0 %v2336
      %v2368 = vpop.xlane.xlu0 %2367
      %2369 = vadd.xlane.f32.xlu0 %v2338
      %v2370 = vpop.xlane.xlu0 %2369
      %2371 = vadd.xlane.f32.xlu0 %v2340
      %v2372 = vpop.xlane.xlu0 %2371
      %2373 = vadd.xlane.f32.xlu0 %v2342
      %v2374 = vpop.xlane.xlu0 %2373
      %2375 = vadd.xlane.f32.xlu0 %v2344
      %v2376 = vpop.xlane.xlu0 %2375
      %2377 = vadd.xlane.f32.xlu0 %v2346
      %v2378 = vpop.xlane.xlu0 %2377
      %2379 = vadd.xlane.f32.xlu0 %v2348
      %v2380 = vpop.xlane.xlu0 %2379
      %2381 = vadd.xlane.f32.xlu0 %v2350
      %v2382 = vpop.xlane.xlu0 %2381
      %2383 = vadd.xlane.f32.xlu0 %v2352
      %v2384 = vpop.xlane.xlu0 %2383
      %v2385 = vrcp.pop %v2354
      %v2386 = vrcp.pop %v2356
      %v2387 = vrcp.pop %v2358
      %v2388 = vrcp.pop %v2360
      %v2389 = vrcp.pop %v2362
      %v2390 = vrcp.pop %v2364
      %v2391 = vrcp.pop %v2366
      %v2392 = vrcp.pop %v2368
      %v2393 = vrcp.pop %v2370
      %v2394 = vrcp.pop %v2372
      %v2395 = vrcp.pop %v2374
      %v2396 = vrcp.pop %v2376
      %v2397 = vrcp.pop %v2378
      %v2398 = vrcp.pop %v2380
      %v2399 = vrcp.pop %v2382
      %v2400 = vrcp.pop %v2384
      %v2401 = vmul.f32 %v2322, %v2385
      %v2402 = vmul.f32 %v2324, %v2386
      %v2403 = vmul.f32 %v2326, %v2387
      %v2404 = vmul.f32 %v2328, %v2388
      %v2405 = vmul.f32 %v2330, %v2389
      %v2406 = vmul.f32 %v2332, %v2390
      %v2407 = vmul.f32 %v2334, %v2391
      %v2408 = vmul.f32 %v2336, %v2392
      %v2409 = vmul.f32 %v2338, %v2393
      %v2410 = vmul.f32 %v2340, %v2394
      %v2411 = vmul.f32 %v2342, %v2395
      %v2412 = vmul.f32 %v2344, %v2396
      %v2413 = vmul.f32 %v2346, %v2397
      %v2414 = vmul.f32 %v2348, %v2398
      %v2415 = vmul.f32 %v2350, %v2399
      %v2416 = vmul.f32 %v2352, %v2400
      %v2417 = vpack.c.bf16 %v2402, %v2401
      %v2418 = vpack.c.bf16 %v2404, %v2403
      %v2419 = vpack.c.bf16 %v2406, %v2405
      %v2420 = vpack.c.bf16 %v2408, %v2407
      %v2421 = vpack.c.bf16 %v2410, %v2409
      %v2422 = vpack.c.bf16 %v2412, %v2411
      %v2423 = vpack.c.bf16 %v2414, %v2413
      %v2424 = vpack.c.bf16 %v2416, %v2415
      %v2441 = vunpack.c.l.b16 %v1984
      %v2442 = vunpack.c.l.b16 %v1985
      %v2443 = vunpack.c.l.b16 %v1986
      %v2444 = vunpack.c.l.b16 %v1987
      %v2445 = vunpack.c.l.b16 %v1988
      %v2446 = vunpack.c.l.b16 %v1989
      %v2447 = vunpack.c.l.b16 %v1990
      %v2448 = vunpack.c.l.b16 %v1991
      %v2449 = vunpack.c.l.b16 %v1992
      %v2450 = vunpack.c.l.b16 %v1993
      %v2451 = vunpack.c.l.b16 %v1994
      %v2452 = vunpack.c.l.b16 %v1995
      %v2453 = vunpack.c.l.b16 %v1996
      %v2454 = vunpack.c.l.b16 %v1997
      %v2455 = vunpack.c.l.b16 %v1998
      %v2456 = vunpack.c.l.b16 %v1999
      %v2457 = vpack.c.b16 %v2442, %v2441
      %v2458 = vpack.c.b16 %v2444, %v2443
      %v2459 = vpack.c.b16 %v2446, %v2445
      %v2460 = vpack.c.b16 %v2448, %v2447
      %v2461 = vpack.c.b16 %v2450, %v2449
      %v2462 = vpack.c.b16 %v2452, %v2451
      %v2463 = vpack.c.b16 %v2454, %v2453
      %v2464 = vpack.c.b16 %v2456, %v2455
      %2473 = vmatprep.subr.bf16.mxu0 0
      %2474 = vmatpush1.bf16.msra.mxu0 %v2464
      %2475 = vmatprep.subr.bf16.mxu0 0
      %2476 = vmatpush1.bf16.msra.mxu0 %v2463
      %2477 = vmatprep.subr.bf16.mxu0 0
      %2478 = vmatpush1.bf16.msra.mxu0 %v2462
      %2479 = vmatprep.subr.bf16.mxu0 0
      %2480 = vmatpush1.bf16.msra.mxu0 %v2461
      %2481 = vmatprep.subr.bf16.mxu0 0
      %2482 = vmatpush1.bf16.msra.mxu0 %v2460
      %2483 = vmatprep.subr.bf16.mxu0 0
      %2484 = vmatpush1.bf16.msra.mxu0 %v2459
      %2485 = vmatprep.subr.bf16.mxu0 0
      %2486 = vmatpush1.bf16.msra.mxu0 %v2458
      %2487 = vmatprep.subr.bf16.mxu0 0
      %2488 = vmatpush1.bf16.msra.mxu0 %v2457
      %2489 = vmatprep.subr.bf16.mxu0 0
      %2490 = vmatpush2.bf16.msra.mxu0 0
      %2491 = vmatprep.subr.bf16.mxu0 0
      %2492 = vmatpush2.bf16.msra.mxu0 0
      %2493 = vmatprep.subr.bf16.mxu0 0
      %2494 = vmatpush2.bf16.msra.mxu0 0
      %2495 = vmatprep.subr.bf16.mxu0 0
      %2496 = vmatpush2.bf16.msra.mxu0 0
      %2497 = vmatprep.subr.bf16.mxu0 0
      %2498 = vmatpush2.bf16.msra.mxu0 0
      %2499 = vmatprep.subr.bf16.mxu0 0
      %2500 = vmatpush2.bf16.msra.mxu0 0
      %2501 = vmatprep.subr.bf16.mxu0 0
      %2502 = vmatpush2.bf16.msra.mxu0 0
      %2503 = vmatprep.subr.bf16.mxu0 0
      %2504 = vmatpush2.bf16.msra.mxu0 0
      %2505 = vmatprep.mubr.bf16.mxu0 0
      %2506 = vmatmul.mubr.bf16.gmra.mxu0 %v2417
      %v2507 = vpop.f32.mrf.mxu0
      %v2508 = vadd.f32 0.0, %v2507
      %v2509 = vpop.f32.mrf.mxu0
      %v2510 = vpop.f32.mrf.mxu0
      %v2511 = vadd.f32 0.0, %v2510
      %v2512 = vpop.f32.mrf.mxu0
      %2513 = vmatprep.mubr.bf16.mxu0 0
      %2514 = vmatmul.mubr.bf16.gmra.mxu0 %v2418
      %v2515 = vpop.f32.mrf.mxu0
      %v2516 = vadd.f32 0.0, %v2515
      %v2517 = vpop.f32.mrf.mxu0
      %v2518 = vpop.f32.mrf.mxu0
      %v2519 = vadd.f32 0.0, %v2518
      %v2520 = vpop.f32.mrf.mxu0
      %2521 = vmatprep.mubr.bf16.mxu0 0
      %2522 = vmatmul.mubr.bf16.gmra.mxu0 %v2419
      %v2523 = vpop.f32.mrf.mxu0
      %v2524 = vadd.f32 0.0, %v2523
      %v2525 = vpop.f32.mrf.mxu0
      %v2526 = vpop.f32.mrf.mxu0
      %v2527 = vadd.f32 0.0, %v2526
      %v2528 = vpop.f32.mrf.mxu0
      %2529 = vmatprep.mubr.bf16.mxu0 0
      %2530 = vmatmul.mubr.bf16.gmra.mxu0 %v2420
      %v2531 = vpop.f32.mrf.mxu0
      %v2532 = vadd.f32 0.0, %v2531
      %v2533 = vpop.f32.mrf.mxu0
      %v2534 = vpop.f32.mrf.mxu0
      %v2535 = vadd.f32 0.0, %v2534
      %v2536 = vpop.f32.mrf.mxu0
      %2537 = vmatprep.mubr.bf16.mxu0 0
      %2538 = vmatmul.mubr.bf16.gmra.mxu0 %v2421
      %v2539 = vpop.f32.mrf.mxu0
      %v2540 = vadd.f32 0.0, %v2539
      %v2541 = vpop.f32.mrf.mxu0
      %v2542 = vpop.f32.mrf.mxu0
      %v2543 = vadd.f32 0.0, %v2542
      %v2544 = vpop.f32.mrf.mxu0
      %2545 = vmatprep.mubr.bf16.mxu0 0
      %2546 = vmatmul.mubr.bf16.gmra.mxu0 %v2422
      %v2547 = vpop.f32.mrf.mxu0
      %v2548 = vadd.f32 0.0, %v2547
      %v2549 = vpop.f32.mrf.mxu0
      %v2550 = vpop.f32.mrf.mxu0
      %v2551 = vadd.f32 0.0, %v2550
      %v2552 = vpop.f32.mrf.mxu0
      %2553 = vmatprep.mubr.bf16.mxu0 0
      %2554 = vmatmul.mubr.bf16.gmra.mxu0 %v2423
      %v2555 = vpop.f32.mrf.mxu0
      %v2556 = vadd.f32 0.0, %v2555
      %v2557 = vpop.f32.mrf.mxu0
      %v2558 = vpop.f32.mrf.mxu0
      %v2559 = vadd.f32 0.0, %v2558
      %v2560 = vpop.f32.mrf.mxu0
      %2561 = vmatprep.mubr.bf16.mxu0 0
      %2562 = vmatmul.mubr.bf16.gmra.mxu0 %v2424
      %v2563 = vpop.f32.mrf.mxu0
      %v2564 = vadd.f32 0.0, %v2563
      %v2565 = vpop.f32.mrf.mxu0
      %v2566 = vpop.f32.mrf.mxu0
      %v2567 = vadd.f32 0.0, %v2566
      %v2568 = vpop.f32.mrf.mxu0
      %2569 = vdwg.mxu0
      %v2570 = vpack.c.bf16 %v2511, %v2508
      %v2571 = vpack.c.bf16 %v2519, %v2516
      %v2572 = vpack.c.bf16 %v2527, %v2524
      %v2573 = vpack.c.bf16 %v2535, %v2532
      %v2574 = vpack.c.bf16 %v2543, %v2540
      %v2575 = vpack.c.bf16 %v2551, %v2548
      %v2576 = vpack.c.bf16 %v2559, %v2556
      %v2577 = vpack.c.bf16 %v2567, %v2564
      %v2578 = vld [vmem:[#allocation2 + $0x8] sm:$0xf]
      %v2579 = vld [vmem:[#allocation2 + $0x1c] sm:$0xf]
      %v2580 = vld [vmem:[#allocation2 + $0x30] sm:$0xf]
      %v2581 = vld [vmem:[#allocation2 + $0x44] sm:$0xf]
      %v2582 = vld [vmem:[#allocation2 + $0x58] sm:$0xf]
      %v2583 = vld [vmem:[#allocation2 + $0x6c] sm:$0xf]
      %v2584 = vld [vmem:[#allocation2 + $0x80] sm:$0xf]
      %v2585 = vld [vmem:[#allocation2 + $0x94] sm:$0xf]
      %v2586 = vld [vmem:[#allocation2 + $0xa8] sm:$0xf]
      %v2587 = vld [vmem:[#allocation2 + $0xbc] sm:$0xf]
      %v2588 = vld [vmem:[#allocation2 + $0xd0] sm:$0xf]
      %v2589 = vld [vmem:[#allocation2 + $0xe4] sm:$0xf]
      %v2590 = vld [vmem:[#allocation2 + $0xf8] sm:$0xf]
      %v2591 = vld [vmem:[#allocation2 + $0x10c] sm:$0xf]
      %v2592 = vld [vmem:[#allocation2 + $0x120] sm:$0xf]
      %v2593 = vld [vmem:[#allocation2 + $0x134] sm:$0xf]
      %2594 = vrot.lane.b32.xlu0 %v2032, 64
      %v2595 = vpop.permute.xlu0 %2594
      %2596 = vrot.lane.b32.xlu0 %v2033, 64
      %v2597 = vpop.permute.xlu0 %2596
      %2598 = vrot.lane.b32.xlu0 %v2034, 64
      %v2599 = vpop.permute.xlu0 %2598
      %2600 = vrot.lane.b32.xlu0 %v2035, 64
      %v2601 = vpop.permute.xlu0 %2600
      %2602 = vrot.lane.b32.xlu0 %v2036, 64
      %v2603 = vpop.permute.xlu0 %2602
      %2604 = vrot.lane.b32.xlu0 %v2037, 64
      %v2605 = vpop.permute.xlu0 %2604
      %2606 = vrot.lane.b32.xlu0 %v2038, 64
      %v2607 = vpop.permute.xlu0 %2606
      %2608 = vrot.lane.b32.xlu0 %v2039, 64
      %v2609 = vpop.permute.xlu0 %2608
      %v2626 = vunpack.c.l.b16 %v2578
      %v2627 = vunpack.c.l.b16 %v2579
      %v2628 = vunpack.c.l.b16 %v2580
      %v2629 = vunpack.c.l.b16 %v2581
      %v2630 = vunpack.c.l.b16 %v2582
      %v2631 = vunpack.c.l.b16 %v2583
      %v2632 = vunpack.c.l.b16 %v2584
      %v2633 = vunpack.c.l.b16 %v2585
      %v2634 = vunpack.c.l.b16 %v2586
      %v2635 = vunpack.c.l.b16 %v2587
      %v2636 = vunpack.c.l.b16 %v2588
      %v2637 = vunpack.c.l.b16 %v2589
      %v2638 = vunpack.c.l.b16 %v2590
      %v2639 = vunpack.c.l.b16 %v2591
      %v2640 = vunpack.c.l.b16 %v2592
      %v2641 = vunpack.c.l.b16 %v2593
      %v2642 = vpack.c.b16 %v2627, %v2626
      %v2643 = vpack.c.b16 %v2629, %v2628
      %v2644 = vpack.c.b16 %v2631, %v2630
      %v2645 = vpack.c.b16 %v2633, %v2632
      %v2646 = vpack.c.b16 %v2635, %v2634
      %v2647 = vpack.c.b16 %v2637, %v2636
      %v2648 = vpack.c.b16 %v2639, %v2638
      %v2649 = vpack.c.b16 %v2641, %v2640
      %v2651 = vsel %vm449, %v2595, 0
      %v2654 = vsel %vm449, %v2597, 0
      %v2657 = vsel %vm449, %v2599, 0
      %v2660 = vsel %vm449, %v2601, 0
      %v2663 = vsel %vm449, %v2603, 0
      %v2666 = vsel %vm449, %v2605, 0
      %v2669 = vsel %vm449, %v2607, 0
      %v2672 = vsel %vm449, %v2609, 0
      %v2675 = vsel %vm449, %v2642, 0
      %v2678 = vsel %vm449, %v2643, 0
      %v2681 = vsel %vm449, %v2644, 0
      %v2684 = vsel %vm449, %v2645, 0
      %v2687 = vsel %vm449, %v2646, 0
      %v2690 = vsel %vm449, %v2647, 0
      %v2693 = vsel %vm449, %v2648, 0
      %v2696 = vsel %vm449, %v2649, 0
      %2698 = vmatprep.subr.bf16.mxu0 0
      %2699 = vmatpush1.bf16.xpose.msra.mxu0 %v2696
      %2700 = vmatprep.subr.bf16.mxu0 0
      %2701 = vmatpush1.bf16.xpose.msra.mxu0 %v2693
      %2702 = vmatprep.subr.bf16.mxu0 0
      %2703 = vmatpush1.bf16.xpose.msra.mxu0 %v2690
      %2704 = vmatprep.subr.bf16.mxu0 0
      %2705 = vmatpush1.bf16.xpose.msra.mxu0 %v2687
      %2706 = vmatprep.subr.bf16.mxu0 0
      %2707 = vmatpush1.bf16.xpose.msra.mxu0 %v2684
      %2708 = vmatprep.subr.bf16.mxu0 0
      %2709 = vmatpush1.bf16.xpose.msra.mxu0 %v2681
      %2710 = vmatprep.subr.bf16.mxu0 0
      %2711 = vmatpush1.bf16.xpose.msra.mxu0 %v2678
      %2712 = vmatprep.subr.bf16.mxu0 0
      %2713 = vmatpush1.bf16.xpose.msra.mxu0 %v2675
      %2714 = vmatprep.subr.bf16.mxu0 0
      %2715 = vmatpush2.bf16.xpose.msra.mxu0 0
      %2716 = vmatprep.subr.bf16.mxu0 0
      %2717 = vmatpush2.bf16.xpose.msra.mxu0 0
      %2718 = vmatprep.subr.bf16.mxu0 0
      %2719 = vmatpush2.bf16.xpose.msra.mxu0 0
      %2720 = vmatprep.subr.bf16.mxu0 0
      %2721 = vmatpush2.bf16.xpose.msra.mxu0 0
      %2722 = vmatprep.subr.bf16.mxu0 0
      %2723 = vmatpush2.bf16.xpose.msra.mxu0 0
      %2724 = vmatprep.subr.bf16.mxu0 0
      %2725 = vmatpush2.bf16.xpose.msra.mxu0 0
      %2726 = vmatprep.subr.bf16.mxu0 0
      %2727 = vmatpush2.bf16.xpose.msra.mxu0 0
      %2728 = vmatprep.subr.bf16.mxu0 0
      %2729 = vmatpush2.bf16.xpose.msra.mxu0 0
      %2730 = vmatprep.mubr.bf16.mxu0 0
      %2731 = vmatmul.mubr.bf16.gmra.mxu0 %v2651
      %v2732 = vpop.f32.mrf.mxu0
      %v2733 = vadd.f32 0.0, %v2732
      %v2734 = vpop.f32.mrf.mxu0
      %v2735 = vpop.f32.mrf.mxu0
      %v2736 = vadd.f32 0.0, %v2735
      %v2737 = vpop.f32.mrf.mxu0
      %2738 = vmatprep.mubr.bf16.mxu0 0
      %2739 = vmatmul.mubr.bf16.gmra.mxu0 %v2654
      %v2740 = vpop.f32.mrf.mxu0
      %v2741 = vadd.f32 0.0, %v2740
      %v2742 = vpop.f32.mrf.mxu0
      %v2743 = vpop.f32.mrf.mxu0
      %v2744 = vadd.f32 0.0, %v2743
      %v2745 = vpop.f32.mrf.mxu0
      %2746 = vmatprep.mubr.bf16.mxu0 0
      %2747 = vmatmul.mubr.bf16.gmra.mxu0 %v2657
      %v2748 = vpop.f32.mrf.mxu0
      %v2749 = vadd.f32 0.0, %v2748
      %v2750 = vpop.f32.mrf.mxu0
      %v2751 = vpop.f32.mrf.mxu0
      %v2752 = vadd.f32 0.0, %v2751
      %v2753 = vpop.f32.mrf.mxu0
      %2754 = vmatprep.mubr.bf16.mxu0 0
      %2755 = vmatmul.mubr.bf16.gmra.mxu0 %v2660
      %v2756 = vpop.f32.mrf.mxu0
      %v2757 = vadd.f32 0.0, %v2756
      %v2758 = vpop.f32.mrf.mxu0
      %v2759 = vpop.f32.mrf.mxu0
      %v2760 = vadd.f32 0.0, %v2759
      %v2761 = vpop.f32.mrf.mxu0
      %2762 = vmatprep.mubr.bf16.mxu0 0
      %2763 = vmatmul.mubr.bf16.gmra.mxu0 %v2663
      %v2764 = vpop.f32.mrf.mxu0
      %v2765 = vadd.f32 0.0, %v2764
      %v2766 = vpop.f32.mrf.mxu0
      %v2767 = vpop.f32.mrf.mxu0
      %v2768 = vadd.f32 0.0, %v2767
      %v2769 = vpop.f32.mrf.mxu0
      %2770 = vmatprep.mubr.bf16.mxu0 0
      %2771 = vmatmul.mubr.bf16.gmra.mxu0 %v2666
      %v2772 = vpop.f32.mrf.mxu0
      %v2773 = vadd.f32 0.0, %v2772
      %v2774 = vpop.f32.mrf.mxu0
      %v2775 = vpop.f32.mrf.mxu0
      %v2776 = vadd.f32 0.0, %v2775
      %v2777 = vpop.f32.mrf.mxu0
      %2778 = vmatprep.mubr.bf16.mxu0 0
      %2779 = vmatmul.mubr.bf16.gmra.mxu0 %v2669
      %v2780 = vpop.f32.mrf.mxu0
      %v2781 = vadd.f32 0.0, %v2780
      %v2782 = vpop.f32.mrf.mxu0
      %v2783 = vpop.f32.mrf.mxu0
      %v2784 = vadd.f32 0.0, %v2783
      %v2785 = vpop.f32.mrf.mxu0
      %2786 = vmatprep.mubr.bf16.mxu0 0
      %2787 = vmatmul.mubr.bf16.gmra.mxu0 %v2672
      %v2788 = vpop.f32.mrf.mxu0
      %v2789 = vadd.f32 0.0, %v2788
      %v2790 = vpop.f32.mrf.mxu0
      %v2791 = vpop.f32.mrf.mxu0
      %v2792 = vadd.f32 0.0, %v2791
      %v2793 = vpop.f32.mrf.mxu0
      %2794 = vdwg.mxu0
      %v2795 = vmul.f32 %v2733, 0.07216878
      %v2796 = vmul.f32 %v2736, 0.07216878
      %v2797 = vmul.f32 %v2741, 0.07216878
      %v2798 = vmul.f32 %v2744, 0.07216878
      %v2799 = vmul.f32 %v2749, 0.07216878
      %v2800 = vmul.f32 %v2752, 0.07216878
      %v2801 = vmul.f32 %v2757, 0.07216878
      %v2802 = vmul.f32 %v2760, 0.07216878
      %v2803 = vmul.f32 %v2765, 0.07216878
      %v2804 = vmul.f32 %v2768, 0.07216878
      %v2805 = vmul.f32 %v2773, 0.07216878
      %v2806 = vmul.f32 %v2776, 0.07216878
      %v2807 = vmul.f32 %v2781, 0.07216878
      %v2808 = vmul.f32 %v2784, 0.07216878
      %v2809 = vmul.f32 %v2789, 0.07216878
      %v2810 = vmul.f32 %v2792, 0.07216878
      %v2811 = vadd.f32 %v2795, %v1912
      %v2812 = vadd.f32 %v2796, %v1913
      %v2813 = vadd.f32 %v2797, %v1914
      %v2814 = vadd.f32 %v2798, %v1915
      %v2815 = vadd.f32 %v2799, %v1916
      %v2816 = vadd.f32 %v2800, %v1917
      %v2817 = vadd.f32 %v2801, %v1918
      %v2818 = vadd.f32 %v2802, %v1919
      %v2819 = vadd.f32 %v2803, %v1920
      %v2820 = vadd.f32 %v2804, %v1921
      %v2821 = vadd.f32 %v2805, %v1922
      %v2822 = vadd.f32 %v2806, %v1923
      %v2823 = vadd.f32 %v2807, %v1924
      %v2824 = vadd.f32 %v2808, %v1925
      %v2825 = vadd.f32 %v2809, %v1926
      %v2826 = vadd.f32 %v2810, %v1927
      %2827 = vmax.xlane.f32.xlu0 %v2811
      %v2828 = vpop.xlane.xlu0 %2827
      %2829 = vmax.xlane.f32.xlu0 %v2812
      %v2830 = vpop.xlane.xlu0 %2829
      %2831 = vmax.xlane.f32.xlu0 %v2813
      %v2832 = vpop.xlane.xlu0 %2831
      %2833 = vmax.xlane.f32.xlu0 %v2814
      %v2834 = vpop.xlane.xlu0 %2833
      %2835 = vmax.xlane.f32.xlu0 %v2815
      %v2836 = vpop.xlane.xlu0 %2835
      %2837 = vmax.xlane.f32.xlu0 %v2816
      %v2838 = vpop.xlane.xlu0 %2837
      %2839 = vmax.xlane.f32.xlu0 %v2817
      %v2840 = vpop.xlane.xlu0 %2839
      %2841 = vmax.xlane.f32.xlu0 %v2818
      %v2842 = vpop.xlane.xlu0 %2841
      %2843 = vmax.xlane.f32.xlu0 %v2819
      %v2844 = vpop.xlane.xlu0 %2843
      %2845 = vmax.xlane.f32.xlu0 %v2820
      %v2846 = vpop.xlane.xlu0 %2845
      %2847 = vmax.xlane.f32.xlu0 %v2821
      %v2848 = vpop.xlane.xlu0 %2847
      %2849 = vmax.xlane.f32.xlu0 %v2822
      %v2850 = vpop.xlane.xlu0 %2849
      %2851 = vmax.xlane.f32.xlu0 %v2823
      %v2852 = vpop.xlane.xlu0 %2851
      %2853 = vmax.xlane.f32.xlu0 %v2824
      %v2854 = vpop.xlane.xlu0 %2853
      %2855 = vmax.xlane.f32.xlu0 %v2825
      %v2856 = vpop.xlane.xlu0 %2855
      %2857 = vmax.xlane.f32.xlu0 %v2826
      %v2858 = vpop.xlane.xlu0 %2857
      %v2859 = vsub.f32 %v2811, %v2828
      %v2860 = vsub.f32 %v2812, %v2830
      %v2861 = vsub.f32 %v2813, %v2832
      %v2862 = vsub.f32 %v2814, %v2834
      %v2863 = vsub.f32 %v2815, %v2836
      %v2864 = vsub.f32 %v2816, %v2838
      %v2865 = vsub.f32 %v2817, %v2840
      %v2866 = vsub.f32 %v2818, %v2842
      %v2867 = vsub.f32 %v2819, %v2844
      %v2868 = vsub.f32 %v2820, %v2846
      %v2869 = vsub.f32 %v2821, %v2848
      %v2870 = vsub.f32 %v2822, %v2850
      %v2871 = vsub.f32 %v2823, %v2852
      %v2872 = vsub.f32 %v2824, %v2854
      %v2873 = vsub.f32 %v2825, %v2856
      %v2874 = vsub.f32 %v2826, %v2858
      %v2875 = vmul.f32 %v2859, 1.442695
      %v2876 = vpow.pop %v2875
      %v2877 = vmul.f32 %v2860, 1.442695
      %v2878 = vpow.pop %v2877
      %v2879 = vmul.f32 %v2861, 1.442695
      %v2880 = vpow.pop %v2879
      %v2881 = vmul.f32 %v2862, 1.442695
      %v2882 = vpow.pop %v2881
      %v2883 = vmul.f32 %v2863, 1.442695
      %v2884 = vpow.pop %v2883
      %v2885 = vmul.f32 %v2864, 1.442695
      %v2886 = vpow.pop %v2885
      %v2887 = vmul.f32 %v2865, 1.442695
      %v2888 = vpow.pop %v2887
      %v2889 = vmul.f32 %v2866, 1.442695
      %v2890 = vpow.pop %v2889
      %v2891 = vmul.f32 %v2867, 1.442695
      %v2892 = vpow.pop %v2891
      %v2893 = vmul.f32 %v2868, 1.442695
      %v2894 = vpow.pop %v2893
      %v2895 = vmul.f32 %v2869, 1.442695
      %v2896 = vpow.pop %v2895
      %v2897 = vmul.f32 %v2870, 1.442695
      %v2898 = vpow.pop %v2897
      %v2899 = vmul.f32 %v2871, 1.442695
      %v2900 = vpow.pop %v2899
      %v2901 = vmul.f32 %v2872, 1.442695
      %v2902 = vpow.pop %v2901
      %v2903 = vmul.f32 %v2873, 1.442695
      %v2904 = vpow.pop %v2903
      %v2905 = vmul.f32 %v2874, 1.442695
      %v2906 = vpow.pop %v2905
      %2907 = vadd.xlane.f32.xlu0 %v2876
      %v2908 = vpop.xlane.xlu0 %2907
      %2909 = vadd.xlane.f32.xlu0 %v2878
      %v2910 = vpop.xlane.xlu0 %2909
      %2911 = vadd.xlane.f32.xlu0 %v2880
      %v2912 = vpop.xlane.xlu0 %2911
      %2913 = vadd.xlane.f32.xlu0 %v2882
      %v2914 = vpop.xlane.xlu0 %2913
      %2915 = vadd.xlane.f32.xlu0 %v2884
      %v2916 = vpop.xlane.xlu0 %2915
      %2917 = vadd.xlane.f32.xlu0 %v2886
      %v2918 = vpop.xlane.xlu0 %2917
      %2919 = vadd.xlane.f32.xlu0 %v2888
      %v2920 = vpop.xlane.xlu0 %2919
      %2921 = vadd.xlane.f32.xlu0 %v2890
      %v2922 = vpop.xlane.xlu0 %2921
      %2923 = vadd.xlane.f32.xlu0 %v2892
      %v2924 = vpop.xlane.xlu0 %2923
      %2925 = vadd.xlane.f32.xlu0 %v2894
      %v2926 = vpop.xlane.xlu0 %2925
      %2927 = vadd.xlane.f32.xlu0 %v2896
      %v2928 = vpop.xlane.xlu0 %2927
      %2929 = vadd.xlane.f32.xlu0 %v2898
      %v2930 = vpop.xlane.xlu0 %2929
      %2931 = vadd.xlane.f32.xlu0 %v2900
      %v2932 = vpop.xlane.xlu0 %2931
      %2933 = vadd.xlane.f32.xlu0 %v2902
      %v2934 = vpop.xlane.xlu0 %2933
      %2935 = vadd.xlane.f32.xlu0 %v2904
      %v2936 = vpop.xlane.xlu0 %2935
      %2937 = vadd.xlane.f32.xlu0 %v2906
      %v2938 = vpop.xlane.xlu0 %2937
      %v2939 = vrcp.pop %v2908
      %v2940 = vrcp.pop %v2910
      %v2941 = vrcp.pop %v2912
      %v2942 = vrcp.pop %v2914
      %v2943 = vrcp.pop %v2916
      %v2944 = vrcp.pop %v2918
      %v2945 = vrcp.pop %v2920
      %v2946 = vrcp.pop %v2922
      %v2947 = vrcp.pop %v2924
      %v2948 = vrcp.pop %v2926
      %v2949 = vrcp.pop %v2928
      %v2950 = vrcp.pop %v2930
      %v2951 = vrcp.pop %v2932
      %v2952 = vrcp.pop %v2934
      %v2953 = vrcp.pop %v2936
      %v2954 = vrcp.pop %v2938
      %v2955 = vmul.f32 %v2876, %v2939
      %v2956 = vmul.f32 %v2878, %v2940
      %v2957 = vmul.f32 %v2880, %v2941
      %v2958 = vmul.f32 %v2882, %v2942
      %v2959 = vmul.f32 %v2884, %v2943
      %v2960 = vmul.f32 %v2886, %v2944
      %v2961 = vmul.f32 %v2888, %v2945
      %v2962 = vmul.f32 %v2890, %v2946
      %v2963 = vmul.f32 %v2892, %v2947
      %v2964 = vmul.f32 %v2894, %v2948
      %v2965 = vmul.f32 %v2896, %v2949
      %v2966 = vmul.f32 %v2898, %v2950
      %v2967 = vmul.f32 %v2900, %v2951
      %v2968 = vmul.f32 %v2902, %v2952
      %v2969 = vmul.f32 %v2904, %v2953
      %v2970 = vmul.f32 %v2906, %v2954
      %v2971 = vpack.c.bf16 %v2956, %v2955
      %v2972 = vpack.c.bf16 %v2958, %v2957
      %v2973 = vpack.c.bf16 %v2960, %v2959
      %v2974 = vpack.c.bf16 %v2962, %v2961
      %v2975 = vpack.c.bf16 %v2964, %v2963
      %v2976 = vpack.c.bf16 %v2966, %v2965
      %v2977 = vpack.c.bf16 %v2968, %v2967
      %v2978 = vpack.c.bf16 %v2970, %v2969
      %2979 = vrot.lane.b32.xlu0 %v2457, 64
      %v2980 = vpop.permute.xlu0 %2979
      %2981 = vrot.lane.b32.xlu0 %v2458, 64
      %v2982 = vpop.permute.xlu0 %2981
      %2983 = vrot.lane.b32.xlu0 %v2459, 64
      %v2984 = vpop.permute.xlu0 %2983
      %2985 = vrot.lane.b32.xlu0 %v2460, 64
      %v2986 = vpop.permute.xlu0 %2985
      %2987 = vrot.lane.b32.xlu0 %v2461, 64
      %v2988 = vpop.permute.xlu0 %2987
      %2989 = vrot.lane.b32.xlu0 %v2462, 64
      %v2990 = vpop.permute.xlu0 %2989
      %2991 = vrot.lane.b32.xlu0 %v2463, 64
      %v2992 = vpop.permute.xlu0 %2991
      %2993 = vrot.lane.b32.xlu0 %v2464, 64
      %v2994 = vpop.permute.xlu0 %2993
      %3003 = vmatprep.subr.bf16.mxu0 0
      %3004 = vmatpush1.bf16.msra.mxu0 %v2994
      %3005 = vmatprep.subr.bf16.mxu0 0
      %3006 = vmatpush1.bf16.msra.mxu0 %v2992
      %3007 = vmatprep.subr.bf16.mxu0 0
      %3008 = vmatpush1.bf16.msra.mxu0 %v2990
      %3009 = vmatprep.subr.bf16.mxu0 0
      %3010 = vmatpush1.bf16.msra.mxu0 %v2988
      %3011 = vmatprep.subr.bf16.mxu0 0
      %3012 = vmatpush1.bf16.msra.mxu0 %v2986
      %3013 = vmatprep.subr.bf16.mxu0 0
      %3014 = vmatpush1.bf16.msra.mxu0 %v2984
      %3015 = vmatprep.subr.bf16.mxu0 0
      %3016 = vmatpush1.bf16.msra.mxu0 %v2982
      %3017 = vmatprep.subr.bf16.mxu0 0
      %3018 = vmatpush1.bf16.msra.mxu0 %v2980
      %3019 = vmatprep.subr.bf16.mxu0 0
      %3020 = vmatpush2.bf16.msra.mxu0 0
      %3021 = vmatprep.subr.bf16.mxu0 0
      %3022 = vmatpush2.bf16.msra.mxu0 0
      %3023 = vmatprep.subr.bf16.mxu0 0
      %3024 = vmatpush2.bf16.msra.mxu0 0
      %3025 = vmatprep.subr.bf16.mxu0 0
      %3026 = vmatpush2.bf16.msra.mxu0 0
      %3027 = vmatprep.subr.bf16.mxu0 0
      %3028 = vmatpush2.bf16.msra.mxu0 0
      %3029 = vmatprep.subr.bf16.mxu0 0
      %3030 = vmatpush2.bf16.msra.mxu0 0
      %3031 = vmatprep.subr.bf16.mxu0 0
      %3032 = vmatpush2.bf16.msra.mxu0 0
      %3033 = vmatprep.subr.bf16.mxu0 0
      %3034 = vmatpush2.bf16.msra.mxu0 0
      %3035 = vmatprep.mubr.bf16.mxu0 0
      %3036 = vmatmul.mubr.bf16.gmra.mxu0 %v2971
      %v3037 = vpop.f32.mrf.mxu0
      %v3038 = vadd.f32 0.0, %v3037
      %v3039 = vpop.f32.mrf.mxu0
      %v3040 = vpop.f32.mrf.mxu0
      %v3041 = vadd.f32 0.0, %v3040
      %v3042 = vpop.f32.mrf.mxu0
      %3043 = vmatprep.mubr.bf16.mxu0 0
      %3044 = vmatmul.mubr.bf16.gmra.mxu0 %v2972
      %v3045 = vpop.f32.mrf.mxu0
      %v3046 = vadd.f32 0.0, %v3045
      %v3047 = vpop.f32.mrf.mxu0
      %v3048 = vpop.f32.mrf.mxu0
      %v3049 = vadd.f32 0.0, %v3048
      %v3050 = vpop.f32.mrf.mxu0
      %3051 = vmatprep.mubr.bf16.mxu0 0
      %3052 = vmatmul.mubr.bf16.gmra.mxu0 %v2973
      %v3053 = vpop.f32.mrf.mxu0
      %v3054 = vadd.f32 0.0, %v3053
      %v3055 = vpop.f32.mrf.mxu0
      %v3056 = vpop.f32.mrf.mxu0
      %v3057 = vadd.f32 0.0, %v3056
      %v3058 = vpop.f32.mrf.mxu0
      %3059 = vmatprep.mubr.bf16.mxu0 0
      %3060 = vmatmul.mubr.bf16.gmra.mxu0 %v2974
      %v3061 = vpop.f32.mrf.mxu0
      %v3062 = vadd.f32 0.0, %v3061
      %v3063 = vpop.f32.mrf.mxu0
      %v3064 = vpop.f32.mrf.mxu0
      %v3065 = vadd.f32 0.0, %v3064
      %v3066 = vpop.f32.mrf.mxu0
      %3067 = vmatprep.mubr.bf16.mxu0 0
      %3068 = vmatmul.mubr.bf16.gmra.mxu0 %v2975
      %v3069 = vpop.f32.mrf.mxu0
      %v3070 = vadd.f32 0.0, %v3069
      %v3071 = vpop.f32.mrf.mxu0
      %v3072 = vpop.f32.mrf.mxu0
      %v3073 = vadd.f32 0.0, %v3072
      %v3074 = vpop.f32.mrf.mxu0
      %3075 = vmatprep.mubr.bf16.mxu0 0
      %3076 = vmatmul.mubr.bf16.gmra.mxu0 %v2976
      %v3077 = vpop.f32.mrf.mxu0
      %v3078 = vadd.f32 0.0, %v3077
      %v3079 = vpop.f32.mrf.mxu0
      %v3080 = vpop.f32.mrf.mxu0
      %v3081 = vadd.f32 0.0, %v3080
      %v3082 = vpop.f32.mrf.mxu0
      %3083 = vmatprep.mubr.bf16.mxu0 0
      %3084 = vmatmul.mubr.bf16.gmra.mxu0 %v2977
      %v3085 = vpop.f32.mrf.mxu0
      %v3086 = vadd.f32 0.0, %v3085
      %v3087 = vpop.f32.mrf.mxu0
      %v3088 = vpop.f32.mrf.mxu0
      %v3089 = vadd.f32 0.0, %v3088
      %v3090 = vpop.f32.mrf.mxu0
      %3091 = vmatprep.mubr.bf16.mxu0 0
      %3092 = vmatmul.mubr.bf16.gmra.mxu0 %v2978
      %v3093 = vpop.f32.mrf.mxu0
      %v3094 = vadd.f32 0.0, %v3093
      %v3095 = vpop.f32.mrf.mxu0
      %v3096 = vpop.f32.mrf.mxu0
      %v3097 = vadd.f32 0.0, %v3096
      %v3098 = vpop.f32.mrf.mxu0
      %3099 = vdwg.mxu0
      %v3100 = vpack.c.bf16 %v3041, %v3038
      %v3101 = vpack.c.bf16 %v3049, %v3046
      %v3102 = vpack.c.bf16 %v3057, %v3054
      %v3103 = vpack.c.bf16 %v3065, %v3062
      %v3104 = vpack.c.bf16 %v3073, %v3070
      %v3105 = vpack.c.bf16 %v3081, %v3078
      %v3106 = vpack.c.bf16 %v3089, %v3086
      %v3107 = vpack.c.bf16 %v3097, %v3094
      %v3116 = vunpack.c.l.b16 %v1936
      %v3117 = vunpack.c.h.b16 %v1936
      %v3118 = vunpack.c.l.b16 %v1937
      %v3119 = vunpack.c.h.b16 %v1937
      %v3120 = vunpack.c.l.b16 %v1938
      %v3121 = vunpack.c.h.b16 %v1938
      %v3122 = vunpack.c.l.b16 %v1939
      %v3123 = vunpack.c.h.b16 %v1939
      %v3124 = vunpack.c.l.b16 %v1940
      %v3125 = vunpack.c.h.b16 %v1940
      %v3126 = vunpack.c.l.b16 %v1941
      %v3127 = vunpack.c.h.b16 %v1941
      %v3128 = vunpack.c.l.b16 %v1942
      %v3129 = vunpack.c.h.b16 %v1942
      %v3130 = vunpack.c.l.b16 %v1943
      %v3131 = vunpack.c.h.b16 %v1943
      %v3132 = vpack.c.b16 %v3118, %v3116
      %v3133 = vpack.c.b16 %v3119, %v3117
      %v3134 = vpack.c.b16 %v3122, %v3120
      %v3135 = vpack.c.b16 %v3123, %v3121
      %v3136 = vpack.c.b16 %v3126, %v3124
      %v3137 = vpack.c.b16 %v3127, %v3125
      %v3138 = vpack.c.b16 %v3130, %v3128
      %v3139 = vpack.c.b16 %v3131, %v3129
      %v3149 = vsel %vm449, %v3100, 0
      %v3152 = vsel %vm449, %v3101, 0
      %v3155 = vsel %vm449, %v3102, 0
      %v3158 = vsel %vm449, %v3103, 0
      %v3161 = vsel %vm449, %v3104, 0
      %v3164 = vsel %vm449, %v3105, 0
      %v3167 = vsel %vm449, %v3106, 0
      %v3170 = vsel %vm449, %v3107, 0
      %3172 = vmatprep.subr.bf16.mxu0 0
      %3173 = vmatpush1.bf16.msra.mxu0 0
      %3174 = vmatprep.subr.bf16.mxu0 0
      %3175 = vmatpush1.bf16.msra.mxu0 0
      %3176 = vmatprep.subr.bf16.mxu0 0
      %3177 = vmatpush1.bf16.msra.mxu0 0
      %3178 = vmatprep.subr.bf16.mxu0 0
      %3179 = vmatpush1.bf16.msra.mxu0 0
      %3180 = vmatprep.subr.bf16.mxu0 %v3139
      %3181 = vmatpush1.bf16.msra.mxu0 %v3138
      %3182 = vmatprep.subr.bf16.mxu0 %v3137
      %3183 = vmatpush1.bf16.msra.mxu0 %v3136
      %3184 = vmatprep.subr.bf16.mxu0 %v3135
      %3185 = vmatpush1.bf16.msra.mxu0 %v3134
      %3186 = vmatprep.subr.bf16.mxu0 %v3133
      %3187 = vmatpush1.bf16.msra.mxu0 %v3132
      %3188 = vmatprep.subr.bf16.mxu0 0
      %3189 = vmatpush2.bf16.msra.mxu0 0
      %3190 = vmatprep.subr.bf16.mxu0 0
      %3191 = vmatpush2.bf16.msra.mxu0 0
      %3192 = vmatprep.subr.bf16.mxu0 0
      %3193 = vmatpush2.bf16.msra.mxu0 0
      %3194 = vmatprep.subr.bf16.mxu0 0
      %3195 = vmatpush2.bf16.msra.mxu0 0
      %3196 = vmatprep.subr.bf16.mxu0 0
      %3197 = vmatpush2.bf16.msra.mxu0 0
      %3198 = vmatprep.subr.bf16.mxu0 0
      %3199 = vmatpush2.bf16.msra.mxu0 0
      %3200 = vmatprep.subr.bf16.mxu0 0
      %3201 = vmatpush2.bf16.msra.mxu0 0
      %3202 = vmatprep.subr.bf16.mxu0 0
      %3203 = vmatpush2.bf16.msra.mxu0 0
      %3204 = vmatprep.mubr.bf16.mxu0 0
      %3205 = vmatmul.mubr.bf16.gmra.mxu0 %v3149
      %v3206 = vpop.f32.mrf.mxu0
      %v3207 = vadd.f32 0.0, %v3206
      %v3208 = vpop.f32.mrf.mxu0
      %v3209 = vadd.f32 0.0, %v3208
      %v3210 = vpop.f32.mrf.mxu0
      %v3211 = vadd.f32 0.0, %v3210
      %v3212 = vpop.f32.mrf.mxu0
      %v3213 = vadd.f32 0.0, %v3212
      %3214 = vmatprep.mubr.bf16.mxu0 0
      %3215 = vmatmul.mubr.bf16.gmra.mxu0 %v3152
      %v3216 = vpop.f32.mrf.mxu0
      %v3217 = vadd.f32 0.0, %v3216
      %v3218 = vpop.f32.mrf.mxu0
      %v3219 = vadd.f32 0.0, %v3218
      %v3220 = vpop.f32.mrf.mxu0
      %v3221 = vadd.f32 0.0, %v3220
      %v3222 = vpop.f32.mrf.mxu0
      %v3223 = vadd.f32 0.0, %v3222
      %3224 = vmatprep.mubr.bf16.mxu0 0
      %3225 = vmatmul.mubr.bf16.gmra.mxu0 %v3155
      %v3226 = vpop.f32.mrf.mxu0
      %v3227 = vadd.f32 0.0, %v3226
      %v3228 = vpop.f32.mrf.mxu0
      %v3229 = vadd.f32 0.0, %v3228
      %v3230 = vpop.f32.mrf.mxu0
      %v3231 = vadd.f32 0.0, %v3230
      %v3232 = vpop.f32.mrf.mxu0
      %v3233 = vadd.f32 0.0, %v3232
      %3234 = vmatprep.mubr.bf16.mxu0 0
      %3235 = vmatmul.mubr.bf16.gmra.mxu0 %v3158
      %v3236 = vpop.f32.mrf.mxu0
      %v3237 = vadd.f32 0.0, %v3236
      %v3238 = vpop.f32.mrf.mxu0
      %v3239 = vadd.f32 0.0, %v3238
      %v3240 = vpop.f32.mrf.mxu0
      %v3241 = vadd.f32 0.0, %v3240
      %v3242 = vpop.f32.mrf.mxu0
      %v3243 = vadd.f32 0.0, %v3242
      %3244 = vmatprep.mubr.bf16.mxu0 0
      %3245 = vmatmul.mubr.bf16.gmra.mxu0 %v3161
      %v3246 = vpop.f32.mrf.mxu0
      %v3247 = vadd.f32 0.0, %v3246
      %v3248 = vpop.f32.mrf.mxu0
      %v3249 = vadd.f32 0.0, %v3248
      %v3250 = vpop.f32.mrf.mxu0
      %v3251 = vadd.f32 0.0, %v3250
      %v3252 = vpop.f32.mrf.mxu0
      %v3253 = vadd.f32 0.0, %v3252
      %3254 = vmatprep.mubr.bf16.mxu0 0
      %3255 = vmatmul.mubr.bf16.gmra.mxu0 %v3164
      %v3256 = vpop.f32.mrf.mxu0
      %v3257 = vadd.f32 0.0, %v3256
      %v3258 = vpop.f32.mrf.mxu0
      %v3259 = vadd.f32 0.0, %v3258
      %v3260 = vpop.f32.mrf.mxu0
      %v3261 = vadd.f32 0.0, %v3260
      %v3262 = vpop.f32.mrf.mxu0
      %v3263 = vadd.f32 0.0, %v3262
      %3264 = vmatprep.mubr.bf16.mxu0 0
      %3265 = vmatmul.mubr.bf16.gmra.mxu0 %v3167
      %v3266 = vpop.f32.mrf.mxu0
      %v3267 = vadd.f32 0.0, %v3266
      %v3268 = vpop.f32.mrf.mxu0
      %v3269 = vadd.f32 0.0, %v3268
      %v3270 = vpop.f32.mrf.mxu0
      %v3271 = vadd.f32 0.0, %v3270
      %v3272 = vpop.f32.mrf.mxu0
      %v3273 = vadd.f32 0.0, %v3272
      %3274 = vmatprep.mubr.bf16.mxu0 0
      %3275 = vmatmul.mubr.bf16.gmra.mxu0 %v3170
      %v3276 = vpop.f32.mrf.mxu0
      %v3277 = vadd.f32 0.0, %v3276
      %v3278 = vpop.f32.mrf.mxu0
      %v3279 = vadd.f32 0.0, %v3278
      %v3280 = vpop.f32.mrf.mxu0
      %v3281 = vadd.f32 0.0, %v3280
      %v3282 = vpop.f32.mrf.mxu0
      %v3283 = vadd.f32 0.0, %v3282
      %3284 = vdwg.mxu0
      %v3293 = vunpack.c.l.b16 %v1928
      %v3294 = vunpack.c.h.b16 %v1928
      %v3295 = vunpack.c.l.b16 %v1929
      %v3296 = vunpack.c.h.b16 %v1929
      %v3297 = vunpack.c.l.b16 %v1930
      %v3298 = vunpack.c.h.b16 %v1930
      %v3299 = vunpack.c.l.b16 %v1931
      %v3300 = vunpack.c.h.b16 %v1931
      %v3301 = vunpack.c.l.b16 %v1932
      %v3302 = vunpack.c.h.b16 %v1932
      %v3303 = vunpack.c.l.b16 %v1933
      %v3304 = vunpack.c.h.b16 %v1933
      %v3305 = vunpack.c.l.b16 %v1934
      %v3306 = vunpack.c.h.b16 %v1934
      %v3307 = vunpack.c.l.b16 %v1935
      %v3308 = vunpack.c.h.b16 %v1935
      %v3309 = vpack.c.b16 %v3295, %v3293
      %v3310 = vpack.c.b16 %v3296, %v3294
      %v3311 = vpack.c.b16 %v3299, %v3297
      %v3312 = vpack.c.b16 %v3300, %v3298
      %v3313 = vpack.c.b16 %v3303, %v3301
      %v3314 = vpack.c.b16 %v3304, %v3302
      %v3315 = vpack.c.b16 %v3307, %v3305
      %v3316 = vpack.c.b16 %v3308, %v3306
      %v3326 = vsel %vm449, %v2570, 0
      %v3329 = vsel %vm449, %v2571, 0
      %v3332 = vsel %vm449, %v2572, 0
      %v3335 = vsel %vm449, %v2573, 0
      %v3338 = vsel %vm449, %v2574, 0
      %v3341 = vsel %vm449, %v2575, 0
      %v3344 = vsel %vm449, %v2576, 0
      %v3347 = vsel %vm449, %v2577, 0
      %3349 = vmatprep.subr.bf16.mxu0 0
      %3350 = vmatpush1.bf16.msra.mxu0 0
      %3351 = vmatprep.subr.bf16.mxu0 0
      %3352 = vmatpush1.bf16.msra.mxu0 0
      %3353 = vmatprep.subr.bf16.mxu0 0
      %3354 = vmatpush1.bf16.msra.mxu0 0
      %3355 = vmatprep.subr.bf16.mxu0 0
      %3356 = vmatpush1.bf16.msra.mxu0 0
      %3357 = vmatprep.subr.bf16.mxu0 %v3316
      %3358 = vmatpush1.bf16.msra.mxu0 %v3315
      %3359 = vmatprep.subr.bf16.mxu0 %v3314
      %3360 = vmatpush1.bf16.msra.mxu0 %v3313
      %3361 = vmatprep.subr.bf16.mxu0 %v3312
      %3362 = vmatpush1.bf16.msra.mxu0 %v3311
      %3363 = vmatprep.subr.bf16.mxu0 %v3310
      %3364 = vmatpush1.bf16.msra.mxu0 %v3309
      %3365 = vmatprep.subr.bf16.mxu0 0
      %3366 = vmatpush2.bf16.msra.mxu0 0
      %3367 = vmatprep.subr.bf16.mxu0 0
      %3368 = vmatpush2.bf16.msra.mxu0 0
      %3369 = vmatprep.subr.bf16.mxu0 0
      %3370 = vmatpush2.bf16.msra.mxu0 0
      %3371 = vmatprep.subr.bf16.mxu0 0
      %3372 = vmatpush2.bf16.msra.mxu0 0
      %3373 = vmatprep.subr.bf16.mxu0 0
      %3374 = vmatpush2.bf16.msra.mxu0 0
      %3375 = vmatprep.subr.bf16.mxu0 0
      %3376 = vmatpush2.bf16.msra.mxu0 0
      %3377 = vmatprep.subr.bf16.mxu0 0
      %3378 = vmatpush2.bf16.msra.mxu0 0
      %3379 = vmatprep.subr.bf16.mxu0 0
      %3380 = vmatpush2.bf16.msra.mxu0 0
      %3381 = vmatprep.mubr.bf16.mxu0 0
      %3382 = vmatmul.mubr.bf16.gmra.mxu0 %v3326
      %v3383 = vpop.f32.mrf.mxu0
      %v3384 = vadd.f32 %v3207, %v3383
      %v3385 = vpop.f32.mrf.mxu0
      %v3386 = vadd.f32 %v3209, %v3385
      %v3387 = vpop.f32.mrf.mxu0
      %v3388 = vadd.f32 %v3211, %v3387
      %v3389 = vpop.f32.mrf.mxu0
      %v3390 = vadd.f32 %v3213, %v3389
      %3391 = vmatprep.mubr.bf16.mxu0 0
      %3392 = vmatmul.mubr.bf16.gmra.mxu0 %v3329
      %v3393 = vpop.f32.mrf.mxu0
      %v3394 = vadd.f32 %v3217, %v3393
      %v3395 = vpop.f32.mrf.mxu0
      %v3396 = vadd.f32 %v3219, %v3395
      %v3397 = vpop.f32.mrf.mxu0
      %v3398 = vadd.f32 %v3221, %v3397
      %v3399 = vpop.f32.mrf.mxu0
      %v3400 = vadd.f32 %v3223, %v3399
      %3401 = vmatprep.mubr.bf16.mxu0 0
      %3402 = vmatmul.mubr.bf16.gmra.mxu0 %v3332
      %v3403 = vpop.f32.mrf.mxu0
      %v3404 = vadd.f32 %v3227, %v3403
      %v3405 = vpop.f32.mrf.mxu0
      %v3406 = vadd.f32 %v3229, %v3405
      %v3407 = vpop.f32.mrf.mxu0
      %v3408 = vadd.f32 %v3231, %v3407
      %v3409 = vpop.f32.mrf.mxu0
      %v3410 = vadd.f32 %v3233, %v3409
      %3411 = vmatprep.mubr.bf16.mxu0 0
      %3412 = vmatmul.mubr.bf16.gmra.mxu0 %v3335
      %v3413 = vpop.f32.mrf.mxu0
      %v3414 = vadd.f32 %v3237, %v3413
      %v3415 = vpop.f32.mrf.mxu0
      %v3416 = vadd.f32 %v3239, %v3415
      %v3417 = vpop.f32.mrf.mxu0
      %v3418 = vadd.f32 %v3241, %v3417
      %v3419 = vpop.f32.mrf.mxu0
      %v3420 = vadd.f32 %v3243, %v3419
      %3421 = vmatprep.mubr.bf16.mxu0 0
      %3422 = vmatmul.mubr.bf16.gmra.mxu0 %v3338
      %v3423 = vpop.f32.mrf.mxu0
      %v3424 = vadd.f32 %v3247, %v3423
      %v3425 = vpop.f32.mrf.mxu0
      %v3426 = vadd.f32 %v3249, %v3425
      %v3427 = vpop.f32.mrf.mxu0
      %v3428 = vadd.f32 %v3251, %v3427
      %v3429 = vpop.f32.mrf.mxu0
      %v3430 = vadd.f32 %v3253, %v3429
      %3431 = vmatprep.mubr.bf16.mxu0 0
      %3432 = vmatmul.mubr.bf16.gmra.mxu0 %v3341
      %v3433 = vpop.f32.mrf.mxu0
      %v3434 = vadd.f32 %v3257, %v3433
      %v3435 = vpop.f32.mrf.mxu0
      %v3436 = vadd.f32 %v3259, %v3435
      %v3437 = vpop.f32.mrf.mxu0
      %v3438 = vadd.f32 %v3261, %v3437
      %v3439 = vpop.f32.mrf.mxu0
      %v3440 = vadd.f32 %v3263, %v3439
      %3441 = vmatprep.mubr.bf16.mxu0 0
      %3442 = vmatmul.mubr.bf16.gmra.mxu0 %v3344
      %v3443 = vpop.f32.mrf.mxu0
      %v3444 = vadd.f32 %v3267, %v3443
      %v3445 = vpop.f32.mrf.mxu0
      %v3446 = vadd.f32 %v3269, %v3445
      %v3447 = vpop.f32.mrf.mxu0
      %v3448 = vadd.f32 %v3271, %v3447
      %v3449 = vpop.f32.mrf.mxu0
      %v3450 = vadd.f32 %v3273, %v3449
      %3451 = vmatprep.mubr.bf16.mxu0 0
      %3452 = vmatmul.mubr.bf16.gmra.mxu0 %v3347
      %v3453 = vpop.f32.mrf.mxu0
      %v3454 = vadd.f32 %v3277, %v3453
      %v3455 = vpop.f32.mrf.mxu0
      %v3456 = vadd.f32 %v3279, %v3455
      %v3457 = vpop.f32.mrf.mxu0
      %v3458 = vadd.f32 %v3281, %v3457
      %v3459 = vpop.f32.mrf.mxu0
      %v3460 = vadd.f32 %v3283, %v3459
      %3461 = vdwg.mxu0
      %v3462 = vld [vmem:[#allocation2 + $0x10] sm:$0xf]
      %v3463 = vld [vmem:[#allocation2 + $0x24] sm:$0xf]
      %v3464 = vld [vmem:[#allocation2 + $0x38] sm:$0xf]
      %v3465 = vld [vmem:[#allocation2 + $0x4c] sm:$0xf]
      %v3466 = vld [vmem:[#allocation2 + $0x60] sm:$0xf]
      %v3467 = vld [vmem:[#allocation2 + $0x74] sm:$0xf]
      %v3468 = vld [vmem:[#allocation2 + $0x88] sm:$0xf]
      %v3469 = vld [vmem:[#allocation2 + $0x9c] sm:$0xf]
      %v3470 = vld [vmem:[#allocation2 + $0xb0] sm:$0xf]
      %v3471 = vld [vmem:[#allocation2 + $0xc4] sm:$0xf]
      %v3472 = vld [vmem:[#allocation2 + $0xd8] sm:$0xf]
      %v3473 = vld [vmem:[#allocation2 + $0xec] sm:$0xf]
      %v3474 = vld [vmem:[#allocation2 + $0x100] sm:$0xf]
      %v3475 = vld [vmem:[#allocation2 + $0x114] sm:$0xf]
      %v3476 = vld [vmem:[#allocation2 + $0x128] sm:$0xf]
      %v3477 = vld [vmem:[#allocation2 + $0x13c] sm:$0xf]
      %3478 = vrot.lane.b32.xlu0 %v2642, 64
      %v3479 = vpop.permute.xlu0 %3478
      %3480 = vrot.lane.b32.xlu0 %v2643, 64
      %v3481 = vpop.permute.xlu0 %3480
      %3482 = vrot.lane.b32.xlu0 %v2644, 64
      %v3483 = vpop.permute.xlu0 %3482
      %3484 = vrot.lane.b32.xlu0 %v2645, 64
      %v3485 = vpop.permute.xlu0 %3484
      %3486 = vrot.lane.b32.xlu0 %v2646, 64
      %v3487 = vpop.permute.xlu0 %3486
      %3488 = vrot.lane.b32.xlu0 %v2647, 64
      %v3489 = vpop.permute.xlu0 %3488
      %3490 = vrot.lane.b32.xlu0 %v2648, 64
      %v3491 = vpop.permute.xlu0 %3490
      %3492 = vrot.lane.b32.xlu0 %v2649, 64
      %v3493 = vpop.permute.xlu0 %3492
      %v3495 = vsel %vm449, %v2072, 0
      %v3498 = vsel %vm449, %v2073, 0
      %v3501 = vsel %vm449, %v2074, 0
      %v3504 = vsel %vm449, %v2075, 0
      %v3507 = vsel %vm449, %v2076, 0
      %v3510 = vsel %vm449, %v2077, 0
      %v3513 = vsel %vm449, %v2078, 0
      %v3516 = vsel %vm449, %v2079, 0
      %v3519 = vsel %vm449, %v3479, 0
      %v3522 = vsel %vm449, %v3481, 0
      %v3525 = vsel %vm449, %v3483, 0
      %v3528 = vsel %vm449, %v3485, 0
      %v3531 = vsel %vm449, %v3487, 0
      %v3534 = vsel %vm449, %v3489, 0
      %v3537 = vsel %vm449, %v3491, 0
      %v3540 = vsel %vm449, %v3493, 0
      %3542 = vmatprep.subr.bf16.mxu0 0
      %3543 = vmatpush1.bf16.xpose.msra.mxu0 %v3540
      %3544 = vmatprep.subr.bf16.mxu0 0
      %3545 = vmatpush1.bf16.xpose.msra.mxu0 %v3537
      %3546 = vmatprep.subr.bf16.mxu0 0
      %3547 = vmatpush1.bf16.xpose.msra.mxu0 %v3534
      %3548 = vmatprep.subr.bf16.mxu0 0
      %3549 = vmatpush1.bf16.xpose.msra.mxu0 %v3531
      %3550 = vmatprep.subr.bf16.mxu0 0
      %3551 = vmatpush1.bf16.xpose.msra.mxu0 %v3528
      %3552 = vmatprep.subr.bf16.mxu0 0
      %3553 = vmatpush1.bf16.xpose.msra.mxu0 %v3525
      %3554 = vmatprep.subr.bf16.mxu0 0
      %3555 = vmatpush1.bf16.xpose.msra.mxu0 %v3522
      %3556 = vmatprep.subr.bf16.mxu0 0
      %3557 = vmatpush1.bf16.xpose.msra.mxu0 %v3519
      %3558 = vmatprep.subr.bf16.mxu0 0
      %3559 = vmatpush2.bf16.xpose.msra.mxu0 0
      %3560 = vmatprep.subr.bf16.mxu0 0
      %3561 = vmatpush2.bf16.xpose.msra.mxu0 0
      %3562 = vmatprep.subr.bf16.mxu0 0
      %3563 = vmatpush2.bf16.xpose.msra.mxu0 0
      %3564 = vmatprep.subr.bf16.mxu0 0
      %3565 = vmatpush2.bf16.xpose.msra.mxu0 0
      %3566 = vmatprep.subr.bf16.mxu0 0
      %3567 = vmatpush2.bf16.xpose.msra.mxu0 0
      %3568 = vmatprep.subr.bf16.mxu0 0
      %3569 = vmatpush2.bf16.xpose.msra.mxu0 0
      %3570 = vmatprep.subr.bf16.mxu0 0
      %3571 = vmatpush2.bf16.xpose.msra.mxu0 0
      %3572 = vmatprep.subr.bf16.mxu0 0
      %3573 = vmatpush2.bf16.xpose.msra.mxu0 0
      %3574 = vmatprep.mubr.bf16.mxu0 0
      %3575 = vmatmul.mubr.bf16.gmra.mxu0 %v3495
      %v3576 = vpop.f32.mrf.mxu0
      %v3577 = vadd.f32 0.0, %v3576
      %v3578 = vpop.f32.mrf.mxu0
      %v3579 = vpop.f32.mrf.mxu0
      %v3580 = vadd.f32 0.0, %v3579
      %v3581 = vpop.f32.mrf.mxu0
      %3582 = vmatprep.mubr.bf16.mxu0 0
      %3583 = vmatmul.mubr.bf16.gmra.mxu0 %v3498
      %v3584 = vpop.f32.mrf.mxu0
      %v3585 = vadd.f32 0.0, %v3584
      %v3586 = vpop.f32.mrf.mxu0
      %v3587 = vpop.f32.mrf.mxu0
      %v3588 = vadd.f32 0.0, %v3587
      %v3589 = vpop.f32.mrf.mxu0
      %3590 = vmatprep.mubr.bf16.mxu0 0
      %3591 = vmatmul.mubr.bf16.gmra.mxu0 %v3501
      %v3592 = vpop.f32.mrf.mxu0
      %v3593 = vadd.f32 0.0, %v3592
      %v3594 = vpop.f32.mrf.mxu0
      %v3595 = vpop.f32.mrf.mxu0
      %v3596 = vadd.f32 0.0, %v3595
      %v3597 = vpop.f32.mrf.mxu0
      %3598 = vmatprep.mubr.bf16.mxu0 0
      %3599 = vmatmul.mubr.bf16.gmra.mxu0 %v3504
      %v3600 = vpop.f32.mrf.mxu0
      %v3601 = vadd.f32 0.0, %v3600
      %v3602 = vpop.f32.mrf.mxu0
      %v3603 = vpop.f32.mrf.mxu0
      %v3604 = vadd.f32 0.0, %v3603
      %v3605 = vpop.f32.mrf.mxu0
      %3606 = vmatprep.mubr.bf16.mxu0 0
      %3607 = vmatmul.mubr.bf16.gmra.mxu0 %v3507
      %v3608 = vpop.f32.mrf.mxu0
      %v3609 = vadd.f32 0.0, %v3608
      %v3610 = vpop.f32.mrf.mxu0
      %v3611 = vpop.f32.mrf.mxu0
      %v3612 = vadd.f32 0.0, %v3611
      %v3613 = vpop.f32.mrf.mxu0
      %3614 = vmatprep.mubr.bf16.mxu0 0
      %3615 = vmatmul.mubr.bf16.gmra.mxu0 %v3510
      %v3616 = vpop.f32.mrf.mxu0
      %v3617 = vadd.f32 0.0, %v3616
      %v3618 = vpop.f32.mrf.mxu0
      %v3619 = vpop.f32.mrf.mxu0
      %v3620 = vadd.f32 0.0, %v3619
      %v3621 = vpop.f32.mrf.mxu0
      %3622 = vmatprep.mubr.bf16.mxu0 0
      %3623 = vmatmul.mubr.bf16.gmra.mxu0 %v3513
      %v3624 = vpop.f32.mrf.mxu0
      %v3625 = vadd.f32 0.0, %v3624
      %v3626 = vpop.f32.mrf.mxu0
      %v3627 = vpop.f32.mrf.mxu0
      %v3628 = vadd.f32 0.0, %v3627
      %v3629 = vpop.f32.mrf.mxu0
      %3630 = vmatprep.mubr.bf16.mxu0 0
      %3631 = vmatmul.mubr.bf16.gmra.mxu0 %v3516
      %v3632 = vpop.f32.mrf.mxu0
      %v3633 = vadd.f32 0.0, %v3632
      %v3634 = vpop.f32.mrf.mxu0
      %v3635 = vpop.f32.mrf.mxu0
      %v3636 = vadd.f32 0.0, %v3635
      %v3637 = vpop.f32.mrf.mxu0
      %3638 = vdwg.mxu0
      %v3639 = vmul.f32 %v3577, 0.07216878
      %v3640 = vmul.f32 %v3580, 0.07216878
      %v3641 = vmul.f32 %v3585, 0.07216878
      %v3642 = vmul.f32 %v3588, 0.07216878
      %v3643 = vmul.f32 %v3593, 0.07216878
      %v3644 = vmul.f32 %v3596, 0.07216878
      %v3645 = vmul.f32 %v3601, 0.07216878
      %v3646 = vmul.f32 %v3604, 0.07216878
      %v3647 = vmul.f32 %v3609, 0.07216878
      %v3648 = vmul.f32 %v3612, 0.07216878
      %v3649 = vmul.f32 %v3617, 0.07216878
      %v3650 = vmul.f32 %v3620, 0.07216878
      %v3651 = vmul.f32 %v3625, 0.07216878
      %v3652 = vmul.f32 %v3628, 0.07216878
      %v3653 = vmul.f32 %v3633, 0.07216878
      %v3654 = vmul.f32 %v3636, 0.07216878
      %v3655 = vadd.f32 %v3639, %v1912
      %v3656 = vadd.f32 %v3640, %v1913
      %v3657 = vadd.f32 %v3641, %v1914
      %v3658 = vadd.f32 %v3642, %v1915
      %v3659 = vadd.f32 %v3643, %v1916
      %v3660 = vadd.f32 %v3644, %v1917
      %v3661 = vadd.f32 %v3645, %v1918
      %v3662 = vadd.f32 %v3646, %v1919
      %v3663 = vadd.f32 %v3647, %v1920
      %v3664 = vadd.f32 %v3648, %v1921
      %v3665 = vadd.f32 %v3649, %v1922
      %v3666 = vadd.f32 %v3650, %v1923
      %v3667 = vadd.f32 %v3651, %v1924
      %v3668 = vadd.f32 %v3652, %v1925
      %v3669 = vadd.f32 %v3653, %v1926
      %v3670 = vadd.f32 %v3654, %v1927
      %3671 = vmax.xlane.f32.xlu0 %v3655
      %v3672 = vpop.xlane.xlu0 %3671
      %3673 = vmax.xlane.f32.xlu0 %v3656
      %v3674 = vpop.xlane.xlu0 %3673
      %3675 = vmax.xlane.f32.xlu0 %v3657
      %v3676 = vpop.xlane.xlu0 %3675
      %3677 = vmax.xlane.f32.xlu0 %v3658
      %v3678 = vpop.xlane.xlu0 %3677
      %3679 = vmax.xlane.f32.xlu0 %v3659
      %v3680 = vpop.xlane.xlu0 %3679
      %3681 = vmax.xlane.f32.xlu0 %v3660
      %v3682 = vpop.xlane.xlu0 %3681
      %3683 = vmax.xlane.f32.xlu0 %v3661
      %v3684 = vpop.xlane.xlu0 %3683
      %3685 = vmax.xlane.f32.xlu0 %v3662
      %v3686 = vpop.xlane.xlu0 %3685
      %3687 = vmax.xlane.f32.xlu0 %v3663
      %v3688 = vpop.xlane.xlu0 %3687
      %3689 = vmax.xlane.f32.xlu0 %v3664
      %v3690 = vpop.xlane.xlu0 %3689
      %3691 = vmax.xlane.f32.xlu0 %v3665
      %v3692 = vpop.xlane.xlu0 %3691
      %3693 = vmax.xlane.f32.xlu0 %v3666
      %v3694 = vpop.xlane.xlu0 %3693
      %3695 = vmax.xlane.f32.xlu0 %v3667
      %v3696 = vpop.xlane.xlu0 %3695
      %3697 = vmax.xlane.f32.xlu0 %v3668
      %v3698 = vpop.xlane.xlu0 %3697
      %3699 = vmax.xlane.f32.xlu0 %v3669
      %v3700 = vpop.xlane.xlu0 %3699
      %3701 = vmax.xlane.f32.xlu0 %v3670
      %v3702 = vpop.xlane.xlu0 %3701
      %v3703 = vsub.f32 %v3655, %v3672
      %v3704 = vsub.f32 %v3656, %v3674
      %v3705 = vsub.f32 %v3657, %v3676
      %v3706 = vsub.f32 %v3658, %v3678
      %v3707 = vsub.f32 %v3659, %v3680
      %v3708 = vsub.f32 %v3660, %v3682
      %v3709 = vsub.f32 %v3661, %v3684
      %v3710 = vsub.f32 %v3662, %v3686
      %v3711 = vsub.f32 %v3663, %v3688
      %v3712 = vsub.f32 %v3664, %v3690
      %v3713 = vsub.f32 %v3665, %v3692
      %v3714 = vsub.f32 %v3666, %v3694
      %v3715 = vsub.f32 %v3667, %v3696
      %v3716 = vsub.f32 %v3668, %v3698
      %v3717 = vsub.f32 %v3669, %v3700
      %v3718 = vsub.f32 %v3670, %v3702
      %v3719 = vmul.f32 %v3703, 1.442695
      %v3720 = vpow.pop %v3719
      %v3721 = vmul.f32 %v3704, 1.442695
      %v3722 = vpow.pop %v3721
      %v3723 = vmul.f32 %v3705, 1.442695
      %v3724 = vpow.pop %v3723
      %v3725 = vmul.f32 %v3706, 1.442695
      %v3726 = vpow.pop %v3725
      %v3727 = vmul.f32 %v3707, 1.442695
      %v3728 = vpow.pop %v3727
      %v3729 = vmul.f32 %v3708, 1.442695
      %v3730 = vpow.pop %v3729
      %v3731 = vmul.f32 %v3709, 1.442695
      %v3732 = vpow.pop %v3731
      %v3733 = vmul.f32 %v3710, 1.442695
      %v3734 = vpow.pop %v3733
      %v3735 = vmul.f32 %v3711, 1.442695
      %v3736 = vpow.pop %v3735
      %v3737 = vmul.f32 %v3712, 1.442695
      %v3738 = vpow.pop %v3737
      %v3739 = vmul.f32 %v3713, 1.442695
      %v3740 = vpow.pop %v3739
      %v3741 = vmul.f32 %v3714, 1.442695
      %v3742 = vpow.pop %v3741
      %v3743 = vmul.f32 %v3715, 1.442695
      %v3744 = vpow.pop %v3743
      %v3745 = vmul.f32 %v3716, 1.442695
      %v3746 = vpow.pop %v3745
      %v3747 = vmul.f32 %v3717, 1.442695
      %v3748 = vpow.pop %v3747
      %v3749 = vmul.f32 %v3718, 1.442695
      %v3750 = vpow.pop %v3749
      %3751 = vadd.xlane.f32.xlu0 %v3720
      %v3752 = vpop.xlane.xlu0 %3751
      %3753 = vadd.xlane.f32.xlu0 %v3722
      %v3754 = vpop.xlane.xlu0 %3753
      %3755 = vadd.xlane.f32.xlu0 %v3724
      %v3756 = vpop.xlane.xlu0 %3755
      %3757 = vadd.xlane.f32.xlu0 %v3726
      %v3758 = vpop.xlane.xlu0 %3757
      %3759 = vadd.xlane.f32.xlu0 %v3728
      %v3760 = vpop.xlane.xlu0 %3759
      %3761 = vadd.xlane.f32.xlu0 %v3730
      %v3762 = vpop.xlane.xlu0 %3761
      %3763 = vadd.xlane.f32.xlu0 %v3732
      %v3764 = vpop.xlane.xlu0 %3763
      %3765 = vadd.xlane.f32.xlu0 %v3734
      %v3766 = vpop.xlane.xlu0 %3765
      %3767 = vadd.xlane.f32.xlu0 %v3736
      %v3768 = vpop.xlane.xlu0 %3767
      %3769 = vadd.xlane.f32.xlu0 %v3738
      %v3770 = vpop.xlane.xlu0 %3769
      %3771 = vadd.xlane.f32.xlu0 %v3740
      %v3772 = vpop.xlane.xlu0 %3771
      %3773 = vadd.xlane.f32.xlu0 %v3742
      %v3774 = vpop.xlane.xlu0 %3773
      %3775 = vadd.xlane.f32.xlu0 %v3744
      %v3776 = vpop.xlane.xlu0 %3775
      %3777 = vadd.xlane.f32.xlu0 %v3746
      %v3778 = vpop.xlane.xlu0 %3777
      %3779 = vadd.xlane.f32.xlu0 %v3748
      %v3780 = vpop.xlane.xlu0 %3779
      %3781 = vadd.xlane.f32.xlu0 %v3750
      %v3782 = vpop.xlane.xlu0 %3781
      %v3783 = vrcp.pop %v3752
      %v3784 = vrcp.pop %v3754
      %v3785 = vrcp.pop %v3756
      %v3786 = vrcp.pop %v3758
      %v3787 = vrcp.pop %v3760
      %v3788 = vrcp.pop %v3762
      %v3789 = vrcp.pop %v3764
      %v3790 = vrcp.pop %v3766
      %v3791 = vrcp.pop %v3768
      %v3792 = vrcp.pop %v3770
      %v3793 = vrcp.pop %v3772
      %v3794 = vrcp.pop %v3774
      %v3795 = vrcp.pop %v3776
      %v3796 = vrcp.pop %v3778
      %v3797 = vrcp.pop %v3780
      %v3798 = vrcp.pop %v3782
      %v3799 = vmul.f32 %v3720, %v3783
      %v3800 = vmul.f32 %v3722, %v3784
      %v3801 = vmul.f32 %v3724, %v3785
      %v3802 = vmul.f32 %v3726, %v3786
      %v3803 = vmul.f32 %v3728, %v3787
      %v3804 = vmul.f32 %v3730, %v3788
      %v3805 = vmul.f32 %v3732, %v3789
      %v3806 = vmul.f32 %v3734, %v3790
      %v3807 = vmul.f32 %v3736, %v3791
      %v3808 = vmul.f32 %v3738, %v3792
      %v3809 = vmul.f32 %v3740, %v3793
      %v3810 = vmul.f32 %v3742, %v3794
      %v3811 = vmul.f32 %v3744, %v3795
      %v3812 = vmul.f32 %v3746, %v3796
      %v3813 = vmul.f32 %v3748, %v3797
      %v3814 = vmul.f32 %v3750, %v3798
      %v3815 = vpack.c.bf16 %v3800, %v3799
      %v3816 = vpack.c.bf16 %v3802, %v3801
      %v3817 = vpack.c.bf16 %v3804, %v3803
      %v3818 = vpack.c.bf16 %v3806, %v3805
      %v3819 = vpack.c.bf16 %v3808, %v3807
      %v3820 = vpack.c.bf16 %v3810, %v3809
      %v3821 = vpack.c.bf16 %v3812, %v3811
      %v3822 = vpack.c.bf16 %v3814, %v3813
      %v3839 = vunpack.c.l.b16 %v3462
      %v3840 = vunpack.c.l.b16 %v3463
      %v3841 = vunpack.c.l.b16 %v3464
      %v3842 = vunpack.c.l.b16 %v3465
      %v3843 = vunpack.c.l.b16 %v3466
      %v3844 = vunpack.c.l.b16 %v3467
      %v3845 = vunpack.c.l.b16 %v3468
      %v3846 = vunpack.c.l.b16 %v3469
      %v3847 = vunpack.c.l.b16 %v3470
      %v3848 = vunpack.c.l.b16 %v3471
      %v3849 = vunpack.c.l.b16 %v3472
      %v3850 = vunpack.c.l.b16 %v3473
      %v3851 = vunpack.c.l.b16 %v3474
      %v3852 = vunpack.c.l.b16 %v3475
      %v3853 = vunpack.c.l.b16 %v3476
      %v3854 = vunpack.c.l.b16 %v3477
      %v3855 = vpack.c.b16 %v3840, %v3839
      %v3856 = vpack.c.b16 %v3842, %v3841
      %v3857 = vpack.c.b16 %v3844, %v3843
      %v3858 = vpack.c.b16 %v3846, %v3845
      %v3859 = vpack.c.b16 %v3848, %v3847
      %v3860 = vpack.c.b16 %v3850, %v3849
      %v3861 = vpack.c.b16 %v3852, %v3851
      %v3862 = vpack.c.b16 %v3854, %v3853
      %3871 = vmatprep.subr.bf16.mxu0 0
      %3872 = vmatpush1.bf16.msra.mxu0 %v3862
      %3873 = vmatprep.subr.bf16.mxu0 0
      %3874 = vmatpush1.bf16.msra.mxu0 %v3861
      %3875 = vmatprep.subr.bf16.mxu0 0
      %3876 = vmatpush1.bf16.msra.mxu0 %v3860
      %3877 = vmatprep.subr.bf16.mxu0 0
      %3878 = vmatpush1.bf16.msra.mxu0 %v3859
      %3879 = vmatprep.subr.bf16.mxu0 0
      %3880 = vmatpush1.bf16.msra.mxu0 %v3858
      %3881 = vmatprep.subr.bf16.mxu0 0
      %3882 = vmatpush1.bf16.msra.mxu0 %v3857
      %3883 = vmatprep.subr.bf16.mxu0 0
      %3884 = vmatpush1.bf16.msra.mxu0 %v3856
      %3885 = vmatprep.subr.bf16.mxu0 0
      %3886 = vmatpush1.bf16.msra.mxu0 %v3855
      %3887 = vmatprep.subr.bf16.mxu0 0
      %3888 = vmatpush2.bf16.msra.mxu0 0
      %3889 = vmatprep.subr.bf16.mxu0 0
      %3890 = vmatpush2.bf16.msra.mxu0 0
      %3891 = vmatprep.subr.bf16.mxu0 0
      %3892 = vmatpush2.bf16.msra.mxu0 0
      %3893 = vmatprep.subr.bf16.mxu0 0
      %3894 = vmatpush2.bf16.msra.mxu0 0
      %3895 = vmatprep.subr.bf16.mxu0 0
      %3896 = vmatpush2.bf16.msra.mxu0 0
      %3897 = vmatprep.subr.bf16.mxu0 0
      %3898 = vmatpush2.bf16.msra.mxu0 0
      %3899 = vmatprep.subr.bf16.mxu0 0
      %3900 = vmatpush2.bf16.msra.mxu0 0
      %3901 = vmatprep.subr.bf16.mxu0 0
      %3902 = vmatpush2.bf16.msra.mxu0 0
      %3903 = vmatprep.mubr.bf16.mxu0 0
      %3904 = vmatmul.mubr.bf16.gmra.mxu0 %v3815
      %v3905 = vpop.f32.mrf.mxu0
      %v3906 = vadd.f32 0.0, %v3905
      %v3907 = vpop.f32.mrf.mxu0
      %v3908 = vpop.f32.mrf.mxu0
      %v3909 = vadd.f32 0.0, %v3908
      %v3910 = vpop.f32.mrf.mxu0
      %3911 = vmatprep.mubr.bf16.mxu0 0
      %3912 = vmatmul.mubr.bf16.gmra.mxu0 %v3816
      %v3913 = vpop.f32.mrf.mxu0
      %v3914 = vadd.f32 0.0, %v3913
      %v3915 = vpop.f32.mrf.mxu0
      %v3916 = vpop.f32.mrf.mxu0
      %v3917 = vadd.f32 0.0, %v3916
      %v3918 = vpop.f32.mrf.mxu0
      %3919 = vmatprep.mubr.bf16.mxu0 0
      %3920 = vmatmul.mubr.bf16.gmra.mxu0 %v3817
      %v3921 = vpop.f32.mrf.mxu0
      %v3922 = vadd.f32 0.0, %v3921
      %v3923 = vpop.f32.mrf.mxu0
      %v3924 = vpop.f32.mrf.mxu0
      %v3925 = vadd.f32 0.0, %v3924
      %v3926 = vpop.f32.mrf.mxu0
      %3927 = vmatprep.mubr.bf16.mxu0 0
      %3928 = vmatmul.mubr.bf16.gmra.mxu0 %v3818
      %v3929 = vpop.f32.mrf.mxu0
      %v3930 = vadd.f32 0.0, %v3929
      %v3931 = vpop.f32.mrf.mxu0
      %v3932 = vpop.f32.mrf.mxu0
      %v3933 = vadd.f32 0.0, %v3932
      %v3934 = vpop.f32.mrf.mxu0
      %3935 = vmatprep.mubr.bf16.mxu0 0
      %3936 = vmatmul.mubr.bf16.gmra.mxu0 %v3819
      %v3937 = vpop.f32.mrf.mxu0
      %v3938 = vadd.f32 0.0, %v3937
      %v3939 = vpop.f32.mrf.mxu0
      %v3940 = vpop.f32.mrf.mxu0
      %v3941 = vadd.f32 0.0, %v3940
      %v3942 = vpop.f32.mrf.mxu0
      %3943 = vmatprep.mubr.bf16.mxu0 0
      %3944 = vmatmul.mubr.bf16.gmra.mxu0 %v3820
      %v3945 = vpop.f32.mrf.mxu0
      %v3946 = vadd.f32 0.0, %v3945
      %v3947 = vpop.f32.mrf.mxu0
      %v3948 = vpop.f32.mrf.mxu0
      %v3949 = vadd.f32 0.0, %v3948
      %v3950 = vpop.f32.mrf.mxu0
      %3951 = vmatprep.mubr.bf16.mxu0 0
      %3952 = vmatmul.mubr.bf16.gmra.mxu0 %v3821
      %v3953 = vpop.f32.mrf.mxu0
      %v3954 = vadd.f32 0.0, %v3953
      %v3955 = vpop.f32.mrf.mxu0
      %v3956 = vpop.f32.mrf.mxu0
      %v3957 = vadd.f32 0.0, %v3956
      %v3958 = vpop.f32.mrf.mxu0
      %3959 = vmatprep.mubr.bf16.mxu0 0
      %3960 = vmatmul.mubr.bf16.gmra.mxu0 %v3822
      %v3961 = vpop.f32.mrf.mxu0
      %v3962 = vadd.f32 0.0, %v3961
      %v3963 = vpop.f32.mrf.mxu0
      %v3964 = vpop.f32.mrf.mxu0
      %v3965 = vadd.f32 0.0, %v3964
      %v3966 = vpop.f32.mrf.mxu0
      %3967 = vdwg.mxu0
      %v3968 = vpack.c.bf16 %v3909, %v3906
      %v3969 = vpack.c.bf16 %v3917, %v3914
      %v3970 = vpack.c.bf16 %v3925, %v3922
      %v3971 = vpack.c.bf16 %v3933, %v3930
      %v3972 = vpack.c.bf16 %v3941, %v3938
      %v3973 = vpack.c.bf16 %v3949, %v3946
      %v3974 = vpack.c.bf16 %v3957, %v3954
      %v3975 = vpack.c.bf16 %v3965, %v3962
      %v3984 = vunpack.c.l.b16 %v1944
      %v3985 = vunpack.c.h.b16 %v1944
      %v3986 = vunpack.c.l.b16 %v1945
      %v3987 = vunpack.c.h.b16 %v1945
      %v3988 = vunpack.c.l.b16 %v1946
      %v3989 = vunpack.c.h.b16 %v1946
      %v3990 = vunpack.c.l.b16 %v1947
      %v3991 = vunpack.c.h.b16 %v1947
      %v3992 = vunpack.c.l.b16 %v1948
      %v3993 = vunpack.c.h.b16 %v1948
      %v3994 = vunpack.c.l.b16 %v1949
      %v3995 = vunpack.c.h.b16 %v1949
      %v3996 = vunpack.c.l.b16 %v1950
      %v3997 = vunpack.c.h.b16 %v1950
      %v3998 = vunpack.c.l.b16 %v1951
      %v3999 = vunpack.c.h.b16 %v1951
      %v4000 = vpack.c.b16 %v3986, %v3984
      %v4001 = vpack.c.b16 %v3987, %v3985
      %v4002 = vpack.c.b16 %v3990, %v3988
      %v4003 = vpack.c.b16 %v3991, %v3989
      %v4004 = vpack.c.b16 %v3994, %v3992
      %v4005 = vpack.c.b16 %v3995, %v3993
      %v4006 = vpack.c.b16 %v3998, %v3996
      %v4007 = vpack.c.b16 %v3999, %v3997
      %v4017 = vsel %vm449, %v3968, 0
      %v4020 = vsel %vm449, %v3969, 0
      %v4023 = vsel %vm449, %v3970, 0
      %v4026 = vsel %vm449, %v3971, 0
      %v4029 = vsel %vm449, %v3972, 0
      %v4032 = vsel %vm449, %v3973, 0
      %v4035 = vsel %vm449, %v3974, 0
      %v4038 = vsel %vm449, %v3975, 0
      %4040 = vmatprep.subr.bf16.mxu0 0
      %4041 = vmatpush1.bf16.msra.mxu0 0
      %4042 = vmatprep.subr.bf16.mxu0 0
      %4043 = vmatpush1.bf16.msra.mxu0 0
      %4044 = vmatprep.subr.bf16.mxu0 0
      %4045 = vmatpush1.bf16.msra.mxu0 0
      %4046 = vmatprep.subr.bf16.mxu0 0
      %4047 = vmatpush1.bf16.msra.mxu0 0
      %4048 = vmatprep.subr.bf16.mxu0 %v4007
      %4049 = vmatpush1.bf16.msra.mxu0 %v4006
      %4050 = vmatprep.subr.bf16.mxu0 %v4005
      %4051 = vmatpush1.bf16.msra.mxu0 %v4004
      %4052 = vmatprep.subr.bf16.mxu0 %v4003
      %4053 = vmatpush1.bf16.msra.mxu0 %v4002
      %4054 = vmatprep.subr.bf16.mxu0 %v4001
      %4055 = vmatpush1.bf16.msra.mxu0 %v4000
      %4056 = vmatprep.subr.bf16.mxu0 0
      %4057 = vmatpush2.bf16.msra.mxu0 0
      %4058 = vmatprep.subr.bf16.mxu0 0
      %4059 = vmatpush2.bf16.msra.mxu0 0
      %4060 = vmatprep.subr.bf16.mxu0 0
      %4061 = vmatpush2.bf16.msra.mxu0 0
      %4062 = vmatprep.subr.bf16.mxu0 0
      %4063 = vmatpush2.bf16.msra.mxu0 0
      %4064 = vmatprep.subr.bf16.mxu0 0
      %4065 = vmatpush2.bf16.msra.mxu0 0
      %4066 = vmatprep.subr.bf16.mxu0 0
      %4067 = vmatpush2.bf16.msra.mxu0 0
      %4068 = vmatprep.subr.bf16.mxu0 0
      %4069 = vmatpush2.bf16.msra.mxu0 0
      %4070 = vmatprep.subr.bf16.mxu0 0
      %4071 = vmatpush2.bf16.msra.mxu0 0
      %4072 = vmatprep.mubr.bf16.mxu0 0
      %4073 = vmatmul.mubr.bf16.gmra.mxu0 %v4017
      %v4074 = vpop.f32.mrf.mxu0
      %v4075 = vadd.f32 0.0, %v4074
      %v4076 = vpop.f32.mrf.mxu0
      %v4077 = vadd.f32 0.0, %v4076
      %v4078 = vpop.f32.mrf.mxu0
      %v4079 = vadd.f32 0.0, %v4078
      %v4080 = vpop.f32.mrf.mxu0
      %v4081 = vadd.f32 0.0, %v4080
      %4082 = vmatprep.mubr.bf16.mxu0 0
      %4083 = vmatmul.mubr.bf16.gmra.mxu0 %v4020
      %v4084 = vpop.f32.mrf.mxu0
      %v4085 = vadd.f32 0.0, %v4084
      %v4086 = vpop.f32.mrf.mxu0
      %v4087 = vadd.f32 0.0, %v4086
      %v4088 = vpop.f32.mrf.mxu0
      %v4089 = vadd.f32 0.0, %v4088
      %v4090 = vpop.f32.mrf.mxu0
      %v4091 = vadd.f32 0.0, %v4090
      %4092 = vmatprep.mubr.bf16.mxu0 0
      %4093 = vmatmul.mubr.bf16.gmra.mxu0 %v4023
      %v4094 = vpop.f32.mrf.mxu0
      %v4095 = vadd.f32 0.0, %v4094
      %v4096 = vpop.f32.mrf.mxu0
      %v4097 = vadd.f32 0.0, %v4096
      %v4098 = vpop.f32.mrf.mxu0
      %v4099 = vadd.f32 0.0, %v4098
      %v4100 = vpop.f32.mrf.mxu0
      %v4101 = vadd.f32 0.0, %v4100
      %4102 = vmatprep.mubr.bf16.mxu0 0
      %4103 = vmatmul.mubr.bf16.gmra.mxu0 %v4026
      %v4104 = vpop.f32.mrf.mxu0
      %v4105 = vadd.f32 0.0, %v4104
      %v4106 = vpop.f32.mrf.mxu0
      %v4107 = vadd.f32 0.0, %v4106
      %v4108 = vpop.f32.mrf.mxu0
      %v4109 = vadd.f32 0.0, %v4108
      %v4110 = vpop.f32.mrf.mxu0
      %v4111 = vadd.f32 0.0, %v4110
      %4112 = vmatprep.mubr.bf16.mxu0 0
      %4113 = vmatmul.mubr.bf16.gmra.mxu0 %v4029
      %v4114 = vpop.f32.mrf.mxu0
      %v4115 = vadd.f32 0.0, %v4114
      %v4116 = vpop.f32.mrf.mxu0
      %v4117 = vadd.f32 0.0, %v4116
      %v4118 = vpop.f32.mrf.mxu0
      %v4119 = vadd.f32 0.0, %v4118
      %v4120 = vpop.f32.mrf.mxu0
      %v4121 = vadd.f32 0.0, %v4120
      %4122 = vmatprep.mubr.bf16.mxu0 0
      %4123 = vmatmul.mubr.bf16.gmra.mxu0 %v4032
      %v4124 = vpop.f32.mrf.mxu0
      %v4125 = vadd.f32 0.0, %v4124
      %v4126 = vpop.f32.mrf.mxu0
      %v4127 = vadd.f32 0.0, %v4126
      %v4128 = vpop.f32.mrf.mxu0
      %v4129 = vadd.f32 0.0, %v4128
      %v4130 = vpop.f32.mrf.mxu0
      %v4131 = vadd.f32 0.0, %v4130
      %4132 = vmatprep.mubr.bf16.mxu0 0
      %4133 = vmatmul.mubr.bf16.gmra.mxu0 %v4035
      %v4134 = vpop.f32.mrf.mxu0
      %v4135 = vadd.f32 0.0, %v4134
      %v4136 = vpop.f32.mrf.mxu0
      %v4137 = vadd.f32 0.0, %v4136
      %v4138 = vpop.f32.mrf.mxu0
      %v4139 = vadd.f32 0.0, %v4138
      %v4140 = vpop.f32.mrf.mxu0
      %v4141 = vadd.f32 0.0, %v4140
      %4142 = vmatprep.mubr.bf16.mxu0 0
      %4143 = vmatmul.mubr.bf16.gmra.mxu0 %v4038
      %v4144 = vpop.f32.mrf.mxu0
      %v4145 = vadd.f32 0.0, %v4144
      %v4146 = vpop.f32.mrf.mxu0
      %v4147 = vadd.f32 0.0, %v4146
      %v4148 = vpop.f32.mrf.mxu0
      %v4149 = vadd.f32 0.0, %v4148
      %v4150 = vpop.f32.mrf.mxu0
      %v4151 = vadd.f32 0.0, %v4150
      %4152 = vdwg.mxu0
      %v4153 = vadd.f32 %v3384, %v4075
      %v4154 = vadd.f32 %v3386, %v4077
      %v4155 = vadd.f32 %v3388, %v4079
      %v4156 = vadd.f32 %v3390, %v4081
      %v4157 = vadd.f32 %v3394, %v4085
      %v4158 = vadd.f32 %v3396, %v4087
      %v4159 = vadd.f32 %v3398, %v4089
      %v4160 = vadd.f32 %v3400, %v4091
      %v4161 = vadd.f32 %v3404, %v4095
      %v4162 = vadd.f32 %v3406, %v4097
      %v4163 = vadd.f32 %v3408, %v4099
      %v4164 = vadd.f32 %v3410, %v4101
      %v4165 = vadd.f32 %v3414, %v4105
      %v4166 = vadd.f32 %v3416, %v4107
      %v4167 = vadd.f32 %v3418, %v4109
      %v4168 = vadd.f32 %v3420, %v4111
      %v4169 = vadd.f32 %v3424, %v4115
      %v4170 = vadd.f32 %v3426, %v4117
      %v4171 = vadd.f32 %v3428, %v4119
      %v4172 = vadd.f32 %v3430, %v4121
      %v4173 = vadd.f32 %v3434, %v4125
      %v4174 = vadd.f32 %v3436, %v4127
      %v4175 = vadd.f32 %v3438, %v4129
      %v4176 = vadd.f32 %v3440, %v4131
      %v4177 = vadd.f32 %v3444, %v4135
      %v4178 = vadd.f32 %v3446, %v4137
      %v4179 = vadd.f32 %v3448, %v4139
      %v4180 = vadd.f32 %v3450, %v4141
      %v4181 = vadd.f32 %v3454, %v4145
      %v4182 = vadd.f32 %v3456, %v4147
      %v4183 = vadd.f32 %v3458, %v4149
      %v4184 = vadd.f32 %v3460, %v4151
      %4185 = vst [vmem:[#allocation3] sm:$0xff] %v4153
      %4186 = vst.msk [vmem:[#allocation3 + $0x8] sm:$0xff] %vm449, %v4154
      %4187 = vst [vmem:[#allocation3 + $0x10] sm:$0xff] %v4155
      %4188 = vst.msk [vmem:[#allocation3 + $0x18] sm:$0xff] %vm449, %v4156
      %4189 = vst [vmem:[#allocation3 + $0x20] sm:$0xff] %v4157
      %4190 = vst.msk [vmem:[#allocation3 + $0x28] sm:$0xff] %vm449, %v4158
      %4191 = vst [vmem:[#allocation3 + $0x30] sm:$0xff] %v4159
      %4192 = vst.msk [vmem:[#allocation3 + $0x38] sm:$0xff] %vm449, %v4160
      %4193 = vst [vmem:[#allocation3 + $0x40] sm:$0xff] %v4161
      %4194 = vst.msk [vmem:[#allocation3 + $0x48] sm:$0xff] %vm449, %v4162
      %4195 = vst [vmem:[#allocation3 + $0x50] sm:$0xff] %v4163
      %4196 = vst.msk [vmem:[#allocation3 + $0x58] sm:$0xff] %vm449, %v4164
      %4197 = vst [vmem:[#allocation3 + $0x60] sm:$0xff] %v4165
      %4198 = vst.msk [vmem:[#allocation3 + $0x68] sm:$0xff] %vm449, %v4166
      %4199 = vst [vmem:[#allocation3 + $0x70] sm:$0xff] %v4167
      %4200 = vst.msk [vmem:[#allocation3 + $0x78] sm:$0xff] %vm449, %v4168
      %4201 = vst [vmem:[#allocation3 + $0x80] sm:$0xff] %v4169
      %4202 = vst.msk [vmem:[#allocation3 + $0x88] sm:$0xff] %vm449, %v4170
      %4203 = vst [vmem:[#allocation3 + $0x90] sm:$0xff] %v4171
      %4204 = vst.msk [vmem:[#allocation3 + $0x98] sm:$0xff] %vm449, %v4172
      %4205 = vst [vmem:[#allocation3 + $0xa0] sm:$0xff] %v4173
      %4206 = vst.msk [vmem:[#allocation3 + $0xa8] sm:$0xff] %vm449, %v4174
      %4207 = vst [vmem:[#allocation3 + $0xb0] sm:$0xff] %v4175
      %4208 = vst.msk [vmem:[#allocation3 + $0xb8] sm:$0xff] %vm449, %v4176
      %4209 = vst [vmem:[#allocation3 + $0xc0] sm:$0xff] %v4177
      %4210 = vst.msk [vmem:[#allocation3 + $0xc8] sm:$0xff] %vm449, %v4178
      %4211 = vst [vmem:[#allocation3 + $0xd0] sm:$0xff] %v4179
      %4212 = vst.msk [vmem:[#allocation3 + $0xd8] sm:$0xff] %vm449, %v4180
      %4213 = vst [vmem:[#allocation3 + $0xe0] sm:$0xff] %v4181
      %4214 = vst.msk [vmem:[#allocation3 + $0xe8] sm:$0xff] %vm449, %v4182
      %4215 = vst [vmem:[#allocation3 + $0xf0] sm:$0xff] %v4183
      %4216 = vst.msk [vmem:[#allocation3 + $0xf8] sm:$0xff] %vm449, %v4184
      %v4217 = vld [vmem:[%s408] sm:$0xff]
      %v4218 = vld [vmem:[%s408 + $0x8] sm:$0xff]
      %v4219 = vld [vmem:[%s408 + $0x10] sm:$0xff]
      %v4220 = vld [vmem:[%s408 + $0x18] sm:$0xff]
      %v4221 = vld [vmem:[%s408 + $0x20] sm:$0xff]
      %v4222 = vld [vmem:[%s408 + $0x28] sm:$0xff]
      %v4223 = vld [vmem:[%s408 + $0x30] sm:$0xff]
      %v4224 = vld [vmem:[%s408 + $0x38] sm:$0xff]
      %v4225 = vld [vmem:[%s408 + $0x40] sm:$0xff]
      %v4226 = vld [vmem:[%s408 + $0x48] sm:$0xff]
      %v4227 = vld [vmem:[%s408 + $0x50] sm:$0xff]
      %v4228 = vld [vmem:[%s408 + $0x58] sm:$0xff]
      %v4229 = vld [vmem:[%s408 + $0x60] sm:$0xff]
      %v4230 = vld [vmem:[%s408 + $0x68] sm:$0xff]
      %v4231 = vld [vmem:[%s408 + $0x70] sm:$0xff]
      %v4232 = vld [vmem:[%s408 + $0x78] sm:$0xff]
      %v4233 = vld [vmem:[%s408 + $0x80] sm:$0xff]
      %v4234 = vld [vmem:[%s408 + $0x88] sm:$0xff]
      %v4235 = vld [vmem:[%s408 + $0x90] sm:$0xff]
      %v4236 = vld [vmem:[%s408 + $0x98] sm:$0xff]
      %v4237 = vld [vmem:[%s408 + $0xa0] sm:$0xff]
      %v4238 = vld [vmem:[%s408 + $0xa8] sm:$0xff]
      %v4239 = vld [vmem:[%s408 + $0xb0] sm:$0xff]
      %v4240 = vld [vmem:[%s408 + $0xb8] sm:$0xff]
      %v4241 = vld [vmem:[%s408 + $0xc0] sm:$0xff]
      %v4242 = vld [vmem:[%s408 + $0xc8] sm:$0xff]
      %v4243 = vld [vmem:[%s408 + $0xd0] sm:$0xff]
      %v4244 = vld [vmem:[%s408 + $0xd8] sm:$0xff]
      %v4245 = vld [vmem:[%s408 + $0xe0] sm:$0xff]
      %v4246 = vld [vmem:[%s408 + $0xe8] sm:$0xff]
      %v4247 = vld [vmem:[%s408 + $0xf0] sm:$0xff]
      %v4248 = vld [vmem:[%s408 + $0xf8] sm:$0xff]
      %v4249 = vld [vmem:[#allocation3] sm:$0xff]
      %v4250 = vld [vmem:[#allocation3 + $0x8] sm:$0xff]
      %v4251 = vld [vmem:[#allocation3 + $0x10] sm:$0xff]
      %v4252 = vld [vmem:[#allocation3 + $0x18] sm:$0xff]
      %v4253 = vld [vmem:[#allocation3 + $0x20] sm:$0xff]
      %v4254 = vld [vmem:[#allocation3 + $0x28] sm:$0xff]
      %v4255 = vld [vmem:[#allocation3 + $0x30] sm:$0xff]
      %v4256 = vld [vmem:[#allocation3 + $0x38] sm:$0xff]
      %v4257 = vld [vmem:[#allocation3 + $0x40] sm:$0xff]
      %v4258 = vld [vmem:[#allocation3 + $0x48] sm:$0xff]
      %v4259 = vld [vmem:[#allocation3 + $0x50] sm:$0xff]
      %v4260 = vld [vmem:[#allocation3 + $0x58] sm:$0xff]
      %v4261 = vld [vmem:[#allocation3 + $0x60] sm:$0xff]
      %v4262 = vld [vmem:[#allocation3 + $0x68] sm:$0xff]
      %v4263 = vld [vmem:[#allocation3 + $0x70] sm:$0xff]
      %v4264 = vld [vmem:[#allocation3 + $0x78] sm:$0xff]
      %v4265 = vld [vmem:[#allocation3 + $0x80] sm:$0xff]
      %v4266 = vld [vmem:[#allocation3 + $0x88] sm:$0xff]
      %v4267 = vld [vmem:[#allocation3 + $0x90] sm:$0xff]
      %v4268 = vld [vmem:[#allocation3 + $0x98] sm:$0xff]
      %v4269 = vld [vmem:[#allocation3 + $0xa0] sm:$0xff]
      %v4270 = vld [vmem:[#allocation3 + $0xa8] sm:$0xff]
      %v4271 = vld [vmem:[#allocation3 + $0xb0] sm:$0xff]
      %v4272 = vld [vmem:[#allocation3 + $0xb8] sm:$0xff]
      %v4273 = vld [vmem:[#allocation3 + $0xc0] sm:$0xff]
      %v4274 = vld [vmem:[#allocation3 + $0xc8] sm:$0xff]
      %v4275 = vld [vmem:[#allocation3 + $0xd0] sm:$0xff]
      %v4276 = vld [vmem:[#allocation3 + $0xd8] sm:$0xff]
      %v4277 = vld [vmem:[#allocation3 + $0xe0] sm:$0xff]
      %v4278 = vld [vmem:[#allocation3 + $0xe8] sm:$0xff]
      %v4279 = vld [vmem:[#allocation3 + $0xf0] sm:$0xff]
      %v4280 = vld [vmem:[#allocation3 + $0xf8] sm:$0xff]
      %v4281 = vadd.f32 %v4217, %v4249
      %v4282 = vadd.f32 %v4218, %v4250
      %v4283 = vadd.f32 %v4219, %v4251
      %v4284 = vadd.f32 %v4220, %v4252
      %v4285 = vadd.f32 %v4221, %v4253
      %v4286 = vadd.f32 %v4222, %v4254
      %v4287 = vadd.f32 %v4223, %v4255
      %v4288 = vadd.f32 %v4224, %v4256
      %v4289 = vadd.f32 %v4225, %v4257
      %v4290 = vadd.f32 %v4226, %v4258
      %v4291 = vadd.f32 %v4227, %v4259
      %v4292 = vadd.f32 %v4228, %v4260
      %v4293 = vadd.f32 %v4229, %v4261
      %v4294 = vadd.f32 %v4230, %v4262
      %v4295 = vadd.f32 %v4231, %v4263
      %v4296 = vadd.f32 %v4232, %v4264
      %v4297 = vadd.f32 %v4233, %v4265
      %v4298 = vadd.f32 %v4234, %v4266
      %v4299 = vadd.f32 %v4235, %v4267
      %v4300 = vadd.f32 %v4236, %v4268
      %v4301 = vadd.f32 %v4237, %v4269
      %v4302 = vadd.f32 %v4238, %v4270
      %v4303 = vadd.f32 %v4239, %v4271
      %v4304 = vadd.f32 %v4240, %v4272
      %v4305 = vadd.f32 %v4241, %v4273
      %v4306 = vadd.f32 %v4242, %v4274
      %v4307 = vadd.f32 %v4243, %v4275
      %v4308 = vadd.f32 %v4244, %v4276
      %v4309 = vadd.f32 %v4245, %v4277
      %v4310 = vadd.f32 %v4246, %v4278
      %v4311 = vadd.f32 %v4247, %v4279
      %v4312 = vadd.f32 %v4248, %v4280
      %v4313 = vld [vmem:[%s5] sm:$0x3]
      %v4315 = vlaneseq
      %v4316 = vshrl.u32 %v4315, 7
      %v4317 = vsub.s32 0, %v4316
      %v4318 = vrot.slane %v4313, %v4317
      %v4319 = vlaneseq
      %v4320 = vshrl.u32 %v4319, 7
      %v4321 = vsub.s32 1, %v4320
      %v4322 = vrot.slane %v4313, %v4321
      %v4325 = vadd.f32 %v4281, %v4318
      %v4326 = vadd.f32 %v4282, %v4322
      %v4327 = vadd.f32 %v4283, %v4318
      %v4328 = vadd.f32 %v4284, %v4322
      %v4329 = vadd.f32 %v4285, %v4318
      %v4330 = vadd.f32 %v4286, %v4322
      %v4331 = vadd.f32 %v4287, %v4318
      %v4332 = vadd.f32 %v4288, %v4322
      %v4333 = vadd.f32 %v4289, %v4318
      %v4334 = vadd.f32 %v4290, %v4322
      %v4335 = vadd.f32 %v4291, %v4318
      %v4336 = vadd.f32 %v4292, %v4322
      %v4337 = vadd.f32 %v4293, %v4318
      %v4338 = vadd.f32 %v4294, %v4322
      %v4339 = vadd.f32 %v4295, %v4318
      %v4340 = vadd.f32 %v4296, %v4322
      %v4341 = vadd.f32 %v4297, %v4318
      %v4342 = vadd.f32 %v4298, %v4322
      %v4343 = vadd.f32 %v4299, %v4318
      %v4344 = vadd.f32 %v4300, %v4322
      %v4345 = vadd.f32 %v4301, %v4318
      %v4346 = vadd.f32 %v4302, %v4322
      %v4347 = vadd.f32 %v4303, %v4318
      %v4348 = vadd.f32 %v4304, %v4322
      %v4349 = vadd.f32 %v4305, %v4318
      %v4350 = vadd.f32 %v4306, %v4322
      %v4351 = vadd.f32 %v4307, %v4318
      %v4352 = vadd.f32 %v4308, %v4322
      %v4353 = vadd.f32 %v4309, %v4318
      %v4354 = vadd.f32 %v4310, %v4322
      %v4355 = vadd.f32 %v4311, %v4318
      %v4356 = vadd.f32 %v4312, %v4322
      %v4357 = vld [vmem:[%s6] sm:$0x3]
      %v4358 = vld [vmem:[%s7] sm:$0x3]
      %v4359 = vsel %vm449, %v4326, 0.0
      %v4360 = vadd.f32 %v4325, %v4359
      %4361 = vadd.xlane.f32.xlu0 %v4360
      %v4362 = vpop.xlane.xlu0 %4361
      %v4363 = vsel %vm449, %v4328, 0.0
      %v4364 = vadd.f32 %v4327, %v4363
      %4365 = vadd.xlane.f32.xlu0 %v4364
      %v4366 = vpop.xlane.xlu0 %4365
      %v4367 = vsel %vm449, %v4330, 0.0
      %v4368 = vadd.f32 %v4329, %v4367
      %4369 = vadd.xlane.f32.xlu0 %v4368
      %v4370 = vpop.xlane.xlu0 %4369
      %v4371 = vsel %vm449, %v4332, 0.0
      %v4372 = vadd.f32 %v4331, %v4371
      %4373 = vadd.xlane.f32.xlu0 %v4372
      %v4374 = vpop.xlane.xlu0 %4373
      %v4375 = vsel %vm449, %v4334, 0.0
      %v4376 = vadd.f32 %v4333, %v4375
      %4377 = vadd.xlane.f32.xlu0 %v4376
      %v4378 = vpop.xlane.xlu0 %4377
      %v4379 = vsel %vm449, %v4336, 0.0
      %v4380 = vadd.f32 %v4335, %v4379
      %4381 = vadd.xlane.f32.xlu0 %v4380
      %v4382 = vpop.xlane.xlu0 %4381
      %v4383 = vsel %vm449, %v4338, 0.0
      %v4384 = vadd.f32 %v4337, %v4383
      %4385 = vadd.xlane.f32.xlu0 %v4384
      %v4386 = vpop.xlane.xlu0 %4385
      %v4387 = vsel %vm449, %v4340, 0.0
      %v4388 = vadd.f32 %v4339, %v4387
      %4389 = vadd.xlane.f32.xlu0 %v4388
      %v4390 = vpop.xlane.xlu0 %4389
      %v4391 = vsel %vm449, %v4342, 0.0
      %v4392 = vadd.f32 %v4341, %v4391
      %4393 = vadd.xlane.f32.xlu0 %v4392
      %v4394 = vpop.xlane.xlu0 %4393
      %v4395 = vsel %vm449, %v4344, 0.0
      %v4396 = vadd.f32 %v4343, %v4395
      %4397 = vadd.xlane.f32.xlu0 %v4396
      %v4398 = vpop.xlane.xlu0 %4397
      %v4399 = vsel %vm449, %v4346, 0.0
      %v4400 = vadd.f32 %v4345, %v4399
      %4401 = vadd.xlane.f32.xlu0 %v4400
      %v4402 = vpop.xlane.xlu0 %4401
      %v4403 = vsel %vm449, %v4348, 0.0
      %v4404 = vadd.f32 %v4347, %v4403
      %4405 = vadd.xlane.f32.xlu0 %v4404
      %v4406 = vpop.xlane.xlu0 %4405
      %v4407 = vsel %vm449, %v4350, 0.0
      %v4408 = vadd.f32 %v4349, %v4407
      %4409 = vadd.xlane.f32.xlu0 %v4408
      %v4410 = vpop.xlane.xlu0 %4409
      %v4411 = vsel %vm449, %v4352, 0.0
      %v4412 = vadd.f32 %v4351, %v4411
      %4413 = vadd.xlane.f32.xlu0 %v4412
      %v4414 = vpop.xlane.xlu0 %4413
      %v4415 = vsel %vm449, %v4354, 0.0
      %v4416 = vadd.f32 %v4353, %v4415
      %4417 = vadd.xlane.f32.xlu0 %v4416
      %v4418 = vpop.xlane.xlu0 %4417
      %v4419 = vsel %vm449, %v4356, 0.0
      %v4420 = vadd.f32 %v4355, %v4419
      %4421 = vadd.xlane.f32.xlu0 %v4420
      %v4422 = vpop.xlane.xlu0 %4421
      %v4423 = vmul.f32 %v4362, %v514
      %v4424 = vmul.f32 %v4366, %v514
      %v4425 = vmul.f32 %v4370, %v514
      %v4426 = vmul.f32 %v4374, %v514
      %v4427 = vmul.f32 %v4378, %v514
      %v4428 = vmul.f32 %v4382, %v514
      %v4429 = vmul.f32 %v4386, %v514
      %v4430 = vmul.f32 %v4390, %v514
      %v4431 = vmul.f32 %v4394, %v514
      %v4432 = vmul.f32 %v4398, %v514
      %v4433 = vmul.f32 %v4402, %v514
      %v4434 = vmul.f32 %v4406, %v514
      %v4435 = vmul.f32 %v4410, %v514
      %v4436 = vmul.f32 %v4414, %v514
      %v4437 = vmul.f32 %v4418, %v514
      %v4438 = vmul.f32 %v4422, %v514
      %v4439 = vsub.f32 %v4325, %v4423
      %v4440 = vsub.f32 %v4326, %v4423
      %v4441 = vsub.f32 %v4327, %v4424
      %v4442 = vsub.f32 %v4328, %v4424
      %v4443 = vsub.f32 %v4329, %v4425
      %v4444 = vsub.f32 %v4330, %v4425
      %v4445 = vsub.f32 %v4331, %v4426
      %v4446 = vsub.f32 %v4332, %v4426
      %v4447 = vsub.f32 %v4333, %v4427
      %v4448 = vsub.f32 %v4334, %v4427
      %v4449 = vsub.f32 %v4335, %v4428
      %v4450 = vsub.f32 %v4336, %v4428
      %v4451 = vsub.f32 %v4337, %v4429
      %v4452 = vsub.f32 %v4338, %v4429
      %v4453 = vsub.f32 %v4339, %v4430
      %v4454 = vsub.f32 %v4340, %v4430
      %v4455 = vsub.f32 %v4341, %v4431
      %v4456 = vsub.f32 %v4342, %v4431
      %v4457 = vsub.f32 %v4343, %v4432
      %v4458 = vsub.f32 %v4344, %v4432
      %v4459 = vsub.f32 %v4345, %v4433
      %v4460 = vsub.f32 %v4346, %v4433
      %v4461 = vsub.f32 %v4347, %v4434
      %v4462 = vsub.f32 %v4348, %v4434
      %v4463 = vsub.f32 %v4349, %v4435
      %v4464 = vsub.f32 %v4350, %v4435
      %v4465 = vsub.f32 %v4351, %v4436
      %v4466 = vsub.f32 %v4352, %v4436
      %v4467 = vsub.f32 %v4353, %v4437
      %v4468 = vsub.f32 %v4354, %v4437
      %v4469 = vsub.f32 %v4355, %v4438
      %v4470 = vsub.f32 %v4356, %v4438
      %v4471 = vmul.f32 %v4439, %v4439
      %v4472 = vmul.f32 %v4440, %v4440
      %v4473 = vmul.f32 %v4441, %v4441
      %v4474 = vmul.f32 %v4442, %v4442
      %v4475 = vmul.f32 %v4443, %v4443
      %v4476 = vmul.f32 %v4444, %v4444
      %v4477 = vmul.f32 %v4445, %v4445
      %v4478 = vmul.f32 %v4446, %v4446
      %v4479 = vmul.f32 %v4447, %v4447
      %v4480 = vmul.f32 %v4448, %v4448
      %v4481 = vmul.f32 %v4449, %v4449
      %v4482 = vmul.f32 %v4450, %v4450
      %v4483 = vmul.f32 %v4451, %v4451
      %v4484 = vmul.f32 %v4452, %v4452
      %v4485 = vmul.f32 %v4453, %v4453
      %v4486 = vmul.f32 %v4454, %v4454
      %v4487 = vmul.f32 %v4455, %v4455
      %v4488 = vmul.f32 %v4456, %v4456
      %v4489 = vmul.f32 %v4457, %v4457
      %v4490 = vmul.f32 %v4458, %v4458
      %v4491 = vmul.f32 %v4459, %v4459
      %v4492 = vmul.f32 %v4460, %v4460
      %v4493 = vmul.f32 %v4461, %v4461
      %v4494 = vmul.f32 %v4462, %v4462
      %v4495 = vmul.f32 %v4463, %v4463
      %v4496 = vmul.f32 %v4464, %v4464
      %v4497 = vmul.f32 %v4465, %v4465
      %v4498 = vmul.f32 %v4466, %v4466
      %v4499 = vmul.f32 %v4467, %v4467
      %v4500 = vmul.f32 %v4468, %v4468
      %v4501 = vmul.f32 %v4469, %v4469
      %v4502 = vmul.f32 %v4470, %v4470
      %v4503 = vsel %vm449, %v4472, 0.0
      %v4504 = vadd.f32 %v4471, %v4503
      %4505 = vadd.xlane.f32.xlu0 %v4504
      %v4506 = vpop.xlane.xlu0 %4505
      %v4507 = vsel %vm449, %v4474, 0.0
      %v4508 = vadd.f32 %v4473, %v4507
      %4509 = vadd.xlane.f32.xlu0 %v4508
      %v4510 = vpop.xlane.xlu0 %4509
      %v4511 = vsel %vm449, %v4476, 0.0
      %v4512 = vadd.f32 %v4475, %v4511
      %4513 = vadd.xlane.f32.xlu0 %v4512
      %v4514 = vpop.xlane.xlu0 %4513
      %v4515 = vsel %vm449, %v4478, 0.0
      %v4516 = vadd.f32 %v4477, %v4515
      %4517 = vadd.xlane.f32.xlu0 %v4516
      %v4518 = vpop.xlane.xlu0 %4517
      %v4519 = vsel %vm449, %v4480, 0.0
      %v4520 = vadd.f32 %v4479, %v4519
      %4521 = vadd.xlane.f32.xlu0 %v4520
      %v4522 = vpop.xlane.xlu0 %4521
      %v4523 = vsel %vm449, %v4482, 0.0
      %v4524 = vadd.f32 %v4481, %v4523
      %4525 = vadd.xlane.f32.xlu0 %v4524
      %v4526 = vpop.xlane.xlu0 %4525
      %v4527 = vsel %vm449, %v4484, 0.0
      %v4528 = vadd.f32 %v4483, %v4527
      %4529 = vadd.xlane.f32.xlu0 %v4528
      %v4530 = vpop.xlane.xlu0 %4529
      %v4531 = vsel %vm449, %v4486, 0.0
      %v4532 = vadd.f32 %v4485, %v4531
      %4533 = vadd.xlane.f32.xlu0 %v4532
      %v4534 = vpop.xlane.xlu0 %4533
      %v4535 = vsel %vm449, %v4488, 0.0
      %v4536 = vadd.f32 %v4487, %v4535
      %4537 = vadd.xlane.f32.xlu0 %v4536
      %v4538 = vpop.xlane.xlu0 %4537
      %v4539 = vsel %vm449, %v4490, 0.0
      %v4540 = vadd.f32 %v4489, %v4539
      %4541 = vadd.xlane.f32.xlu0 %v4540
      %v4542 = vpop.xlane.xlu0 %4541
      %v4543 = vsel %vm449, %v4492, 0.0
      %v4544 = vadd.f32 %v4491, %v4543
      %4545 = vadd.xlane.f32.xlu0 %v4544
      %v4546 = vpop.xlane.xlu0 %4545
      %v4547 = vsel %vm449, %v4494, 0.0
      %v4548 = vadd.f32 %v4493, %v4547
      %4549 = vadd.xlane.f32.xlu0 %v4548
      %v4550 = vpop.xlane.xlu0 %4549
      %v4551 = vsel %vm449, %v4496, 0.0
      %v4552 = vadd.f32 %v4495, %v4551
      %4553 = vadd.xlane.f32.xlu0 %v4552
      %v4554 = vpop.xlane.xlu0 %4553
      %v4555 = vsel %vm449, %v4498, 0.0
      %v4556 = vadd.f32 %v4497, %v4555
      %4557 = vadd.xlane.f32.xlu0 %v4556
      %v4558 = vpop.xlane.xlu0 %4557
      %v4559 = vsel %vm449, %v4500, 0.0
      %v4560 = vadd.f32 %v4499, %v4559
      %4561 = vadd.xlane.f32.xlu0 %v4560
      %v4562 = vpop.xlane.xlu0 %4561
      %v4563 = vsel %vm449, %v4502, 0.0
      %v4564 = vadd.f32 %v4501, %v4563
      %4565 = vadd.xlane.f32.xlu0 %v4564
      %v4566 = vpop.xlane.xlu0 %4565
      %v4567 = vmul.f32 %v4506, %v514
      %v4568 = vmul.f32 %v4510, %v514
      %v4569 = vmul.f32 %v4514, %v514
      %v4570 = vmul.f32 %v4518, %v514
      %v4571 = vmul.f32 %v4522, %v514
      %v4572 = vmul.f32 %v4526, %v514
      %v4573 = vmul.f32 %v4530, %v514
      %v4574 = vmul.f32 %v4534, %v514
      %v4575 = vmul.f32 %v4538, %v514
      %v4576 = vmul.f32 %v4542, %v514
      %v4577 = vmul.f32 %v4546, %v514
      %v4578 = vmul.f32 %v4550, %v514
      %v4579 = vmul.f32 %v4554, %v514
      %v4580 = vmul.f32 %v4558, %v514
      %v4581 = vmul.f32 %v4562, %v514
      %v4582 = vmul.f32 %v4566, %v514
      %v4583 = vadd.f32 %v4567, 1e-05
      %v4584 = vadd.f32 %v4568, 1e-05
      %v4585 = vadd.f32 %v4569, 1e-05
      %v4586 = vadd.f32 %v4570, 1e-05
      %v4587 = vadd.f32 %v4571, 1e-05
      %v4588 = vadd.f32 %v4572, 1e-05
      %v4589 = vadd.f32 %v4573, 1e-05
      %v4590 = vadd.f32 %v4574, 1e-05
      %v4591 = vadd.f32 %v4575, 1e-05
      %v4592 = vadd.f32 %v4576, 1e-05
      %v4593 = vadd.f32 %v4577, 1e-05
      %v4594 = vadd.f32 %v4578, 1e-05
      %v4595 = vadd.f32 %v4579, 1e-05
      %v4596 = vadd.f32 %v4580, 1e-05
      %v4597 = vadd.f32 %v4581, 1e-05
      %v4598 = vadd.f32 %v4582, 1e-05
      %v4599 = vrsqrt.pop %v4583
      %v4600 = vrsqrt.pop %v4584
      %v4601 = vrsqrt.pop %v4585
      %v4602 = vrsqrt.pop %v4586
      %v4603 = vrsqrt.pop %v4587
      %v4604 = vrsqrt.pop %v4588
      %v4605 = vrsqrt.pop %v4589
      %v4606 = vrsqrt.pop %v4590
      %v4607 = vrsqrt.pop %v4591
      %v4608 = vrsqrt.pop %v4592
      %v4609 = vrsqrt.pop %v4593
      %v4610 = vrsqrt.pop %v4594
      %v4611 = vrsqrt.pop %v4595
      %v4612 = vrsqrt.pop %v4596
      %v4613 = vrsqrt.pop %v4597
      %v4614 = vrsqrt.pop %v4598
      %v4615 = vmul.f32 %v4439, %v4599
      %v4616 = vmul.f32 %v4440, %v4599
      %v4617 = vmul.f32 %v4441, %v4600
      %v4618 = vmul.f32 %v4442, %v4600
      %v4619 = vmul.f32 %v4443, %v4601
      %v4620 = vmul.f32 %v4444, %v4601
      %v4621 = vmul.f32 %v4445, %v4602
      %v4622 = vmul.f32 %v4446, %v4602
      %v4623 = vmul.f32 %v4447, %v4603
      %v4624 = vmul.f32 %v4448, %v4603
      %v4625 = vmul.f32 %v4449, %v4604
      %v4626 = vmul.f32 %v4450, %v4604
      %v4627 = vmul.f32 %v4451, %v4605
      %v4628 = vmul.f32 %v4452, %v4605
      %v4629 = vmul.f32 %v4453, %v4606
      %v4630 = vmul.f32 %v4454, %v4606
      %v4631 = vmul.f32 %v4455, %v4607
      %v4632 = vmul.f32 %v4456, %v4607
      %v4633 = vmul.f32 %v4457, %v4608
      %v4634 = vmul.f32 %v4458, %v4608
      %v4635 = vmul.f32 %v4459, %v4609
      %v4636 = vmul.f32 %v4460, %v4609
      %v4637 = vmul.f32 %v4461, %v4610
      %v4638 = vmul.f32 %v4462, %v4610
      %v4639 = vmul.f32 %v4463, %v4611
      %v4640 = vmul.f32 %v4464, %v4611
      %v4641 = vmul.f32 %v4465, %v4612
      %v4642 = vmul.f32 %v4466, %v4612
      %v4643 = vmul.f32 %v4467, %v4613
      %v4644 = vmul.f32 %v4468, %v4613
      %v4645 = vmul.f32 %v4469, %v4614
      %v4646 = vmul.f32 %v4470, %v4614
      %v4648 = vlaneseq
      %v4649 = vshrl.u32 %v4648, 7
      %v4650 = vsub.s32 0, %v4649
      %v4651 = vrot.slane %v4357, %v4650
      %v4652 = vlaneseq
      %v4653 = vshrl.u32 %v4652, 7
      %v4654 = vsub.s32 1, %v4653
      %v4655 = vrot.slane %v4357, %v4654
      %v4658 = vmul.f32 %v4615, %v4651
      %v4659 = vmul.f32 %v4616, %v4655
      %v4660 = vmul.f32 %v4617, %v4651
      %v4661 = vmul.f32 %v4618, %v4655
      %v4662 = vmul.f32 %v4619, %v4651
      %v4663 = vmul.f32 %v4620, %v4655
      %v4664 = vmul.f32 %v4621, %v4651
      %v4665 = vmul.f32 %v4622, %v4655
      %v4666 = vmul.f32 %v4623, %v4651
      %v4667 = vmul.f32 %v4624, %v4655
      %v4668 = vmul.f32 %v4625, %v4651
      %v4669 = vmul.f32 %v4626, %v4655
      %v4670 = vmul.f32 %v4627, %v4651
      %v4671 = vmul.f32 %v4628, %v4655
      %v4672 = vmul.f32 %v4629, %v4651
      %v4673 = vmul.f32 %v4630, %v4655
      %v4674 = vmul.f32 %v4631, %v4651
      %v4675 = vmul.f32 %v4632, %v4655
      %v4676 = vmul.f32 %v4633, %v4651
      %v4677 = vmul.f32 %v4634, %v4655
      %v4678 = vmul.f32 %v4635, %v4651
      %v4679 = vmul.f32 %v4636, %v4655
      %v4680 = vmul.f32 %v4637, %v4651
      %v4681 = vmul.f32 %v4638, %v4655
      %v4682 = vmul.f32 %v4639, %v4651
      %v4683 = vmul.f32 %v4640, %v4655
      %v4684 = vmul.f32 %v4641, %v4651
      %v4685 = vmul.f32 %v4642, %v4655
      %v4686 = vmul.f32 %v4643, %v4651
      %v4687 = vmul.f32 %v4644, %v4655
      %v4688 = vmul.f32 %v4645, %v4651
      %v4689 = vmul.f32 %v4646, %v4655
      %v4691 = vlaneseq
      %v4692 = vshrl.u32 %v4691, 7
      %v4693 = vsub.s32 0, %v4692
      %v4694 = vrot.slane %v4358, %v4693
      %v4695 = vlaneseq
      %v4696 = vshrl.u32 %v4695, 7
      %v4697 = vsub.s32 1, %v4696
      %v4698 = vrot.slane %v4358, %v4697
      %v4701 = vadd.f32 %v4658, %v4694
      %v4702 = vadd.f32 %v4659, %v4698
      %v4703 = vadd.f32 %v4660, %v4694
      %v4704 = vadd.f32 %v4661, %v4698
      %v4705 = vadd.f32 %v4662, %v4694
      %v4706 = vadd.f32 %v4663, %v4698
      %v4707 = vadd.f32 %v4664, %v4694
      %v4708 = vadd.f32 %v4665, %v4698
      %v4709 = vadd.f32 %v4666, %v4694
      %v4710 = vadd.f32 %v4667, %v4698
      %v4711 = vadd.f32 %v4668, %v4694
      %v4712 = vadd.f32 %v4669, %v4698
      %v4713 = vadd.f32 %v4670, %v4694
      %v4714 = vadd.f32 %v4671, %v4698
      %v4715 = vadd.f32 %v4672, %v4694
      %v4716 = vadd.f32 %v4673, %v4698
      %v4717 = vadd.f32 %v4674, %v4694
      %v4718 = vadd.f32 %v4675, %v4698
      %v4719 = vadd.f32 %v4676, %v4694
      %v4720 = vadd.f32 %v4677, %v4698
      %v4721 = vadd.f32 %v4678, %v4694
      %v4722 = vadd.f32 %v4679, %v4698
      %v4723 = vadd.f32 %v4680, %v4694
      %v4724 = vadd.f32 %v4681, %v4698
      %v4725 = vadd.f32 %v4682, %v4694
      %v4726 = vadd.f32 %v4683, %v4698
      %v4727 = vadd.f32 %v4684, %v4694
      %v4728 = vadd.f32 %v4685, %v4698
      %v4729 = vadd.f32 %v4686, %v4694
      %v4730 = vadd.f32 %v4687, %v4698
      %v4731 = vadd.f32 %v4688, %v4694
      %v4732 = vadd.f32 %v4689, %v4698
      %v4733 = vpack.c.bf16 %v4703, %v4701
      %v4734 = vpack.c.bf16 %v4704, %v4702
      %v4735 = vpack.c.bf16 %v4707, %v4705
      %v4736 = vpack.c.bf16 %v4708, %v4706
      %v4737 = vpack.c.bf16 %v4711, %v4709
      %v4738 = vpack.c.bf16 %v4712, %v4710
      %v4739 = vpack.c.bf16 %v4715, %v4713
      %v4740 = vpack.c.bf16 %v4716, %v4714
      %v4741 = vpack.c.bf16 %v4719, %v4717
      %v4742 = vpack.c.bf16 %v4720, %v4718
      %v4743 = vpack.c.bf16 %v4723, %v4721
      %v4744 = vpack.c.bf16 %v4724, %v4722
      %v4745 = vpack.c.bf16 %v4727, %v4725
      %v4746 = vpack.c.bf16 %v4728, %v4726
      %v4747 = vpack.c.bf16 %v4731, %v4729
      %v4748 = vpack.c.bf16 %v4732, %v4730
      %v4749 = vld [vmem:[%s8] sm:$0xff]
      %v4750 = vld [vmem:[%s8 + $0x8] sm:$0xff]
      %v4751 = vld [vmem:[%s8 + $0x10] sm:$0xff]
      %v4752 = vld [vmem:[%s8 + $0x18] sm:$0xff]
      %v4753 = vld [vmem:[%s8 + $0x20] sm:$0xff]
      %v4754 = vld [vmem:[%s8 + $0x28] sm:$0xff]
      %v4755 = vld [vmem:[%s8 + $0x30] sm:$0xff]
      %v4756 = vld [vmem:[%s8 + $0x38] sm:$0xff]
      %v4757 = vld [vmem:[%s8 + $0x40] sm:$0xff]
      %v4758 = vld [vmem:[%s8 + $0x48] sm:$0xff]
      %v4759 = vld [vmem:[%s8 + $0x50] sm:$0xff]
      %v4760 = vld [vmem:[%s8 + $0x58] sm:$0xff]
      %v4761 = vld [vmem:[%s8 + $0x60] sm:$0xff]
      %v4762 = vld [vmem:[%s8 + $0x68] sm:$0xff]
      %v4763 = vld [vmem:[%s8 + $0x70] sm:$0xff]
      %v4764 = vld [vmem:[%s8 + $0x78] sm:$0xff]
      %v4765 = vld [vmem:[%s8 + $0x80] sm:$0xff]
      %v4766 = vld [vmem:[%s8 + $0x88] sm:$0xff]
      %v4767 = vld [vmem:[%s8 + $0x90] sm:$0xff]
      %v4768 = vld [vmem:[%s8 + $0x98] sm:$0xff]
      %v4769 = vld [vmem:[%s8 + $0xa0] sm:$0xff]
      %v4770 = vld [vmem:[%s8 + $0xa8] sm:$0xff]
      %v4771 = vld [vmem:[%s8 + $0xb0] sm:$0xff]
      %v4772 = vld [vmem:[%s8 + $0xb8] sm:$0xff]
      %v4773 = vld [vmem:[%s8 + $0xc0] sm:$0xff]
      %v4774 = vld [vmem:[%s8 + $0xc8] sm:$0xff]
      %v4775 = vld [vmem:[%s8 + $0xd0] sm:$0xff]
      %v4776 = vld [vmem:[%s8 + $0xd8] sm:$0xff]
      %v4777 = vld [vmem:[%s8 + $0xe0] sm:$0xff]
      %v4778 = vld [vmem:[%s8 + $0xe8] sm:$0xff]
      %v4779 = vld [vmem:[%s8 + $0xf0] sm:$0xff]
      %v4780 = vld [vmem:[%s8 + $0xf8] sm:$0xff]
      %v4781 = vld [vmem:[%s8 + $0x100] sm:$0xff]
      %v4782 = vld [vmem:[%s8 + $0x108] sm:$0xff]
      %v4783 = vld [vmem:[%s8 + $0x110] sm:$0xff]
      %v4784 = vld [vmem:[%s8 + $0x118] sm:$0xff]
      %v4785 = vld [vmem:[%s8 + $0x120] sm:$0xff]
      %v4786 = vld [vmem:[%s8 + $0x128] sm:$0xff]
      %v4787 = vld [vmem:[%s8 + $0x130] sm:$0xff]
      %v4788 = vld [vmem:[%s8 + $0x138] sm:$0xff]
      %v4789 = vld [vmem:[%s8 + $0x140] sm:$0xff]
      %v4790 = vld [vmem:[%s8 + $0x148] sm:$0xff]
      %v4791 = vld [vmem:[%s8 + $0x150] sm:$0xff]
      %v4792 = vld [vmem:[%s8 + $0x158] sm:$0xff]
      %v4793 = vld [vmem:[%s8 + $0x160] sm:$0xff]
      %v4794 = vld [vmem:[%s8 + $0x168] sm:$0xff]
      %v4795 = vld [vmem:[%s8 + $0x170] sm:$0xff]
      %v4796 = vld [vmem:[%s8 + $0x178] sm:$0xff]
      %v4797 = vld [vmem:[%s8 + $0x180] sm:$0xff]
      %v4798 = vld [vmem:[%s8 + $0x188] sm:$0xff]
      %v4799 = vld [vmem:[%s8 + $0x190] sm:$0xff]
      %v4800 = vld [vmem:[%s8 + $0x198] sm:$0xff]
      %v4801 = vld [vmem:[%s8 + $0x1a0] sm:$0xff]
      %v4802 = vld [vmem:[%s8 + $0x1a8] sm:$0xff]
      %v4803 = vld [vmem:[%s8 + $0x1b0] sm:$0xff]
      %v4804 = vld [vmem:[%s8 + $0x1b8] sm:$0xff]
      %v4805 = vld [vmem:[%s8 + $0x1c0] sm:$0xff]
      %v4806 = vld [vmem:[%s8 + $0x1c8] sm:$0xff]
      %v4807 = vld [vmem:[%s8 + $0x1d0] sm:$0xff]
      %v4808 = vld [vmem:[%s8 + $0x1d8] sm:$0xff]
      %v4809 = vld [vmem:[%s8 + $0x1e0] sm:$0xff]
      %v4810 = vld [vmem:[%s8 + $0x1e8] sm:$0xff]
      %v4811 = vld [vmem:[%s8 + $0x1f0] sm:$0xff]
      %v4812 = vld [vmem:[%s8 + $0x1f8] sm:$0xff]
      %v4813 = vld [vmem:[%s8 + $0x200] sm:$0xff]
      %v4814 = vld [vmem:[%s8 + $0x208] sm:$0xff]
      %v4815 = vld [vmem:[%s8 + $0x210] sm:$0xff]
      %v4816 = vld [vmem:[%s8 + $0x218] sm:$0xff]
      %v4817 = vld [vmem:[%s8 + $0x220] sm:$0xff]
      %v4818 = vld [vmem:[%s8 + $0x228] sm:$0xff]
      %v4819 = vld [vmem:[%s8 + $0x230] sm:$0xff]
      %v4820 = vld [vmem:[%s8 + $0x238] sm:$0xff]
      %v4821 = vld [vmem:[%s9] sm:$0x3f]
      %v4823 = vlaneseq
      %v4824 = vshrl.u32 %v4823, 7
      %v4825 = vsub.s32 0, %v4824
      %v4826 = vrot.slane %v4821, %v4825
      %v4827 = vlaneseq
      %v4828 = vshrl.u32 %v4827, 7
      %v4829 = vsub.s32 1, %v4828
      %v4830 = vrot.slane %v4821, %v4829
      %v4831 = vlaneseq
      %v4832 = vshrl.u32 %v4831, 7
      %v4833 = vsub.s32 2, %v4832
      %v4834 = vrot.slane %v4821, %v4833
      %v4835 = vlaneseq
      %v4836 = vshrl.u32 %v4835, 7
      %v4837 = vsub.s32 3, %v4836
      %v4838 = vrot.slane %v4821, %v4837
      %v4839 = vlaneseq
      %v4840 = vshrl.u32 %v4839, 7
      %v4841 = vsub.s32 4, %v4840
      %v4842 = vrot.slane %v4821, %v4841
      %v4843 = vlaneseq
      %v4844 = vshrl.u32 %v4843, 7
      %v4845 = vsub.s32 5, %v4844
      %v4846 = vrot.slane %v4821, %v4845
      %v4925 = vunpack.c.l.b16 %v4749
      %v4926 = vunpack.c.h.b16 %v4749
      %v4927 = vunpack.c.l.b16 %v4750
      %v4928 = vunpack.c.h.b16 %v4750
      %v4929 = vunpack.c.l.b16 %v4751
      %v4930 = vunpack.c.h.b16 %v4751
      %v4931 = vunpack.c.l.b16 %v4752
      %v4932 = vunpack.c.h.b16 %v4752
      %v4933 = vunpack.c.l.b16 %v4753
      %v4934 = vunpack.c.h.b16 %v4753
      %v4935 = vunpack.c.l.b16 %v4754
      %v4936 = vunpack.c.h.b16 %v4754
      %v4937 = vunpack.c.l.b16 %v4755
      %v4938 = vunpack.c.h.b16 %v4755
      %v4939 = vunpack.c.l.b16 %v4756
      %v4940 = vunpack.c.h.b16 %v4756
      %v4941 = vunpack.c.l.b16 %v4757
      %v4942 = vunpack.c.h.b16 %v4757
      %v4943 = vunpack.c.l.b16 %v4758
      %v4944 = vunpack.c.h.b16 %v4758
      %v4945 = vunpack.c.l.b16 %v4759
      %v4946 = vunpack.c.h.b16 %v4759
      %v4947 = vunpack.c.l.b16 %v4760
      %v4948 = vunpack.c.h.b16 %v4760
      %v4949 = vunpack.c.l.b16 %v4761
      %v4950 = vunpack.c.h.b16 %v4761
      %v4951 = vunpack.c.l.b16 %v4762
      %v4952 = vunpack.c.h.b16 %v4762
      %v4953 = vunpack.c.l.b16 %v4763
      %v4954 = vunpack.c.h.b16 %v4763
      %v4955 = vunpack.c.l.b16 %v4764
      %v4956 = vunpack.c.h.b16 %v4764
      %v4957 = vunpack.c.l.b16 %v4765
      %v4958 = vunpack.c.h.b16 %v4765
      %v4959 = vunpack.c.l.b16 %v4766
      %v4960 = vunpack.c.h.b16 %v4766
      %v4961 = vunpack.c.l.b16 %v4767
      %v4962 = vunpack.c.h.b16 %v4767
      %v4963 = vunpack.c.l.b16 %v4768
      %v4964 = vunpack.c.h.b16 %v4768
      %v4965 = vunpack.c.l.b16 %v4769
      %v4966 = vunpack.c.h.b16 %v4769
      %v4967 = vunpack.c.l.b16 %v4770
      %v4968 = vunpack.c.h.b16 %v4770
      %v4969 = vunpack.c.l.b16 %v4771
      %v4970 = vunpack.c.h.b16 %v4771
      %v4971 = vunpack.c.l.b16 %v4772
      %v4972 = vunpack.c.h.b16 %v4772
      %v4973 = vunpack.c.l.b16 %v4773
      %v4974 = vunpack.c.h.b16 %v4773
      %v4975 = vunpack.c.l.b16 %v4774
      %v4976 = vunpack.c.h.b16 %v4774
      %v4977 = vunpack.c.l.b16 %v4775
      %v4978 = vunpack.c.h.b16 %v4775
      %v4979 = vunpack.c.l.b16 %v4776
      %v4980 = vunpack.c.h.b16 %v4776
      %v4981 = vunpack.c.l.b16 %v4777
      %v4982 = vunpack.c.h.b16 %v4777
      %v4983 = vunpack.c.l.b16 %v4778
      %v4984 = vunpack.c.h.b16 %v4778
      %v4985 = vunpack.c.l.b16 %v4779
      %v4986 = vunpack.c.h.b16 %v4779
      %v4987 = vunpack.c.l.b16 %v4780
      %v4988 = vunpack.c.h.b16 %v4780
      %v4989 = vunpack.c.l.b16 %v4781
      %v4990 = vunpack.c.h.b16 %v4781
      %v4991 = vunpack.c.l.b16 %v4782
      %v4992 = vunpack.c.h.b16 %v4782
      %v4993 = vunpack.c.l.b16 %v4783
      %v4994 = vunpack.c.h.b16 %v4783
      %v4995 = vunpack.c.l.b16 %v4784
      %v4996 = vunpack.c.h.b16 %v4784
      %v4997 = vunpack.c.l.b16 %v4785
      %v4998 = vunpack.c.h.b16 %v4785
      %v4999 = vunpack.c.l.b16 %v4786
      %v5000 = vunpack.c.h.b16 %v4786
      %v5001 = vunpack.c.l.b16 %v4787
      %v5002 = vunpack.c.h.b16 %v4787
      %v5003 = vunpack.c.l.b16 %v4788
      %v5004 = vunpack.c.h.b16 %v4788
      %v5005 = vunpack.c.l.b16 %v4789
      %v5006 = vunpack.c.h.b16 %v4789
      %v5007 = vunpack.c.l.b16 %v4790
      %v5008 = vunpack.c.h.b16 %v4790
      %v5009 = vunpack.c.l.b16 %v4791
      %v5010 = vunpack.c.h.b16 %v4791
      %v5011 = vunpack.c.l.b16 %v4792
      %v5012 = vunpack.c.h.b16 %v4792
      %v5013 = vunpack.c.l.b16 %v4793
      %v5014 = vunpack.c.h.b16 %v4793
      %v5015 = vunpack.c.l.b16 %v4794
      %v5016 = vunpack.c.h.b16 %v4794
      %v5017 = vunpack.c.l.b16 %v4795
      %v5018 = vunpack.c.h.b16 %v4795
      %v5019 = vunpack.c.l.b16 %v4796
      %v5020 = vunpack.c.h.b16 %v4796
      %v5021 = vunpack.c.l.b16 %v4797
      %v5022 = vunpack.c.h.b16 %v4797
      %v5023 = vunpack.c.l.b16 %v4798
      %v5024 = vunpack.c.h.b16 %v4798
      %v5025 = vunpack.c.l.b16 %v4799
      %v5026 = vunpack.c.h.b16 %v4799
      %v5027 = vunpack.c.l.b16 %v4800
      %v5028 = vunpack.c.h.b16 %v4800
      %v5029 = vunpack.c.l.b16 %v4801
      %v5030 = vunpack.c.h.b16 %v4801
      %v5031 = vunpack.c.l.b16 %v4802
      %v5032 = vunpack.c.h.b16 %v4802
      %v5033 = vunpack.c.l.b16 %v4803
      %v5034 = vunpack.c.h.b16 %v4803
      %v5035 = vunpack.c.l.b16 %v4804
      %v5036 = vunpack.c.h.b16 %v4804
      %v5037 = vunpack.c.l.b16 %v4805
      %v5038 = vunpack.c.h.b16 %v4805
      %v5039 = vunpack.c.l.b16 %v4806
      %v5040 = vunpack.c.h.b16 %v4806
      %v5041 = vunpack.c.l.b16 %v4807
      %v5042 = vunpack.c.h.b16 %v4807
      %v5043 = vunpack.c.l.b16 %v4808
      %v5044 = vunpack.c.h.b16 %v4808
      %v5045 = vunpack.c.l.b16 %v4809
      %v5046 = vunpack.c.h.b16 %v4809
      %v5047 = vunpack.c.l.b16 %v4810
      %v5048 = vunpack.c.h.b16 %v4810
      %v5049 = vunpack.c.l.b16 %v4811
      %v5050 = vunpack.c.h.b16 %v4811
      %v5051 = vunpack.c.l.b16 %v4812
      %v5052 = vunpack.c.h.b16 %v4812
      %v5053 = vunpack.c.l.b16 %v4813
      %v5054 = vunpack.c.h.b16 %v4813
      %v5055 = vunpack.c.l.b16 %v4814
      %v5056 = vunpack.c.h.b16 %v4814
      %v5057 = vunpack.c.l.b16 %v4815
      %v5058 = vunpack.c.h.b16 %v4815
      %v5059 = vunpack.c.l.b16 %v4816
      %v5060 = vunpack.c.h.b16 %v4816
      %v5061 = vunpack.c.l.b16 %v4817
      %v5062 = vunpack.c.h.b16 %v4817
      %v5063 = vunpack.c.l.b16 %v4818
      %v5064 = vunpack.c.h.b16 %v4818
      %v5065 = vunpack.c.l.b16 %v4819
      %v5066 = vunpack.c.h.b16 %v4819
      %v5067 = vunpack.c.l.b16 %v4820
      %v5068 = vunpack.c.h.b16 %v4820
      %v5069 = vpack.c.b16 %v4931, %v4925
      %v5070 = vpack.c.b16 %v4932, %v4926
      %v5071 = vpack.c.b16 %v4933, %v4927
      %v5072 = vpack.c.b16 %v4934, %v4928
      %v5073 = vpack.c.b16 %v4935, %v4929
      %v5074 = vpack.c.b16 %v4936, %v4930
      %v5075 = vpack.c.b16 %v4943, %v4937
      %v5076 = vpack.c.b16 %v4944, %v4938
      %v5077 = vpack.c.b16 %v4945, %v4939
      %v5078 = vpack.c.b16 %v4946, %v4940
      %v5079 = vpack.c.b16 %v4947, %v4941
      %v5080 = vpack.c.b16 %v4948, %v4942
      %v5081 = vpack.c.b16 %v4955, %v4949
      %v5082 = vpack.c.b16 %v4956, %v4950
      %v5083 = vpack.c.b16 %v4957, %v4951
      %v5084 = vpack.c.b16 %v4958, %v4952
      %v5085 = vpack.c.b16 %v4959, %v4953
      %v5086 = vpack.c.b16 %v4960, %v4954
      %v5087 = vpack.c.b16 %v4967, %v4961
      %v5088 = vpack.c.b16 %v4968, %v4962
      %v5089 = vpack.c.b16 %v4969, %v4963
      %v5090 = vpack.c.b16 %v4970, %v4964
      %v5091 = vpack.c.b16 %v4971, %v4965
      %v5092 = vpack.c.b16 %v4972, %v4966
      %v5093 = vpack.c.b16 %v4979, %v4973
      %v5094 = vpack.c.b16 %v4980, %v4974
      %v5095 = vpack.c.b16 %v4981, %v4975
      %v5096 = vpack.c.b16 %v4982, %v4976
      %v5097 = vpack.c.b16 %v4983, %v4977
      %v5098 = vpack.c.b16 %v4984, %v4978
      %v5099 = vpack.c.b16 %v4991, %v4985
      %v5100 = vpack.c.b16 %v4992, %v4986
      %v5101 = vpack.c.b16 %v4993, %v4987
      %v5102 = vpack.c.b16 %v4994, %v4988
      %v5103 = vpack.c.b16 %v4995, %v4989
      %v5104 = vpack.c.b16 %v4996, %v4990
      %v5105 = vpack.c.b16 %v5003, %v4997
      %v5106 = vpack.c.b16 %v5004, %v4998
      %v5107 = vpack.c.b16 %v5005, %v4999
      %v5108 = vpack.c.b16 %v5006, %v5000
      %v5109 = vpack.c.b16 %v5007, %v5001
      %v5110 = vpack.c.b16 %v5008, %v5002
      %v5111 = vpack.c.b16 %v5015, %v5009
      %v5112 = vpack.c.b16 %v5016, %v5010
      %v5113 = vpack.c.b16 %v5017, %v5011
      %v5114 = vpack.c.b16 %v5018, %v5012
      %v5115 = vpack.c.b16 %v5019, %v5013
      %v5116 = vpack.c.b16 %v5020, %v5014
      %v5117 = vpack.c.b16 %v5027, %v5021
      %v5118 = vpack.c.b16 %v5028, %v5022
      %v5119 = vpack.c.b16 %v5029, %v5023
      %v5120 = vpack.c.b16 %v5030, %v5024
      %v5121 = vpack.c.b16 %v5031, %v5025
      %v5122 = vpack.c.b16 %v5032, %v5026
      %v5123 = vpack.c.b16 %v5039, %v5033
      %v5124 = vpack.c.b16 %v5040, %v5034
      %v5125 = vpack.c.b16 %v5041, %v5035
      %v5126 = vpack.c.b16 %v5042, %v5036
      %v5127 = vpack.c.b16 %v5043, %v5037
      %v5128 = vpack.c.b16 %v5044, %v5038
      %v5129 = vpack.c.b16 %v5051, %v5045
      %v5130 = vpack.c.b16 %v5052, %v5046
      %v5131 = vpack.c.b16 %v5053, %v5047
      %v5132 = vpack.c.b16 %v5054, %v5048
      %v5133 = vpack.c.b16 %v5055, %v5049
      %v5134 = vpack.c.b16 %v5056, %v5050
      %v5135 = vpack.c.b16 %v5063, %v5057
      %v5136 = vpack.c.b16 %v5064, %v5058
      %v5137 = vpack.c.b16 %v5065, %v5059
      %v5138 = vpack.c.b16 %v5066, %v5060
      %v5139 = vpack.c.b16 %v5067, %v5061
      %v5140 = vpack.c.b16 %v5068, %v5062
      %v5214 = vsel %vm449, %v4734, 0
      %v5217 = vsel %vm449, %v4736, 0
      %v5220 = vsel %vm449, %v4738, 0
      %v5223 = vsel %vm449, %v4740, 0
      %v5226 = vsel %vm449, %v4742, 0
      %v5229 = vsel %vm449, %v4744, 0
      %v5232 = vsel %vm449, %v4746, 0
      %v5235 = vsel %vm449, %v4748, 0
      %5237 = vmatprep.subr.bf16.mxu0 %v5112
      %5238 = vmatpush1.bf16.msra.mxu0 %v5111
      %5239 = vmatprep.subr.bf16.mxu0 %v5106
      %5240 = vmatpush1.bf16.msra.mxu0 %v5105
      %5241 = vmatprep.subr.bf16.mxu0 %v5100
      %5242 = vmatpush1.bf16.msra.mxu0 %v5099
      %5243 = vmatprep.subr.bf16.mxu0 %v5094
      %5244 = vmatpush1.bf16.msra.mxu0 %v5093
      %5245 = vmatprep.subr.bf16.mxu0 %v5088
      %5246 = vmatpush1.bf16.msra.mxu0 %v5087
      %5247 = vmatprep.subr.bf16.mxu0 %v5082
      %5248 = vmatpush1.bf16.msra.mxu0 %v5081
      %5249 = vmatprep.subr.bf16.mxu0 %v5076
      %5250 = vmatpush1.bf16.msra.mxu0 %v5075
      %5251 = vmatprep.subr.bf16.mxu0 %v5070
      %5252 = vmatpush1.bf16.msra.mxu0 %v5069
      %5253 = vmatprep.subr.bf16.mxu0 0
      %5254 = vmatpush2.bf16.msra.mxu0 0
      %5255 = vmatprep.subr.bf16.mxu0 0
      %5256 = vmatpush2.bf16.msra.mxu0 0
      %5257 = vmatprep.subr.bf16.mxu0 0
      %5258 = vmatpush2.bf16.msra.mxu0 0
      %5259 = vmatprep.subr.bf16.mxu0 0
      %5260 = vmatpush2.bf16.msra.mxu0 0
      %5261 = vmatprep.subr.bf16.mxu0 %v5136
      %5262 = vmatpush2.bf16.msra.mxu0 %v5135
      %5263 = vmatprep.subr.bf16.mxu0 %v5130
      %5264 = vmatpush2.bf16.msra.mxu0 %v5129
      %5265 = vmatprep.subr.bf16.mxu0 %v5124
      %5266 = vmatpush2.bf16.msra.mxu0 %v5123
      %5267 = vmatprep.subr.bf16.mxu0 %v5118
      %5268 = vmatpush2.bf16.msra.mxu0 %v5117
      %5269 = vmatprep.mubr.bf16.mxu0 %v5214
      %5270 = vmatmul.mubr.bf16.gmra.mxu0 %v4733
      %v5271 = vpop.f32.mrf.mxu0
      %v5272 = vadd.f32 %v4826, %v5271
      %v5273 = vpop.f32.mrf.mxu0
      %v5274 = vadd.f32 %v4830, %v5273
      %v5275 = vpop.f32.mrf.mxu0
      %v5276 = vadd.f32 %v4826, %v5275
      %v5277 = vpop.f32.mrf.mxu0
      %v5278 = vadd.f32 %v4830, %v5277
      %5279 = vmatprep.mubr.bf16.mxu0 %v5217
      %5280 = vmatmul.mubr.bf16.gmra.mxu0 %v4735
      %v5281 = vpop.f32.mrf.mxu0
      %v5282 = vadd.f32 %v4826, %v5281
      %v5283 = vpop.f32.mrf.mxu0
      %v5284 = vadd.f32 %v4830, %v5283
      %v5285 = vpop.f32.mrf.mxu0
      %v5286 = vadd.f32 %v4826, %v5285
      %v5287 = vpop.f32.mrf.mxu0
      %v5288 = vadd.f32 %v4830, %v5287
      %5289 = vmatprep.mubr.bf16.mxu0 %v5220
      %5290 = vmatmul.mubr.bf16.gmra.mxu0 %v4737
      %v5291 = vpop.f32.mrf.mxu0
      %v5292 = vadd.f32 %v4826, %v5291
      %v5293 = vpop.f32.mrf.mxu0
      %v5294 = vadd.f32 %v4830, %v5293
      %v5295 = vpop.f32.mrf.mxu0
      %v5296 = vadd.f32 %v4826, %v5295
      %v5297 = vpop.f32.mrf.mxu0
      %v5298 = vadd.f32 %v4830, %v5297
      %5299 = vmatprep.mubr.bf16.mxu0 %v5223
      %5300 = vmatmul.mubr.bf16.gmra.mxu0 %v4739
      %v5301 = vpop.f32.mrf.mxu0
      %v5302 = vadd.f32 %v4826, %v5301
      %v5303 = vpop.f32.mrf.mxu0
      %v5304 = vadd.f32 %v4830, %v5303
      %v5305 = vpop.f32.mrf.mxu0
      %v5306 = vadd.f32 %v4826, %v5305
      %v5307 = vpop.f32.mrf.mxu0
      %v5308 = vadd.f32 %v4830, %v5307
      %5309 = vmatprep.mubr.bf16.mxu0 %v5226
      %5310 = vmatmul.mubr.bf16.gmra.mxu0 %v4741
      %v5311 = vpop.f32.mrf.mxu0
      %v5312 = vadd.f32 %v4826, %v5311
      %v5313 = vpop.f32.mrf.mxu0
      %v5314 = vadd.f32 %v4830, %v5313
      %v5315 = vpop.f32.mrf.mxu0
      %v5316 = vadd.f32 %v4826, %v5315
      %v5317 = vpop.f32.mrf.mxu0
      %v5318 = vadd.f32 %v4830, %v5317
      %5319 = vmatprep.mubr.bf16.mxu0 %v5229
      %5320 = vmatmul.mubr.bf16.gmra.mxu0 %v4743
      %v5321 = vpop.f32.mrf.mxu0
      %v5322 = vadd.f32 %v4826, %v5321
      %v5323 = vpop.f32.mrf.mxu0
      %v5324 = vadd.f32 %v4830, %v5323
      %v5325 = vpop.f32.mrf.mxu0
      %v5326 = vadd.f32 %v4826, %v5325
      %v5327 = vpop.f32.mrf.mxu0
      %v5328 = vadd.f32 %v4830, %v5327
      %5329 = vmatprep.mubr.bf16.mxu0 %v5232
      %5330 = vmatmul.mubr.bf16.gmra.mxu0 %v4745
      %v5331 = vpop.f32.mrf.mxu0
      %v5332 = vadd.f32 %v4826, %v5331
      %v5333 = vpop.f32.mrf.mxu0
      %v5334 = vadd.f32 %v4830, %v5333
      %v5335 = vpop.f32.mrf.mxu0
      %v5336 = vadd.f32 %v4826, %v5335
      %v5337 = vpop.f32.mrf.mxu0
      %v5338 = vadd.f32 %v4830, %v5337
      %5339 = vmatprep.mubr.bf16.mxu0 %v5235
      %5340 = vmatmul.mubr.bf16.gmra.mxu0 %v4747
      %v5341 = vpop.f32.mrf.mxu0
      %v5342 = vadd.f32 %v4826, %v5341
      %v5343 = vpop.f32.mrf.mxu0
      %v5344 = vadd.f32 %v4830, %v5343
      %v5345 = vpop.f32.mrf.mxu0
      %v5346 = vadd.f32 %v4826, %v5345
      %v5347 = vpop.f32.mrf.mxu0
      %v5348 = vadd.f32 %v4830, %v5347
      %5349 = vdwg.mxu0
      %5350 = vmatprep.subr.bf16.mxu0 %v5114
      %5351 = vmatpush1.bf16.msra.mxu0 %v5113
      %5352 = vmatprep.subr.bf16.mxu0 %v5108
      %5353 = vmatpush1.bf16.msra.mxu0 %v5107
      %5354 = vmatprep.subr.bf16.mxu0 %v5102
      %5355 = vmatpush1.bf16.msra.mxu0 %v5101
      %5356 = vmatprep.subr.bf16.mxu0 %v5096
      %5357 = vmatpush1.bf16.msra.mxu0 %v5095
      %5358 = vmatprep.subr.bf16.mxu0 %v5090
      %5359 = vmatpush1.bf16.msra.mxu0 %v5089
      %5360 = vmatprep.subr.bf16.mxu0 %v5084
      %5361 = vmatpush1.bf16.msra.mxu0 %v5083
      %5362 = vmatprep.subr.bf16.mxu0 %v5078
      %5363 = vmatpush1.bf16.msra.mxu0 %v5077
      %5364 = vmatprep.subr.bf16.mxu0 %v5072
      %5365 = vmatpush1.bf16.msra.mxu0 %v5071
      %5366 = vmatprep.subr.bf16.mxu0 0
      %5367 = vmatpush2.bf16.msra.mxu0 0
      %5368 = vmatprep.subr.bf16.mxu0 0
      %5369 = vmatpush2.bf16.msra.mxu0 0
      %5370 = vmatprep.subr.bf16.mxu0 0
      %5371 = vmatpush2.bf16.msra.mxu0 0
      %5372 = vmatprep.subr.bf16.mxu0 0
      %5373 = vmatpush2.bf16.msra.mxu0 0
      %5374 = vmatprep.subr.bf16.mxu0 %v5138
      %5375 = vmatpush2.bf16.msra.mxu0 %v5137
      %5376 = vmatprep.subr.bf16.mxu0 %v5132
      %5377 = vmatpush2.bf16.msra.mxu0 %v5131
      %5378 = vmatprep.subr.bf16.mxu0 %v5126
      %5379 = vmatpush2.bf16.msra.mxu0 %v5125
      %5380 = vmatprep.subr.bf16.mxu0 %v5120
      %5381 = vmatpush2.bf16.msra.mxu0 %v5119
      %5382 = vmatprep.mubr.bf16.mxu0 %v5214
      %5383 = vmatmul.mubr.bf16.gmra.mxu0 %v4733
      %v5384 = vpop.f32.mrf.mxu0
      %v5385 = vadd.f32 %v4834, %v5384
      %v5386 = vpop.f32.mrf.mxu0
      %v5387 = vadd.f32 %v4838, %v5386
      %v5388 = vpop.f32.mrf.mxu0
      %v5389 = vadd.f32 %v4834, %v5388
      %v5390 = vpop.f32.mrf.mxu0
      %v5391 = vadd.f32 %v4838, %v5390
      %5392 = vmatprep.mubr.bf16.mxu0 %v5217
      %5393 = vmatmul.mubr.bf16.gmra.mxu0 %v4735
      %v5394 = vpop.f32.mrf.mxu0
      %v5395 = vadd.f32 %v4834, %v5394
      %v5396 = vpop.f32.mrf.mxu0
      %v5397 = vadd.f32 %v4838, %v5396
      %v5398 = vpop.f32.mrf.mxu0
      %v5399 = vadd.f32 %v4834, %v5398
      %v5400 = vpop.f32.mrf.mxu0
      %v5401 = vadd.f32 %v4838, %v5400
      %5402 = vmatprep.mubr.bf16.mxu0 %v5220
      %5403 = vmatmul.mubr.bf16.gmra.mxu0 %v4737
      %v5404 = vpop.f32.mrf.mxu0
      %v5405 = vadd.f32 %v4834, %v5404
      %v5406 = vpop.f32.mrf.mxu0
      %v5407 = vadd.f32 %v4838, %v5406
      %v5408 = vpop.f32.mrf.mxu0
      %v5409 = vadd.f32 %v4834, %v5408
      %v5410 = vpop.f32.mrf.mxu0
      %v5411 = vadd.f32 %v4838, %v5410
      %5412 = vmatprep.mubr.bf16.mxu0 %v5223
      %5413 = vmatmul.mubr.bf16.gmra.mxu0 %v4739
      %v5414 = vpop.f32.mrf.mxu0
      %v5415 = vadd.f32 %v4834, %v5414
      %v5416 = vpop.f32.mrf.mxu0
      %v5417 = vadd.f32 %v4838, %v5416
      %v5418 = vpop.f32.mrf.mxu0
      %v5419 = vadd.f32 %v4834, %v5418
      %v5420 = vpop.f32.mrf.mxu0
      %v5421 = vadd.f32 %v4838, %v5420
      %5422 = vmatprep.mubr.bf16.mxu0 %v5226
      %5423 = vmatmul.mubr.bf16.gmra.mxu0 %v4741
      %v5424 = vpop.f32.mrf.mxu0
      %v5425 = vadd.f32 %v4834, %v5424
      %v5426 = vpop.f32.mrf.mxu0
      %v5427 = vadd.f32 %v4838, %v5426
      %v5428 = vpop.f32.mrf.mxu0
      %v5429 = vadd.f32 %v4834, %v5428
      %v5430 = vpop.f32.mrf.mxu0
      %v5431 = vadd.f32 %v4838, %v5430
      %5432 = vmatprep.mubr.bf16.mxu0 %v5229
      %5433 = vmatmul.mubr.bf16.gmra.mxu0 %v4743
      %v5434 = vpop.f32.mrf.mxu0
      %v5435 = vadd.f32 %v4834, %v5434
      %v5436 = vpop.f32.mrf.mxu0
      %v5437 = vadd.f32 %v4838, %v5436
      %v5438 = vpop.f32.mrf.mxu0
      %v5439 = vadd.f32 %v4834, %v5438
      %v5440 = vpop.f32.mrf.mxu0
      %v5441 = vadd.f32 %v4838, %v5440
      %5442 = vmatprep.mubr.bf16.mxu0 %v5232
      %5443 = vmatmul.mubr.bf16.gmra.mxu0 %v4745
      %v5444 = vpop.f32.mrf.mxu0
      %v5445 = vadd.f32 %v4834, %v5444
      %v5446 = vpop.f32.mrf.mxu0
      %v5447 = vadd.f32 %v4838, %v5446
      %v5448 = vpop.f32.mrf.mxu0
      %v5449 = vadd.f32 %v4834, %v5448
      %v5450 = vpop.f32.mrf.mxu0
      %v5451 = vadd.f32 %v4838, %v5450
      %5452 = vmatprep.mubr.bf16.mxu0 %v5235
      %5453 = vmatmul.mubr.bf16.gmra.mxu0 %v4747
      %v5454 = vpop.f32.mrf.mxu0
      %v5455 = vadd.f32 %v4834, %v5454
      %v5456 = vpop.f32.mrf.mxu0
      %v5457 = vadd.f32 %v4838, %v5456
      %v5458 = vpop.f32.mrf.mxu0
      %v5459 = vadd.f32 %v4834, %v5458
      %v5460 = vpop.f32.mrf.mxu0
      %v5461 = vadd.f32 %v4838, %v5460
      %5462 = vdwg.mxu0
      %5463 = vmatprep.subr.bf16.mxu0 %v5116
      %5464 = vmatpush1.bf16.msra.mxu0 %v5115
      %5465 = vmatprep.subr.bf16.mxu0 %v5110
      %5466 = vmatpush1.bf16.msra.mxu0 %v5109
      %5467 = vmatprep.subr.bf16.mxu0 %v5104
      %5468 = vmatpush1.bf16.msra.mxu0 %v5103
      %5469 = vmatprep.subr.bf16.mxu0 %v5098
      %5470 = vmatpush1.bf16.msra.mxu0 %v5097
      %5471 = vmatprep.subr.bf16.mxu0 %v5092
      %5472 = vmatpush1.bf16.msra.mxu0 %v5091
      %5473 = vmatprep.subr.bf16.mxu0 %v5086
      %5474 = vmatpush1.bf16.msra.mxu0 %v5085
      %5475 = vmatprep.subr.bf16.mxu0 %v5080
      %5476 = vmatpush1.bf16.msra.mxu0 %v5079
      %5477 = vmatprep.subr.bf16.mxu0 %v5074
      %5478 = vmatpush1.bf16.msra.mxu0 %v5073
      %5479 = vmatprep.subr.bf16.mxu0 0
      %5480 = vmatpush2.bf16.msra.mxu0 0
      %5481 = vmatprep.subr.bf16.mxu0 0
      %5482 = vmatpush2.bf16.msra.mxu0 0
      %5483 = vmatprep.subr.bf16.mxu0 0
      %5484 = vmatpush2.bf16.msra.mxu0 0
      %5485 = vmatprep.subr.bf16.mxu0 0
      %5486 = vmatpush2.bf16.msra.mxu0 0
      %5487 = vmatprep.subr.bf16.mxu0 %v5140
      %5488 = vmatpush2.bf16.msra.mxu0 %v5139
      %5489 = vmatprep.subr.bf16.mxu0 %v5134
      %5490 = vmatpush2.bf16.msra.mxu0 %v5133
      %5491 = vmatprep.subr.bf16.mxu0 %v5128
      %5492 = vmatpush2.bf16.msra.mxu0 %v5127
      %5493 = vmatprep.subr.bf16.mxu0 %v5122
      %5494 = vmatpush2.bf16.msra.mxu0 %v5121
      %5495 = vmatprep.mubr.bf16.mxu0 %v5214
      %5496 = vmatmul.mubr.bf16.gmra.mxu0 %v4733
      %v5497 = vpop.f32.mrf.mxu0
      %v5498 = vadd.f32 %v4842, %v5497
      %v5499 = vpop.f32.mrf.mxu0
      %v5500 = vadd.f32 %v4846, %v5499
      %v5501 = vpop.f32.mrf.mxu0
      %v5502 = vadd.f32 %v4842, %v5501
      %v5503 = vpop.f32.mrf.mxu0
      %v5504 = vadd.f32 %v4846, %v5503
      %5505 = vmatprep.mubr.bf16.mxu0 %v5217
      %5506 = vmatmul.mubr.bf16.gmra.mxu0 %v4735
      %v5507 = vpop.f32.mrf.mxu0
      %v5508 = vadd.f32 %v4842, %v5507
      %v5509 = vpop.f32.mrf.mxu0
      %v5510 = vadd.f32 %v4846, %v5509
      %v5511 = vpop.f32.mrf.mxu0
      %v5512 = vadd.f32 %v4842, %v5511
      %v5513 = vpop.f32.mrf.mxu0
      %v5514 = vadd.f32 %v4846, %v5513
      %5515 = vmatprep.mubr.bf16.mxu0 %v5220
      %5516 = vmatmul.mubr.bf16.gmra.mxu0 %v4737
      %v5517 = vpop.f32.mrf.mxu0
      %v5518 = vadd.f32 %v4842, %v5517
      %v5519 = vpop.f32.mrf.mxu0
      %v5520 = vadd.f32 %v4846, %v5519
      %v5521 = vpop.f32.mrf.mxu0
      %v5522 = vadd.f32 %v4842, %v5521
      %v5523 = vpop.f32.mrf.mxu0
      %v5524 = vadd.f32 %v4846, %v5523
      %5525 = vmatprep.mubr.bf16.mxu0 %v5223
      %5526 = vmatmul.mubr.bf16.gmra.mxu0 %v4739
      %v5527 = vpop.f32.mrf.mxu0
      %v5528 = vadd.f32 %v4842, %v5527
      %v5529 = vpop.f32.mrf.mxu0
      %v5530 = vadd.f32 %v4846, %v5529
      %v5531 = vpop.f32.mrf.mxu0
      %v5532 = vadd.f32 %v4842, %v5531
      %v5533 = vpop.f32.mrf.mxu0
      %v5534 = vadd.f32 %v4846, %v5533
      %5535 = vmatprep.mubr.bf16.mxu0 %v5226
      %5536 = vmatmul.mubr.bf16.gmra.mxu0 %v4741
      %v5537 = vpop.f32.mrf.mxu0
      %v5538 = vadd.f32 %v4842, %v5537
      %v5539 = vpop.f32.mrf.mxu0
      %v5540 = vadd.f32 %v4846, %v5539
      %v5541 = vpop.f32.mrf.mxu0
      %v5542 = vadd.f32 %v4842, %v5541
      %v5543 = vpop.f32.mrf.mxu0
      %v5544 = vadd.f32 %v4846, %v5543
      %5545 = vmatprep.mubr.bf16.mxu0 %v5229
      %5546 = vmatmul.mubr.bf16.gmra.mxu0 %v4743
      %v5547 = vpop.f32.mrf.mxu0
      %v5548 = vadd.f32 %v4842, %v5547
      %v5549 = vpop.f32.mrf.mxu0
      %v5550 = vadd.f32 %v4846, %v5549
      %v5551 = vpop.f32.mrf.mxu0
      %v5552 = vadd.f32 %v4842, %v5551
      %v5553 = vpop.f32.mrf.mxu0
      %v5554 = vadd.f32 %v4846, %v5553
      %5555 = vmatprep.mubr.bf16.mxu0 %v5232
      %5556 = vmatmul.mubr.bf16.gmra.mxu0 %v4745
      %v5557 = vpop.f32.mrf.mxu0
      %v5558 = vadd.f32 %v4842, %v5557
      %v5559 = vpop.f32.mrf.mxu0
      %v5560 = vadd.f32 %v4846, %v5559
      %v5561 = vpop.f32.mrf.mxu0
      %v5562 = vadd.f32 %v4842, %v5561
      %v5563 = vpop.f32.mrf.mxu0
      %v5564 = vadd.f32 %v4846, %v5563
      %5565 = vmatprep.mubr.bf16.mxu0 %v5235
      %5566 = vmatmul.mubr.bf16.gmra.mxu0 %v4747
      %v5567 = vpop.f32.mrf.mxu0
      %v5568 = vadd.f32 %v4842, %v5567
      %v5569 = vpop.f32.mrf.mxu0
      %v5570 = vadd.f32 %v4846, %v5569
      %v5571 = vpop.f32.mrf.mxu0
      %v5572 = vadd.f32 %v4842, %v5571
      %v5573 = vpop.f32.mrf.mxu0
      %v5574 = vadd.f32 %v4846, %v5573
      %5575 = vdwg.mxu0
      %v5576 = vmax.f32 %v5272, 0.0
      %v5577 = vmax.f32 %v5274, 0.0
      %v5578 = vmax.f32 %v5385, 0.0
      %v5579 = vmax.f32 %v5387, 0.0
      %v5580 = vmax.f32 %v5498, 0.0
      %v5581 = vmax.f32 %v5500, 0.0
      %v5582 = vmax.f32 %v5276, 0.0
      %v5583 = vmax.f32 %v5278, 0.0
      %v5584 = vmax.f32 %v5389, 0.0
      %v5585 = vmax.f32 %v5391, 0.0
      %v5586 = vmax.f32 %v5502, 0.0
      %v5587 = vmax.f32 %v5504, 0.0
      %v5588 = vmax.f32 %v5282, 0.0
      %v5589 = vmax.f32 %v5284, 0.0
      %v5590 = vmax.f32 %v5395, 0.0
      %v5591 = vmax.f32 %v5397, 0.0
      %v5592 = vmax.f32 %v5508, 0.0
      %v5593 = vmax.f32 %v5510, 0.0
      %v5594 = vmax.f32 %v5286, 0.0
      %v5595 = vmax.f32 %v5288, 0.0
      %v5596 = vmax.f32 %v5399, 0.0
      %v5597 = vmax.f32 %v5401, 0.0
      %v5598 = vmax.f32 %v5512, 0.0
      %v5599 = vmax.f32 %v5514, 0.0
      %v5600 = vmax.f32 %v5292, 0.0
      %v5601 = vmax.f32 %v5294, 0.0
      %v5602 = vmax.f32 %v5405, 0.0
      %v5603 = vmax.f32 %v5407, 0.0
      %v5604 = vmax.f32 %v5518, 0.0
      %v5605 = vmax.f32 %v5520, 0.0
      %v5606 = vmax.f32 %v5296, 0.0
      %v5607 = vmax.f32 %v5298, 0.0
      %v5608 = vmax.f32 %v5409, 0.0
      %v5609 = vmax.f32 %v5411, 0.0
      %v5610 = vmax.f32 %v5522, 0.0
      %v5611 = vmax.f32 %v5524, 0.0
      %v5612 = vmax.f32 %v5302, 0.0
      %v5613 = vmax.f32 %v5304, 0.0
      %v5614 = vmax.f32 %v5415, 0.0
      %v5615 = vmax.f32 %v5417, 0.0
      %v5616 = vmax.f32 %v5528, 0.0
      %v5617 = vmax.f32 %v5530, 0.0
      %v5618 = vmax.f32 %v5306, 0.0
      %v5619 = vmax.f32 %v5308, 0.0
      %v5620 = vmax.f32 %v5419, 0.0
      %v5621 = vmax.f32 %v5421, 0.0
      %v5622 = vmax.f32 %v5532, 0.0
      %v5623 = vmax.f32 %v5534, 0.0
      %v5624 = vmax.f32 %v5312, 0.0
      %v5625 = vmax.f32 %v5314, 0.0
      %v5626 = vmax.f32 %v5425, 0.0
      %v5627 = vmax.f32 %v5427, 0.0
      %v5628 = vmax.f32 %v5538, 0.0
      %v5629 = vmax.f32 %v5540, 0.0
      %v5630 = vmax.f32 %v5316, 0.0
      %v5631 = vmax.f32 %v5318, 0.0
      %v5632 = vmax.f32 %v5429, 0.0
      %v5633 = vmax.f32 %v5431, 0.0
      %v5634 = vmax.f32 %v5542, 0.0
      %v5635 = vmax.f32 %v5544, 0.0
      %v5636 = vmax.f32 %v5322, 0.0
      %v5637 = vmax.f32 %v5324, 0.0
      %v5638 = vmax.f32 %v5435, 0.0
      %v5639 = vmax.f32 %v5437, 0.0
      %v5640 = vmax.f32 %v5548, 0.0
      %v5641 = vmax.f32 %v5550, 0.0
      %v5642 = vmax.f32 %v5326, 0.0
      %v5643 = vmax.f32 %v5328, 0.0
      %v5644 = vmax.f32 %v5439, 0.0
      %v5645 = vmax.f32 %v5441, 0.0
      %v5646 = vmax.f32 %v5552, 0.0
      %v5647 = vmax.f32 %v5554, 0.0
      %v5648 = vmax.f32 %v5332, 0.0
      %v5649 = vmax.f32 %v5334, 0.0
      %v5650 = vmax.f32 %v5445, 0.0
      %v5651 = vmax.f32 %v5447, 0.0
      %v5652 = vmax.f32 %v5558, 0.0
      %v5653 = vmax.f32 %v5560, 0.0
      %v5654 = vmax.f32 %v5336, 0.0
      %v5655 = vmax.f32 %v5338, 0.0
      %v5656 = vmax.f32 %v5449, 0.0
      %v5657 = vmax.f32 %v5451, 0.0
      %v5658 = vmax.f32 %v5562, 0.0
      %v5659 = vmax.f32 %v5564, 0.0
      %v5660 = vmax.f32 %v5342, 0.0
      %v5661 = vmax.f32 %v5344, 0.0
      %v5662 = vmax.f32 %v5455, 0.0
      %v5663 = vmax.f32 %v5457, 0.0
      %v5664 = vmax.f32 %v5568, 0.0
      %v5665 = vmax.f32 %v5570, 0.0
      %v5666 = vmax.f32 %v5346, 0.0
      %v5667 = vmax.f32 %v5348, 0.0
      %v5668 = vmax.f32 %v5459, 0.0
      %v5669 = vmax.f32 %v5461, 0.0
      %v5670 = vmax.f32 %v5572, 0.0
      %v5671 = vmax.f32 %v5574, 0.0
      %v5672 = vpack.c.bf16 %v5582, %v5576
      %v5673 = vpack.c.bf16 %v5583, %v5577
      %v5674 = vpack.c.bf16 %v5584, %v5578
      %v5675 = vpack.c.bf16 %v5585, %v5579
      %v5676 = vpack.c.bf16 %v5586, %v5580
      %v5677 = vpack.c.bf16 %v5587, %v5581
      %v5678 = vpack.c.bf16 %v5594, %v5588
      %v5679 = vpack.c.bf16 %v5595, %v5589
      %v5680 = vpack.c.bf16 %v5596, %v5590
      %v5681 = vpack.c.bf16 %v5597, %v5591
      %v5682 = vpack.c.bf16 %v5598, %v5592
      %v5683 = vpack.c.bf16 %v5599, %v5593
      %v5684 = vpack.c.bf16 %v5606, %v5600
      %v5685 = vpack.c.bf16 %v5607, %v5601
      %v5686 = vpack.c.bf16 %v5608, %v5602
      %v5687 = vpack.c.bf16 %v5609, %v5603
      %v5688 = vpack.c.bf16 %v5610, %v5604
      %v5689 = vpack.c.bf16 %v5611, %v5605
      %v5690 = vpack.c.bf16 %v5618, %v5612
      %v5691 = vpack.c.bf16 %v5619, %v5613
      %v5692 = vpack.c.bf16 %v5620, %v5614
      %v5693 = vpack.c.bf16 %v5621, %v5615
      %v5694 = vpack.c.bf16 %v5622, %v5616
      %v5695 = vpack.c.bf16 %v5623, %v5617
      %v5696 = vpack.c.bf16 %v5630, %v5624
      %v5697 = vpack.c.bf16 %v5631, %v5625
      %v5698 = vpack.c.bf16 %v5632, %v5626
      %v5699 = vpack.c.bf16 %v5633, %v5627
      %v5700 = vpack.c.bf16 %v5634, %v5628
      %v5701 = vpack.c.bf16 %v5635, %v5629
      %v5702 = vpack.c.bf16 %v5642, %v5636
      %v5703 = vpack.c.bf16 %v5643, %v5637
      %v5704 = vpack.c.bf16 %v5644, %v5638
      %v5705 = vpack.c.bf16 %v5645, %v5639
      %v5706 = vpack.c.bf16 %v5646, %v5640
      %v5707 = vpack.c.bf16 %v5647, %v5641
      %v5708 = vpack.c.bf16 %v5654, %v5648
      %v5709 = vpack.c.bf16 %v5655, %v5649
      %v5710 = vpack.c.bf16 %v5656, %v5650
      %v5711 = vpack.c.bf16 %v5657, %v5651
      %v5712 = vpack.c.bf16 %v5658, %v5652
      %v5713 = vpack.c.bf16 %v5659, %v5653
      %v5714 = vpack.c.bf16 %v5666, %v5660
      %v5715 = vpack.c.bf16 %v5667, %v5661
      %v5716 = vpack.c.bf16 %v5668, %v5662
      %v5717 = vpack.c.bf16 %v5669, %v5663
      %v5718 = vpack.c.bf16 %v5670, %v5664
      %v5719 = vpack.c.bf16 %v5671, %v5665
      %v5720 = vld [vmem:[%s10] sm:$0xff]
      %v5721 = vld [vmem:[%s10 + $0x8] sm:$0xff]
      %v5722 = vld [vmem:[%s10 + $0x10] sm:$0xff]
      %v5723 = vld [vmem:[%s10 + $0x18] sm:$0xff]
      %v5724 = vld [vmem:[%s10 + $0x20] sm:$0xff]
      %v5725 = vld [vmem:[%s10 + $0x28] sm:$0xff]
      %v5726 = vld [vmem:[%s10 + $0x30] sm:$0xff]
      %v5727 = vld [vmem:[%s10 + $0x38] sm:$0xff]
      %v5728 = vld [vmem:[%s10 + $0x40] sm:$0xff]
      %v5729 = vld [vmem:[%s10 + $0x48] sm:$0xff]
      %v5730 = vld [vmem:[%s10 + $0x50] sm:$0xff]
      %v5731 = vld [vmem:[%s10 + $0x58] sm:$0xff]
      %v5732 = vld [vmem:[%s10 + $0x60] sm:$0xff]
      %v5733 = vld [vmem:[%s10 + $0x68] sm:$0xff]
      %v5734 = vld [vmem:[%s10 + $0x70] sm:$0xff]
      %v5735 = vld [vmem:[%s10 + $0x78] sm:$0xff]
      %v5736 = vld [vmem:[%s10 + $0x80] sm:$0xff]
      %v5737 = vld [vmem:[%s10 + $0x88] sm:$0xff]
      %v5738 = vld [vmem:[%s10 + $0x90] sm:$0xff]
      %v5739 = vld [vmem:[%s10 + $0x98] sm:$0xff]
      %v5740 = vld [vmem:[%s10 + $0xa0] sm:$0xff]
      %v5741 = vld [vmem:[%s10 + $0xa8] sm:$0xff]
      %v5742 = vld [vmem:[%s10 + $0xb0] sm:$0xff]
      %v5743 = vld [vmem:[%s10 + $0xb8] sm:$0xff]
      %v5744 = vld [vmem:[%s10 + $0xc0] sm:$0xff]
      %v5745 = vld [vmem:[%s10 + $0xc8] sm:$0xff]
      %v5746 = vld [vmem:[%s10 + $0xd0] sm:$0xff]
      %v5747 = vld [vmem:[%s10 + $0xd8] sm:$0xff]
      %v5748 = vld [vmem:[%s10 + $0xe0] sm:$0xff]
      %v5749 = vld [vmem:[%s10 + $0xe8] sm:$0xff]
      %v5750 = vld [vmem:[%s10 + $0xf0] sm:$0xff]
      %v5751 = vld [vmem:[%s10 + $0xf8] sm:$0xff]
      %v5752 = vld [vmem:[%s10 + $0x100] sm:$0xff]
      %v5753 = vld [vmem:[%s10 + $0x108] sm:$0xff]
      %v5754 = vld [vmem:[%s10 + $0x110] sm:$0xff]
      %v5755 = vld [vmem:[%s10 + $0x118] sm:$0xff]
      %v5756 = vld [vmem:[%s10 + $0x120] sm:$0xff]
      %v5757 = vld [vmem:[%s10 + $0x128] sm:$0xff]
      %v5758 = vld [vmem:[%s10 + $0x130] sm:$0xff]
      %v5759 = vld [vmem:[%s10 + $0x138] sm:$0xff]
      %v5760 = vld [vmem:[%s10 + $0x140] sm:$0xff]
      %v5761 = vld [vmem:[%s10 + $0x148] sm:$0xff]
      %v5762 = vld [vmem:[%s10 + $0x150] sm:$0xff]
      %v5763 = vld [vmem:[%s10 + $0x158] sm:$0xff]
      %v5764 = vld [vmem:[%s10 + $0x160] sm:$0xff]
      %v5765 = vld [vmem:[%s10 + $0x168] sm:$0xff]
      %v5766 = vld [vmem:[%s10 + $0x170] sm:$0xff]
      %v5767 = vld [vmem:[%s10 + $0x178] sm:$0xff]
      %v5768 = vld [vmem:[%s10 + $0x180] sm:$0xff]
      %v5769 = vld [vmem:[%s10 + $0x188] sm:$0xff]
      %v5770 = vld [vmem:[%s10 + $0x190] sm:$0xff]
      %v5771 = vld [vmem:[%s10 + $0x198] sm:$0xff]
      %v5772 = vld [vmem:[%s10 + $0x1a0] sm:$0xff]
      %v5773 = vld [vmem:[%s10 + $0x1a8] sm:$0xff]
      %v5774 = vld [vmem:[%s10 + $0x1b0] sm:$0xff]
      %v5775 = vld [vmem:[%s10 + $0x1b8] sm:$0xff]
      %v5776 = vld [vmem:[%s10 + $0x1c0] sm:$0xff]
      %v5777 = vld [vmem:[%s10 + $0x1c8] sm:$0xff]
      %v5778 = vld [vmem:[%s10 + $0x1d0] sm:$0xff]
      %v5779 = vld [vmem:[%s10 + $0x1d8] sm:$0xff]
      %v5780 = vld [vmem:[%s10 + $0x1e0] sm:$0xff]
      %v5781 = vld [vmem:[%s10 + $0x1e8] sm:$0xff]
      %v5782 = vld [vmem:[%s10 + $0x1f0] sm:$0xff]
      %v5783 = vld [vmem:[%s10 + $0x1f8] sm:$0xff]
      %v5784 = vld [vmem:[%s10 + $0x200] sm:$0xff]
      %v5785 = vld [vmem:[%s10 + $0x208] sm:$0xff]
      %v5786 = vld [vmem:[%s10 + $0x210] sm:$0xff]
      %v5787 = vld [vmem:[%s10 + $0x218] sm:$0xff]
      %v5788 = vld [vmem:[%s10 + $0x220] sm:$0xff]
      %v5789 = vld [vmem:[%s10 + $0x228] sm:$0xff]
      %v5790 = vld [vmem:[%s10 + $0x230] sm:$0xff]
      %v5791 = vld [vmem:[%s10 + $0x238] sm:$0xff]
      %v5792 = vld [vmem:[%s10 + $0x240] sm:$0xff]
      %v5793 = vld [vmem:[%s10 + $0x248] sm:$0xff]
      %v5794 = vld [vmem:[%s10 + $0x250] sm:$0xff]
      %v5795 = vld [vmem:[%s10 + $0x258] sm:$0xff]
      %v5796 = vld [vmem:[%s10 + $0x260] sm:$0xff]
      %v5797 = vld [vmem:[%s10 + $0x268] sm:$0xff]
      %v5798 = vld [vmem:[%s10 + $0x270] sm:$0xff]
      %v5799 = vld [vmem:[%s10 + $0x278] sm:$0xff]
      %v5800 = vld [vmem:[%s10 + $0x280] sm:$0xff]
      %v5801 = vld [vmem:[%s10 + $0x288] sm:$0xff]
      %v5802 = vld [vmem:[%s10 + $0x290] sm:$0xff]
      %v5803 = vld [vmem:[%s10 + $0x298] sm:$0xff]
      %v5804 = vld [vmem:[%s10 + $0x2a0] sm:$0xff]
      %v5805 = vld [vmem:[%s10 + $0x2a8] sm:$0xff]
      %v5806 = vld [vmem:[%s10 + $0x2b0] sm:$0xff]
      %v5807 = vld [vmem:[%s10 + $0x2b8] sm:$0xff]
      %v5808 = vld [vmem:[%s10 + $0x2c0] sm:$0xff]
      %v5809 = vld [vmem:[%s10 + $0x2c8] sm:$0xff]
      %v5810 = vld [vmem:[%s10 + $0x2d0] sm:$0xff]
      %v5811 = vld [vmem:[%s10 + $0x2d8] sm:$0xff]
      %v5812 = vld [vmem:[%s10 + $0x2e0] sm:$0xff]
      %v5813 = vld [vmem:[%s10 + $0x2e8] sm:$0xff]
      %v5814 = vld [vmem:[%s10 + $0x2f0] sm:$0xff]
      %v5815 = vld [vmem:[%s10 + $0x2f8] sm:$0xff]
      %v5816 = vld [vmem:[%s11] sm:$0x3]
      %v5818 = vlaneseq
      %v5819 = vshrl.u32 %v5818, 7
      %v5820 = vsub.s32 0, %v5819
      %v5821 = vrot.slane %v5816, %v5820
      %v5822 = vlaneseq
      %v5823 = vshrl.u32 %v5822, 7
      %v5824 = vsub.s32 1, %v5823
      %v5825 = vrot.slane %v5816, %v5824
      %v5924 = vunpack.c.l.b16 %v5720
      %v5925 = vunpack.c.h.b16 %v5720
      %v5926 = vunpack.c.l.b16 %v5721
      %v5927 = vunpack.c.h.b16 %v5721
      %v5928 = vunpack.c.l.b16 %v5722
      %v5929 = vunpack.c.h.b16 %v5722
      %v5930 = vunpack.c.l.b16 %v5723
      %v5931 = vunpack.c.h.b16 %v5723
      %v5932 = vunpack.c.l.b16 %v5724
      %v5933 = vunpack.c.h.b16 %v5724
      %v5934 = vunpack.c.l.b16 %v5725
      %v5935 = vunpack.c.h.b16 %v5725
      %v5936 = vunpack.c.l.b16 %v5726
      %v5937 = vunpack.c.h.b16 %v5726
      %v5938 = vunpack.c.l.b16 %v5727
      %v5939 = vunpack.c.h.b16 %v5727
      %v5940 = vunpack.c.l.b16 %v5728
      %v5941 = vunpack.c.h.b16 %v5728
      %v5942 = vunpack.c.l.b16 %v5729
      %v5943 = vunpack.c.h.b16 %v5729
      %v5944 = vunpack.c.l.b16 %v5730
      %v5945 = vunpack.c.h.b16 %v5730
      %v5946 = vunpack.c.l.b16 %v5731
      %v5947 = vunpack.c.h.b16 %v5731
      %v5948 = vunpack.c.l.b16 %v5732
      %v5949 = vunpack.c.h.b16 %v5732
      %v5950 = vunpack.c.l.b16 %v5733
      %v5951 = vunpack.c.h.b16 %v5733
      %v5952 = vunpack.c.l.b16 %v5734
      %v5953 = vunpack.c.h.b16 %v5734
      %v5954 = vunpack.c.l.b16 %v5735
      %v5955 = vunpack.c.h.b16 %v5735
      %v5956 = vunpack.c.l.b16 %v5736
      %v5957 = vunpack.c.h.b16 %v5736
      %v5958 = vunpack.c.l.b16 %v5737
      %v5959 = vunpack.c.h.b16 %v5737
      %v5960 = vunpack.c.l.b16 %v5738
      %v5961 = vunpack.c.h.b16 %v5738
      %v5962 = vunpack.c.l.b16 %v5739
      %v5963 = vunpack.c.h.b16 %v5739
      %v5964 = vunpack.c.l.b16 %v5740
      %v5965 = vunpack.c.h.b16 %v5740
      %v5966 = vunpack.c.l.b16 %v5741
      %v5967 = vunpack.c.h.b16 %v5741
      %v5968 = vunpack.c.l.b16 %v5742
      %v5969 = vunpack.c.h.b16 %v5742
      %v5970 = vunpack.c.l.b16 %v5743
      %v5971 = vunpack.c.h.b16 %v5743
      %v5972 = vunpack.c.l.b16 %v5744
      %v5973 = vunpack.c.h.b16 %v5744
      %v5974 = vunpack.c.l.b16 %v5745
      %v5975 = vunpack.c.h.b16 %v5745
      %v5976 = vunpack.c.l.b16 %v5746
      %v5977 = vunpack.c.h.b16 %v5746
      %v5978 = vunpack.c.l.b16 %v5747
      %v5979 = vunpack.c.h.b16 %v5747
      %v5980 = vunpack.c.l.b16 %v5748
      %v5981 = vunpack.c.h.b16 %v5748
      %v5982 = vunpack.c.l.b16 %v5749
      %v5983 = vunpack.c.h.b16 %v5749
      %v5984 = vunpack.c.l.b16 %v5750
      %v5985 = vunpack.c.h.b16 %v5750
      %v5986 = vunpack.c.l.b16 %v5751
      %v5987 = vunpack.c.h.b16 %v5751
      %v5988 = vunpack.c.l.b16 %v5752
      %v5989 = vunpack.c.h.b16 %v5752
      %v5990 = vunpack.c.l.b16 %v5753
      %v5991 = vunpack.c.h.b16 %v5753
      %v5992 = vunpack.c.l.b16 %v5754
      %v5993 = vunpack.c.h.b16 %v5754
      %v5994 = vunpack.c.l.b16 %v5755
      %v5995 = vunpack.c.h.b16 %v5755
      %v5996 = vunpack.c.l.b16 %v5756
      %v5997 = vunpack.c.h.b16 %v5756
      %v5998 = vunpack.c.l.b16 %v5757
      %v5999 = vunpack.c.h.b16 %v5757
      %v6000 = vunpack.c.l.b16 %v5758
      %v6001 = vunpack.c.h.b16 %v5758
      %v6002 = vunpack.c.l.b16 %v5759
      %v6003 = vunpack.c.h.b16 %v5759
      %v6004 = vunpack.c.l.b16 %v5760
      %v6005 = vunpack.c.h.b16 %v5760
      %v6006 = vunpack.c.l.b16 %v5761
      %v6007 = vunpack.c.h.b16 %v5761
      %v6008 = vunpack.c.l.b16 %v5762
      %v6009 = vunpack.c.h.b16 %v5762
      %v6010 = vunpack.c.l.b16 %v5763
      %v6011 = vunpack.c.h.b16 %v5763
      %v6012 = vunpack.c.l.b16 %v5764
      %v6013 = vunpack.c.h.b16 %v5764
      %v6014 = vunpack.c.l.b16 %v5765
      %v6015 = vunpack.c.h.b16 %v5765
      %v6016 = vunpack.c.l.b16 %v5766
      %v6017 = vunpack.c.h.b16 %v5766
      %v6018 = vunpack.c.l.b16 %v5767
      %v6019 = vunpack.c.h.b16 %v5767
      %v6020 = vunpack.c.l.b16 %v5768
      %v6021 = vunpack.c.h.b16 %v5768
      %v6022 = vunpack.c.l.b16 %v5769
      %v6023 = vunpack.c.h.b16 %v5769
      %v6024 = vunpack.c.l.b16 %v5770
      %v6025 = vunpack.c.h.b16 %v5770
      %v6026 = vunpack.c.l.b16 %v5771
      %v6027 = vunpack.c.h.b16 %v5771
      %v6028 = vunpack.c.l.b16 %v5772
      %v6029 = vunpack.c.h.b16 %v5772
      %v6030 = vunpack.c.l.b16 %v5773
      %v6031 = vunpack.c.h.b16 %v5773
      %v6032 = vunpack.c.l.b16 %v5774
      %v6033 = vunpack.c.h.b16 %v5774
      %v6034 = vunpack.c.l.b16 %v5775
      %v6035 = vunpack.c.h.b16 %v5775
      %v6036 = vunpack.c.l.b16 %v5776
      %v6037 = vunpack.c.h.b16 %v5776
      %v6038 = vunpack.c.l.b16 %v5777
      %v6039 = vunpack.c.h.b16 %v5777
      %v6040 = vunpack.c.l.b16 %v5778
      %v6041 = vunpack.c.h.b16 %v5778
      %v6042 = vunpack.c.l.b16 %v5779
      %v6043 = vunpack.c.h.b16 %v5779
      %v6044 = vunpack.c.l.b16 %v5780
      %v6045 = vunpack.c.h.b16 %v5780
      %v6046 = vunpack.c.l.b16 %v5781
      %v6047 = vunpack.c.h.b16 %v5781
      %v6048 = vunpack.c.l.b16 %v5782
      %v6049 = vunpack.c.h.b16 %v5782
      %v6050 = vunpack.c.l.b16 %v5783
      %v6051 = vunpack.c.h.b16 %v5783
      %v6052 = vunpack.c.l.b16 %v5784
      %v6053 = vunpack.c.h.b16 %v5784
      %v6054 = vunpack.c.l.b16 %v5785
      %v6055 = vunpack.c.h.b16 %v5785
      %v6056 = vunpack.c.l.b16 %v5786
      %v6057 = vunpack.c.h.b16 %v5786
      %v6058 = vunpack.c.l.b16 %v5787
      %v6059 = vunpack.c.h.b16 %v5787
      %v6060 = vunpack.c.l.b16 %v5788
      %v6061 = vunpack.c.h.b16 %v5788
      %v6062 = vunpack.c.l.b16 %v5789
      %v6063 = vunpack.c.h.b16 %v5789
      %v6064 = vunpack.c.l.b16 %v5790
      %v6065 = vunpack.c.h.b16 %v5790
      %v6066 = vunpack.c.l.b16 %v5791
      %v6067 = vunpack.c.h.b16 %v5791
      %v6068 = vunpack.c.l.b16 %v5792
      %v6069 = vunpack.c.h.b16 %v5792
      %v6070 = vunpack.c.l.b16 %v5793
      %v6071 = vunpack.c.h.b16 %v5793
      %v6072 = vunpack.c.l.b16 %v5794
      %v6073 = vunpack.c.h.b16 %v5794
      %v6074 = vunpack.c.l.b16 %v5795
      %v6075 = vunpack.c.h.b16 %v5795
      %v6076 = vunpack.c.l.b16 %v5796
      %v6077 = vunpack.c.h.b16 %v5796
      %v6078 = vunpack.c.l.b16 %v5797
      %v6079 = vunpack.c.h.b16 %v5797
      %v6080 = vunpack.c.l.b16 %v5798
      %v6081 = vunpack.c.h.b16 %v5798
      %v6082 = vunpack.c.l.b16 %v5799
      %v6083 = vunpack.c.h.b16 %v5799
      %v6084 = vunpack.c.l.b16 %v5800
      %v6085 = vunpack.c.h.b16 %v5800
      %v6086 = vunpack.c.l.b16 %v5801
      %v6087 = vunpack.c.h.b16 %v5801
      %v6088 = vunpack.c.l.b16 %v5802
      %v6089 = vunpack.c.h.b16 %v5802
      %v6090 = vunpack.c.l.b16 %v5803
      %v6091 = vunpack.c.h.b16 %v5803
      %v6092 = vunpack.c.l.b16 %v5804
      %v6093 = vunpack.c.h.b16 %v5804
      %v6094 = vunpack.c.l.b16 %v5805
      %v6095 = vunpack.c.h.b16 %v5805
      %v6096 = vunpack.c.l.b16 %v5806
      %v6097 = vunpack.c.h.b16 %v5806
      %v6098 = vunpack.c.l.b16 %v5807
      %v6099 = vunpack.c.h.b16 %v5807
      %v6100 = vunpack.c.l.b16 %v5808
      %v6101 = vunpack.c.h.b16 %v5808
      %v6102 = vunpack.c.l.b16 %v5809
      %v6103 = vunpack.c.h.b16 %v5809
      %v6104 = vunpack.c.l.b16 %v5810
      %v6105 = vunpack.c.h.b16 %v5810
      %v6106 = vunpack.c.l.b16 %v5811
      %v6107 = vunpack.c.h.b16 %v5811
      %v6108 = vunpack.c.l.b16 %v5812
      %v6109 = vunpack.c.h.b16 %v5812
      %v6110 = vunpack.c.l.b16 %v5813
      %v6111 = vunpack.c.h.b16 %v5813
      %v6112 = vunpack.c.l.b16 %v5814
      %v6113 = vunpack.c.h.b16 %v5814
      %v6114 = vunpack.c.l.b16 %v5815
      %v6115 = vunpack.c.h.b16 %v5815
      %v6116 = vpack.c.b16 %v5926, %v5924
      %v6117 = vpack.c.b16 %v5927, %v5925
      %v6118 = vpack.c.b16 %v5930, %v5928
      %v6119 = vpack.c.b16 %v5931, %v5929
      %v6120 = vpack.c.b16 %v5934, %v5932
      %v6121 = vpack.c.b16 %v5935, %v5933
      %v6122 = vpack.c.b16 %v5938, %v5936
      %v6123 = vpack.c.b16 %v5939, %v5937
      %v6124 = vpack.c.b16 %v5942, %v5940
      %v6125 = vpack.c.b16 %v5943, %v5941
      %v6126 = vpack.c.b16 %v5946, %v5944
      %v6127 = vpack.c.b16 %v5947, %v5945
      %v6128 = vpack.c.b16 %v5950, %v5948
      %v6129 = vpack.c.b16 %v5951, %v5949
      %v6130 = vpack.c.b16 %v5954, %v5952
      %v6131 = vpack.c.b16 %v5955, %v5953
      %v6132 = vpack.c.b16 %v5958, %v5956
      %v6133 = vpack.c.b16 %v5959, %v5957
      %v6134 = vpack.c.b16 %v5962, %v5960
      %v6135 = vpack.c.b16 %v5963, %v5961
      %v6136 = vpack.c.b16 %v5966, %v5964
      %v6137 = vpack.c.b16 %v5967, %v5965
      %v6138 = vpack.c.b16 %v5970, %v5968
      %v6139 = vpack.c.b16 %v5971, %v5969
      %v6140 = vpack.c.b16 %v5974, %v5972
      %v6141 = vpack.c.b16 %v5975, %v5973
      %v6142 = vpack.c.b16 %v5978, %v5976
      %v6143 = vpack.c.b16 %v5979, %v5977
      %v6144 = vpack.c.b16 %v5982, %v5980
      %v6145 = vpack.c.b16 %v5983, %v5981
      %v6146 = vpack.c.b16 %v5986, %v5984
      %v6147 = vpack.c.b16 %v5987, %v5985
      %v6148 = vpack.c.b16 %v5990, %v5988
      %v6149 = vpack.c.b16 %v5991, %v5989
      %v6150 = vpack.c.b16 %v5994, %v5992
      %v6151 = vpack.c.b16 %v5995, %v5993
      %v6152 = vpack.c.b16 %v5998, %v5996
      %v6153 = vpack.c.b16 %v5999, %v5997
      %v6154 = vpack.c.b16 %v6002, %v6000
      %v6155 = vpack.c.b16 %v6003, %v6001
      %v6156 = vpack.c.b16 %v6006, %v6004
      %v6157 = vpack.c.b16 %v6007, %v6005
      %v6158 = vpack.c.b16 %v6010, %v6008
      %v6159 = vpack.c.b16 %v6011, %v6009
      %v6160 = vpack.c.b16 %v6014, %v6012
      %v6161 = vpack.c.b16 %v6015, %v6013
      %v6162 = vpack.c.b16 %v6018, %v6016
      %v6163 = vpack.c.b16 %v6019, %v6017
      %v6164 = vpack.c.b16 %v6022, %v6020
      %v6165 = vpack.c.b16 %v6023, %v6021
      %v6166 = vpack.c.b16 %v6026, %v6024
      %v6167 = vpack.c.b16 %v6027, %v6025
      %v6168 = vpack.c.b16 %v6030, %v6028
      %v6169 = vpack.c.b16 %v6031, %v6029
      %v6170 = vpack.c.b16 %v6034, %v6032
      %v6171 = vpack.c.b16 %v6035, %v6033
      %v6172 = vpack.c.b16 %v6038, %v6036
      %v6173 = vpack.c.b16 %v6039, %v6037
      %v6174 = vpack.c.b16 %v6042, %v6040
      %v6175 = vpack.c.b16 %v6043, %v6041
      %v6176 = vpack.c.b16 %v6046, %v6044
      %v6177 = vpack.c.b16 %v6047, %v6045
      %v6178 = vpack.c.b16 %v6050, %v6048
      %v6179 = vpack.c.b16 %v6051, %v6049
      %v6180 = vpack.c.b16 %v6054, %v6052
      %v6181 = vpack.c.b16 %v6055, %v6053
      %v6182 = vpack.c.b16 %v6058, %v6056
      %v6183 = vpack.c.b16 %v6059, %v6057
      %v6184 = vpack.c.b16 %v6062, %v6060
      %v6185 = vpack.c.b16 %v6063, %v6061
      %v6186 = vpack.c.b16 %v6066, %v6064
      %v6187 = vpack.c.b16 %v6067, %v6065
      %v6188 = vpack.c.b16 %v6070, %v6068
      %v6189 = vpack.c.b16 %v6071, %v6069
      %v6190 = vpack.c.b16 %v6074, %v6072
      %v6191 = vpack.c.b16 %v6075, %v6073
      %v6192 = vpack.c.b16 %v6078, %v6076
      %v6193 = vpack.c.b16 %v6079, %v6077
      %v6194 = vpack.c.b16 %v6082, %v6080
      %v6195 = vpack.c.b16 %v6083, %v6081
      %v6196 = vpack.c.b16 %v6086, %v6084
      %v6197 = vpack.c.b16 %v6087, %v6085
      %v6198 = vpack.c.b16 %v6090, %v6088
      %v6199 = vpack.c.b16 %v6091, %v6089
      %v6200 = vpack.c.b16 %v6094, %v6092
      %v6201 = vpack.c.b16 %v6095, %v6093
      %v6202 = vpack.c.b16 %v6098, %v6096
      %v6203 = vpack.c.b16 %v6099, %v6097
      %v6204 = vpack.c.b16 %v6102, %v6100
      %v6205 = vpack.c.b16 %v6103, %v6101
      %v6206 = vpack.c.b16 %v6106, %v6104
      %v6207 = vpack.c.b16 %v6107, %v6105
      %v6208 = vpack.c.b16 %v6110, %v6108
      %v6209 = vpack.c.b16 %v6111, %v6109
      %v6210 = vpack.c.b16 %v6114, %v6112
      %v6211 = vpack.c.b16 %v6115, %v6113
      %6308 = vmatprep.subr.bf16.mxu0 %v6131
      %6309 = vmatpush1.bf16.msra.mxu0 %v6130
      %6310 = vmatprep.subr.bf16.mxu0 %v6129
      %6311 = vmatpush1.bf16.msra.mxu0 %v6128
      %6312 = vmatprep.subr.bf16.mxu0 %v6127
      %6313 = vmatpush1.bf16.msra.mxu0 %v6126
      %6314 = vmatprep.subr.bf16.mxu0 %v6125
      %6315 = vmatpush1.bf16.msra.mxu0 %v6124
      %6316 = vmatprep.subr.bf16.mxu0 %v6123
      %6317 = vmatpush1.bf16.msra.mxu0 %v6122
      %6318 = vmatprep.subr.bf16.mxu0 %v6121
      %6319 = vmatpush1.bf16.msra.mxu0 %v6120
      %6320 = vmatprep.subr.bf16.mxu0 %v6119
      %6321 = vmatpush1.bf16.msra.mxu0 %v6118
      %6322 = vmatprep.subr.bf16.mxu0 %v6117
      %6323 = vmatpush1.bf16.msra.mxu0 %v6116
      %6324 = vmatprep.subr.bf16.mxu0 %v6147
      %6325 = vmatpush2.bf16.msra.mxu0 %v6146
      %6326 = vmatprep.subr.bf16.mxu0 %v6145
      %6327 = vmatpush2.bf16.msra.mxu0 %v6144
      %6328 = vmatprep.subr.bf16.mxu0 %v6143
      %6329 = vmatpush2.bf16.msra.mxu0 %v6142
      %6330 = vmatprep.subr.bf16.mxu0 %v6141
      %6331 = vmatpush2.bf16.msra.mxu0 %v6140
      %6332 = vmatprep.subr.bf16.mxu0 %v6139
      %6333 = vmatpush2.bf16.msra.mxu0 %v6138
      %6334 = vmatprep.subr.bf16.mxu0 %v6137
      %6335 = vmatpush2.bf16.msra.mxu0 %v6136
      %6336 = vmatprep.subr.bf16.mxu0 %v6135
      %6337 = vmatpush2.bf16.msra.mxu0 %v6134
      %6338 = vmatprep.subr.bf16.mxu0 %v6133
      %6339 = vmatpush2.bf16.msra.mxu0 %v6132
      %6340 = vmatprep.mubr.bf16.mxu0 %v5673
      %6341 = vmatmul.mubr.bf16.gmra.mxu0 %v5672
      %v6342 = vpop.f32.mrf.mxu0
      %v6343 = vadd.f32 %v5821, %v6342
      %v6344 = vpop.f32.mrf.mxu0
      %v6345 = vadd.f32 %v5825, %v6344
      %v6346 = vpop.f32.mrf.mxu0
      %v6347 = vadd.f32 %v5821, %v6346
      %v6348 = vpop.f32.mrf.mxu0
      %v6349 = vadd.f32 %v5825, %v6348
      %6350 = vmatprep.mubr.bf16.mxu0 %v5679
      %6351 = vmatmul.mubr.bf16.gmra.mxu0 %v5678
      %v6352 = vpop.f32.mrf.mxu0
      %v6353 = vadd.f32 %v5821, %v6352
      %v6354 = vpop.f32.mrf.mxu0
      %v6355 = vadd.f32 %v5825, %v6354
      %v6356 = vpop.f32.mrf.mxu0
      %v6357 = vadd.f32 %v5821, %v6356
      %v6358 = vpop.f32.mrf.mxu0
      %v6359 = vadd.f32 %v5825, %v6358
      %6360 = vmatprep.mubr.bf16.mxu0 %v5685
      %6361 = vmatmul.mubr.bf16.gmra.mxu0 %v5684
      %v6362 = vpop.f32.mrf.mxu0
      %v6363 = vadd.f32 %v5821, %v6362
      %v6364 = vpop.f32.mrf.mxu0
      %v6365 = vadd.f32 %v5825, %v6364
      %v6366 = vpop.f32.mrf.mxu0
      %v6367 = vadd.f32 %v5821, %v6366
      %v6368 = vpop.f32.mrf.mxu0
      %v6369 = vadd.f32 %v5825, %v6368
      %6370 = vmatprep.mubr.bf16.mxu0 %v5691
      %6371 = vmatmul.mubr.bf16.gmra.mxu0 %v5690
      %v6372 = vpop.f32.mrf.mxu0
      %v6373 = vadd.f32 %v5821, %v6372
      %v6374 = vpop.f32.mrf.mxu0
      %v6375 = vadd.f32 %v5825, %v6374
      %v6376 = vpop.f32.mrf.mxu0
      %v6377 = vadd.f32 %v5821, %v6376
      %v6378 = vpop.f32.mrf.mxu0
      %v6379 = vadd.f32 %v5825, %v6378
      %6380 = vmatprep.mubr.bf16.mxu0 %v5697
      %6381 = vmatmul.mubr.bf16.gmra.mxu0 %v5696
      %v6382 = vpop.f32.mrf.mxu0
      %v6383 = vadd.f32 %v5821, %v6382
      %v6384 = vpop.f32.mrf.mxu0
      %v6385 = vadd.f32 %v5825, %v6384
      %v6386 = vpop.f32.mrf.mxu0
      %v6387 = vadd.f32 %v5821, %v6386
      %v6388 = vpop.f32.mrf.mxu0
      %v6389 = vadd.f32 %v5825, %v6388
      %6390 = vmatprep.mubr.bf16.mxu0 %v5703
      %6391 = vmatmul.mubr.bf16.gmra.mxu0 %v5702
      %v6392 = vpop.f32.mrf.mxu0
      %v6393 = vadd.f32 %v5821, %v6392
      %v6394 = vpop.f32.mrf.mxu0
      %v6395 = vadd.f32 %v5825, %v6394
      %v6396 = vpop.f32.mrf.mxu0
      %v6397 = vadd.f32 %v5821, %v6396
      %v6398 = vpop.f32.mrf.mxu0
      %v6399 = vadd.f32 %v5825, %v6398
      %6400 = vmatprep.mubr.bf16.mxu0 %v5709
      %6401 = vmatmul.mubr.bf16.gmra.mxu0 %v5708
      %v6402 = vpop.f32.mrf.mxu0
      %v6403 = vadd.f32 %v5821, %v6402
      %v6404 = vpop.f32.mrf.mxu0
      %v6405 = vadd.f32 %v5825, %v6404
      %v6406 = vpop.f32.mrf.mxu0
      %v6407 = vadd.f32 %v5821, %v6406
      %v6408 = vpop.f32.mrf.mxu0
      %v6409 = vadd.f32 %v5825, %v6408
      %6410 = vmatprep.mubr.bf16.mxu0 %v5715
      %6411 = vmatmul.mubr.bf16.gmra.mxu0 %v5714
      %v6412 = vpop.f32.mrf.mxu0
      %v6413 = vadd.f32 %v5821, %v6412
      %v6414 = vpop.f32.mrf.mxu0
      %v6415 = vadd.f32 %v5825, %v6414
      %v6416 = vpop.f32.mrf.mxu0
      %v6417 = vadd.f32 %v5821, %v6416
      %v6418 = vpop.f32.mrf.mxu0
      %v6419 = vadd.f32 %v5825, %v6418
      %6420 = vdwg.mxu0
      %6421 = vmatprep.subr.bf16.mxu0 %v6163
      %6422 = vmatpush1.bf16.msra.mxu0 %v6162
      %6423 = vmatprep.subr.bf16.mxu0 %v6161
      %6424 = vmatpush1.bf16.msra.mxu0 %v6160
      %6425 = vmatprep.subr.bf16.mxu0 %v6159
      %6426 = vmatpush1.bf16.msra.mxu0 %v6158
      %6427 = vmatprep.subr.bf16.mxu0 %v6157
      %6428 = vmatpush1.bf16.msra.mxu0 %v6156
      %6429 = vmatprep.subr.bf16.mxu0 %v6155
      %6430 = vmatpush1.bf16.msra.mxu0 %v6154
      %6431 = vmatprep.subr.bf16.mxu0 %v6153
      %6432 = vmatpush1.bf16.msra.mxu0 %v6152
      %6433 = vmatprep.subr.bf16.mxu0 %v6151
      %6434 = vmatpush1.bf16.msra.mxu0 %v6150
      %6435 = vmatprep.subr.bf16.mxu0 %v6149
      %6436 = vmatpush1.bf16.msra.mxu0 %v6148
      %6437 = vmatprep.subr.bf16.mxu0 %v6179
      %6438 = vmatpush2.bf16.msra.mxu0 %v6178
      %6439 = vmatprep.subr.bf16.mxu0 %v6177
      %6440 = vmatpush2.bf16.msra.mxu0 %v6176
      %6441 = vmatprep.subr.bf16.mxu0 %v6175
      %6442 = vmatpush2.bf16.msra.mxu0 %v6174
      %6443 = vmatprep.subr.bf16.mxu0 %v6173
      %6444 = vmatpush2.bf16.msra.mxu0 %v6172
      %6445 = vmatprep.subr.bf16.mxu0 %v6171
      %6446 = vmatpush2.bf16.msra.mxu0 %v6170
      %6447 = vmatprep.subr.bf16.mxu0 %v6169
      %6448 = vmatpush2.bf16.msra.mxu0 %v6168
      %6449 = vmatprep.subr.bf16.mxu0 %v6167
      %6450 = vmatpush2.bf16.msra.mxu0 %v6166
      %6451 = vmatprep.subr.bf16.mxu0 %v6165
      %6452 = vmatpush2.bf16.msra.mxu0 %v6164
      %6453 = vmatprep.mubr.bf16.mxu0 %v5675
      %6454 = vmatmul.mubr.bf16.gmra.mxu0 %v5674
      %v6455 = vpop.f32.mrf.mxu0
      %v6456 = vadd.f32 %v6343, %v6455
      %v6457 = vpop.f32.mrf.mxu0
      %v6458 = vadd.f32 %v6345, %v6457
      %v6459 = vpop.f32.mrf.mxu0
      %v6460 = vadd.f32 %v6347, %v6459
      %v6461 = vpop.f32.mrf.mxu0
      %v6462 = vadd.f32 %v6349, %v6461
      %6463 = vmatprep.mubr.bf16.mxu0 %v5681
      %6464 = vmatmul.mubr.bf16.gmra.mxu0 %v5680
      %v6465 = vpop.f32.mrf.mxu0
      %v6466 = vadd.f32 %v6353, %v6465
      %v6467 = vpop.f32.mrf.mxu0
      %v6468 = vadd.f32 %v6355, %v6467
      %v6469 = vpop.f32.mrf.mxu0
      %v6470 = vadd.f32 %v6357, %v6469
      %v6471 = vpop.f32.mrf.mxu0
      %v6472 = vadd.f32 %v6359, %v6471
      %6473 = vmatprep.mubr.bf16.mxu0 %v5687
      %6474 = vmatmul.mubr.bf16.gmra.mxu0 %v5686
      %v6475 = vpop.f32.mrf.mxu0
      %v6476 = vadd.f32 %v6363, %v6475
      %v6477 = vpop.f32.mrf.mxu0
      %v6478 = vadd.f32 %v6365, %v6477
      %v6479 = vpop.f32.mrf.mxu0
      %v6480 = vadd.f32 %v6367, %v6479
      %v6481 = vpop.f32.mrf.mxu0
      %v6482 = vadd.f32 %v6369, %v6481
      %6483 = vmatprep.mubr.bf16.mxu0 %v5693
      %6484 = vmatmul.mubr.bf16.gmra.mxu0 %v5692
      %v6485 = vpop.f32.mrf.mxu0
      %v6486 = vadd.f32 %v6373, %v6485
      %v6487 = vpop.f32.mrf.mxu0
      %v6488 = vadd.f32 %v6375, %v6487
      %v6489 = vpop.f32.mrf.mxu0
      %v6490 = vadd.f32 %v6377, %v6489
      %v6491 = vpop.f32.mrf.mxu0
      %v6492 = vadd.f32 %v6379, %v6491
      %6493 = vmatprep.mubr.bf16.mxu0 %v5699
      %6494 = vmatmul.mubr.bf16.gmra.mxu0 %v5698
      %v6495 = vpop.f32.mrf.mxu0
      %v6496 = vadd.f32 %v6383, %v6495
      %v6497 = vpop.f32.mrf.mxu0
      %v6498 = vadd.f32 %v6385, %v6497
      %v6499 = vpop.f32.mrf.mxu0
      %v6500 = vadd.f32 %v6387, %v6499
      %v6501 = vpop.f32.mrf.mxu0
      %v6502 = vadd.f32 %v6389, %v6501
      %6503 = vmatprep.mubr.bf16.mxu0 %v5705
      %6504 = vmatmul.mubr.bf16.gmra.mxu0 %v5704
      %v6505 = vpop.f32.mrf.mxu0
      %v6506 = vadd.f32 %v6393, %v6505
      %v6507 = vpop.f32.mrf.mxu0
      %v6508 = vadd.f32 %v6395, %v6507
      %v6509 = vpop.f32.mrf.mxu0
      %v6510 = vadd.f32 %v6397, %v6509
      %v6511 = vpop.f32.mrf.mxu0
      %v6512 = vadd.f32 %v6399, %v6511
      %6513 = vmatprep.mubr.bf16.mxu0 %v5711
      %6514 = vmatmul.mubr.bf16.gmra.mxu0 %v5710
      %v6515 = vpop.f32.mrf.mxu0
      %v6516 = vadd.f32 %v6403, %v6515
      %v6517 = vpop.f32.mrf.mxu0
      %v6518 = vadd.f32 %v6405, %v6517
      %v6519 = vpop.f32.mrf.mxu0
      %v6520 = vadd.f32 %v6407, %v6519
      %v6521 = vpop.f32.mrf.mxu0
      %v6522 = vadd.f32 %v6409, %v6521
      %6523 = vmatprep.mubr.bf16.mxu0 %v5717
      %6524 = vmatmul.mubr.bf16.gmra.mxu0 %v5716
      %v6525 = vpop.f32.mrf.mxu0
      %v6526 = vadd.f32 %v6413, %v6525
      %v6527 = vpop.f32.mrf.mxu0
      %v6528 = vadd.f32 %v6415, %v6527
      %v6529 = vpop.f32.mrf.mxu0
      %v6530 = vadd.f32 %v6417, %v6529
      %v6531 = vpop.f32.mrf.mxu0
      %v6532 = vadd.f32 %v6419, %v6531
      %6533 = vdwg.mxu0
      %6534 = vmatprep.subr.bf16.mxu0 %v6195
      %6535 = vmatpush1.bf16.msra.mxu0 %v6194
      %6536 = vmatprep.subr.bf16.mxu0 %v6193
      %6537 = vmatpush1.bf16.msra.mxu0 %v6192
      %6538 = vmatprep.subr.bf16.mxu0 %v6191
      %6539 = vmatpush1.bf16.msra.mxu0 %v6190
      %6540 = vmatprep.subr.bf16.mxu0 %v6189
      %6541 = vmatpush1.bf16.msra.mxu0 %v6188
      %6542 = vmatprep.subr.bf16.mxu0 %v6187
      %6543 = vmatpush1.bf16.msra.mxu0 %v6186
      %6544 = vmatprep.subr.bf16.mxu0 %v6185
      %6545 = vmatpush1.bf16.msra.mxu0 %v6184
      %6546 = vmatprep.subr.bf16.mxu0 %v6183
      %6547 = vmatpush1.bf16.msra.mxu0 %v6182
      %6548 = vmatprep.subr.bf16.mxu0 %v6181
      %6549 = vmatpush1.bf16.msra.mxu0 %v6180
      %6550 = vmatprep.subr.bf16.mxu0 %v6211
      %6551 = vmatpush2.bf16.msra.mxu0 %v6210
      %6552 = vmatprep.subr.bf16.mxu0 %v6209
      %6553 = vmatpush2.bf16.msra.mxu0 %v6208
      %6554 = vmatprep.subr.bf16.mxu0 %v6207
      %6555 = vmatpush2.bf16.msra.mxu0 %v6206
      %6556 = vmatprep.subr.bf16.mxu0 %v6205
      %6557 = vmatpush2.bf16.msra.mxu0 %v6204
      %6558 = vmatprep.subr.bf16.mxu0 %v6203
      %6559 = vmatpush2.bf16.msra.mxu0 %v6202
      %6560 = vmatprep.subr.bf16.mxu0 %v6201
      %6561 = vmatpush2.bf16.msra.mxu0 %v6200
      %6562 = vmatprep.subr.bf16.mxu0 %v6199
      %6563 = vmatpush2.bf16.msra.mxu0 %v6198
      %6564 = vmatprep.subr.bf16.mxu0 %v6197
      %6565 = vmatpush2.bf16.msra.mxu0 %v6196
      %6566 = vmatprep.mubr.bf16.mxu0 %v5677
      %6567 = vmatmul.mubr.bf16.gmra.mxu0 %v5676
      %v6568 = vpop.f32.mrf.mxu0
      %v6569 = vadd.f32 %v6456, %v6568
      %v6570 = vpop.f32.mrf.mxu0
      %v6571 = vadd.f32 %v6458, %v6570
      %v6572 = vpop.f32.mrf.mxu0
      %v6573 = vadd.f32 %v6460, %v6572
      %v6574 = vpop.f32.mrf.mxu0
      %v6575 = vadd.f32 %v6462, %v6574
      %6576 = vmatprep.mubr.bf16.mxu0 %v5683
      %6577 = vmatmul.mubr.bf16.gmra.mxu0 %v5682
      %v6578 = vpop.f32.mrf.mxu0
      %v6579 = vadd.f32 %v6466, %v6578
      %v6580 = vpop.f32.mrf.mxu0
      %v6581 = vadd.f32 %v6468, %v6580
      %v6582 = vpop.f32.mrf.mxu0
      %v6583 = vadd.f32 %v6470, %v6582
      %v6584 = vpop.f32.mrf.mxu0
      %v6585 = vadd.f32 %v6472, %v6584
      %6586 = vmatprep.mubr.bf16.mxu0 %v5689
      %6587 = vmatmul.mubr.bf16.gmra.mxu0 %v5688
      %v6588 = vpop.f32.mrf.mxu0
      %v6589 = vadd.f32 %v6476, %v6588
      %v6590 = vpop.f32.mrf.mxu0
      %v6591 = vadd.f32 %v6478, %v6590
      %v6592 = vpop.f32.mrf.mxu0
      %v6593 = vadd.f32 %v6480, %v6592
      %v6594 = vpop.f32.mrf.mxu0
      %v6595 = vadd.f32 %v6482, %v6594
      %6596 = vmatprep.mubr.bf16.mxu0 %v5695
      %6597 = vmatmul.mubr.bf16.gmra.mxu0 %v5694
      %v6598 = vpop.f32.mrf.mxu0
      %v6599 = vadd.f32 %v6486, %v6598
      %v6600 = vpop.f32.mrf.mxu0
      %v6601 = vadd.f32 %v6488, %v6600
      %v6602 = vpop.f32.mrf.mxu0
      %v6603 = vadd.f32 %v6490, %v6602
      %v6604 = vpop.f32.mrf.mxu0
      %v6605 = vadd.f32 %v6492, %v6604
      %6606 = vmatprep.mubr.bf16.mxu0 %v5701
      %6607 = vmatmul.mubr.bf16.gmra.mxu0 %v5700
      %v6608 = vpop.f32.mrf.mxu0
      %v6609 = vadd.f32 %v6496, %v6608
      %v6610 = vpop.f32.mrf.mxu0
      %v6611 = vadd.f32 %v6498, %v6610
      %v6612 = vpop.f32.mrf.mxu0
      %v6613 = vadd.f32 %v6500, %v6612
      %v6614 = vpop.f32.mrf.mxu0
      %v6615 = vadd.f32 %v6502, %v6614
      %6616 = vmatprep.mubr.bf16.mxu0 %v5707
      %6617 = vmatmul.mubr.bf16.gmra.mxu0 %v5706
      %v6618 = vpop.f32.mrf.mxu0
      %v6619 = vadd.f32 %v6506, %v6618
      %v6620 = vpop.f32.mrf.mxu0
      %v6621 = vadd.f32 %v6508, %v6620
      %v6622 = vpop.f32.mrf.mxu0
      %v6623 = vadd.f32 %v6510, %v6622
      %v6624 = vpop.f32.mrf.mxu0
      %v6625 = vadd.f32 %v6512, %v6624
      %6626 = vmatprep.mubr.bf16.mxu0 %v5713
      %6627 = vmatmul.mubr.bf16.gmra.mxu0 %v5712
      %v6628 = vpop.f32.mrf.mxu0
      %v6629 = vadd.f32 %v6516, %v6628
      %v6630 = vpop.f32.mrf.mxu0
      %v6631 = vadd.f32 %v6518, %v6630
      %v6632 = vpop.f32.mrf.mxu0
      %v6633 = vadd.f32 %v6520, %v6632
      %v6634 = vpop.f32.mrf.mxu0
      %v6635 = vadd.f32 %v6522, %v6634
      %6636 = vmatprep.mubr.bf16.mxu0 %v5719
      %6637 = vmatmul.mubr.bf16.gmra.mxu0 %v5718
      %v6638 = vpop.f32.mrf.mxu0
      %v6639 = vadd.f32 %v6526, %v6638
      %v6640 = vpop.f32.mrf.mxu0
      %v6641 = vadd.f32 %v6528, %v6640
      %v6642 = vpop.f32.mrf.mxu0
      %v6643 = vadd.f32 %v6530, %v6642
      %v6644 = vpop.f32.mrf.mxu0
      %v6645 = vadd.f32 %v6532, %v6644
      %6646 = vdwg.mxu0
      %v6647 = vadd.f32 %v4325, %v6569
      %v6648 = vadd.f32 %v4326, %v6571
      %v6649 = vadd.f32 %v4327, %v6573
      %v6650 = vadd.f32 %v4328, %v6575
      %v6651 = vadd.f32 %v4329, %v6579
      %v6652 = vadd.f32 %v4330, %v6581
      %v6653 = vadd.f32 %v4331, %v6583
      %v6654 = vadd.f32 %v4332, %v6585
      %v6655 = vadd.f32 %v4333, %v6589
      %v6656 = vadd.f32 %v4334, %v6591
      %v6657 = vadd.f32 %v4335, %v6593
      %v6658 = vadd.f32 %v4336, %v6595
      %v6659 = vadd.f32 %v4337, %v6599
      %v6660 = vadd.f32 %v4338, %v6601
      %v6661 = vadd.f32 %v4339, %v6603
      %v6662 = vadd.f32 %v4340, %v6605
      %v6663 = vadd.f32 %v4341, %v6609
      %v6664 = vadd.f32 %v4342, %v6611
      %v6665 = vadd.f32 %v4343, %v6613
      %v6666 = vadd.f32 %v4344, %v6615
      %v6667 = vadd.f32 %v4345, %v6619
      %v6668 = vadd.f32 %v4346, %v6621
      %v6669 = vadd.f32 %v4347, %v6623
      %v6670 = vadd.f32 %v4348, %v6625
      %v6671 = vadd.f32 %v4349, %v6629
      %v6672 = vadd.f32 %v4350, %v6631
      %v6673 = vadd.f32 %v4351, %v6633
      %v6674 = vadd.f32 %v4352, %v6635
      %v6675 = vadd.f32 %v4353, %v6639
      %v6676 = vadd.f32 %v4354, %v6641
      %v6677 = vadd.f32 %v4355, %v6643
      %v6678 = vadd.f32 %v4356, %v6645
      %6679 = vst [vmem:[%s413] sm:$0xff] %v6647
      %6680 = vst.msk [vmem:[%s413 + $0x8] sm:$0xff] %vm449, %v6648
      %6681 = vst [vmem:[%s413 + $0x10] sm:$0xff] %v6649
      %6682 = vst.msk [vmem:[%s413 + $0x18] sm:$0xff] %vm449, %v6650
      %6683 = vst [vmem:[%s413 + $0x20] sm:$0xff] %v6651
      %6684 = vst.msk [vmem:[%s413 + $0x28] sm:$0xff] %vm449, %v6652
      %6685 = vst [vmem:[%s413 + $0x30] sm:$0xff] %v6653
      %6686 = vst.msk [vmem:[%s413 + $0x38] sm:$0xff] %vm449, %v6654
      %6687 = vst [vmem:[%s413 + $0x40] sm:$0xff] %v6655
      %6688 = vst.msk [vmem:[%s413 + $0x48] sm:$0xff] %vm449, %v6656
      %6689 = vst [vmem:[%s413 + $0x50] sm:$0xff] %v6657
      %6690 = vst.msk [vmem:[%s413 + $0x58] sm:$0xff] %vm449, %v6658
      %6691 = vst [vmem:[%s413 + $0x60] sm:$0xff] %v6659
      %6692 = vst.msk [vmem:[%s413 + $0x68] sm:$0xff] %vm449, %v6660
      %6693 = vst [vmem:[%s413 + $0x70] sm:$0xff] %v6661
      %6694 = vst.msk [vmem:[%s413 + $0x78] sm:$0xff] %vm449, %v6662
      %6695 = vst [vmem:[%s413 + $0x80] sm:$0xff] %v6663
      %6696 = vst.msk [vmem:[%s413 + $0x88] sm:$0xff] %vm449, %v6664
      %6697 = vst [vmem:[%s413 + $0x90] sm:$0xff] %v6665
      %6698 = vst.msk [vmem:[%s413 + $0x98] sm:$0xff] %vm449, %v6666
      %6699 = vst [vmem:[%s413 + $0xa0] sm:$0xff] %v6667
      %6700 = vst.msk [vmem:[%s413 + $0xa8] sm:$0xff] %vm449, %v6668
      %6701 = vst [vmem:[%s413 + $0xb0] sm:$0xff] %v6669
      %6702 = vst.msk [vmem:[%s413 + $0xb8] sm:$0xff] %vm449, %v6670
      %6703 = vst [vmem:[%s413 + $0xc0] sm:$0xff] %v6671
      %6704 = vst.msk [vmem:[%s413 + $0xc8] sm:$0xff] %vm449, %v6672
      %6705 = vst [vmem:[%s413 + $0xd0] sm:$0xff] %v6673
      %6706 = vst.msk [vmem:[%s413 + $0xd8] sm:$0xff] %vm449, %v6674
      %6707 = vst [vmem:[%s413 + $0xe0] sm:$0xff] %v6675
      %6708 = vst.msk [vmem:[%s413 + $0xe8] sm:$0xff] %vm449, %v6676
      %6709 = vst [vmem:[%s413 + $0xf0] sm:$0xff] %v6677
      %6710 = vst.msk [vmem:[%s413 + $0xf8] sm:$0xff] %vm449, %v6678
      %p6711 = scmp.lt.s32.totalorder %s23, 1
      %s6712 = scalar_select %p6711, %s23, 1
      %s6713 = smul.addr %s6712, 32
      %s6714 = smul.addr %s6713, 8
      %s6715 = scalar_lea.vmem %s12, %s6714
      // Predicated region
      $region69: #{tpu_custom_call.1} parent=67 // pred_check
        %p6716 = pneg %p298
      $region70: #{tpu_custom_call.1} parent=67 // pred_check_branch
        %6718 = sbr.rel (%p6716) target = $region72
      $region71: #{tpu_custom_call.1} parent=67 // pred_region
        _
      $region72: #{tpu_custom_call.1} parent=67 // pred_fallthru
        _
    $region68: #{tpu_custom_call.1} parent=5 // pred_fallthru
      _
    %p6719 = scmp.le.s32.totalorder 2, %s18
    // Predicated region
    $region73: #{tpu_custom_call.1} parent=5 // pred_check
      %p6720 = pneg %p6719
    $region74: #{tpu_custom_call.1} parent=5 // pred_check_branch
      %6722 = sbr.rel (%p6720) target = $region76
    $region75: #{tpu_custom_call.1} parent=5 // pred_region
      %s6723 = ssub.s32 %s18, 2
      // Predicated region
      $region77: #{tpu_custom_call.1} parent=75 // pred_check
        %p6724 = pneg %p304
      $region78: #{tpu_custom_call.1} parent=75 // pred_check_branch
        %6726 = sbr.rel (%p6724) target = $region80
      $region79: #{tpu_custom_call.1} parent=75 // pred_region
        %p6727 = scmp.lt.s32.totalorder %s24, 1
        %s6728 = scalar_select %p6727, %s24, 1
        %s6729 = smul.addr %s6728, 32
        %s6730 = smul.addr %s6729, 8
        %s6731 = scalar_lea.vmem %s12, %s6730
      $region80: #{tpu_custom_call.1} parent=75 // pred_fallthru
        _
    $region76: #{tpu_custom_call.1} parent=5 // pred_fallthru
      _
  $region6: #{tpu_custom_call.1} parent=0 // loop_footer
    %s22 = sadd.s32 1, %s18
  $region7: #{tpu_custom_call.1} parent=0 // loop_footer_branch
    %17 = sbr.rel target = $region3
  $region8: #{tpu_custom_call.1} parent=0 // loop_exit
    _

</llo_original>
